<compile_context>
chip_gen: v7x
topology: tpu7x:2x2x1
jax: 0.10.0
libtpu: 0.0.40
codegen_flags: <defaults>
</compile_context>

<pallas_src>
import functools

import jax
import jax.numpy as jnp
import numpy as np
from jax.experimental import pallas as pl
from jax.experimental.pallas import tpu as pltpu


def _assp_kernel(dilations, H, W, P,
                 x_ref, w1_ref, w2_ref, w3_ref, w4_ref, wp_ref,
                 wc_main_ref, wc_pool_ref, bn_s_ref, bn_b_ref,
                 out_ref, xpad_scr, slab_scr, cat_scr):
    """One batch element per grid step.

    x_ref    : (H, W, Cin) bf16 (unpadded)
    w2..4    : (9*Cin, Cm) bf16  (3x3 kernel flattened kh-major, kw, cin)
    xpad_scr : (H+2P, W+2P, Cin) bf16 VMEM scratch (zero halo built on-chip)
    slab_scr : (H*W, 9*Cin) bf16 im2col scratch
    cat_scr  : (H*W, 4*Cm)  bf16 conv1-input concat scratch
    """
    Cm = out_ref.shape[-1]
    Cin = x_ref.shape[-1]
    HW = H * W
    cdt = x_ref.dtype

    # Build the zero halo in VMEM instead of DMA-ing a padded array from HBM.
    xpad_scr[...] = jnp.zeros_like(xpad_scr)
    xval = x_ref[...]                                    # (H, W, Cin)
    xpad_scr[P:P + H, P:P + W, :] = xval

    x_center = xval.reshape(HW, Cin)                     # (HW, Cin) bf16

    bn_s = bn_s_ref[...]                                 # (6, Cm) f32
    bn_b = bn_b_ref[...]

    def mm(a, b):
        # bf16 x bf16 -> f32 accumulate, single-pass MXU.
        return jnp.dot(a, b, preferred_element_type=jnp.float32)

    def bn_relu(y, idx):
        return jnp.maximum(y * bn_s[idx:idx + 1, :] + bn_b[idx:idx + 1, :], 0.0)

    # --- aspp1: 1x1 conv + BN + ReLU -> lanes [0, Cm) of the conv1 input ---
    cat_scr[:, 0:Cm] = bn_relu(mm(x_center, w1_ref[...]), 0).astype(cdt)

    # --- aspp2-4: dilated 3x3 conv as ONE im2col matmul per branch ---
    def dilated_branch(w_ref, d, idx):
        for kh in range(3):
            for kw in range(3):
                oh = P + (kh - 1) * d                    # static offsets
                ow = P + (kw - 1) * d
                t = kh * 3 + kw
                slab_scr[:, t * Cin:(t + 1) * Cin] = (
                    xpad_scr[oh:oh + H, ow:ow + W, :].reshape(HW, Cin))
        b = bn_relu(mm(slab_scr[...], w_ref[...]), idx)  # (HW, Cm) f32
        cat_scr[:, idx * Cm:(idx + 1) * Cm] = b.astype(cdt)

    dilated_branch(w2_ref, dilations[1], 1)
    dilated_branch(w3_ref, dilations[2], 2)
    dilated_branch(w4_ref, dilations[3], 3)

    # --- global-average-pool branch (rank-1): fold into a (1, Cm) bias row ---
    # Bilinear upsample of a (1,1) map with align_corners=True is a broadcast,
    # so its conv1 contribution is one row added to every pixel (no big matmul).
    pooled = jnp.mean(x_center.astype(jnp.float32), axis=0, keepdims=True)
    row5 = bn_relu(mm(pooled.astype(cdt), wp_ref[...]), 4)       # (1, Cm)
    pool_bias = mm(row5.astype(cdt), wc_pool_ref[...])           # (1, Cm)

    # --- conv1 over the channel concat + bn1 + relu ---
    y = mm(cat_scr[...], wc_main_ref[...]) + pool_bias           # (HW, Cm)
    y = bn_relu(y, 5)
    # TODO(synk): Dropout(0.3) and train-mode BatchNorm batch statistics use
    # inference semantics here (dropout = identity, BN uses running stats).
    out_ref[...] = y.reshape(H, W, Cm).astype(out_ref.dtype)


def assp_forward(x_nchw, params, dilations, compute_dtype=jnp.bfloat16):
    """x_nchw: (N, Cin, H, W) float32 -> (N, Cm, H, W) float32."""
    N, Cin, H, W = x_nchw.shape
    Cm = params["w1"].shape[-1]
    P = max(dilations)
    Hp, Wp = H + 2 * P, W + 2 * P
    HW = H * W
    cdt = compute_dtype

    x = jnp.transpose(x_nchw, (0, 2, 3, 1)).astype(cdt)          # NHWC, bf16

    w1 = params["w1"].astype(cdt)                                # (Cin, Cm)
    w2 = params["w2"].reshape(9 * Cin, Cm).astype(cdt)           # (9*Cin, Cm)
    w3 = params["w3"].reshape(9 * Cin, Cm).astype(cdt)
    w4 = params["w4"].reshape(9 * Cin, Cm).astype(cdt)
    wp = params["wp"].astype(cdt)                                # (Cin, Cm)
    wc_main = params["wc"][:4 * Cm].astype(cdt)                  # (4*Cm, Cm)
    wc_pool = params["wc"][4 * Cm:].astype(cdt)                  # (Cm, Cm)
    bn_s = params["bn_scale"].astype(jnp.float32)                # (6, Cm)
    bn_b = params["bn_bias"].astype(jnp.float32)

    kern = functools.partial(_assp_kernel, tuple(dilations), H, W, P)

    def whole(arr):
        # Grid-invariant 2-D operand: constant index_map, so the pipeline
        # DMAs it once and reuses the resident block across the N grid.
        # TODO(synk): at production channel counts, single-buffer these
        # (pl.Buffered(1)) and add a Cin-reduction / row-tile grid axis so the
        # blocks fit v7x's 64 MiB VMEM.
        return pl.BlockSpec(arr.shape, lambda n: (0, 0))

    out_nhwc = pl.pallas_call(
        kern,
        out_shape=jax.ShapeDtypeStruct((N, H, W, Cm), jnp.float32),
        grid_spec=pltpu.PrefetchScalarGridSpec(
            num_scalar_prefetch=0,
            grid=(N,),
            in_specs=[
                pl.BlockSpec((pl.Squeezed(), H, W, Cin),
                             lambda n: (n, 0, 0, 0)),
                whole(w1), whole(w2), whole(w3), whole(w4), whole(wp),
                whole(wc_main), whole(wc_pool), whole(bn_s), whole(bn_b),
            ],
            out_specs=pl.BlockSpec((pl.Squeezed(), H, W, Cm),
                                   lambda n: (n, 0, 0, 0)),
            scratch_shapes=[
                pltpu.VMEM((Hp, Wp, Cin), cdt),      # zero-halo input copy
                pltpu.VMEM((HW, 9 * Cin), cdt),      # im2col slab
                pltpu.VMEM((HW, 4 * Cm), cdt),       # conv1 concat input
            ],
        ),
        compiler_params=pltpu.CompilerParams(
            dimension_semantics=("parallel",)),
    )(x, w1, w2, w3, w4, wp, wc_main, wc_pool, bn_s, bn_b)

    return jnp.transpose(out_nhwc, (0, 3, 1, 2))                 # back to NCHW


def init_params(key, in_channels, mid_channel):
    """Deterministic synthetic init mirroring initialize_weights():
    kaiming-normal (fan_in, relu gain) convs; BN gamma=1, beta=1e-4."""
    Cin, Cm = in_channels, mid_channel
    ks = jax.random.split(key, 6)

    def kaiming(k, shape, fan_in):
        std = (2.0 / fan_in) ** 0.5
        return (std * jax.random.normal(k, shape)).astype(jnp.float32)

    params = dict(
        w1=kaiming(ks[0], (Cin, Cm), Cin),            # aspp1 1x1 conv
        w2=kaiming(ks[1], (3, 3, Cin, Cm), 9 * Cin),  # aspp2 3x3 (kh,kw,Cin,Cm)
        w3=kaiming(ks[2], (3, 3, Cin, Cm), 9 * Cin),
        w4=kaiming(ks[3], (3, 3, Cin, Cm), 9 * Cin),
        wp=kaiming(ks[4], (Cin, Cm), Cin),            # pool-branch 1x1 conv
        wc=kaiming(ks[5], (5 * Cm, Cm), 5 * Cm),      # conv1 on concat
    )
    eps = 1e-5
    scale = 1.0 / np.sqrt(1.0 + eps)                  # gamma / sqrt(var + eps)
    bias = 1e-4                                       # beta - mean * scale
    params["bn_scale"] = jnp.full((6, Cm), scale, jnp.float32)
    params["bn_bias"] = jnp.full((6, Cm), bias, jnp.float32)
    return params


def ref_forward(x, params, dilations):
    """Pure-JAX (XLA) reference in NCHW, inference-mode semantics."""
    def bn_relu(y, idx):
        s = params["bn_scale"][idx][None, :, None, None]
        b = params["bn_bias"][idx][None, :, None, None]
        return jnp.maximum(y * s + b, 0.0)

    def conv3x3(x, w_hwio, d):
        w = jnp.transpose(w_hwio, (3, 2, 0, 1))       # OIHW
        return jax.lax.conv_general_dilated(
            x, w, (1, 1), [(d, d), (d, d)], rhs_dilation=(d, d),
            dimension_numbers=("NCHW", "OIHW", "NCHW"))

    def conv1x1(x, w_io):
        w = w_io.T[:, :, None, None]                  # (Cout, Cin, 1, 1)
        return jax.lax.conv_general_dilated(
            x, w, (1, 1), [(0, 0), (0, 0)],
            dimension_numbers=("NCHW", "OIHW", "NCHW"))

    x1 = bn_relu(conv1x1(x, params["w1"]), 0)
    x2 = bn_relu(conv3x3(x, params["w2"], dilations[1]), 1)
    x3 = bn_relu(conv3x3(x, params["w3"], dilations[2]), 2)
    x4 = bn_relu(conv3x3(x, params["w4"], dilations[3]), 3)
    pooled = jnp.mean(x, axis=(2, 3), keepdims=True)
    x5 = jnp.broadcast_to(bn_relu(conv1x1(pooled, params["wp"]), 4), x1.shape)
    cat = jnp.concatenate([x1, x2, x3, x4, x5], axis=1)
    return bn_relu(conv1x1(cat, params["wc"]), 5)


if __name__ == "__main__":
    key = jax.random.PRNGKey(0)
    kx, kp = jax.random.split(key)

    N, Cin, H, W = 2, 4, 16, 16
    Cm = 32
    dilations = (1, 6, 12, 18)   # output_stride == 16

    x = jax.random.normal(kx, (N, Cin, H, W), jnp.float32)
    params = init_params(kp, Cin, Cm)

    out = jax.block_until_ready(assp_forward(x, params, dilations))
    assert out.shape == (N, Cm, H, W) and out.dtype == jnp.float32

    ref = jax.block_until_ready(ref_forward(x, params, dilations))
    # Kernel runs bf16 operands / f32 accumulation on the MXU; tolerance is
    # loosened accordingly vs the XLA reference.
    np.testing.assert_allclose(np.asarray(out), np.asarray(ref),
                               rtol=2e-2, atol=3e-2)
    print("KERNEL_OK")
</pallas_src>

<mosaic_0001>
module attributes {stable_mosaic.version = 11 : i64} {
  func.func @_assp_kernel(%arg0: i32, %arg1: memref<1x16x16x4xbf16, #tpu.memory_space<vmem>>, %arg2: memref<4x32xbf16, #tpu.memory_space<vmem>>, %arg3: memref<36x32xbf16, #tpu.memory_space<vmem>>, %arg4: memref<36x32xbf16, #tpu.memory_space<vmem>>, %arg5: memref<36x32xbf16, #tpu.memory_space<vmem>>, %arg6: memref<4x32xbf16, #tpu.memory_space<vmem>>, %arg7: memref<128x32xbf16, #tpu.memory_space<vmem>>, %arg8: memref<32x32xbf16, #tpu.memory_space<vmem>>, %arg9: memref<6x32xf32, #tpu.memory_space<vmem>>, %arg10: memref<6x32xf32, #tpu.memory_space<vmem>>, %arg11: memref<1x16x16x32xf32, #tpu.memory_space<vmem>>, %arg12: memref<52x52x4xbf16, #tpu.memory_space<vmem>>, %arg13: memref<256x36xbf16, #tpu.memory_space<vmem>>, %arg14: memref<256x128xbf16, #tpu.memory_space<vmem>>) attributes {dimension_semantics = [#tpu.dimension_semantics<parallel>], iteration_bounds = array<i64: 2>, scalar_prefetch = 0 : i64, scratch_operands = 3 : i64, tpu.core_type = #tpu.core_type<tc>, window_params = [{transform_indices = @transform_0, window_bounds = array<i64: 1, 16, 16, 4>}, {pipeline_mode = #tpu.pipeline_mode<synchronous>, transform_indices = @transform_1, window_bounds = array<i64: 4, 32>}, {pipeline_mode = #tpu.pipeline_mode<synchronous>, transform_indices = @transform_2, window_bounds = array<i64: 36, 32>}, {pipeline_mode = #tpu.pipeline_mode<synchronous>, transform_indices = @transform_3, window_bounds = array<i64: 36, 32>}, {pipeline_mode = #tpu.pipeline_mode<synchronous>, transform_indices = @transform_4, window_bounds = array<i64: 36, 32>}, {pipeline_mode = #tpu.pipeline_mode<synchronous>, transform_indices = @transform_5, window_bounds = array<i64: 4, 32>}, {pipeline_mode = #tpu.pipeline_mode<synchronous>, transform_indices = @transform_6, window_bounds = array<i64: 128, 32>}, {pipeline_mode = #tpu.pipeline_mode<synchronous>, transform_indices = @transform_7, window_bounds = array<i64: 32, 32>}, {pipeline_mode = #tpu.pipeline_mode<synchronous>, transform_indices = @transform_8, window_bounds = array<i64: 6, 32>}, {pipeline_mode = #tpu.pipeline_mode<synchronous>, transform_indices = @transform_9, window_bounds = array<i64: 6, 32>}, {transform_indices = @transform_10, window_bounds = array<i64: 1, 16, 16, 32>}]} {
    %cst = arith.constant 0.000000e+00 : bf16
    %0 = vector.broadcast %cst : bf16 to vector<52x52x4xbf16>
    %c0 = arith.constant 0 : index
    %c0_0 = arith.constant 0 : index
    %c0_1 = arith.constant 0 : index
    %1 = vector.load %arg12[%c0, %c0_0, %c0_1] : memref<52x52x4xbf16, #tpu.memory_space<vmem>>, vector<52x52x4xbf16>
    tpu.vector_store %arg12[%c0, %c0_0, %c0_1], %0 {strides = array<i32>} : memref<52x52x4xbf16, #tpu.memory_space<vmem>>, vector<52x52x4xbf16>,
    %c0_2 = arith.constant 0 : index
    %c0_3 = arith.constant 0 : index
    %c0_4 = arith.constant 0 : index
    %c0_5 = arith.constant 0 : index
    %2 = vector.load %arg1[%c0_2, %c0_3, %c0_4, %c0_5] : memref<1x16x16x4xbf16, #tpu.memory_space<vmem>>, vector<1x16x16x4xbf16>
    %3 = vector.shape_cast %2 : vector<1x16x16x4xbf16> to vector<16x16x4xbf16>
    %c18 = arith.constant 18 : index
    %c18_6 = arith.constant 18 : index
    %c0_7 = arith.constant 0 : index
    %4 = vector.load %arg12[%c18, %c18_6, %c0_7] : memref<52x52x4xbf16, #tpu.memory_space<vmem>>, vector<16x16x4xbf16>
    tpu.vector_store %arg12[%c18, %c18_6, %c0_7], %3 {strides = array<i32>} : memref<52x52x4xbf16, #tpu.memory_space<vmem>>, vector<16x16x4xbf16>,
    %5 = vector.shape_cast %3 : vector<16x16x4xbf16> to vector<256x4xbf16>
    %c0_8 = arith.constant 0 : index
    %c0_9 = arith.constant 0 : index
    %6 = vector.load %arg9[%c0_8, %c0_9] : memref<6x32xf32, #tpu.memory_space<vmem>>, vector<6x32xf32>
    %c0_10 = arith.constant 0 : index
    %c0_11 = arith.constant 0 : index
    %7 = vector.load %arg10[%c0_10, %c0_11] : memref<6x32xf32, #tpu.memory_space<vmem>>, vector<6x32xf32>
    %c0_12 = arith.constant 0 : index
    %c0_13 = arith.constant 0 : index
    %8 = vector.load %arg2[%c0_12, %c0_13] : memref<4x32xbf16, #tpu.memory_space<vmem>>, vector<4x32xbf16>
    %cst_14 = arith.constant dense<0.000000e+00> : vector<256x32xf32>
    %9 = tpu.matmul %5, %8, %cst_14 {dimension_numbers = #tpu.dot_dimension_numbers<[1], [0], [0], [1], [0, 0, 1, 1], [], []>} : vector<256x4xbf16>, vector<4x32xbf16>, vector<256x32xf32> -> vector<256x32xf32>
    %10 = vector.extract_strided_slice %6 {offsets = [0, 0], sizes = [1, 32], strides = [1, 1]} : vector<6x32xf32> to vector<1x32xf32>
    %11 = vector.broadcast %10 : vector<1x32xf32> to vector<256x32xf32>
    %12 = arith.mulf %9, %11 : vector<256x32xf32>
    %13 = vector.extract_strided_slice %7 {offsets = [0, 0], sizes = [1, 32], strides = [1, 1]} : vector<6x32xf32> to vector<1x32xf32>
    %14 = vector.broadcast %13 : vector<1x32xf32> to vector<256x32xf32>
    %15 = arith.addf %12, %14 : vector<256x32xf32>
    %cst_15 = arith.constant 0.000000e+00 : f32
    %16 = vector.broadcast %cst_15 : f32 to vector<256x32xf32>
    %17 = arith.maximumf %15, %16 : vector<256x32xf32>
    %18 = arith.truncf %17 : vector<256x32xf32> to vector<256x32xbf16>
    %c0_16 = arith.constant 0 : index
    %c0_17 = arith.constant 0 : index
    %19 = vector.load %arg14[%c0_16, %c0_17] : memref<256x128xbf16, #tpu.memory_space<vmem>>, vector<256x32xbf16>
    tpu.vector_store %arg14[%c0_16, %c0_17], %18 {strides = array<i32>} : memref<256x128xbf16, #tpu.memory_space<vmem>>, vector<256x32xbf16>,
    %c12 = arith.constant 12 : index
    %c12_18 = arith.constant 12 : index
    %c0_19 = arith.constant 0 : index
    %20 = vector.load %arg12[%c12, %c12_18, %c0_19] : memref<52x52x4xbf16, #tpu.memory_space<vmem>>, vector<16x16x4xbf16>
    %21 = vector.shape_cast %20 : vector<16x16x4xbf16> to vector<256x4xbf16>
    %c0_20 = arith.constant 0 : index
    %c0_21 = arith.constant 0 : index
    %22 = vector.load %arg13[%c0_20, %c0_21] : memref<256x36xbf16, #tpu.memory_space<vmem>>, vector<256x4xbf16>
    tpu.vector_store %arg13[%c0_20, %c0_21], %21 {strides = array<i32>} : memref<256x36xbf16, #tpu.memory_space<vmem>>, vector<256x4xbf16>,
    %c12_22 = arith.constant 12 : index
    %c18_23 = arith.constant 18 : index
    %c0_24 = arith.constant 0 : index
    %23 = vector.load %arg12[%c12_22, %c18_23, %c0_24] : memref<52x52x4xbf16, #tpu.memory_space<vmem>>, vector<16x16x4xbf16>
    %24 = vector.shape_cast %23 : vector<16x16x4xbf16> to vector<256x4xbf16>
    %c0_25 = arith.constant 0 : index
    %c4 = arith.constant 4 : index
    %25 = vector.load %arg13[%c0_25, %c4] : memref<256x36xbf16, #tpu.memory_space<vmem>>, vector<256x4xbf16>
    tpu.vector_store %arg13[%c0_25, %c4], %24 {strides = array<i32>} : memref<256x36xbf16, #tpu.memory_space<vmem>>, vector<256x4xbf16>,
    %c12_26 = arith.constant 12 : index
    %c24 = arith.constant 24 : index
    %c0_27 = arith.constant 0 : index
    %26 = vector.load %arg12[%c12_26, %c24, %c0_27] : memref<52x52x4xbf16, #tpu.memory_space<vmem>>, vector<16x16x4xbf16>
    %27 = vector.shape_cast %26 : vector<16x16x4xbf16> to vector<256x4xbf16>
    %c0_28 = arith.constant 0 : index
    %c8 = arith.constant 8 : index
    %28 = vector.load %arg13[%c0_28, %c8] : memref<256x36xbf16, #tpu.memory_space<vmem>>, vector<256x4xbf16>
    tpu.vector_store %arg13[%c0_28, %c8], %27 {strides = array<i32>} : memref<256x36xbf16, #tpu.memory_space<vmem>>, vector<256x4xbf16>,
    %c18_29 = arith.constant 18 : index
    %c12_30 = arith.constant 12 : index
    %c0_31 = arith.constant 0 : index
    %29 = vector.load %arg12[%c18_29, %c12_30, %c0_31] : memref<52x52x4xbf16, #tpu.memory_space<vmem>>, vector<16x16x4xbf16>
    %30 = vector.shape_cast %29 : vector<16x16x4xbf16> to vector<256x4xbf16>
    %c0_32 = arith.constant 0 : index
    %c12_33 = arith.constant 12 : index
    %31 = vector.load %arg13[%c0_32, %c12_33] : memref<256x36xbf16, #tpu.memory_space<vmem>>, vector<256x4xbf16>
    tpu.vector_store %arg13[%c0_32, %c12_33], %30 {strides = array<i32>} : memref<256x36xbf16, #tpu.memory_space<vmem>>, vector<256x4xbf16>,
    %c18_34 = arith.constant 18 : index
    %c18_35 = arith.constant 18 : index
    %c0_36 = arith.constant 0 : index
    %32 = vector.load %arg12[%c18_34, %c18_35, %c0_36] : memref<52x52x4xbf16, #tpu.memory_space<vmem>>, vector<16x16x4xbf16>
    %33 = vector.shape_cast %32 : vector<16x16x4xbf16> to vector<256x4xbf16>
    %c0_37 = arith.constant 0 : index
    %c16 = arith.constant 16 : index
    %34 = vector.load %arg13[%c0_37, %c16] : memref<256x36xbf16, #tpu.memory_space<vmem>>, vector<256x4xbf16>
    tpu.vector_store %arg13[%c0_37, %c16], %33 {strides = array<i32>} : memref<256x36xbf16, #tpu.memory_space<vmem>>, vector<256x4xbf16>,
    %c18_38 = arith.constant 18 : index
    %c24_39 = arith.constant 24 : index
    %c0_40 = arith.constant 0 : index
    %35 = vector.load %arg12[%c18_38, %c24_39, %c0_40] : memref<52x52x4xbf16, #tpu.memory_space<vmem>>, vector<16x16x4xbf16>
    %36 = vector.shape_cast %35 : vector<16x16x4xbf16> to vector<256x4xbf16>
    %c0_41 = arith.constant 0 : index
    %c20 = arith.constant 20 : index
    %37 = vector.load %arg13[%c0_41, %c20] : memref<256x36xbf16, #tpu.memory_space<vmem>>, vector<256x4xbf16>
    tpu.vector_store %arg13[%c0_41, %c20], %36 {strides = array<i32>} : memref<256x36xbf16, #tpu.memory_space<vmem>>, vector<256x4xbf16>,
    %c24_42 = arith.constant 24 : index
    %c12_43 = arith.constant 12 : index
    %c0_44 = arith.constant 0 : index
    %38 = vector.load %arg12[%c24_42, %c12_43, %c0_44] : memref<52x52x4xbf16, #tpu.memory_space<vmem>>, vector<16x16x4xbf16>
    %39 = vector.shape_cast %38 : vector<16x16x4xbf16> to vector<256x4xbf16>
    %c0_45 = arith.constant 0 : index
    %c24_46 = arith.constant 24 : index
    %40 = vector.load %arg13[%c0_45, %c24_46] : memref<256x36xbf16, #tpu.memory_space<vmem>>, vector<256x4xbf16>
    tpu.vector_store %arg13[%c0_45, %c24_46], %39 {strides = array<i32>} : memref<256x36xbf16, #tpu.memory_space<vmem>>, vector<256x4xbf16>,
    %c24_47 = arith.constant 24 : index
    %c18_48 = arith.constant 18 : index
    %c0_49 = arith.constant 0 : index
    %41 = vector.load %arg12[%c24_47, %c18_48, %c0_49] : memref<52x52x4xbf16, #tpu.memory_space<vmem>>, vector<16x16x4xbf16>
    %42 = vector.shape_cast %41 : vector<16x16x4xbf16> to vector<256x4xbf16>
    %c0_50 = arith.constant 0 : index
    %c28 = arith.constant 28 : index
    %43 = vector.load %arg13[%c0_50, %c28] : memref<256x36xbf16, #tpu.memory_space<vmem>>, vector<256x4xbf16>
    tpu.vector_store %arg13[%c0_50, %c28], %42 {strides = array<i32>} : memref<256x36xbf16, #tpu.memory_space<vmem>>, vector<256x4xbf16>,
    %c24_51 = arith.constant 24 : index
    %c24_52 = arith.constant 24 : index
    %c0_53 = arith.constant 0 : index
    %44 = vector.load %arg12[%c24_51, %c24_52, %c0_53] : memref<52x52x4xbf16, #tpu.memory_space<vmem>>, vector<16x16x4xbf16>
    %45 = vector.shape_cast %44 : vector<16x16x4xbf16> to vector<256x4xbf16>
    %c0_54 = arith.constant 0 : index
    %c32 = arith.constant 32 : index
    %46 = vector.load %arg13[%c0_54, %c32] : memref<256x36xbf16, #tpu.memory_space<vmem>>, vector<256x4xbf16>
    tpu.vector_store %arg13[%c0_54, %c32], %45 {strides = array<i32>} : memref<256x36xbf16, #tpu.memory_space<vmem>>, vector<256x4xbf16>,
    %c0_55 = arith.constant 0 : index
    %c0_56 = arith.constant 0 : index
    %47 = vector.load %arg13[%c0_55, %c0_56] : memref<256x36xbf16, #tpu.memory_space<vmem>>, vector<256x36xbf16>
    %c0_57 = arith.constant 0 : index
    %c0_58 = arith.constant 0 : index
    %48 = vector.load %arg3[%c0_57, %c0_58] : memref<36x32xbf16, #tpu.memory_space<vmem>>, vector<36x32xbf16>
    %cst_59 = arith.constant dense<0.000000e+00> : vector<256x32xf32>
    %49 = tpu.matmul %47, %48, %cst_59 {dimension_numbers = #tpu.dot_dimension_numbers<[1], [0], [0], [1], [0, 0, 1, 1], [], []>} : vector<256x36xbf16>, vector<36x32xbf16>, vector<256x32xf32> -> vector<256x32xf32>
    %50 = vector.extract_strided_slice %6 {offsets = [1, 0], sizes = [1, 32], strides = [1, 1]} : vector<6x32xf32> to vector<1x32xf32>
    %51 = vector.broadcast %50 : vector<1x32xf32> to vector<256x32xf32>
    %52 = arith.mulf %49, %51 : vector<256x32xf32>
    %53 = vector.extract_strided_slice %7 {offsets = [1, 0], sizes = [1, 32], strides = [1, 1]} : vector<6x32xf32> to vector<1x32xf32>
    %54 = vector.broadcast %53 : vector<1x32xf32> to vector<256x32xf32>
    %55 = arith.addf %52, %54 : vector<256x32xf32>
    %cst_60 = arith.constant 0.000000e+00 : f32
    %56 = vector.broadcast %cst_60 : f32 to vector<256x32xf32>
    %57 = arith.maximumf %55, %56 : vector<256x32xf32>
    %58 = arith.truncf %57 : vector<256x32xf32> to vector<256x32xbf16>
    %c0_61 = arith.constant 0 : index
    %c32_62 = arith.constant 32 : index
    %59 = vector.load %arg14[%c0_61, %c32_62] : memref<256x128xbf16, #tpu.memory_space<vmem>>, vector<256x32xbf16>
    tpu.vector_store %arg14[%c0_61, %c32_62], %58 {strides = array<i32>} : memref<256x128xbf16, #tpu.memory_space<vmem>>, vector<256x32xbf16>,
    %c6 = arith.constant 6 : index
    %c6_63 = arith.constant 6 : index
    %c0_64 = arith.constant 0 : index
    %60 = vector.load %arg12[%c6, %c6_63, %c0_64] : memref<52x52x4xbf16, #tpu.memory_space<vmem>>, vector<16x16x4xbf16>
    %61 = vector.shape_cast %60 : vector<16x16x4xbf16> to vector<256x4xbf16>
    %c0_65 = arith.constant 0 : index
    %c0_66 = arith.constant 0 : index
    %62 = vector.load %arg13[%c0_65, %c0_66] : memref<256x36xbf16, #tpu.memory_space<vmem>>, vector<256x4xbf16>
    tpu.vector_store %arg13[%c0_65, %c0_66], %61 {strides = array<i32>} : memref<256x36xbf16, #tpu.memory_space<vmem>>, vector<256x4xbf16>,
    %c6_67 = arith.constant 6 : index
    %c18_68 = arith.constant 18 : index
    %c0_69 = arith.constant 0 : index
    %63 = vector.load %arg12[%c6_67, %c18_68, %c0_69] : memref<52x52x4xbf16, #tpu.memory_space<vmem>>, vector<16x16x4xbf16>
    %64 = vector.shape_cast %63 : vector<16x16x4xbf16> to vector<256x4xbf16>
    %c0_70 = arith.constant 0 : index
    %c4_71 = arith.constant 4 : index
    %65 = vector.load %arg13[%c0_70, %c4_71] : memref<256x36xbf16, #tpu.memory_space<vmem>>, vector<256x4xbf16>
    tpu.vector_store %arg13[%c0_70, %c4_71], %64 {strides = array<i32>} : memref<256x36xbf16, #tpu.memory_space<vmem>>, vector<256x4xbf16>,
    %c6_72 = arith.constant 6 : index
    %c30 = arith.constant 30 : index
    %c0_73 = arith.constant 0 : index
    %66 = vector.load %arg12[%c6_72, %c30, %c0_73] : memref<52x52x4xbf16, #tpu.memory_space<vmem>>, vector<16x16x4xbf16>
    %67 = vector.shape_cast %66 : vector<16x16x4xbf16> to vector<256x4xbf16>
    %c0_74 = arith.constant 0 : index
    %c8_75 = arith.constant 8 : index
    %68 = vector.load %arg13[%c0_74, %c8_75] : memref<256x36xbf16, #tpu.memory_space<vmem>>, vector<256x4xbf16>
    tpu.vector_store %arg13[%c0_74, %c8_75], %67 {strides = array<i32>} : memref<256x36xbf16, #tpu.memory_space<vmem>>, vector<256x4xbf16>,
    %c18_76 = arith.constant 18 : index
    %c6_77 = arith.constant 6 : index
    %c0_78 = arith.constant 0 : index
    %69 = vector.load %arg12[%c18_76, %c6_77, %c0_78] : memref<52x52x4xbf16, #tpu.memory_space<vmem>>, vector<16x16x4xbf16>
    %70 = vector.shape_cast %69 : vector<16x16x4xbf16> to vector<256x4xbf16>
    %c0_79 = arith.constant 0 : index
    %c12_80 = arith.constant 12 : index
    %71 = vector.load %arg13[%c0_79, %c12_80] : memref<256x36xbf16, #tpu.memory_space<vmem>>, vector<256x4xbf16>
    tpu.vector_store %arg13[%c0_79, %c12_80], %70 {strides = array<i32>} : memref<256x36xbf16, #tpu.memory_space<vmem>>, vector<256x4xbf16>,
    %c18_81 = arith.constant 18 : index
    %c18_82 = arith.constant 18 : index
    %c0_83 = arith.constant 0 : index
    %72 = vector.load %arg12[%c18_81, %c18_82, %c0_83] : memref<52x52x4xbf16, #tpu.memory_space<vmem>>, vector<16x16x4xbf16>
    %73 = vector.shape_cast %72 : vector<16x16x4xbf16> to vector<256x4xbf16>
    %c0_84 = arith.constant 0 : index
    %c16_85 = arith.constant 16 : index
    %74 = vector.load %arg13[%c0_84, %c16_85] : memref<256x36xbf16, #tpu.memory_space<vmem>>, vector<256x4xbf16>
    tpu.vector_store %arg13[%c0_84, %c16_85], %73 {strides = array<i32>} : memref<256x36xbf16, #tpu.memory_space<vmem>>, vector<256x4xbf16>,
    %c18_86 = arith.constant 18 : index
    %c30_87 = arith.constant 30 : index
    %c0_88 = arith.constant 0 : index
    %75 = vector.load %arg12[%c18_86, %c30_87, %c0_88] : memref<52x52x4xbf16, #tpu.memory_space<vmem>>, vector<16x16x4xbf16>
    %76 = vector.shape_cast %75 : vector<16x16x4xbf16> to vector<256x4xbf16>
    %c0_89 = arith.constant 0 : index
    %c20_90 = arith.constant 20 : index
    %77 = vector.load %arg13[%c0_89, %c20_90] : memref<256x36xbf16, #tpu.memory_space<vmem>>, vector<256x4xbf16>
    tpu.vector_store %arg13[%c0_89, %c20_90], %76 {strides = array<i32>} : memref<256x36xbf16, #tpu.memory_space<vmem>>, vector<256x4xbf16>,
    %c30_91 = arith.constant 30 : index
    %c6_92 = arith.constant 6 : index
    %c0_93 = arith.constant 0 : index
    %78 = vector.load %arg12[%c30_91, %c6_92, %c0_93] : memref<52x52x4xbf16, #tpu.memory_space<vmem>>, vector<16x16x4xbf16>
    %79 = vector.shape_cast %78 : vector<16x16x4xbf16> to vector<256x4xbf16>
    %c0_94 = arith.constant 0 : index
    %c24_95 = arith.constant 24 : index
    %80 = vector.load %arg13[%c0_94, %c24_95] : memref<256x36xbf16, #tpu.memory_space<vmem>>, vector<256x4xbf16>
    tpu.vector_store %arg13[%c0_94, %c24_95], %79 {strides = array<i32>} : memref<256x36xbf16, #tpu.memory_space<vmem>>, vector<256x4xbf16>,
    %c30_96 = arith.constant 30 : index
    %c18_97 = arith.constant 18 : index
    %c0_98 = arith.constant 0 : index
    %81 = vector.load %arg12[%c30_96, %c18_97, %c0_98] : memref<52x52x4xbf16, #tpu.memory_space<vmem>>, vector<16x16x4xbf16>
    %82 = vector.shape_cast %81 : vector<16x16x4xbf16> to vector<256x4xbf16>
    %c0_99 = arith.constant 0 : index
    %c28_100 = arith.constant 28 : index
    %83 = vector.load %arg13[%c0_99, %c28_100] : memref<256x36xbf16, #tpu.memory_space<vmem>>, vector<256x4xbf16>
    tpu.vector_store %arg13[%c0_99, %c28_100], %82 {strides = array<i32>} : memref<256x36xbf16, #tpu.memory_space<vmem>>, vector<256x4xbf16>,
    %c30_101 = arith.constant 30 : index
    %c30_102 = arith.constant 30 : index
    %c0_103 = arith.constant 0 : index
    %84 = vector.load %arg12[%c30_101, %c30_102, %c0_103] : memref<52x52x4xbf16, #tpu.memory_space<vmem>>, vector<16x16x4xbf16>
    %85 = vector.shape_cast %84 : vector<16x16x4xbf16> to vector<256x4xbf16>
    %c0_104 = arith.constant 0 : index
    %c32_105 = arith.constant 32 : index
    %86 = vector.load %arg13[%c0_104, %c32_105] : memref<256x36xbf16, #tpu.memory_space<vmem>>, vector<256x4xbf16>
    tpu.vector_store %arg13[%c0_104, %c32_105], %85 {strides = array<i32>} : memref<256x36xbf16, #tpu.memory_space<vmem>>, vector<256x4xbf16>,
    %c0_106 = arith.constant 0 : index
    %c0_107 = arith.constant 0 : index
    %87 = vector.load %arg13[%c0_106, %c0_107] : memref<256x36xbf16, #tpu.memory_space<vmem>>, vector<256x36xbf16>
    %c0_108 = arith.constant 0 : index
    %c0_109 = arith.constant 0 : index
    %88 = vector.load %arg4[%c0_108, %c0_109] : memref<36x32xbf16, #tpu.memory_space<vmem>>, vector<36x32xbf16>
    %cst_110 = arith.constant dense<0.000000e+00> : vector<256x32xf32>
    %89 = tpu.matmul %87, %88, %cst_110 {dimension_numbers = #tpu.dot_dimension_numbers<[1], [0], [0], [1], [0, 0, 1, 1], [], []>} : vector<256x36xbf16>, vector<36x32xbf16>, vector<256x32xf32> -> vector<256x32xf32>
    %90 = vector.extract_strided_slice %6 {offsets = [2, 0], sizes = [1, 32], strides = [1, 1]} : vector<6x32xf32> to vector<1x32xf32>
    %91 = vector.broadcast %90 : vector<1x32xf32> to vector<256x32xf32>
    %92 = arith.mulf %89, %91 : vector<256x32xf32>
    %93 = vector.extract_strided_slice %7 {offsets = [2, 0], sizes = [1, 32], strides = [1, 1]} : vector<6x32xf32> to vector<1x32xf32>
    %94 = vector.broadcast %93 : vector<1x32xf32> to vector<256x32xf32>
    %95 = arith.addf %92, %94 : vector<256x32xf32>
    %cst_111 = arith.constant 0.000000e+00 : f32
    %96 = vector.broadcast %cst_111 : f32 to vector<256x32xf32>
    %97 = arith.maximumf %95, %96 : vector<256x32xf32>
    %98 = arith.truncf %97 : vector<256x32xf32> to vector<256x32xbf16>
    %c0_112 = arith.constant 0 : index
    %c64 = arith.constant 64 : index
    %99 = vector.load %arg14[%c0_112, %c64] : memref<256x128xbf16, #tpu.memory_space<vmem>>, vector<256x32xbf16>
    tpu.vector_store %arg14[%c0_112, %c64], %98 {strides = array<i32>} : memref<256x128xbf16, #tpu.memory_space<vmem>>, vector<256x32xbf16>,
    %c0_113 = arith.constant 0 : index
    %c0_114 = arith.constant 0 : index
    %c0_115 = arith.constant 0 : index
    %100 = vector.load %arg12[%c0_113, %c0_114, %c0_115] : memref<52x52x4xbf16, #tpu.memory_space<vmem>>, vector<16x16x4xbf16>
    %101 = vector.shape_cast %100 : vector<16x16x4xbf16> to vector<256x4xbf16>
    %c0_116 = arith.constant 0 : index
    %c0_117 = arith.constant 0 : index
    %102 = vector.load %arg13[%c0_116, %c0_117] : memref<256x36xbf16, #tpu.memory_space<vmem>>, vector<256x4xbf16>
    tpu.vector_store %arg13[%c0_116, %c0_117], %101 {strides = array<i32>} : memref<256x36xbf16, #tpu.memory_space<vmem>>, vector<256x4xbf16>,
    %c0_118 = arith.constant 0 : index
    %c18_119 = arith.constant 18 : index
    %c0_120 = arith.constant 0 : index
    %103 = vector.load %arg12[%c0_118, %c18_119, %c0_120] : memref<52x52x4xbf16, #tpu.memory_space<vmem>>, vector<16x16x4xbf16>
    %104 = vector.shape_cast %103 : vector<16x16x4xbf16> to vector<256x4xbf16>
    %c0_121 = arith.constant 0 : index
    %c4_122 = arith.constant 4 : index
    %105 = vector.load %arg13[%c0_121, %c4_122] : memref<256x36xbf16, #tpu.memory_space<vmem>>, vector<256x4xbf16>
    tpu.vector_store %arg13[%c0_121, %c4_122], %104 {strides = array<i32>} : memref<256x36xbf16, #tpu.memory_space<vmem>>, vector<256x4xbf16>,
    %c0_123 = arith.constant 0 : index
    %c36 = arith.constant 36 : index
    %c0_124 = arith.constant 0 : index
    %106 = vector.load %arg12[%c0_123, %c36, %c0_124] : memref<52x52x4xbf16, #tpu.memory_space<vmem>>, vector<16x16x4xbf16>
    %107 = vector.shape_cast %106 : vector<16x16x4xbf16> to vector<256x4xbf16>
    %c0_125 = arith.constant 0 : index
    %c8_126 = arith.constant 8 : index
    %108 = vector.load %arg13[%c0_125, %c8_126] : memref<256x36xbf16, #tpu.memory_space<vmem>>, vector<256x4xbf16>
    tpu.vector_store %arg13[%c0_125, %c8_126], %107 {strides = array<i32>} : memref<256x36xbf16, #tpu.memory_space<vmem>>, vector<256x4xbf16>,
    %c18_127 = arith.constant 18 : index
    %c0_128 = arith.constant 0 : index
    %c0_129 = arith.constant 0 : index
    %109 = vector.load %arg12[%c18_127, %c0_128, %c0_129] : memref<52x52x4xbf16, #tpu.memory_space<vmem>>, vector<16x16x4xbf16>
    %110 = vector.shape_cast %109 : vector<16x16x4xbf16> to vector<256x4xbf16>
    %c0_130 = arith.constant 0 : index
    %c12_131 = arith.constant 12 : index
    %111 = vector.load %arg13[%c0_130, %c12_131] : memref<256x36xbf16, #tpu.memory_space<vmem>>, vector<256x4xbf16>
    tpu.vector_store %arg13[%c0_130, %c12_131], %110 {strides = array<i32>} : memref<256x36xbf16, #tpu.memory_space<vmem>>, vector<256x4xbf16>,
    %c18_132 = arith.constant 18 : index
    %c18_133 = arith.constant 18 : index
    %c0_134 = arith.constant 0 : index
    %112 = vector.load %arg12[%c18_132, %c18_133, %c0_134] : memref<52x52x4xbf16, #tpu.memory_space<vmem>>, vector<16x16x4xbf16>
    %113 = vector.shape_cast %112 : vector<16x16x4xbf16> to vector<256x4xbf16>
    %c0_135 = arith.constant 0 : index
    %c16_136 = arith.constant 16 : index
    %114 = vector.load %arg13[%c0_135, %c16_136] : memref<256x36xbf16, #tpu.memory_space<vmem>>, vector<256x4xbf16>
    tpu.vector_store %arg13[%c0_135, %c16_136], %113 {strides = array<i32>} : memref<256x36xbf16, #tpu.memory_space<vmem>>, vector<256x4xbf16>,
    %c18_137 = arith.constant 18 : index
    %c36_138 = arith.constant 36 : index
    %c0_139 = arith.constant 0 : index
    %115 = vector.load %arg12[%c18_137, %c36_138, %c0_139] : memref<52x52x4xbf16, #tpu.memory_space<vmem>>, vector<16x16x4xbf16>
    %116 = vector.shape_cast %115 : vector<16x16x4xbf16> to vector<256x4xbf16>
    %c0_140 = arith.constant 0 : index
    %c20_141 = arith.constant 20 : index
    %117 = vector.load %arg13[%c0_140, %c20_141] : memref<256x36xbf16, #tpu.memory_space<vmem>>, vector<256x4xbf16>
    tpu.vector_store %arg13[%c0_140, %c20_141], %116 {strides = array<i32>} : memref<256x36xbf16, #tpu.memory_space<vmem>>, vector<256x4xbf16>,
    %c36_142 = arith.constant 36 : index
    %c0_143 = arith.constant 0 : index
    %c0_144 = arith.constant 0 : index
    %118 = vector.load %arg12[%c36_142, %c0_143, %c0_144] : memref<52x52x4xbf16, #tpu.memory_space<vmem>>, vector<16x16x4xbf16>
    %119 = vector.shape_cast %118 : vector<16x16x4xbf16> to vector<256x4xbf16>
    %c0_145 = arith.constant 0 : index
    %c24_146 = arith.constant 24 : index
    %120 = vector.load %arg13[%c0_145, %c24_146] : memref<256x36xbf16, #tpu.memory_space<vmem>>, vector<256x4xbf16>
    tpu.vector_store %arg13[%c0_145, %c24_146], %119 {strides = array<i32>} : memref<256x36xbf16, #tpu.memory_space<vmem>>, vector<256x4xbf16>,
    %c36_147 = arith.constant 36 : index
    %c18_148 = arith.constant 18 : index
    %c0_149 = arith.constant 0 : index
    %121 = vector.load %arg12[%c36_147, %c18_148, %c0_149] : memref<52x52x4xbf16, #tpu.memory_space<vmem>>, vector<16x16x4xbf16>
    %122 = vector.shape_cast %121 : vector<16x16x4xbf16> to vector<256x4xbf16>
    %c0_150 = arith.constant 0 : index
    %c28_151 = arith.constant 28 : index
    %123 = vector.load %arg13[%c0_150, %c28_151] : memref<256x36xbf16, #tpu.memory_space<vmem>>, vector<256x4xbf16>
    tpu.vector_store %arg13[%c0_150, %c28_151], %122 {strides = array<i32>} : memref<256x36xbf16, #tpu.memory_space<vmem>>, vector<256x4xbf16>,
    %c36_152 = arith.constant 36 : index
    %c36_153 = arith.constant 36 : index
    %c0_154 = arith.constant 0 : index
    %124 = vector.load %arg12[%c36_152, %c36_153, %c0_154] : memref<52x52x4xbf16, #tpu.memory_space<vmem>>, vector<16x16x4xbf16>
    %125 = vector.shape_cast %124 : vector<16x16x4xbf16> to vector<256x4xbf16>
    %c0_155 = arith.constant 0 : index
    %c32_156 = arith.constant 32 : index
    %126 = vector.load %arg13[%c0_155, %c32_156] : memref<256x36xbf16, #tpu.memory_space<vmem>>, vector<256x4xbf16>
    tpu.vector_store %arg13[%c0_155, %c32_156], %125 {strides = array<i32>} : memref<256x36xbf16, #tpu.memory_space<vmem>>, vector<256x4xbf16>,
    %c0_157 = arith.constant 0 : index
    %c0_158 = arith.constant 0 : index
    %127 = vector.load %arg13[%c0_157, %c0_158] : memref<256x36xbf16, #tpu.memory_space<vmem>>, vector<256x36xbf16>
    %c0_159 = arith.constant 0 : index
    %c0_160 = arith.constant 0 : index
    %128 = vector.load %arg5[%c0_159, %c0_160] : memref<36x32xbf16, #tpu.memory_space<vmem>>, vector<36x32xbf16>
    %cst_161 = arith.constant dense<0.000000e+00> : vector<256x32xf32>
    %129 = tpu.matmul %127, %128, %cst_161 {dimension_numbers = #tpu.dot_dimension_numbers<[1], [0], [0], [1], [0, 0, 1, 1], [], []>} : vector<256x36xbf16>, vector<36x32xbf16>, vector<256x32xf32> -> vector<256x32xf32>
    %130 = vector.extract_strided_slice %6 {offsets = [3, 0], sizes = [1, 32], strides = [1, 1]} : vector<6x32xf32> to vector<1x32xf32>
    %131 = vector.broadcast %130 : vector<1x32xf32> to vector<256x32xf32>
    %132 = arith.mulf %129, %131 : vector<256x32xf32>
    %133 = vector.extract_strided_slice %7 {offsets = [3, 0], sizes = [1, 32], strides = [1, 1]} : vector<6x32xf32> to vector<1x32xf32>
    %134 = vector.broadcast %133 : vector<1x32xf32> to vector<256x32xf32>
    %135 = arith.addf %132, %134 : vector<256x32xf32>
    %cst_162 = arith.constant 0.000000e+00 : f32
    %136 = vector.broadcast %cst_162 : f32 to vector<256x32xf32>
    %137 = arith.maximumf %135, %136 : vector<256x32xf32>
    %138 = arith.truncf %137 : vector<256x32xf32> to vector<256x32xbf16>
    %c0_163 = arith.constant 0 : index
    %c96 = arith.constant 96 : index
    %139 = vector.load %arg14[%c0_163, %c96] : memref<256x128xbf16, #tpu.memory_space<vmem>>, vector<256x32xbf16>
    tpu.vector_store %arg14[%c0_163, %c96], %138 {strides = array<i32>} : memref<256x128xbf16, #tpu.memory_space<vmem>>, vector<256x32xbf16>,
    %140 = arith.extf %5 : vector<256x4xbf16> to vector<256x4xf32>
    %cst_164 = arith.constant dense<0.000000e+00> : vector<4xf32>
    %141 = vector.multi_reduction <add>, %140, %cst_164 [0] : vector<256x4xf32> to vector<4xf32>
    %142 = vector.shape_cast %141 : vector<4xf32> to vector<1x4xf32>
    %cst_165 = arith.constant 2.560000e+02 : f32
    %143 = vector.broadcast %cst_165 : f32 to vector<1x4xf32>
    %144 = arith.divf %142, %143 : vector<1x4xf32>
    %145 = arith.truncf %144 : vector<1x4xf32> to vector<1x4xbf16>
    %c0_166 = arith.constant 0 : index
    %c0_167 = arith.constant 0 : index
    %146 = vector.load %arg6[%c0_166, %c0_167] : memref<4x32xbf16, #tpu.memory_space<vmem>>, vector<4x32xbf16>
    %cst_168 = arith.constant dense<0.000000e+00> : vector<1x32xf32>
    %147 = tpu.matmul %145, %146, %cst_168 {dimension_numbers = #tpu.dot_dimension_numbers<[1], [0], [0], [1], [0, 0, 1, 1], [], []>} : vector<1x4xbf16>, vector<4x32xbf16>, vector<1x32xf32> -> vector<1x32xf32>
    %148 = vector.extract_strided_slice %6 {offsets = [4, 0], sizes = [1, 32], strides = [1, 1]} : vector<6x32xf32> to vector<1x32xf32>
    %149 = arith.mulf %147, %148 : vector<1x32xf32>
    %150 = vector.extract_strided_slice %7 {offsets = [4, 0], sizes = [1, 32], strides = [1, 1]} : vector<6x32xf32> to vector<1x32xf32>
    %151 = arith.addf %149, %150 : vector<1x32xf32>
    %cst_169 = arith.constant 0.000000e+00 : f32
    %152 = vector.broadcast %cst_169 : f32 to vector<1x32xf32>
    %153 = arith.maximumf %151, %152 : vector<1x32xf32>
    %154 = arith.truncf %153 : vector<1x32xf32> to vector<1x32xbf16>
    %c0_170 = arith.constant 0 : index
    %c0_171 = arith.constant 0 : index
    %155 = vector.load %arg8[%c0_170, %c0_171] : memref<32x32xbf16, #tpu.memory_space<vmem>>, vector<32x32xbf16>
    %cst_172 = arith.constant dense<0.000000e+00> : vector<1x32xf32>
    %156 = tpu.matmul %154, %155, %cst_172 {dimension_numbers = #tpu.dot_dimension_numbers<[1], [0], [0], [1], [0, 0, 1, 1], [], []>} : vector<1x32xbf16>, vector<32x32xbf16>, vector<1x32xf32> -> vector<1x32xf32>
    %c0_173 = arith.constant 0 : index
    %c0_174 = arith.constant 0 : index
    %157 = vector.load %arg14[%c0_173, %c0_174] : memref<256x128xbf16, #tpu.memory_space<vmem>>, vector<256x128xbf16>
    %c0_175 = arith.constant 0 : index
    %c0_176 = arith.constant 0 : index
    %158 = vector.load %arg7[%c0_175, %c0_176] : memref<128x32xbf16, #tpu.memory_space<vmem>>, vector<128x32xbf16>
    %cst_177 = arith.constant dense<0.000000e+00> : vector<256x32xf32>
    %159 = tpu.matmul %157, %158, %cst_177 {dimension_numbers = #tpu.dot_dimension_numbers<[1], [0], [0], [1], [0, 0, 1, 1], [], []>} : vector<256x128xbf16>, vector<128x32xbf16>, vector<256x32xf32> -> vector<256x32xf32>
    %160 = vector.broadcast %156 : vector<1x32xf32> to vector<256x32xf32>
    %161 = arith.addf %159, %160 : vector<256x32xf32>
    %162 = vector.extract_strided_slice %6 {offsets = [5, 0], sizes = [1, 32], strides = [1, 1]} : vector<6x32xf32> to vector<1x32xf32>
    %163 = vector.broadcast %162 : vector<1x32xf32> to vector<256x32xf32>
    %164 = arith.mulf %161, %163 : vector<256x32xf32>
    %165 = vector.extract_strided_slice %7 {offsets = [5, 0], sizes = [1, 32], strides = [1, 1]} : vector<6x32xf32> to vector<1x32xf32>
    %166 = vector.broadcast %165 : vector<1x32xf32> to vector<256x32xf32>
    %167 = arith.addf %164, %166 : vector<256x32xf32>
    %cst_178 = arith.constant 0.000000e+00 : f32
    %168 = vector.broadcast %cst_178 : f32 to vector<256x32xf32>
    %169 = arith.maximumf %167, %168 : vector<256x32xf32>
    %170 = vector.shape_cast %169 : vector<256x32xf32> to vector<16x16x32xf32>
    %c0_179 = arith.constant 0 : index
    %c0_180 = arith.constant 0 : index
    %c0_181 = arith.constant 0 : index
    %c0_182 = arith.constant 0 : index
    %171 = vector.load %arg11[%c0_179, %c0_180, %c0_181, %c0_182] : memref<1x16x16x32xf32, #tpu.memory_space<vmem>>, vector<1x16x16x32xf32>
    %172 = vector.shape_cast %171 : vector<1x16x16x32xf32> to vector<16x16x32xf32>
    %173 = vector.shape_cast %170 : vector<16x16x32xf32> to vector<1x16x16x32xf32>
    tpu.vector_store %arg11[%c0_179, %c0_180, %c0_181, %c0_182], %173 {strides = array<i32>} : memref<1x16x16x32xf32, #tpu.memory_space<vmem>>, vector<1x16x16x32xf32>,
    return
  }
  func.func @transform_0(%arg0: i32) -> (i32, i32, i32, i32) {
    %c0_i32 = arith.constant 0 : i32
    %c0_i32_0 = arith.constant 0 : i32
    %c0_i32_1 = arith.constant 0 : i32
    %c0_i32_2 = arith.constant 0 : i32
    return %arg0, %c0_i32, %c0_i32_0, %c0_i32_1 : i32, i32, i32, i32
  }
  func.func @transform_1(%arg0: i32) -> (i32, i32) {
    %c0_i32 = arith.constant 0 : i32
    %c0_i32_0 = arith.constant 0 : i32
    %c0_i32_1 = arith.constant 0 : i32
    return %c0_i32, %c0_i32_0 : i32, i32
  }
  func.func @transform_2(%arg0: i32) -> (i32, i32) {
    %c0_i32 = arith.constant 0 : i32
    %c0_i32_0 = arith.constant 0 : i32
    %c0_i32_1 = arith.constant 0 : i32
    return %c0_i32, %c0_i32_0 : i32, i32
  }
  func.func @transform_3(%arg0: i32) -> (i32, i32) {
    %c0_i32 = arith.constant 0 : i32
    %c0_i32_0 = arith.constant 0 : i32
    %c0_i32_1 = arith.constant 0 : i32
    return %c0_i32, %c0_i32_0 : i32, i32
  }
  func.func @transform_4(%arg0: i32) -> (i32, i32) {
    %c0_i32 = arith.constant 0 : i32
    %c0_i32_0 = arith.constant 0 : i32
    %c0_i32_1 = arith.constant 0 : i32
    return %c0_i32, %c0_i32_0 : i32, i32
  }
  func.func @transform_5(%arg0: i32) -> (i32, i32) {
    %c0_i32 = arith.constant 0 : i32
    %c0_i32_0 = arith.constant 0 : i32
    %c0_i32_1 = arith.constant 0 : i32
    return %c0_i32, %c0_i32_0 : i32, i32
  }
  func.func @transform_6(%arg0: i32) -> (i32, i32) {
    %c0_i32 = arith.constant 0 : i32
    %c0_i32_0 = arith.constant 0 : i32
    %c0_i32_1 = arith.constant 0 : i32
    return %c0_i32, %c0_i32_0 : i32, i32
  }
  func.func @transform_7(%arg0: i32) -> (i32, i32) {
    %c0_i32 = arith.constant 0 : i32
    %c0_i32_0 = arith.constant 0 : i32
    %c0_i32_1 = arith.constant 0 : i32
    return %c0_i32, %c0_i32_0 : i32, i32
  }
  func.func @transform_8(%arg0: i32) -> (i32, i32) {
    %c0_i32 = arith.constant 0 : i32
    %c0_i32_0 = arith.constant 0 : i32
    %c0_i32_1 = arith.constant 0 : i32
    return %c0_i32, %c0_i32_0 : i32, i32
  }
  func.func @transform_9(%arg0: i32) -> (i32, i32) {
    %c0_i32 = arith.constant 0 : i32
    %c0_i32_0 = arith.constant 0 : i32
    %c0_i32_1 = arith.constant 0 : i32
    return %c0_i32, %c0_i32_0 : i32, i32
  }
  func.func @transform_10(%arg0: i32) -> (i32, i32, i32, i32) {
    %c0_i32 = arith.constant 0 : i32
    %c0_i32_0 = arith.constant 0 : i32
    %c0_i32_1 = arith.constant 0 : i32
    %c0_i32_2 = arith.constant 0 : i32
    return %arg0, %c0_i32, %c0_i32_0, %c0_i32_1 : i32, i32, i32, i32
  }
}

</mosaic_0001>

<llo_original>
// kernel: tpu_custom_call.1
$region0: #{tpu_custom_call.1}
  #allocation0 [shape = 'u32[]', space=smem, size = 0x4, offset = 0x4, fixed_abs, tag = 'smem constant byte address 0x4 - core index']
  #allocation1 [shape = 'u32[144,128]{1,0:T(1,128)}', space=vmem, size = 0x12000, scoped, tag = 'internal scratch']
  #allocation2 [shape = 'bf16[52,52,4]{2,1,0:T(8,128)(2,1)}', space=vmem, size = 0xb6000, scoped, tag = 'scratch operand']
  #allocation3 [shape = 'bf16[256,36]{1,0:T(16,128)(2,1)}', space=vmem, size = 0x10000, scoped, tag = 'scratch operand']
  #allocation4 [shape = 'bf16[256,128]{1,0:T(16,128)(2,1)}', space=vmem, size = 0x10000, scoped, tag = 'scratch operand']
  %s0 = inlined_call_operand.vmem [shape: bf16[2,16,16,4], index: 0, kind: input, shape index: {}]
  %s1 = inlined_call_operand.vmem [shape: bf16[4,32], index: 1, kind: input, shape index: {}]
  %s2 = inlined_call_operand.vmem [shape: bf16[36,32], index: 2, kind: input, shape index: {}]
  %s3 = inlined_call_operand.vmem [shape: bf16[36,32], index: 3, kind: input, shape index: {}]
  %s4 = inlined_call_operand.vmem [shape: bf16[36,32], index: 4, kind: input, shape index: {}]
  %s5 = inlined_call_operand.vmem [shape: bf16[4,32], index: 5, kind: input, shape index: {}]
  %s6 = inlined_call_operand.vmem [shape: bf16[128,32], index: 6, kind: input, shape index: {}]
  %s7 = inlined_call_operand.vmem [shape: bf16[32,32], index: 7, kind: input, shape index: {}]
  %s8 = inlined_call_operand.vmem [shape: f32[6,32], index: 8, kind: input, shape index: {}]
  %s9 = inlined_call_operand.vmem [shape: f32[6,32], index: 9, kind: input, shape index: {}]
  %s10 = inlined_call_operand.hbm [shape: f32[2,16,16,32], index: 10, kind: output, shape index: {}]
  %s11 = sld [smem:[#allocation0]]
  $region73: #{tpu_custom_call.1} parent=0
    _
  %s13 = ssub.s32 1, %s11
  %s14 = scalar_select 0, %s13, %s11
  $region1: #{tpu_custom_call.1} parent=0
    #allocation5 [shape = 'u8[262144]{0}', space=vmem, size = 0x40000, scoped, tag = 'output window, operand 0']
    #allocation6 [shape = 's32[2]{0}', space=sflag, size = 0x8, scoped, tag = 'scoped memory for tpu_custom_call.1']
    %15 = vsyncpa [#allocation6], 0
    %s16 = scalar_lea.sflag [#allocation6], 1
    %17 = vsyncpa %s16, 0
    loop: start=0, step=1, limit=4
    $region2: #{tpu_custom_call.1} parent=1 // loop_pre_header
      _
    $region3: #{tpu_custom_call.1} parent=1 // loop_header
      %s19 = sphi 0, %s23
      %p20 = scmp.ge.s32.totalorder %s19, 4
      %s29 = sphi 0, %s31
      %s32 = sphi 0, %s29
      %s33 = sphi 0, %s32
      %s49 = sphi 0, %s33
      %s53 = sphi 0, %s53
      %s55 = sphi 0, %s53
      %s56 = sphi 0, %s55
      %s70 = sphi 0, %s56
      %s74 = sphi 0, %s74
      %s76 = sphi 0, %s74
      %s77 = sphi 0, %s76
      %s91 = sphi 0, %s77
      %s95 = sphi 0, %s95
      %s97 = sphi 0, %s95
      %s98 = sphi 0, %s97
      %s112 = sphi 0, %s98
      %s116 = sphi 0, %s116
      %s118 = sphi 0, %s116
      %s119 = sphi 0, %s118
      %s133 = sphi 0, %s119
      %s137 = sphi 0, %s137
      %s139 = sphi 0, %s137
      %s140 = sphi 0, %s139
      %s154 = sphi 0, %s140
      %s158 = sphi 0, %s158
      %s160 = sphi 0, %s158
      %s161 = sphi 0, %s160
      %s175 = sphi 0, %s161
      %s179 = sphi 0, %s179
      %s181 = sphi 0, %s179
      %s182 = sphi 0, %s181
      %s196 = sphi 0, %s182
      %s200 = sphi 0, %s200
      %s202 = sphi 0, %s200
      %s203 = sphi 0, %s202
      %s217 = sphi 0, %s203
      %s221 = sphi 0, %s221
      %s223 = sphi 0, %s221
      %s224 = sphi 0, %s223
      %s238 = sphi 0, %s224
      %s244 = sphi 0, %s246
      %s247 = sphi 0, %s244
      %s248 = sphi 0, %s247
      %s264 = sphi 0, %s248
    $region4: #{tpu_custom_call.1} parent=1 // loop_header_branch
      %22 = sbr.rel (%p20) target = $region8
    $region5: #{tpu_custom_call.1} parent=1 // loop_body
      %s24 = ssub.s32 %s19, 1
      %s25 = ssub.s32 %s19, 2
      %s26 = sadd.s32 %s19, 1
      %s27 = ssub.s32 %s19, %s26
      %p28 = scmp.eq.s32.totalorder %s27, 0
      %s30 = sadd.s32 %s29, 1
      %s31 = scalar_select %p28, %s29, %s30
      %p34 = pneg %p28
      %p35 = scmp.eq.s32.totalorder %s19, 1
      %p36 = por %p34, %p35
      %p37 = scmp.ne.s32.totalorder %s29, %s32
      %p38 = scmp.eq.s32.totalorder %s19, 0
      %p39 = por %p37, %p38
      %p40 = scmp.ne.s32.totalorder %s29, %s32
      %p41 = scmp.eq.s32.totalorder %s24, 1
      %p42 = por %p40, %p41
      %p43 = scmp.ne.s32.totalorder %s32, %s33
      %p44 = scmp.eq.s32.totalorder %s24, 0
      %p45 = por %p43, %p44
      %p46 = scmp.ne.s32.totalorder %s32, %s33
      %p47 = scmp.eq.s32.totalorder %s25, 1
      %p48 = por %p46, %p47
      %p50 = scmp.ne.s32.totalorder %s33, %s49
      %p51 = scmp.eq.s32.totalorder %s25, 0
      %p52 = por %p50, %p51
      %s54 = sadd.s32 %s53, 1
      %p57 = scmp.eq.s32.totalorder %s19, 1
      %p58 = scmp.ne.s32.totalorder %s53, %s55
      %p59 = scmp.eq.s32.totalorder %s19, 0
      %p60 = por %p58, %p59
      %p61 = scmp.ne.s32.totalorder %s53, %s55
      %p62 = scmp.eq.s32.totalorder %s24, 1
      %p63 = por %p61, %p62
      %p64 = scmp.ne.s32.totalorder %s55, %s56
      %p65 = scmp.eq.s32.totalorder %s24, 0
      %p66 = por %p64, %p65
      %p67 = scmp.ne.s32.totalorder %s55, %s56
      %p68 = scmp.eq.s32.totalorder %s25, 1
      %p69 = por %p67, %p68
      %p71 = scmp.ne.s32.totalorder %s56, %s70
      %p72 = scmp.eq.s32.totalorder %s25, 0
      %p73 = por %p71, %p72
      %s75 = sadd.s32 %s74, 1
      %p78 = scmp.eq.s32.totalorder %s19, 1
      %p79 = scmp.ne.s32.totalorder %s74, %s76
      %p80 = scmp.eq.s32.totalorder %s19, 0
      %p81 = por %p79, %p80
      %p82 = scmp.ne.s32.totalorder %s74, %s76
      %p83 = scmp.eq.s32.totalorder %s24, 1
      %p84 = por %p82, %p83
      %p85 = scmp.ne.s32.totalorder %s76, %s77
      %p86 = scmp.eq.s32.totalorder %s24, 0
      %p87 = por %p85, %p86
      %p88 = scmp.ne.s32.totalorder %s76, %s77
      %p89 = scmp.eq.s32.totalorder %s25, 1
      %p90 = por %p88, %p89
      %p92 = scmp.ne.s32.totalorder %s77, %s91
      %p93 = scmp.eq.s32.totalorder %s25, 0
      %p94 = por %p92, %p93
      %s96 = sadd.s32 %s95, 1
      %p99 = scmp.eq.s32.totalorder %s19, 1
      %p100 = scmp.ne.s32.totalorder %s95, %s97
      %p101 = scmp.eq.s32.totalorder %s19, 0
      %p102 = por %p100, %p101
      %p103 = scmp.ne.s32.totalorder %s95, %s97
      %p104 = scmp.eq.s32.totalorder %s24, 1
      %p105 = por %p103, %p104
      %p106 = scmp.ne.s32.totalorder %s97, %s98
      %p107 = scmp.eq.s32.totalorder %s24, 0
      %p108 = por %p106, %p107
      %p109 = scmp.ne.s32.totalorder %s97, %s98
      %p110 = scmp.eq.s32.totalorder %s25, 1
      %p111 = por %p109, %p110
      %p113 = scmp.ne.s32.totalorder %s98, %s112
      %p114 = scmp.eq.s32.totalorder %s25, 0
      %p115 = por %p113, %p114
      %s117 = sadd.s32 %s116, 1
      %p120 = scmp.eq.s32.totalorder %s19, 1
      %p121 = scmp.ne.s32.totalorder %s116, %s118
      %p122 = scmp.eq.s32.totalorder %s19, 0
      %p123 = por %p121, %p122
      %p124 = scmp.ne.s32.totalorder %s116, %s118
      %p125 = scmp.eq.s32.totalorder %s24, 1
      %p126 = por %p124, %p125
      %p127 = scmp.ne.s32.totalorder %s118, %s119
      %p128 = scmp.eq.s32.totalorder %s24, 0
      %p129 = por %p127, %p128
      %p130 = scmp.ne.s32.totalorder %s118, %s119
      %p131 = scmp.eq.s32.totalorder %s25, 1
      %p132 = por %p130, %p131
      %p134 = scmp.ne.s32.totalorder %s119, %s133
      %p135 = scmp.eq.s32.totalorder %s25, 0
      %p136 = por %p134, %p135
      %s138 = sadd.s32 %s137, 1
      %p141 = scmp.eq.s32.totalorder %s19, 1
      %p142 = scmp.ne.s32.totalorder %s137, %s139
      %p143 = scmp.eq.s32.totalorder %s19, 0
      %p144 = por %p142, %p143
      %p145 = scmp.ne.s32.totalorder %s137, %s139
      %p146 = scmp.eq.s32.totalorder %s24, 1
      %p147 = por %p145, %p146
      %p148 = scmp.ne.s32.totalorder %s139, %s140
      %p149 = scmp.eq.s32.totalorder %s24, 0
      %p150 = por %p148, %p149
      %p151 = scmp.ne.s32.totalorder %s139, %s140
      %p152 = scmp.eq.s32.totalorder %s25, 1
      %p153 = por %p151, %p152
      %p155 = scmp.ne.s32.totalorder %s140, %s154
      %p156 = scmp.eq.s32.totalorder %s25, 0
      %p157 = por %p155, %p156
      %s159 = sadd.s32 %s158, 1
      %p162 = scmp.eq.s32.totalorder %s19, 1
      %p163 = scmp.ne.s32.totalorder %s158, %s160
      %p164 = scmp.eq.s32.totalorder %s19, 0
      %p165 = por %p163, %p164
      %p166 = scmp.ne.s32.totalorder %s158, %s160
      %p167 = scmp.eq.s32.totalorder %s24, 1
      %p168 = por %p166, %p167
      %p169 = scmp.ne.s32.totalorder %s160, %s161
      %p170 = scmp.eq.s32.totalorder %s24, 0
      %p171 = por %p169, %p170
      %p172 = scmp.ne.s32.totalorder %s160, %s161
      %p173 = scmp.eq.s32.totalorder %s25, 1
      %p174 = por %p172, %p173
      %p176 = scmp.ne.s32.totalorder %s161, %s175
      %p177 = scmp.eq.s32.totalorder %s25, 0
      %p178 = por %p176, %p177
      %s180 = sadd.s32 %s179, 1
      %p183 = scmp.eq.s32.totalorder %s19, 1
      %p184 = scmp.ne.s32.totalorder %s179, %s181
      %p185 = scmp.eq.s32.totalorder %s19, 0
      %p186 = por %p184, %p185
      %p187 = scmp.ne.s32.totalorder %s179, %s181
      %p188 = scmp.eq.s32.totalorder %s24, 1
      %p189 = por %p187, %p188
      %p190 = scmp.ne.s32.totalorder %s181, %s182
      %p191 = scmp.eq.s32.totalorder %s24, 0
      %p192 = por %p190, %p191
      %p193 = scmp.ne.s32.totalorder %s181, %s182
      %p194 = scmp.eq.s32.totalorder %s25, 1
      %p195 = por %p193, %p194
      %p197 = scmp.ne.s32.totalorder %s182, %s196
      %p198 = scmp.eq.s32.totalorder %s25, 0
      %p199 = por %p197, %p198
      %s201 = sadd.s32 %s200, 1
      %p204 = scmp.eq.s32.totalorder %s19, 1
      %p205 = scmp.ne.s32.totalorder %s200, %s202
      %p206 = scmp.eq.s32.totalorder %s19, 0
      %p207 = por %p205, %p206
      %p208 = scmp.ne.s32.totalorder %s200, %s202
      %p209 = scmp.eq.s32.totalorder %s24, 1
      %p210 = por %p208, %p209
      %p211 = scmp.ne.s32.totalorder %s202, %s203
      %p212 = scmp.eq.s32.totalorder %s24, 0
      %p213 = por %p211, %p212
      %p214 = scmp.ne.s32.totalorder %s202, %s203
      %p215 = scmp.eq.s32.totalorder %s25, 1
      %p216 = por %p214, %p215
      %p218 = scmp.ne.s32.totalorder %s203, %s217
      %p219 = scmp.eq.s32.totalorder %s25, 0
      %p220 = por %p218, %p219
      %s222 = sadd.s32 %s221, 1
      %p225 = scmp.eq.s32.totalorder %s19, 1
      %p226 = scmp.ne.s32.totalorder %s221, %s223
      %p227 = scmp.eq.s32.totalorder %s19, 0
      %p228 = por %p226, %p227
      %p229 = scmp.ne.s32.totalorder %s221, %s223
      %p230 = scmp.eq.s32.totalorder %s24, 1
      %p231 = por %p229, %p230
      %p232 = scmp.ne.s32.totalorder %s223, %s224
      %p233 = scmp.eq.s32.totalorder %s24, 0
      %p234 = por %p232, %p233
      %p235 = scmp.ne.s32.totalorder %s223, %s224
      %p236 = scmp.eq.s32.totalorder %s25, 1
      %p237 = por %p235, %p236
      %p239 = scmp.ne.s32.totalorder %s224, %s238
      %p240 = scmp.eq.s32.totalorder %s25, 0
      %p241 = por %p239, %p240
      %s242 = ssub.s32 %s19, %s26
      %p243 = scmp.eq.s32.totalorder %s242, 0
      %s245 = sadd.s32 %s244, 1
      %s246 = scalar_select %p243, %s244, %s245
      %p249 = pneg %p243
      %p250 = scmp.eq.s32.totalorder %s19, 1
      %p251 = por %p249, %p250
      %p252 = scmp.ne.s32.totalorder %s244, %s247
      %p253 = scmp.eq.s32.totalorder %s19, 0
      %p254 = por %p252, %p253
      %p255 = scmp.ne.s32.totalorder %s244, %s247
      %p256 = scmp.eq.s32.totalorder %s24, 1
      %p257 = por %p255, %p256
      %p258 = scmp.ne.s32.totalorder %s247, %s248
      %p259 = scmp.eq.s32.totalorder %s24, 0
      %p260 = por %p258, %p259
      %p261 = scmp.ne.s32.totalorder %s247, %s248
      %p262 = scmp.eq.s32.totalorder %s25, 1
      %p263 = por %p261, %p262
      %p265 = scmp.ne.s32.totalorder %s248, %s264
      %p266 = scmp.eq.s32.totalorder %s25, 0
      %p267 = por %p265, %p266
      %p268 = scmp.le.s32.totalorder 1, %s19
      %p269 = scmp.lt.s32.totalorder %s19, 3
      %p270 = pnand %p268, %p269
      %p271 = pneg %p270
      // Predicated region
      $region9: #{tpu_custom_call.1} parent=5 // pred_check
        _
      $region10: #{tpu_custom_call.1} parent=5 // pred_check_branch
        %273 = sbr.rel (%p270) target = $region12
      $region11: #{tpu_custom_call.1} parent=5 // pred_region
        %s274 = ssub.s32 %s19, 1
        // Predicated region
        $region13: #{tpu_custom_call.1} parent=11 // pred_check
          %p275 = pneg %p66
        $region14: #{tpu_custom_call.1} parent=11 // pred_check_branch
          %277 = sbr.rel (%p275) target = $region16
        $region15: #{tpu_custom_call.1} parent=11 // pred_region
          _
        $region16: #{tpu_custom_call.1} parent=11 // pred_fallthru
          _
        // Predicated region
        $region17: #{tpu_custom_call.1} parent=11 // pred_check
          %p278 = pneg %p87
        $region18: #{tpu_custom_call.1} parent=11 // pred_check_branch
          %280 = sbr.rel (%p278) target = $region20
        $region19: #{tpu_custom_call.1} parent=11 // pred_region
          _
        $region20: #{tpu_custom_call.1} parent=11 // pred_fallthru
          _
        // Predicated region
        $region21: #{tpu_custom_call.1} parent=11 // pred_check
          %p281 = pneg %p108
        $region22: #{tpu_custom_call.1} parent=11 // pred_check_branch
          %283 = sbr.rel (%p281) target = $region24
        $region23: #{tpu_custom_call.1} parent=11 // pred_region
          _
        $region24: #{tpu_custom_call.1} parent=11 // pred_fallthru
          _
        // Predicated region
        $region25: #{tpu_custom_call.1} parent=11 // pred_check
          %p284 = pneg %p129
        $region26: #{tpu_custom_call.1} parent=11 // pred_check_branch
          %286 = sbr.rel (%p284) target = $region28
        $region27: #{tpu_custom_call.1} parent=11 // pred_region
          _
        $region28: #{tpu_custom_call.1} parent=11 // pred_fallthru
          _
        // Predicated region
        $region29: #{tpu_custom_call.1} parent=11 // pred_check
          %p287 = pneg %p150
        $region30: #{tpu_custom_call.1} parent=11 // pred_check_branch
          %289 = sbr.rel (%p287) target = $region32
        $region31: #{tpu_custom_call.1} parent=11 // pred_region
          _
        $region32: #{tpu_custom_call.1} parent=11 // pred_fallthru
          _
        // Predicated region
        $region33: #{tpu_custom_call.1} parent=11 // pred_check
          %p290 = pneg %p171
        $region34: #{tpu_custom_call.1} parent=11 // pred_check_branch
          %292 = sbr.rel (%p290) target = $region36
        $region35: #{tpu_custom_call.1} parent=11 // pred_region
          _
        $region36: #{tpu_custom_call.1} parent=11 // pred_fallthru
          _
        // Predicated region
        $region37: #{tpu_custom_call.1} parent=11 // pred_check
          %p293 = pneg %p192
        $region38: #{tpu_custom_call.1} parent=11 // pred_check_branch
          %295 = sbr.rel (%p293) target = $region40
        $region39: #{tpu_custom_call.1} parent=11 // pred_region
          _
        $region40: #{tpu_custom_call.1} parent=11 // pred_fallthru
          _
        // Predicated region
        $region41: #{tpu_custom_call.1} parent=11 // pred_check
          %p296 = pneg %p213
        $region42: #{tpu_custom_call.1} parent=11 // pred_check_branch
          %298 = sbr.rel (%p296) target = $region44
        $region43: #{tpu_custom_call.1} parent=11 // pred_region
          _
        $region44: #{tpu_custom_call.1} parent=11 // pred_fallthru
          _
        // Predicated region
        $region45: #{tpu_custom_call.1} parent=11 // pred_check
          %p299 = pneg %p234
        $region46: #{tpu_custom_call.1} parent=11 // pred_check_branch
          %301 = sbr.rel (%p299) target = $region48
        $region47: #{tpu_custom_call.1} parent=11 // pred_region
          _
        $region48: #{tpu_custom_call.1} parent=11 // pred_fallthru
          _
      $region12: #{tpu_custom_call.1} parent=5 // pred_fallthru
        _
      %p302 = scmp.lt.s32.totalorder %s19, 2
      // Predicated region
      $region49: #{tpu_custom_call.1} parent=5 // pred_check
        %p303 = pneg %p302
      $region50: #{tpu_custom_call.1} parent=5 // pred_check_branch
        %305 = sbr.rel (%p303) target = $region52
      $region51: #{tpu_custom_call.1} parent=5 // pred_region
        // Predicated region
        $region53: #{tpu_custom_call.1} parent=51 // pred_check
          %p306 = pneg %p39
        $region54: #{tpu_custom_call.1} parent=51 // pred_check_branch
          %308 = sbr.rel (%p306) target = $region56
        $region55: #{tpu_custom_call.1} parent=51 // pred_region
          %p309 = scmp.lt.s32.totalorder %s19, 1
          %s310 = scalar_select %p309, %s19, 1
          %s311 = smul.addr %s310, 32
          %s312 = smul.addr %s311, 4
          %s313 = scalar_lea.vmem %s0, %s312
        $region56: #{tpu_custom_call.1} parent=51 // pred_fallthru
          _
      $region52: #{tpu_custom_call.1} parent=5 // pred_fallthru
        _
      %p314 = scmp.le.s32.totalorder 1, %s19
      %p315 = scmp.lt.s32.totalorder %s19, 3
      %p316 = pnand %p314, %p315
      %p317 = pneg %p316
      // Predicated region
      $region57: #{tpu_custom_call.1} parent=5 // pred_check
        _
      $region58: #{tpu_custom_call.1} parent=5 // pred_check_branch
        %319 = sbr.rel (%p316) target = $region60
      $region59: #{tpu_custom_call.1} parent=5 // pred_region
        %s320 = ssub.s32 %s19, 1
        %p321 = scmp.lt.s32.totalorder %s24, 1
        %s322 = scalar_select %p321, %s24, 1
        %s323 = smul.addr %s322, 32
        %s324 = smul.addr %s323, 4
        %s325 = scalar_lea.vmem %s0, %s324
        %p326 = pneg %p45
        %p327 = pneg %p42
        %p328 = pneg %p66
        %p329 = pneg %p63
        %p330 = pneg %p87
        %p331 = pneg %p84
        %p332 = pneg %p108
        %p333 = pneg %p105
        %p334 = pneg %p129
        %p335 = pneg %p126
        %p336 = pneg %p150
        %p337 = pneg %p147
        %p338 = pneg %p171
        %p339 = pneg %p168
        %p340 = pneg %p192
        %p341 = pneg %p189
        %p342 = pneg %p213
        %p343 = pneg %p210
        %p344 = pneg %p234
        %p345 = pneg %p231
        %p346 = pneg %p260
        %p347 = pneg %p257
        %s348 = sand.u32 %s247, 1
        %s349 = scalar_lea.sflag [#allocation6], %s348
        %s350 = sand.u32 %s247, 1
        %s351 = smul.addr %s350, 256
        %s352 = scalar_lea.vmem [#allocation5], %s351
        %p353 = scmp.lt.s32.totalorder %s24, 1
        %s354 = scalar_select %p353, %s24, 1
        %s355 = smul.addr %s354, 32
        %s356 = smul.addr %s355, 4
        %s357 = scalar_lea.vmem %s0, %s356
        %vm359 = vcmask 27648
        %360 = vst.msk [vmem:[#allocation2] sm:$0xf] %vm359, 0
        %361 = vst.msk [vmem:[#allocation2 + $0x4] sm:$0xf] %vm359, 0
        %362 = vst.msk [vmem:[#allocation2 + $0x8] sm:$0xf] %vm359, 0
        %363 = vst.msk [vmem:[#allocation2 + $0xc] sm:$0xf] %vm359, 0
        %364 = vst.msk [vmem:[#allocation2 + $0x10] sm:$0xf] %vm359, 0
        %365 = vst.msk [vmem:[#allocation2 + $0x14] sm:$0xf] %vm359, 0
        %vm366 = vcmask 25600
        %367 = vst.msk [vmem:[#allocation2 + $0x18] sm:$0x3] %vm366, 0
        %368 = vst.msk [vmem:[#allocation2 + $0x1c] sm:$0xf] %vm359, 0
        %369 = vst.msk [vmem:[#allocation2 + $0x20] sm:$0xf] %vm359, 0
        %370 = vst.msk [vmem:[#allocation2 + $0x24] sm:$0xf] %vm359, 0
        %371 = vst.msk [vmem:[#allocation2 + $0x28] sm:$0xf] %vm359, 0
        %372 = vst.msk [vmem:[#allocation2 + $0x2c] sm:$0xf] %vm359, 0
        %373 = vst.msk [vmem:[#allocation2 + $0x30] sm:$0xf] %vm359, 0
        %374 = vst.msk [vmem:[#allocation2 + $0x34] sm:$0x3] %vm366, 0
        %375 = vst.msk [vmem:[#allocation2 + $0x38] sm:$0xf] %vm359, 0
        %376 = vst.msk [vmem:[#allocation2 + $0x3c] sm:$0xf] %vm359, 0
        %377 = vst.msk [vmem:[#allocation2 + $0x40] sm:$0xf] %vm359, 0
        %378 = vst.msk [vmem:[#allocation2 + $0x44] sm:$0xf] %vm359, 0
        %379 = vst.msk [vmem:[#allocation2 + $0x48] sm:$0xf] %vm359, 0
        %380 = vst.msk [vmem:[#allocation2 + $0x4c] sm:$0xf] %vm359, 0
        %381 = vst.msk [vmem:[#allocation2 + $0x50] sm:$0x3] %vm366, 0
        %382 = vst.msk [vmem:[#allocation2 + $0x54] sm:$0xf] %vm359, 0
        %383 = vst.msk [vmem:[#allocation2 + $0x58] sm:$0xf] %vm359, 0
        %384 = vst.msk [vmem:[#allocation2 + $0x5c] sm:$0xf] %vm359, 0
        %385 = vst.msk [vmem:[#allocation2 + $0x60] sm:$0xf] %vm359, 0
        %386 = vst.msk [vmem:[#allocation2 + $0x64] sm:$0xf] %vm359, 0
        %387 = vst.msk [vmem:[#allocation2 + $0x68] sm:$0xf] %vm359, 0
        %388 = vst.msk [vmem:[#allocation2 + $0x6c] sm:$0x3] %vm366, 0
        %389 = vst.msk [vmem:[#allocation2 + $0x70] sm:$0xf] %vm359, 0
        %390 = vst.msk [vmem:[#allocation2 + $0x74] sm:$0xf] %vm359, 0
        %391 = vst.msk [vmem:[#allocation2 + $0x78] sm:$0xf] %vm359, 0
        %392 = vst.msk [vmem:[#allocation2 + $0x7c] sm:$0xf] %vm359, 0
        %393 = vst.msk [vmem:[#allocation2 + $0x80] sm:$0xf] %vm359, 0
        %394 = vst.msk [vmem:[#allocation2 + $0x84] sm:$0xf] %vm359, 0
        %395 = vst.msk [vmem:[#allocation2 + $0x88] sm:$0x3] %vm366, 0
        %396 = vst.msk [vmem:[#allocation2 + $0x8c] sm:$0xf] %vm359, 0
        %397 = vst.msk [vmem:[#allocation2 + $0x90] sm:$0xf] %vm359, 0
        %398 = vst.msk [vmem:[#allocation2 + $0x94] sm:$0xf] %vm359, 0
        %399 = vst.msk [vmem:[#allocation2 + $0x98] sm:$0xf] %vm359, 0
        %400 = vst.msk [vmem:[#allocation2 + $0x9c] sm:$0xf] %vm359, 0
        %401 = vst.msk [vmem:[#allocation2 + $0xa0] sm:$0xf] %vm359, 0
        %402 = vst.msk [vmem:[#allocation2 + $0xa4] sm:$0x3] %vm366, 0
        %403 = vst.msk [vmem:[#allocation2 + $0xa8] sm:$0xf] %vm359, 0
        %404 = vst.msk [vmem:[#allocation2 + $0xac] sm:$0xf] %vm359, 0
        %405 = vst.msk [vmem:[#allocation2 + $0xb0] sm:$0xf] %vm359, 0
        %406 = vst.msk [vmem:[#allocation2 + $0xb4] sm:$0xf] %vm359, 0
        %407 = vst.msk [vmem:[#allocation2 + $0xb8] sm:$0xf] %vm359, 0
        %408 = vst.msk [vmem:[#allocation2 + $0xbc] sm:$0xf] %vm359, 0
        %409 = vst.msk [vmem:[#allocation2 + $0xc0] sm:$0x3] %vm366, 0
        %410 = vst.msk [vmem:[#allocation2 + $0xc4] sm:$0xf] %vm359, 0
        %411 = vst.msk [vmem:[#allocation2 + $0xc8] sm:$0xf] %vm359, 0
        %412 = vst.msk [vmem:[#allocation2 + $0xcc] sm:$0xf] %vm359, 0
        %413 = vst.msk [vmem:[#allocation2 + $0xd0] sm:$0xf] %vm359, 0
        %414 = vst.msk [vmem:[#allocation2 + $0xd4] sm:$0xf] %vm359, 0
        %415 = vst.msk [vmem:[#allocation2 + $0xd8] sm:$0xf] %vm359, 0
        %416 = vst.msk [vmem:[#allocation2 + $0xdc] sm:$0x3] %vm366, 0
        %417 = vst.msk [vmem:[#allocation2 + $0xe0] sm:$0xf] %vm359, 0
        %418 = vst.msk [vmem:[#allocation2 + $0xe4] sm:$0xf] %vm359, 0
        %419 = vst.msk [vmem:[#allocation2 + $0xe8] sm:$0xf] %vm359, 0
        %420 = vst.msk [vmem:[#allocation2 + $0xec] sm:$0xf] %vm359, 0
        %421 = vst.msk [vmem:[#allocation2 + $0xf0] sm:$0xf] %vm359, 0
        %422 = vst.msk [vmem:[#allocation2 + $0xf4] sm:$0xf] %vm359, 0
        %423 = vst.msk [vmem:[#allocation2 + $0xf8] sm:$0x3] %vm366, 0
        %424 = vst.msk [vmem:[#allocation2 + $0xfc] sm:$0xf] %vm359, 0
        %425 = vst.msk [vmem:[#allocation2 + $0x100] sm:$0xf] %vm359, 0
        %426 = vst.msk [vmem:[#allocation2 + $0x104] sm:$0xf] %vm359, 0
        %427 = vst.msk [vmem:[#allocation2 + $0x108] sm:$0xf] %vm359, 0
        %428 = vst.msk [vmem:[#allocation2 + $0x10c] sm:$0xf] %vm359, 0
        %429 = vst.msk [vmem:[#allocation2 + $0x110] sm:$0xf] %vm359, 0
        %430 = vst.msk [vmem:[#allocation2 + $0x114] sm:$0x3] %vm366, 0
        %431 = vst.msk [vmem:[#allocation2 + $0x118] sm:$0xf] %vm359, 0
        %432 = vst.msk [vmem:[#allocation2 + $0x11c] sm:$0xf] %vm359, 0
        %433 = vst.msk [vmem:[#allocation2 + $0x120] sm:$0xf] %vm359, 0
        %434 = vst.msk [vmem:[#allocation2 + $0x124] sm:$0xf] %vm359, 0
        %435 = vst.msk [vmem:[#allocation2 + $0x128] sm:$0xf] %vm359, 0
        %436 = vst.msk [vmem:[#allocation2 + $0x12c] sm:$0xf] %vm359, 0
        %437 = vst.msk [vmem:[#allocation2 + $0x130] sm:$0x3] %vm366, 0
        %438 = vst.msk [vmem:[#allocation2 + $0x134] sm:$0xf] %vm359, 0
        %439 = vst.msk [vmem:[#allocation2 + $0x138] sm:$0xf] %vm359, 0
        %440 = vst.msk [vmem:[#allocation2 + $0x13c] sm:$0xf] %vm359, 0
        %441 = vst.msk [vmem:[#allocation2 + $0x140] sm:$0xf] %vm359, 0
        %442 = vst.msk [vmem:[#allocation2 + $0x144] sm:$0xf] %vm359, 0
        %443 = vst.msk [vmem:[#allocation2 + $0x148] sm:$0xf] %vm359, 0
        %444 = vst.msk [vmem:[#allocation2 + $0x14c] sm:$0x3] %vm366, 0
        %445 = vst.msk [vmem:[#allocation2 + $0x150] sm:$0xf] %vm359, 0
        %446 = vst.msk [vmem:[#allocation2 + $0x154] sm:$0xf] %vm359, 0
        %447 = vst.msk [vmem:[#allocation2 + $0x158] sm:$0xf] %vm359, 0
        %448 = vst.msk [vmem:[#allocation2 + $0x15c] sm:$0xf] %vm359, 0
        %449 = vst.msk [vmem:[#allocation2 + $0x160] sm:$0xf] %vm359, 0
        %450 = vst.msk [vmem:[#allocation2 + $0x164] sm:$0xf] %vm359, 0
        %451 = vst.msk [vmem:[#allocation2 + $0x168] sm:$0x3] %vm366, 0
        %452 = vst.msk [vmem:[#allocation2 + $0x16c] sm:$0xf] %vm359, 0
        %453 = vst.msk [vmem:[#allocation2 + $0x170] sm:$0xf] %vm359, 0
        %454 = vst.msk [vmem:[#allocation2 + $0x174] sm:$0xf] %vm359, 0
        %455 = vst.msk [vmem:[#allocation2 + $0x178] sm:$0xf] %vm359, 0
        %456 = vst.msk [vmem:[#allocation2 + $0x17c] sm:$0xf] %vm359, 0
        %457 = vst.msk [vmem:[#allocation2 + $0x180] sm:$0xf] %vm359, 0
        %458 = vst.msk [vmem:[#allocation2 + $0x184] sm:$0x3] %vm366, 0
        %459 = vst.msk [vmem:[#allocation2 + $0x188] sm:$0xf] %vm359, 0
        %460 = vst.msk [vmem:[#allocation2 + $0x18c] sm:$0xf] %vm359, 0
        %461 = vst.msk [vmem:[#allocation2 + $0x190] sm:$0xf] %vm359, 0
        %462 = vst.msk [vmem:[#allocation2 + $0x194] sm:$0xf] %vm359, 0
        %463 = vst.msk [vmem:[#allocation2 + $0x198] sm:$0xf] %vm359, 0
        %464 = vst.msk [vmem:[#allocation2 + $0x19c] sm:$0xf] %vm359, 0
        %465 = vst.msk [vmem:[#allocation2 + $0x1a0] sm:$0x3] %vm366, 0
        %466 = vst.msk [vmem:[#allocation2 + $0x1a4] sm:$0xf] %vm359, 0
        %467 = vst.msk [vmem:[#allocation2 + $0x1a8] sm:$0xf] %vm359, 0
        %468 = vst.msk [vmem:[#allocation2 + $0x1ac] sm:$0xf] %vm359, 0
        %469 = vst.msk [vmem:[#allocation2 + $0x1b0] sm:$0xf] %vm359, 0
        %470 = vst.msk [vmem:[#allocation2 + $0x1b4] sm:$0xf] %vm359, 0
        %471 = vst.msk [vmem:[#allocation2 + $0x1b8] sm:$0xf] %vm359, 0
        %472 = vst.msk [vmem:[#allocation2 + $0x1bc] sm:$0x3] %vm366, 0
        %473 = vst.msk [vmem:[#allocation2 + $0x1c0] sm:$0xf] %vm359, 0
        %474 = vst.msk [vmem:[#allocation2 + $0x1c4] sm:$0xf] %vm359, 0
        %475 = vst.msk [vmem:[#allocation2 + $0x1c8] sm:$0xf] %vm359, 0
        %476 = vst.msk [vmem:[#allocation2 + $0x1cc] sm:$0xf] %vm359, 0
        %477 = vst.msk [vmem:[#allocation2 + $0x1d0] sm:$0xf] %vm359, 0
        %478 = vst.msk [vmem:[#allocation2 + $0x1d4] sm:$0xf] %vm359, 0
        %479 = vst.msk [vmem:[#allocation2 + $0x1d8] sm:$0x3] %vm366, 0
        %480 = vst.msk [vmem:[#allocation2 + $0x1dc] sm:$0xf] %vm359, 0
        %481 = vst.msk [vmem:[#allocation2 + $0x1e0] sm:$0xf] %vm359, 0
        %482 = vst.msk [vmem:[#allocation2 + $0x1e4] sm:$0xf] %vm359, 0
        %483 = vst.msk [vmem:[#allocation2 + $0x1e8] sm:$0xf] %vm359, 0
        %484 = vst.msk [vmem:[#allocation2 + $0x1ec] sm:$0xf] %vm359, 0
        %485 = vst.msk [vmem:[#allocation2 + $0x1f0] sm:$0xf] %vm359, 0
        %486 = vst.msk [vmem:[#allocation2 + $0x1f4] sm:$0x3] %vm366, 0
        %487 = vst.msk [vmem:[#allocation2 + $0x1f8] sm:$0xf] %vm359, 0
        %488 = vst.msk [vmem:[#allocation2 + $0x1fc] sm:$0xf] %vm359, 0
        %489 = vst.msk [vmem:[#allocation2 + $0x200] sm:$0xf] %vm359, 0
        %490 = vst.msk [vmem:[#allocation2 + $0x204] sm:$0xf] %vm359, 0
        %491 = vst.msk [vmem:[#allocation2 + $0x208] sm:$0xf] %vm359, 0
        %492 = vst.msk [vmem:[#allocation2 + $0x20c] sm:$0xf] %vm359, 0
        %493 = vst.msk [vmem:[#allocation2 + $0x210] sm:$0x3] %vm366, 0
        %494 = vst.msk [vmem:[#allocation2 + $0x214] sm:$0xf] %vm359, 0
        %495 = vst.msk [vmem:[#allocation2 + $0x218] sm:$0xf] %vm359, 0
        %496 = vst.msk [vmem:[#allocation2 + $0x21c] sm:$0xf] %vm359, 0
        %497 = vst.msk [vmem:[#allocation2 + $0x220] sm:$0xf] %vm359, 0
        %498 = vst.msk [vmem:[#allocation2 + $0x224] sm:$0xf] %vm359, 0
        %499 = vst.msk [vmem:[#allocation2 + $0x228] sm:$0xf] %vm359, 0
        %500 = vst.msk [vmem:[#allocation2 + $0x22c] sm:$0x3] %vm366, 0
        %501 = vst.msk [vmem:[#allocation2 + $0x230] sm:$0xf] %vm359, 0
        %502 = vst.msk [vmem:[#allocation2 + $0x234] sm:$0xf] %vm359, 0
        %503 = vst.msk [vmem:[#allocation2 + $0x238] sm:$0xf] %vm359, 0
        %504 = vst.msk [vmem:[#allocation2 + $0x23c] sm:$0xf] %vm359, 0
        %505 = vst.msk [vmem:[#allocation2 + $0x240] sm:$0xf] %vm359, 0
        %506 = vst.msk [vmem:[#allocation2 + $0x244] sm:$0xf] %vm359, 0
        %507 = vst.msk [vmem:[#allocation2 + $0x248] sm:$0x3] %vm366, 0
        %508 = vst.msk [vmem:[#allocation2 + $0x24c] sm:$0xf] %vm359, 0
        %509 = vst.msk [vmem:[#allocation2 + $0x250] sm:$0xf] %vm359, 0
        %510 = vst.msk [vmem:[#allocation2 + $0x254] sm:$0xf] %vm359, 0
        %511 = vst.msk [vmem:[#allocation2 + $0x258] sm:$0xf] %vm359, 0
        %512 = vst.msk [vmem:[#allocation2 + $0x25c] sm:$0xf] %vm359, 0
        %513 = vst.msk [vmem:[#allocation2 + $0x260] sm:$0xf] %vm359, 0
        %514 = vst.msk [vmem:[#allocation2 + $0x264] sm:$0x3] %vm366, 0
        %515 = vst.msk [vmem:[#allocation2 + $0x268] sm:$0xf] %vm359, 0
        %516 = vst.msk [vmem:[#allocation2 + $0x26c] sm:$0xf] %vm359, 0
        %517 = vst.msk [vmem:[#allocation2 + $0x270] sm:$0xf] %vm359, 0
        %518 = vst.msk [vmem:[#allocation2 + $0x274] sm:$0xf] %vm359, 0
        %519 = vst.msk [vmem:[#allocation2 + $0x278] sm:$0xf] %vm359, 0
        %520 = vst.msk [vmem:[#allocation2 + $0x27c] sm:$0xf] %vm359, 0
        %521 = vst.msk [vmem:[#allocation2 + $0x280] sm:$0x3] %vm366, 0
        %522 = vst.msk [vmem:[#allocation2 + $0x284] sm:$0xf] %vm359, 0
        %523 = vst.msk [vmem:[#allocation2 + $0x288] sm:$0xf] %vm359, 0
        %524 = vst.msk [vmem:[#allocation2 + $0x28c] sm:$0xf] %vm359, 0
        %525 = vst.msk [vmem:[#allocation2 + $0x290] sm:$0xf] %vm359, 0
        %526 = vst.msk [vmem:[#allocation2 + $0x294] sm:$0xf] %vm359, 0
        %527 = vst.msk [vmem:[#allocation2 + $0x298] sm:$0xf] %vm359, 0
        %528 = vst.msk [vmem:[#allocation2 + $0x29c] sm:$0x3] %vm366, 0
        %529 = vst.msk [vmem:[#allocation2 + $0x2a0] sm:$0xf] %vm359, 0
        %530 = vst.msk [vmem:[#allocation2 + $0x2a4] sm:$0xf] %vm359, 0
        %531 = vst.msk [vmem:[#allocation2 + $0x2a8] sm:$0xf] %vm359, 0
        %532 = vst.msk [vmem:[#allocation2 + $0x2ac] sm:$0xf] %vm359, 0
        %533 = vst.msk [vmem:[#allocation2 + $0x2b0] sm:$0xf] %vm359, 0
        %534 = vst.msk [vmem:[#allocation2 + $0x2b4] sm:$0xf] %vm359, 0
        %535 = vst.msk [vmem:[#allocation2 + $0x2b8] sm:$0x3] %vm366, 0
        %536 = vst.msk [vmem:[#allocation2 + $0x2bc] sm:$0xf] %vm359, 0
        %537 = vst.msk [vmem:[#allocation2 + $0x2c0] sm:$0xf] %vm359, 0
        %538 = vst.msk [vmem:[#allocation2 + $0x2c4] sm:$0xf] %vm359, 0
        %539 = vst.msk [vmem:[#allocation2 + $0x2c8] sm:$0xf] %vm359, 0
        %540 = vst.msk [vmem:[#allocation2 + $0x2cc] sm:$0xf] %vm359, 0
        %541 = vst.msk [vmem:[#allocation2 + $0x2d0] sm:$0xf] %vm359, 0
        %542 = vst.msk [vmem:[#allocation2 + $0x2d4] sm:$0x3] %vm366, 0
        %543 = vst.msk [vmem:[#allocation2 + $0x2d8] sm:$0xf] %vm359, 0
        %544 = vst.msk [vmem:[#allocation2 + $0x2dc] sm:$0xf] %vm359, 0
        %545 = vst.msk [vmem:[#allocation2 + $0x2e0] sm:$0xf] %vm359, 0
        %546 = vst.msk [vmem:[#allocation2 + $0x2e4] sm:$0xf] %vm359, 0
        %547 = vst.msk [vmem:[#allocation2 + $0x2e8] sm:$0xf] %vm359, 0
        %548 = vst.msk [vmem:[#allocation2 + $0x2ec] sm:$0xf] %vm359, 0
        %549 = vst.msk [vmem:[#allocation2 + $0x2f0] sm:$0x3] %vm366, 0
        %550 = vst.msk [vmem:[#allocation2 + $0x2f4] sm:$0xf] %vm359, 0
        %551 = vst.msk [vmem:[#allocation2 + $0x2f8] sm:$0xf] %vm359, 0
        %552 = vst.msk [vmem:[#allocation2 + $0x2fc] sm:$0xf] %vm359, 0
        %553 = vst.msk [vmem:[#allocation2 + $0x300] sm:$0xf] %vm359, 0
        %554 = vst.msk [vmem:[#allocation2 + $0x304] sm:$0xf] %vm359, 0
        %555 = vst.msk [vmem:[#allocation2 + $0x308] sm:$0xf] %vm359, 0
        %556 = vst.msk [vmem:[#allocation2 + $0x30c] sm:$0x3] %vm366, 0
        %557 = vst.msk [vmem:[#allocation2 + $0x310] sm:$0xf] %vm359, 0
        %558 = vst.msk [vmem:[#allocation2 + $0x314] sm:$0xf] %vm359, 0
        %559 = vst.msk [vmem:[#allocation2 + $0x318] sm:$0xf] %vm359, 0
        %560 = vst.msk [vmem:[#allocation2 + $0x31c] sm:$0xf] %vm359, 0
        %561 = vst.msk [vmem:[#allocation2 + $0x320] sm:$0xf] %vm359, 0
        %562 = vst.msk [vmem:[#allocation2 + $0x324] sm:$0xf] %vm359, 0
        %563 = vst.msk [vmem:[#allocation2 + $0x328] sm:$0x3] %vm366, 0
        %564 = vst.msk [vmem:[#allocation2 + $0x32c] sm:$0xf] %vm359, 0
        %565 = vst.msk [vmem:[#allocation2 + $0x330] sm:$0xf] %vm359, 0
        %566 = vst.msk [vmem:[#allocation2 + $0x334] sm:$0xf] %vm359, 0
        %567 = vst.msk [vmem:[#allocation2 + $0x338] sm:$0xf] %vm359, 0
        %568 = vst.msk [vmem:[#allocation2 + $0x33c] sm:$0xf] %vm359, 0
        %569 = vst.msk [vmem:[#allocation2 + $0x340] sm:$0xf] %vm359, 0
        %570 = vst.msk [vmem:[#allocation2 + $0x344] sm:$0x3] %vm366, 0
        %571 = vst.msk [vmem:[#allocation2 + $0x348] sm:$0xf] %vm359, 0
        %572 = vst.msk [vmem:[#allocation2 + $0x34c] sm:$0xf] %vm359, 0
        %573 = vst.msk [vmem:[#allocation2 + $0x350] sm:$0xf] %vm359, 0
        %574 = vst.msk [vmem:[#allocation2 + $0x354] sm:$0xf] %vm359, 0
        %575 = vst.msk [vmem:[#allocation2 + $0x358] sm:$0xf] %vm359, 0
        %576 = vst.msk [vmem:[#allocation2 + $0x35c] sm:$0xf] %vm359, 0
        %577 = vst.msk [vmem:[#allocation2 + $0x360] sm:$0x3] %vm366, 0
        %578 = vst.msk [vmem:[#allocation2 + $0x364] sm:$0xf] %vm359, 0
        %579 = vst.msk [vmem:[#allocation2 + $0x368] sm:$0xf] %vm359, 0
        %580 = vst.msk [vmem:[#allocation2 + $0x36c] sm:$0xf] %vm359, 0
        %581 = vst.msk [vmem:[#allocation2 + $0x370] sm:$0xf] %vm359, 0
        %582 = vst.msk [vmem:[#allocation2 + $0x374] sm:$0xf] %vm359, 0
        %583 = vst.msk [vmem:[#allocation2 + $0x378] sm:$0xf] %vm359, 0
        %584 = vst.msk [vmem:[#allocation2 + $0x37c] sm:$0x3] %vm366, 0
        %585 = vst.msk [vmem:[#allocation2 + $0x380] sm:$0xf] %vm359, 0
        %586 = vst.msk [vmem:[#allocation2 + $0x384] sm:$0xf] %vm359, 0
        %587 = vst.msk [vmem:[#allocation2 + $0x388] sm:$0xf] %vm359, 0
        %588 = vst.msk [vmem:[#allocation2 + $0x38c] sm:$0xf] %vm359, 0
        %589 = vst.msk [vmem:[#allocation2 + $0x390] sm:$0xf] %vm359, 0
        %590 = vst.msk [vmem:[#allocation2 + $0x394] sm:$0xf] %vm359, 0
        %591 = vst.msk [vmem:[#allocation2 + $0x398] sm:$0x3] %vm366, 0
        %592 = vst.msk [vmem:[#allocation2 + $0x39c] sm:$0xf] %vm359, 0
        %593 = vst.msk [vmem:[#allocation2 + $0x3a0] sm:$0xf] %vm359, 0
        %594 = vst.msk [vmem:[#allocation2 + $0x3a4] sm:$0xf] %vm359, 0
        %595 = vst.msk [vmem:[#allocation2 + $0x3a8] sm:$0xf] %vm359, 0
        %596 = vst.msk [vmem:[#allocation2 + $0x3ac] sm:$0xf] %vm359, 0
        %597 = vst.msk [vmem:[#allocation2 + $0x3b0] sm:$0xf] %vm359, 0
        %598 = vst.msk [vmem:[#allocation2 + $0x3b4] sm:$0x3] %vm366, 0
        %599 = vst.msk [vmem:[#allocation2 + $0x3b8] sm:$0xf] %vm359, 0
        %600 = vst.msk [vmem:[#allocation2 + $0x3bc] sm:$0xf] %vm359, 0
        %601 = vst.msk [vmem:[#allocation2 + $0x3c0] sm:$0xf] %vm359, 0
        %602 = vst.msk [vmem:[#allocation2 + $0x3c4] sm:$0xf] %vm359, 0
        %603 = vst.msk [vmem:[#allocation2 + $0x3c8] sm:$0xf] %vm359, 0
        %604 = vst.msk [vmem:[#allocation2 + $0x3cc] sm:$0xf] %vm359, 0
        %605 = vst.msk [vmem:[#allocation2 + $0x3d0] sm:$0x3] %vm366, 0
        %606 = vst.msk [vmem:[#allocation2 + $0x3d4] sm:$0xf] %vm359, 0
        %607 = vst.msk [vmem:[#allocation2 + $0x3d8] sm:$0xf] %vm359, 0
        %608 = vst.msk [vmem:[#allocation2 + $0x3dc] sm:$0xf] %vm359, 0
        %609 = vst.msk [vmem:[#allocation2 + $0x3e0] sm:$0xf] %vm359, 0
        %610 = vst.msk [vmem:[#allocation2 + $0x3e4] sm:$0xf] %vm359, 0
        %611 = vst.msk [vmem:[#allocation2 + $0x3e8] sm:$0xf] %vm359, 0
        %612 = vst.msk [vmem:[#allocation2 + $0x3ec] sm:$0x3] %vm366, 0
        %613 = vst.msk [vmem:[#allocation2 + $0x3f0] sm:$0xf] %vm359, 0
        %614 = vst.msk [vmem:[#allocation2 + $0x3f4] sm:$0xf] %vm359, 0
        %615 = vst.msk [vmem:[#allocation2 + $0x3f8] sm:$0xf] %vm359, 0
        %616 = vst.msk [vmem:[#allocation2 + $0x3fc] sm:$0xf] %vm359, 0
        %617 = vst.msk [vmem:[#allocation2 + $0x400] sm:$0xf] %vm359, 0
        %618 = vst.msk [vmem:[#allocation2 + $0x404] sm:$0xf] %vm359, 0
        %619 = vst.msk [vmem:[#allocation2 + $0x408] sm:$0x3] %vm366, 0
        %620 = vst.msk [vmem:[#allocation2 + $0x40c] sm:$0xf] %vm359, 0
        %621 = vst.msk [vmem:[#allocation2 + $0x410] sm:$0xf] %vm359, 0
        %622 = vst.msk [vmem:[#allocation2 + $0x414] sm:$0xf] %vm359, 0
        %623 = vst.msk [vmem:[#allocation2 + $0x418] sm:$0xf] %vm359, 0
        %624 = vst.msk [vmem:[#allocation2 + $0x41c] sm:$0xf] %vm359, 0
        %625 = vst.msk [vmem:[#allocation2 + $0x420] sm:$0xf] %vm359, 0
        %626 = vst.msk [vmem:[#allocation2 + $0x424] sm:$0x3] %vm366, 0
        %627 = vst.msk [vmem:[#allocation2 + $0x428] sm:$0xf] %vm359, 0
        %628 = vst.msk [vmem:[#allocation2 + $0x42c] sm:$0xf] %vm359, 0
        %629 = vst.msk [vmem:[#allocation2 + $0x430] sm:$0xf] %vm359, 0
        %630 = vst.msk [vmem:[#allocation2 + $0x434] sm:$0xf] %vm359, 0
        %631 = vst.msk [vmem:[#allocation2 + $0x438] sm:$0xf] %vm359, 0
        %632 = vst.msk [vmem:[#allocation2 + $0x43c] sm:$0xf] %vm359, 0
        %633 = vst.msk [vmem:[#allocation2 + $0x440] sm:$0x3] %vm366, 0
        %634 = vst.msk [vmem:[#allocation2 + $0x444] sm:$0xf] %vm359, 0
        %635 = vst.msk [vmem:[#allocation2 + $0x448] sm:$0xf] %vm359, 0
        %636 = vst.msk [vmem:[#allocation2 + $0x44c] sm:$0xf] %vm359, 0
        %637 = vst.msk [vmem:[#allocation2 + $0x450] sm:$0xf] %vm359, 0
        %638 = vst.msk [vmem:[#allocation2 + $0x454] sm:$0xf] %vm359, 0
        %639 = vst.msk [vmem:[#allocation2 + $0x458] sm:$0xf] %vm359, 0
        %640 = vst.msk [vmem:[#allocation2 + $0x45c] sm:$0x3] %vm366, 0
        %641 = vst.msk [vmem:[#allocation2 + $0x460] sm:$0xf] %vm359, 0
        %642 = vst.msk [vmem:[#allocation2 + $0x464] sm:$0xf] %vm359, 0
        %643 = vst.msk [vmem:[#allocation2 + $0x468] sm:$0xf] %vm359, 0
        %644 = vst.msk [vmem:[#allocation2 + $0x46c] sm:$0xf] %vm359, 0
        %645 = vst.msk [vmem:[#allocation2 + $0x470] sm:$0xf] %vm359, 0
        %646 = vst.msk [vmem:[#allocation2 + $0x474] sm:$0xf] %vm359, 0
        %647 = vst.msk [vmem:[#allocation2 + $0x478] sm:$0x3] %vm366, 0
        %648 = vst.msk [vmem:[#allocation2 + $0x47c] sm:$0xf] %vm359, 0
        %649 = vst.msk [vmem:[#allocation2 + $0x480] sm:$0xf] %vm359, 0
        %650 = vst.msk [vmem:[#allocation2 + $0x484] sm:$0xf] %vm359, 0
        %651 = vst.msk [vmem:[#allocation2 + $0x488] sm:$0xf] %vm359, 0
        %652 = vst.msk [vmem:[#allocation2 + $0x48c] sm:$0xf] %vm359, 0
        %653 = vst.msk [vmem:[#allocation2 + $0x490] sm:$0xf] %vm359, 0
        %654 = vst.msk [vmem:[#allocation2 + $0x494] sm:$0x3] %vm366, 0
        %655 = vst.msk [vmem:[#allocation2 + $0x498] sm:$0xf] %vm359, 0
        %656 = vst.msk [vmem:[#allocation2 + $0x49c] sm:$0xf] %vm359, 0
        %657 = vst.msk [vmem:[#allocation2 + $0x4a0] sm:$0xf] %vm359, 0
        %658 = vst.msk [vmem:[#allocation2 + $0x4a4] sm:$0xf] %vm359, 0
        %659 = vst.msk [vmem:[#allocation2 + $0x4a8] sm:$0xf] %vm359, 0
        %660 = vst.msk [vmem:[#allocation2 + $0x4ac] sm:$0xf] %vm359, 0
        %661 = vst.msk [vmem:[#allocation2 + $0x4b0] sm:$0x3] %vm366, 0
        %662 = vst.msk [vmem:[#allocation2 + $0x4b4] sm:$0xf] %vm359, 0
        %663 = vst.msk [vmem:[#allocation2 + $0x4b8] sm:$0xf] %vm359, 0
        %664 = vst.msk [vmem:[#allocation2 + $0x4bc] sm:$0xf] %vm359, 0
        %665 = vst.msk [vmem:[#allocation2 + $0x4c0] sm:$0xf] %vm359, 0
        %666 = vst.msk [vmem:[#allocation2 + $0x4c4] sm:$0xf] %vm359, 0
        %667 = vst.msk [vmem:[#allocation2 + $0x4c8] sm:$0xf] %vm359, 0
        %668 = vst.msk [vmem:[#allocation2 + $0x4cc] sm:$0x3] %vm366, 0
        %669 = vst.msk [vmem:[#allocation2 + $0x4d0] sm:$0xf] %vm359, 0
        %670 = vst.msk [vmem:[#allocation2 + $0x4d4] sm:$0xf] %vm359, 0
        %671 = vst.msk [vmem:[#allocation2 + $0x4d8] sm:$0xf] %vm359, 0
        %672 = vst.msk [vmem:[#allocation2 + $0x4dc] sm:$0xf] %vm359, 0
        %673 = vst.msk [vmem:[#allocation2 + $0x4e0] sm:$0xf] %vm359, 0
        %674 = vst.msk [vmem:[#allocation2 + $0x4e4] sm:$0xf] %vm359, 0
        %675 = vst.msk [vmem:[#allocation2 + $0x4e8] sm:$0x3] %vm366, 0
        %676 = vst.msk [vmem:[#allocation2 + $0x4ec] sm:$0xf] %vm359, 0
        %677 = vst.msk [vmem:[#allocation2 + $0x4f0] sm:$0xf] %vm359, 0
        %678 = vst.msk [vmem:[#allocation2 + $0x4f4] sm:$0xf] %vm359, 0
        %679 = vst.msk [vmem:[#allocation2 + $0x4f8] sm:$0xf] %vm359, 0
        %680 = vst.msk [vmem:[#allocation2 + $0x4fc] sm:$0xf] %vm359, 0
        %681 = vst.msk [vmem:[#allocation2 + $0x500] sm:$0xf] %vm359, 0
        %682 = vst.msk [vmem:[#allocation2 + $0x504] sm:$0x3] %vm366, 0
        %683 = vst.msk [vmem:[#allocation2 + $0x508] sm:$0xf] %vm359, 0
        %684 = vst.msk [vmem:[#allocation2 + $0x50c] sm:$0xf] %vm359, 0
        %685 = vst.msk [vmem:[#allocation2 + $0x510] sm:$0xf] %vm359, 0
        %686 = vst.msk [vmem:[#allocation2 + $0x514] sm:$0xf] %vm359, 0
        %687 = vst.msk [vmem:[#allocation2 + $0x518] sm:$0xf] %vm359, 0
        %688 = vst.msk [vmem:[#allocation2 + $0x51c] sm:$0xf] %vm359, 0
        %689 = vst.msk [vmem:[#allocation2 + $0x520] sm:$0x3] %vm366, 0
        %690 = vst.msk [vmem:[#allocation2 + $0x524] sm:$0xf] %vm359, 0
        %691 = vst.msk [vmem:[#allocation2 + $0x528] sm:$0xf] %vm359, 0
        %692 = vst.msk [vmem:[#allocation2 + $0x52c] sm:$0xf] %vm359, 0
        %693 = vst.msk [vmem:[#allocation2 + $0x530] sm:$0xf] %vm359, 0
        %694 = vst.msk [vmem:[#allocation2 + $0x534] sm:$0xf] %vm359, 0
        %695 = vst.msk [vmem:[#allocation2 + $0x538] sm:$0xf] %vm359, 0
        %696 = vst.msk [vmem:[#allocation2 + $0x53c] sm:$0x3] %vm366, 0
        %697 = vst.msk [vmem:[#allocation2 + $0x540] sm:$0xf] %vm359, 0
        %698 = vst.msk [vmem:[#allocation2 + $0x544] sm:$0xf] %vm359, 0
        %699 = vst.msk [vmem:[#allocation2 + $0x548] sm:$0xf] %vm359, 0
        %700 = vst.msk [vmem:[#allocation2 + $0x54c] sm:$0xf] %vm359, 0
        %701 = vst.msk [vmem:[#allocation2 + $0x550] sm:$0xf] %vm359, 0
        %702 = vst.msk [vmem:[#allocation2 + $0x554] sm:$0xf] %vm359, 0
        %703 = vst.msk [vmem:[#allocation2 + $0x558] sm:$0x3] %vm366, 0
        %704 = vst.msk [vmem:[#allocation2 + $0x55c] sm:$0xf] %vm359, 0
        %705 = vst.msk [vmem:[#allocation2 + $0x560] sm:$0xf] %vm359, 0
        %706 = vst.msk [vmem:[#allocation2 + $0x564] sm:$0xf] %vm359, 0
        %707 = vst.msk [vmem:[#allocation2 + $0x568] sm:$0xf] %vm359, 0
        %708 = vst.msk [vmem:[#allocation2 + $0x56c] sm:$0xf] %vm359, 0
        %709 = vst.msk [vmem:[#allocation2 + $0x570] sm:$0xf] %vm359, 0
        %710 = vst.msk [vmem:[#allocation2 + $0x574] sm:$0x3] %vm366, 0
        %711 = vst.msk [vmem:[#allocation2 + $0x578] sm:$0xf] %vm359, 0
        %712 = vst.msk [vmem:[#allocation2 + $0x57c] sm:$0xf] %vm359, 0
        %713 = vst.msk [vmem:[#allocation2 + $0x580] sm:$0xf] %vm359, 0
        %714 = vst.msk [vmem:[#allocation2 + $0x584] sm:$0xf] %vm359, 0
        %715 = vst.msk [vmem:[#allocation2 + $0x588] sm:$0xf] %vm359, 0
        %716 = vst.msk [vmem:[#allocation2 + $0x58c] sm:$0xf] %vm359, 0
        %717 = vst.msk [vmem:[#allocation2 + $0x590] sm:$0x3] %vm366, 0
        %718 = vst.msk [vmem:[#allocation2 + $0x594] sm:$0xf] %vm359, 0
        %719 = vst.msk [vmem:[#allocation2 + $0x598] sm:$0xf] %vm359, 0
        %720 = vst.msk [vmem:[#allocation2 + $0x59c] sm:$0xf] %vm359, 0
        %721 = vst.msk [vmem:[#allocation2 + $0x5a0] sm:$0xf] %vm359, 0
        %722 = vst.msk [vmem:[#allocation2 + $0x5a4] sm:$0xf] %vm359, 0
        %723 = vst.msk [vmem:[#allocation2 + $0x5a8] sm:$0xf] %vm359, 0
        %724 = vst.msk [vmem:[#allocation2 + $0x5ac] sm:$0x3] %vm366, 0
        %v725 = vld [vmem:[%s357] sm:$0xf]
        %v726 = vld [vmem:[%s357 + $0x4] sm:$0xf]
        %v727 = vld [vmem:[%s357 + $0x8] sm:$0xf]
        %v728 = vld [vmem:[%s357 + $0xc] sm:$0xf]
        %v729 = vld [vmem:[%s357 + $0x10] sm:$0xf]
        %v730 = vld [vmem:[%s357 + $0x14] sm:$0xf]
        %v731 = vld [vmem:[%s357 + $0x18] sm:$0xf]
        %v732 = vld [vmem:[%s357 + $0x1c] sm:$0xf]
        %v733 = vld [vmem:[%s357 + $0x20] sm:$0xf]
        %v734 = vld [vmem:[%s357 + $0x24] sm:$0xf]
        %v735 = vld [vmem:[%s357 + $0x28] sm:$0xf]
        %v736 = vld [vmem:[%s357 + $0x2c] sm:$0xf]
        %v737 = vld [vmem:[%s357 + $0x30] sm:$0xf]
        %v738 = vld [vmem:[%s357 + $0x34] sm:$0xf]
        %v739 = vld [vmem:[%s357 + $0x38] sm:$0xf]
        %v740 = vld [vmem:[%s357 + $0x3c] sm:$0xf]
        %v741 = vld [vmem:[%s357 + $0x40] sm:$0xf]
        %v742 = vld [vmem:[%s357 + $0x44] sm:$0xf]
        %v743 = vld [vmem:[%s357 + $0x48] sm:$0xf]
        %v744 = vld [vmem:[%s357 + $0x4c] sm:$0xf]
        %v745 = vld [vmem:[%s357 + $0x50] sm:$0xf]
        %v746 = vld [vmem:[%s357 + $0x54] sm:$0xf]
        %v747 = vld [vmem:[%s357 + $0x58] sm:$0xf]
        %v748 = vld [vmem:[%s357 + $0x5c] sm:$0xf]
        %v749 = vld [vmem:[%s357 + $0x60] sm:$0xf]
        %v750 = vld [vmem:[%s357 + $0x64] sm:$0xf]
        %v751 = vld [vmem:[%s357 + $0x68] sm:$0xf]
        %v752 = vld [vmem:[%s357 + $0x6c] sm:$0xf]
        %v753 = vld [vmem:[%s357 + $0x70] sm:$0xf]
        %v754 = vld [vmem:[%s357 + $0x74] sm:$0xf]
        %v755 = vld [vmem:[%s357 + $0x78] sm:$0xf]
        %v756 = vld [vmem:[%s357 + $0x7c] sm:$0xf]
        %vm789 = vcmask 1040384
        %vm790 = vcmask 1044484
        %vm791 = vmor %vm789, %vm790
        %v792 = vrot.slane %v725, 7
        %v793 = vrot.slane %v792, 4
        %v794 = vrot.slane %v726, 7
        %v795 = vsel %vm791, %v793, %v794
        %v796 = vrot.slane %v794, 4
        %v797 = vrot.slane %v727, 7
        %v798 = vrot.slane %v797, 4
        %v799 = vrot.slane %v728, 7
        %v800 = vsel %vm791, %v798, %v799
        %v801 = vrot.slane %v799, 4
        %v802 = vrot.slane %v729, 7
        %v803 = vrot.slane %v802, 4
        %v804 = vrot.slane %v730, 7
        %v805 = vsel %vm791, %v803, %v804
        %v806 = vrot.slane %v804, 4
        %v807 = vrot.slane %v731, 7
        %v808 = vrot.slane %v807, 4
        %v809 = vrot.slane %v732, 7
        %v810 = vsel %vm791, %v808, %v809
        %v811 = vrot.slane %v809, 4
        %v812 = vrot.slane %v733, 7
        %v813 = vrot.slane %v812, 4
        %v814 = vrot.slane %v734, 7
        %v815 = vsel %vm791, %v813, %v814
        %v816 = vrot.slane %v814, 4
        %v817 = vrot.slane %v735, 7
        %v818 = vrot.slane %v817, 4
        %v819 = vrot.slane %v736, 7
        %v820 = vsel %vm791, %v818, %v819
        %v821 = vrot.slane %v819, 4
        %v822 = vrot.slane %v737, 7
        %v823 = vrot.slane %v822, 4
        %v824 = vrot.slane %v738, 7
        %v825 = vsel %vm791, %v823, %v824
        %v826 = vrot.slane %v824, 4
        %v827 = vrot.slane %v739, 7
        %v828 = vrot.slane %v827, 4
        %v829 = vrot.slane %v740, 7
        %v830 = vsel %vm791, %v828, %v829
        %v831 = vrot.slane %v829, 4
        %v832 = vrot.slane %v741, 7
        %v833 = vrot.slane %v832, 4
        %v834 = vrot.slane %v742, 7
        %v835 = vsel %vm791, %v833, %v834
        %v836 = vrot.slane %v834, 4
        %v837 = vrot.slane %v743, 7
        %v838 = vrot.slane %v837, 4
        %v839 = vrot.slane %v744, 7
        %v840 = vsel %vm791, %v838, %v839
        %v841 = vrot.slane %v839, 4
        %v842 = vrot.slane %v745, 7
        %v843 = vrot.slane %v842, 4
        %v844 = vrot.slane %v746, 7
        %v845 = vsel %vm791, %v843, %v844
        %v846 = vrot.slane %v844, 4
        %v847 = vrot.slane %v747, 7
        %v848 = vrot.slane %v847, 4
        %v849 = vrot.slane %v748, 7
        %v850 = vsel %vm791, %v848, %v849
        %v851 = vrot.slane %v849, 4
        %v852 = vrot.slane %v749, 7
        %v853 = vrot.slane %v852, 4
        %v854 = vrot.slane %v750, 7
        %v855 = vsel %vm791, %v853, %v854
        %v856 = vrot.slane %v854, 4
        %v857 = vrot.slane %v751, 7
        %v858 = vrot.slane %v857, 4
        %v859 = vrot.slane %v752, 7
        %v860 = vsel %vm791, %v858, %v859
        %v861 = vrot.slane %v859, 4
        %v862 = vrot.slane %v753, 7
        %v863 = vrot.slane %v862, 4
        %v864 = vrot.slane %v754, 7
        %v865 = vsel %vm791, %v863, %v864
        %v866 = vrot.slane %v864, 4
        %v867 = vrot.slane %v755, 7
        %v868 = vrot.slane %v867, 4
        %v869 = vrot.slane %v756, 7
        %v870 = vsel %vm791, %v868, %v869
        %v871 = vrot.slane %v869, 4
        %s920 = scalar_lea.vmem [#allocation2], 504
        %vm921 = vcmask 27649
        %922 = vst.msk [vmem:[%s920 + $0x8] sm:$0xe] %vm921, %v792
        %923 = vst.msk [vmem:[%s920 + $0xc] sm:$0xf] %vm359, %v795
        %vm924 = vcmask 24576
        %925 = vst.msk [vmem:[%s920 + $0x10] sm:$0x1] %vm924, %v796
        %926 = vst.msk [vmem:[%s920 + $0x24] sm:$0xe] %vm921, %v797
        %927 = vst.msk [vmem:[%s920 + $0x28] sm:$0xf] %vm359, %v800
        %928 = vst.msk [vmem:[%s920 + $0x2c] sm:$0x1] %vm924, %v801
        %929 = vst.msk [vmem:[%s920 + $0x40] sm:$0xe] %vm921, %v802
        %930 = vst.msk [vmem:[%s920 + $0x44] sm:$0xf] %vm359, %v805
        %931 = vst.msk [vmem:[%s920 + $0x48] sm:$0x1] %vm924, %v806
        %932 = vst.msk [vmem:[%s920 + $0x5c] sm:$0xe] %vm921, %v807
        %933 = vst.msk [vmem:[%s920 + $0x60] sm:$0xf] %vm359, %v810
        %934 = vst.msk [vmem:[%s920 + $0x64] sm:$0x1] %vm924, %v811
        %935 = vst.msk [vmem:[%s920 + $0x78] sm:$0xe] %vm921, %v812
        %936 = vst.msk [vmem:[%s920 + $0x7c] sm:$0xf] %vm359, %v815
        %937 = vst.msk [vmem:[%s920 + $0x80] sm:$0x1] %vm924, %v816
        %938 = vst.msk [vmem:[%s920 + $0x94] sm:$0xe] %vm921, %v817
        %939 = vst.msk [vmem:[%s920 + $0x98] sm:$0xf] %vm359, %v820
        %940 = vst.msk [vmem:[%s920 + $0x9c] sm:$0x1] %vm924, %v821
        %941 = vst.msk [vmem:[%s920 + $0xb0] sm:$0xe] %vm921, %v822
        %942 = vst.msk [vmem:[%s920 + $0xb4] sm:$0xf] %vm359, %v825
        %943 = vst.msk [vmem:[%s920 + $0xb8] sm:$0x1] %vm924, %v826
        %944 = vst.msk [vmem:[%s920 + $0xcc] sm:$0xe] %vm921, %v827
        %945 = vst.msk [vmem:[%s920 + $0xd0] sm:$0xf] %vm359, %v830
        %946 = vst.msk [vmem:[%s920 + $0xd4] sm:$0x1] %vm924, %v831
        %947 = vst.msk [vmem:[%s920 + $0xe8] sm:$0xe] %vm921, %v832
        %948 = vst.msk [vmem:[%s920 + $0xec] sm:$0xf] %vm359, %v835
        %949 = vst.msk [vmem:[%s920 + $0xf0] sm:$0x1] %vm924, %v836
        %950 = vst.msk [vmem:[%s920 + $0x104] sm:$0xe] %vm921, %v837
        %951 = vst.msk [vmem:[%s920 + $0x108] sm:$0xf] %vm359, %v840
        %952 = vst.msk [vmem:[%s920 + $0x10c] sm:$0x1] %vm924, %v841
        %953 = vst.msk [vmem:[%s920 + $0x120] sm:$0xe] %vm921, %v842
        %954 = vst.msk [vmem:[%s920 + $0x124] sm:$0xf] %vm359, %v845
        %955 = vst.msk [vmem:[%s920 + $0x128] sm:$0x1] %vm924, %v846
        %956 = vst.msk [vmem:[%s920 + $0x13c] sm:$0xe] %vm921, %v847
        %957 = vst.msk [vmem:[%s920 + $0x140] sm:$0xf] %vm359, %v850
        %958 = vst.msk [vmem:[%s920 + $0x144] sm:$0x1] %vm924, %v851
        %959 = vst.msk [vmem:[%s920 + $0x158] sm:$0xe] %vm921, %v852
        %960 = vst.msk [vmem:[%s920 + $0x15c] sm:$0xf] %vm359, %v855
        %961 = vst.msk [vmem:[%s920 + $0x160] sm:$0x1] %vm924, %v856
        %962 = vst.msk [vmem:[%s920 + $0x174] sm:$0xe] %vm921, %v857
        %963 = vst.msk [vmem:[%s920 + $0x178] sm:$0xf] %vm359, %v860
        %964 = vst.msk [vmem:[%s920 + $0x17c] sm:$0x1] %vm924, %v861
        %965 = vst.msk [vmem:[%s920 + $0x190] sm:$0xe] %vm921, %v862
        %966 = vst.msk [vmem:[%s920 + $0x194] sm:$0xf] %vm359, %v865
        %967 = vst.msk [vmem:[%s920 + $0x198] sm:$0x1] %vm924, %v866
        %968 = vst.msk [vmem:[%s920 + $0x1ac] sm:$0xe] %vm921, %v867
        %969 = vst.msk [vmem:[%s920 + $0x1b0] sm:$0xf] %vm359, %v870
        %970 = vst.msk [vmem:[%s920 + $0x1b4] sm:$0x1] %vm924, %v871
        %v971 = vld [vmem:[%s8] sm:$0x3f]
        %v972 = vld [vmem:[%s9] sm:$0x3f]
        %v973 = vld [vmem:[%s1] sm:$0x3]
        %v974 = vunpack.c.l.b16 %v725
        %v975 = vunpack.c.l.b16 %v726
        %v976 = vunpack.c.l.b16 %v727
        %v977 = vunpack.c.l.b16 %v728
        %v978 = vunpack.c.l.b16 %v729
        %v979 = vunpack.c.l.b16 %v730
        %v980 = vunpack.c.l.b16 %v731
        %v981 = vunpack.c.l.b16 %v732
        %v982 = vunpack.c.l.b16 %v733
        %v983 = vunpack.c.l.b16 %v734
        %v984 = vunpack.c.l.b16 %v735
        %v985 = vunpack.c.l.b16 %v736
        %v986 = vunpack.c.l.b16 %v737
        %v987 = vunpack.c.l.b16 %v738
        %v988 = vunpack.c.l.b16 %v739
        %v989 = vunpack.c.l.b16 %v740
        %v990 = vunpack.c.l.b16 %v741
        %v991 = vunpack.c.l.b16 %v742
        %v992 = vunpack.c.l.b16 %v743
        %v993 = vunpack.c.l.b16 %v744
        %v994 = vunpack.c.l.b16 %v745
        %v995 = vunpack.c.l.b16 %v746
        %v996 = vunpack.c.l.b16 %v747
        %v997 = vunpack.c.l.b16 %v748
        %v998 = vunpack.c.l.b16 %v749
        %v999 = vunpack.c.l.b16 %v750
        %v1000 = vunpack.c.l.b16 %v751
        %v1001 = vunpack.c.l.b16 %v752
        %v1002 = vunpack.c.l.b16 %v753
        %v1003 = vunpack.c.l.b16 %v754
        %v1004 = vunpack.c.l.b16 %v755
        %v1005 = vunpack.c.l.b16 %v756
        %v1006 = vpack.c.b16 %v975, %v974
        %v1007 = vpack.c.b16 %v977, %v976
        %v1008 = vpack.c.b16 %v979, %v978
        %v1009 = vpack.c.b16 %v981, %v980
        %v1010 = vpack.c.b16 %v983, %v982
        %v1011 = vpack.c.b16 %v985, %v984
        %v1012 = vpack.c.b16 %v987, %v986
        %v1013 = vpack.c.b16 %v989, %v988
        %v1014 = vpack.c.b16 %v991, %v990
        %v1015 = vpack.c.b16 %v993, %v992
        %v1016 = vpack.c.b16 %v995, %v994
        %v1017 = vpack.c.b16 %v997, %v996
        %v1018 = vpack.c.b16 %v999, %v998
        %v1019 = vpack.c.b16 %v1001, %v1000
        %v1020 = vpack.c.b16 %v1003, %v1002
        %v1021 = vpack.c.b16 %v1005, %v1004
        %vm1022 = vcmask 31744
        %v1024 = vsel %vm1022, %v1006, 0
        %v1027 = vsel %vm1022, %v1007, 0
        %v1030 = vsel %vm1022, %v1008, 0
        %v1033 = vsel %vm1022, %v1009, 0
        %v1036 = vsel %vm1022, %v1010, 0
        %v1039 = vsel %vm1022, %v1011, 0
        %v1042 = vsel %vm1022, %v1012, 0
        %v1045 = vsel %vm1022, %v1013, 0
        %v1048 = vsel %vm1022, %v1014, 0
        %v1051 = vsel %vm1022, %v1015, 0
        %v1054 = vsel %vm1022, %v1016, 0
        %v1057 = vsel %vm1022, %v1017, 0
        %v1060 = vsel %vm1022, %v1018, 0
        %v1063 = vsel %vm1022, %v1019, 0
        %v1066 = vsel %vm1022, %v1020, 0
        %v1069 = vsel %vm1022, %v1021, 0
        %vm1071 = vcmask 1041408
        %v1073 = vsel %vm1071, %v973, 0
        %1075 = vmatprep.subr.bf16.mxu0 0
        %1076 = vmatpush1.bf16.msra.mxu0 %v1073
        %1077 = vmatprep.subr.bf16.mxu0 0
        %1078 = vmatpush1.bf16.msra.mxu0 0
        %1079 = vmatprep.subr.bf16.mxu0 0
        %1080 = vmatpush1.bf16.msra.mxu0 0
        %1081 = vmatprep.subr.bf16.mxu0 0
        %1082 = vmatpush1.bf16.msra.mxu0 0
        %1083 = vmatprep.subr.bf16.mxu0 0
        %1084 = vmatpush1.bf16.msra.mxu0 0
        %1085 = vmatprep.subr.bf16.mxu0 0
        %1086 = vmatpush1.bf16.msra.mxu0 0
        %1087 = vmatprep.subr.bf16.mxu0 0
        %1088 = vmatpush1.bf16.msra.mxu0 0
        %1089 = vmatprep.subr.bf16.mxu0 0
        %1090 = vmatpush1.bf16.msra.mxu0 0
        %1091 = vmatprep.subr.bf16.mxu0 0
        %1092 = vmatpush1.bf16.msra.mxu0 0
        %1093 = vmatprep.subr.bf16.mxu0 0
        %1094 = vmatpush1.bf16.msra.mxu0 0
        %1095 = vmatprep.subr.bf16.mxu0 0
        %1096 = vmatpush1.bf16.msra.mxu0 0
        %1097 = vmatprep.subr.bf16.mxu0 0
        %1098 = vmatpush1.bf16.msra.mxu0 0
        %1099 = vmatprep.subr.bf16.mxu0 0
        %1100 = vmatpush1.bf16.msra.mxu0 0
        %1101 = vmatprep.subr.bf16.mxu0 0
        %1102 = vmatpush1.bf16.msra.mxu0 0
        %1103 = vmatprep.subr.bf16.mxu0 0
        %1104 = vmatpush1.bf16.msra.mxu0 0
        %1105 = vmatprep.subr.bf16.mxu0 0
        %1106 = vmatpush1.bf16.msra.mxu0 0
        %1107 = vmatprep.mubr.bf16.mxu0 0
        %1108 = vmatmul.mubr.bf16.gmra.mrb[0].mxu0 %v1024
        %v1109 = vpop.f32.mrb[0].mxu0
        %v1110 = vadd.f32 0.0, %v1109
        %v1111 = vpop.f32.mrb[0].mxu0
        %v1112 = vpop.f32.mrb[0].mxu0
        %v1113 = vadd.f32 0.0, %v1112
        %v1114 = vpop.f32.mrb[0].mxu0
        %1115 = vmatprep.mubr.bf16.mxu0 0
        %1116 = vmatmul.mubr.bf16.gmra.mrb[0].mxu0 %v1027
        %v1117 = vpop.f32.mrb[0].mxu0
        %v1118 = vadd.f32 0.0, %v1117
        %v1119 = vpop.f32.mrb[0].mxu0
        %v1120 = vpop.f32.mrb[0].mxu0
        %v1121 = vadd.f32 0.0, %v1120
        %v1122 = vpop.f32.mrb[0].mxu0
        %1123 = vmatprep.mubr.bf16.mxu0 0
        %1124 = vmatmul.mubr.bf16.gmra.mrb[0].mxu0 %v1030
        %v1125 = vpop.f32.mrb[0].mxu0
        %v1126 = vadd.f32 0.0, %v1125
        %v1127 = vpop.f32.mrb[0].mxu0
        %v1128 = vpop.f32.mrb[0].mxu0
        %v1129 = vadd.f32 0.0, %v1128
        %v1130 = vpop.f32.mrb[0].mxu0
        %1131 = vmatprep.mubr.bf16.mxu0 0
        %1132 = vmatmul.mubr.bf16.gmra.mrb[0].mxu0 %v1033
        %v1133 = vpop.f32.mrb[0].mxu0
        %v1134 = vadd.f32 0.0, %v1133
        %v1135 = vpop.f32.mrb[0].mxu0
        %v1136 = vpop.f32.mrb[0].mxu0
        %v1137 = vadd.f32 0.0, %v1136
        %v1138 = vpop.f32.mrb[0].mxu0
        %1139 = vmatprep.mubr.bf16.mxu0 0
        %1140 = vmatmul.mubr.bf16.gmra.mrb[0].mxu0 %v1036
        %v1141 = vpop.f32.mrb[0].mxu0
        %v1142 = vadd.f32 0.0, %v1141
        %v1143 = vpop.f32.mrb[0].mxu0
        %v1144 = vpop.f32.mrb[0].mxu0
        %v1145 = vadd.f32 0.0, %v1144
        %v1146 = vpop.f32.mrb[0].mxu0
        %1147 = vmatprep.mubr.bf16.mxu0 0
        %1148 = vmatmul.mubr.bf16.gmra.mrb[0].mxu0 %v1039
        %v1149 = vpop.f32.mrb[0].mxu0
        %v1150 = vadd.f32 0.0, %v1149
        %v1151 = vpop.f32.mrb[0].mxu0
        %v1152 = vpop.f32.mrb[0].mxu0
        %v1153 = vadd.f32 0.0, %v1152
        %v1154 = vpop.f32.mrb[0].mxu0
        %1155 = vmatprep.mubr.bf16.mxu0 0
        %1156 = vmatmul.mubr.bf16.gmra.mrb[0].mxu0 %v1042
        %v1157 = vpop.f32.mrb[0].mxu0
        %v1158 = vadd.f32 0.0, %v1157
        %v1159 = vpop.f32.mrb[0].mxu0
        %v1160 = vpop.f32.mrb[0].mxu0
        %v1161 = vadd.f32 0.0, %v1160
        %v1162 = vpop.f32.mrb[0].mxu0
        %1163 = vmatprep.mubr.bf16.mxu0 0
        %1164 = vmatmul.mubr.bf16.gmra.mrb[0].mxu0 %v1045
        %v1165 = vpop.f32.mrb[0].mxu0
        %v1166 = vadd.f32 0.0, %v1165
        %v1167 = vpop.f32.mrb[0].mxu0
        %v1168 = vpop.f32.mrb[0].mxu0
        %v1169 = vadd.f32 0.0, %v1168
        %v1170 = vpop.f32.mrb[0].mxu0
        %1171 = vmatprep.mubr.bf16.mxu0 0
        %1172 = vmatmul.mubr.bf16.gmra.mrb[0].mxu0 %v1048
        %v1173 = vpop.f32.mrb[0].mxu0
        %v1174 = vadd.f32 0.0, %v1173
        %v1175 = vpop.f32.mrb[0].mxu0
        %v1176 = vpop.f32.mrb[0].mxu0
        %v1177 = vadd.f32 0.0, %v1176
        %v1178 = vpop.f32.mrb[0].mxu0
        %1179 = vmatprep.mubr.bf16.mxu0 0
        %1180 = vmatmul.mubr.bf16.gmra.mrb[0].mxu0 %v1051
        %v1181 = vpop.f32.mrb[0].mxu0
        %v1182 = vadd.f32 0.0, %v1181
        %v1183 = vpop.f32.mrb[0].mxu0
        %v1184 = vpop.f32.mrb[0].mxu0
        %v1185 = vadd.f32 0.0, %v1184
        %v1186 = vpop.f32.mrb[0].mxu0
        %1187 = vmatprep.mubr.bf16.mxu0 0
        %1188 = vmatmul.mubr.bf16.gmra.mrb[0].mxu0 %v1054
        %v1189 = vpop.f32.mrb[0].mxu0
        %v1190 = vadd.f32 0.0, %v1189
        %v1191 = vpop.f32.mrb[0].mxu0
        %v1192 = vpop.f32.mrb[0].mxu0
        %v1193 = vadd.f32 0.0, %v1192
        %v1194 = vpop.f32.mrb[0].mxu0
        %1195 = vmatprep.mubr.bf16.mxu0 0
        %1196 = vmatmul.mubr.bf16.gmra.mrb[0].mxu0 %v1057
        %v1197 = vpop.f32.mrb[0].mxu0
        %v1198 = vadd.f32 0.0, %v1197
        %v1199 = vpop.f32.mrb[0].mxu0
        %v1200 = vpop.f32.mrb[0].mxu0
        %v1201 = vadd.f32 0.0, %v1200
        %v1202 = vpop.f32.mrb[0].mxu0
        %1203 = vmatprep.mubr.bf16.mxu0 0
        %1204 = vmatmul.mubr.bf16.gmra.mrb[0].mxu0 %v1060
        %v1205 = vpop.f32.mrb[0].mxu0
        %v1206 = vadd.f32 0.0, %v1205
        %v1207 = vpop.f32.mrb[0].mxu0
        %v1208 = vpop.f32.mrb[0].mxu0
        %v1209 = vadd.f32 0.0, %v1208
        %v1210 = vpop.f32.mrb[0].mxu0
        %1211 = vmatprep.mubr.bf16.mxu0 0
        %1212 = vmatmul.mubr.bf16.gmra.mrb[0].mxu0 %v1063
        %v1213 = vpop.f32.mrb[0].mxu0
        %v1214 = vadd.f32 0.0, %v1213
        %v1215 = vpop.f32.mrb[0].mxu0
        %v1216 = vpop.f32.mrb[0].mxu0
        %v1217 = vadd.f32 0.0, %v1216
        %v1218 = vpop.f32.mrb[0].mxu0
        %1219 = vmatprep.mubr.bf16.mxu0 0
        %1220 = vmatmul.mubr.bf16.gmra.mrb[0].mxu0 %v1066
        %v1221 = vpop.f32.mrb[0].mxu0
        %v1222 = vadd.f32 0.0, %v1221
        %v1223 = vpop.f32.mrb[0].mxu0
        %v1224 = vpop.f32.mrb[0].mxu0
        %v1225 = vadd.f32 0.0, %v1224
        %v1226 = vpop.f32.mrb[0].mxu0
        %1227 = vmatprep.mubr.bf16.mxu0 0
        %1228 = vmatmul.mubr.bf16.gmra.mrb[0].mxu0 %v1069
        %v1229 = vpop.f32.mrb[0].mxu0
        %v1230 = vadd.f32 0.0, %v1229
        %v1231 = vpop.f32.mrb[0].mxu0
        %v1232 = vpop.f32.mrb[0].mxu0
        %v1233 = vadd.f32 0.0, %v1232
        %v1234 = vpop.f32.mrb[0].mxu0
        %1235 = vdwg.mxu0
        %v1236 = vlaneseq
        %v1237 = vshrl.u32 %v1236, 7
        %v1238 = vsub.s32 0, %v1237
        %v1239 = vrot.slane %v971, %v1238
        %v1240 = vmul.f32 %v1110, %v1239
        %v1241 = vmul.f32 %v1113, %v1239
        %v1242 = vmul.f32 %v1118, %v1239
        %v1243 = vmul.f32 %v1121, %v1239
        %v1244 = vmul.f32 %v1126, %v1239
        %v1245 = vmul.f32 %v1129, %v1239
        %v1246 = vmul.f32 %v1134, %v1239
        %v1247 = vmul.f32 %v1137, %v1239
        %v1248 = vmul.f32 %v1142, %v1239
        %v1249 = vmul.f32 %v1145, %v1239
        %v1250 = vmul.f32 %v1150, %v1239
        %v1251 = vmul.f32 %v1153, %v1239
        %v1252 = vmul.f32 %v1158, %v1239
        %v1253 = vmul.f32 %v1161, %v1239
        %v1254 = vmul.f32 %v1166, %v1239
        %v1255 = vmul.f32 %v1169, %v1239
        %v1256 = vmul.f32 %v1174, %v1239
        %v1257 = vmul.f32 %v1177, %v1239
        %v1258 = vmul.f32 %v1182, %v1239
        %v1259 = vmul.f32 %v1185, %v1239
        %v1260 = vmul.f32 %v1190, %v1239
        %v1261 = vmul.f32 %v1193, %v1239
        %v1262 = vmul.f32 %v1198, %v1239
        %v1263 = vmul.f32 %v1201, %v1239
        %v1264 = vmul.f32 %v1206, %v1239
        %v1265 = vmul.f32 %v1209, %v1239
        %v1266 = vmul.f32 %v1214, %v1239
        %v1267 = vmul.f32 %v1217, %v1239
        %v1268 = vmul.f32 %v1222, %v1239
        %v1269 = vmul.f32 %v1225, %v1239
        %v1270 = vmul.f32 %v1230, %v1239
        %v1271 = vmul.f32 %v1233, %v1239
        %v1272 = vlaneseq
        %v1273 = vshrl.u32 %v1272, 7
        %v1274 = vsub.s32 0, %v1273
        %v1275 = vrot.slane %v972, %v1274
        %v1276 = vadd.f32 %v1240, %v1275
        %v1277 = vadd.f32 %v1241, %v1275
        %v1278 = vadd.f32 %v1242, %v1275
        %v1279 = vadd.f32 %v1243, %v1275
        %v1280 = vadd.f32 %v1244, %v1275
        %v1281 = vadd.f32 %v1245, %v1275
        %v1282 = vadd.f32 %v1246, %v1275
        %v1283 = vadd.f32 %v1247, %v1275
        %v1284 = vadd.f32 %v1248, %v1275
        %v1285 = vadd.f32 %v1249, %v1275
        %v1286 = vadd.f32 %v1250, %v1275
        %v1287 = vadd.f32 %v1251, %v1275
        %v1288 = vadd.f32 %v1252, %v1275
        %v1289 = vadd.f32 %v1253, %v1275
        %v1290 = vadd.f32 %v1254, %v1275
        %v1291 = vadd.f32 %v1255, %v1275
        %v1292 = vadd.f32 %v1256, %v1275
        %v1293 = vadd.f32 %v1257, %v1275
        %v1294 = vadd.f32 %v1258, %v1275
        %v1295 = vadd.f32 %v1259, %v1275
        %v1296 = vadd.f32 %v1260, %v1275
        %v1297 = vadd.f32 %v1261, %v1275
        %v1298 = vadd.f32 %v1262, %v1275
        %v1299 = vadd.f32 %v1263, %v1275
        %v1300 = vadd.f32 %v1264, %v1275
        %v1301 = vadd.f32 %v1265, %v1275
        %v1302 = vadd.f32 %v1266, %v1275
        %v1303 = vadd.f32 %v1267, %v1275
        %v1304 = vadd.f32 %v1268, %v1275
        %v1305 = vadd.f32 %v1269, %v1275
        %v1306 = vadd.f32 %v1270, %v1275
        %v1307 = vadd.f32 %v1271, %v1275
        %v1308 = vmax.f32 %v1276, 0.0
        %v1309 = vmax.f32 %v1277, 0.0
        %v1310 = vmax.f32 %v1278, 0.0
        %v1311 = vmax.f32 %v1279, 0.0
        %v1312 = vmax.f32 %v1280, 0.0
        %v1313 = vmax.f32 %v1281, 0.0
        %v1314 = vmax.f32 %v1282, 0.0
        %v1315 = vmax.f32 %v1283, 0.0
        %v1316 = vmax.f32 %v1284, 0.0
        %v1317 = vmax.f32 %v1285, 0.0
        %v1318 = vmax.f32 %v1286, 0.0
        %v1319 = vmax.f32 %v1287, 0.0
        %v1320 = vmax.f32 %v1288, 0.0
        %v1321 = vmax.f32 %v1289, 0.0
        %v1322 = vmax.f32 %v1290, 0.0
        %v1323 = vmax.f32 %v1291, 0.0
        %v1324 = vmax.f32 %v1292, 0.0
        %v1325 = vmax.f32 %v1293, 0.0
        %v1326 = vmax.f32 %v1294, 0.0
        %v1327 = vmax.f32 %v1295, 0.0
        %v1328 = vmax.f32 %v1296, 0.0
        %v1329 = vmax.f32 %v1297, 0.0
        %v1330 = vmax.f32 %v1298, 0.0
        %v1331 = vmax.f32 %v1299, 0.0
        %v1332 = vmax.f32 %v1300, 0.0
        %v1333 = vmax.f32 %v1301, 0.0
        %v1334 = vmax.f32 %v1302, 0.0
        %v1335 = vmax.f32 %v1303, 0.0
        %v1336 = vmax.f32 %v1304, 0.0
        %v1337 = vmax.f32 %v1305, 0.0
        %v1338 = vmax.f32 %v1306, 0.0
        %v1339 = vmax.f32 %v1307, 0.0
        %v1340 = vpack.c.bf16 %v1309, %v1308
        %v1341 = vpack.c.bf16 %v1311, %v1310
        %v1342 = vpack.c.bf16 %v1313, %v1312
        %v1343 = vpack.c.bf16 %v1315, %v1314
        %v1344 = vpack.c.bf16 %v1317, %v1316
        %v1345 = vpack.c.bf16 %v1319, %v1318
        %v1346 = vpack.c.bf16 %v1321, %v1320
        %v1347 = vpack.c.bf16 %v1323, %v1322
        %v1348 = vpack.c.bf16 %v1325, %v1324
        %v1349 = vpack.c.bf16 %v1327, %v1326
        %v1350 = vpack.c.bf16 %v1329, %v1328
        %v1351 = vpack.c.bf16 %v1331, %v1330
        %v1352 = vpack.c.bf16 %v1333, %v1332
        %v1353 = vpack.c.bf16 %v1335, %v1334
        %v1354 = vpack.c.bf16 %v1337, %v1336
        %v1355 = vpack.c.bf16 %v1339, %v1338
        %vm1356 = vcmask 261120
        %1357 = vst.msk [vmem:[#allocation4] sm:$0xff] %vm1356, %v1340
        %1358 = vst.msk [vmem:[#allocation4 + $0x8] sm:$0xff] %vm1356, %v1341
        %1359 = vst.msk [vmem:[#allocation4 + $0x10] sm:$0xff] %vm1356, %v1342
        %1360 = vst.msk [vmem:[#allocation4 + $0x18] sm:$0xff] %vm1356, %v1343
        %1361 = vst.msk [vmem:[#allocation4 + $0x20] sm:$0xff] %vm1356, %v1344
        %1362 = vst.msk [vmem:[#allocation4 + $0x28] sm:$0xff] %vm1356, %v1345
        %1363 = vst.msk [vmem:[#allocation4 + $0x30] sm:$0xff] %vm1356, %v1346
        %1364 = vst.msk [vmem:[#allocation4 + $0x38] sm:$0xff] %vm1356, %v1347
        %1365 = vst.msk [vmem:[#allocation4 + $0x40] sm:$0xff] %vm1356, %v1348
        %1366 = vst.msk [vmem:[#allocation4 + $0x48] sm:$0xff] %vm1356, %v1349
        %1367 = vst.msk [vmem:[#allocation4 + $0x50] sm:$0xff] %vm1356, %v1350
        %1368 = vst.msk [vmem:[#allocation4 + $0x58] sm:$0xff] %vm1356, %v1351
        %1369 = vst.msk [vmem:[#allocation4 + $0x60] sm:$0xff] %vm1356, %v1352
        %1370 = vst.msk [vmem:[#allocation4 + $0x68] sm:$0xff] %vm1356, %v1353
        %1371 = vst.msk [vmem:[#allocation4 + $0x70] sm:$0xff] %vm1356, %v1354
        %1372 = vst.msk [vmem:[#allocation4 + $0x78] sm:$0xff] %vm1356, %v1355
        %s1373 = scalar_lea.vmem [#allocation2], 336
        %v1374 = vld [vmem:[%s1373 + $0x4] sm:$0xc]
        %v1375 = vld [vmem:[%s1373 + $0x8] sm:$0xf]
        %v1376 = vld [vmem:[%s1373 + $0xc] sm:$0x3]
        %v1377 = vld [vmem:[%s1373 + $0x20] sm:$0xc]
        %v1378 = vld [vmem:[%s1373 + $0x24] sm:$0xf]
        %v1379 = vld [vmem:[%s1373 + $0x28] sm:$0x3]
        %v1380 = vld [vmem:[%s1373 + $0x3c] sm:$0xc]
        %v1381 = vld [vmem:[%s1373 + $0x40] sm:$0xf]
        %v1382 = vld [vmem:[%s1373 + $0x44] sm:$0x3]
        %v1383 = vld [vmem:[%s1373 + $0x58] sm:$0xc]
        %v1384 = vld [vmem:[%s1373 + $0x5c] sm:$0xf]
        %v1385 = vld [vmem:[%s1373 + $0x60] sm:$0x3]
        %v1386 = vld [vmem:[%s1373 + $0x74] sm:$0xc]
        %v1387 = vld [vmem:[%s1373 + $0x78] sm:$0xf]
        %v1388 = vld [vmem:[%s1373 + $0x7c] sm:$0x3]
        %v1389 = vld [vmem:[%s1373 + $0x90] sm:$0xc]
        %v1390 = vld [vmem:[%s1373 + $0x94] sm:$0xf]
        %v1391 = vld [vmem:[%s1373 + $0x98] sm:$0x3]
        %v1392 = vld [vmem:[%s1373 + $0xac] sm:$0xc]
        %v1393 = vld [vmem:[%s1373 + $0xb0] sm:$0xf]
        %v1394 = vld [vmem:[%s1373 + $0xb4] sm:$0x3]
        %v1395 = vld [vmem:[%s1373 + $0xc8] sm:$0xc]
        %v1396 = vld [vmem:[%s1373 + $0xcc] sm:$0xf]
        %v1397 = vld [vmem:[%s1373 + $0xd0] sm:$0x3]
        %v1398 = vld [vmem:[%s1373 + $0xe4] sm:$0xc]
        %v1399 = vld [vmem:[%s1373 + $0xe8] sm:$0xf]
        %v1400 = vld [vmem:[%s1373 + $0xec] sm:$0x3]
        %v1401 = vld [vmem:[%s1373 + $0x100] sm:$0xc]
        %v1402 = vld [vmem:[%s1373 + $0x104] sm:$0xf]
        %v1403 = vld [vmem:[%s1373 + $0x108] sm:$0x3]
        %v1404 = vld [vmem:[%s1373 + $0x11c] sm:$0xc]
        %v1405 = vld [vmem:[%s1373 + $0x120] sm:$0xf]
        %v1406 = vld [vmem:[%s1373 + $0x124] sm:$0x3]
        %v1407 = vld [vmem:[%s1373 + $0x138] sm:$0xc]
        %v1408 = vld [vmem:[%s1373 + $0x13c] sm:$0xf]
        %v1409 = vld [vmem:[%s1373 + $0x140] sm:$0x3]
        %v1410 = vld [vmem:[%s1373 + $0x154] sm:$0xc]
        %v1411 = vld [vmem:[%s1373 + $0x158] sm:$0xf]
        %v1412 = vld [vmem:[%s1373 + $0x15c] sm:$0x3]
        %v1413 = vld [vmem:[%s1373 + $0x170] sm:$0xc]
        %v1414 = vld [vmem:[%s1373 + $0x174] sm:$0xf]
        %v1415 = vld [vmem:[%s1373 + $0x178] sm:$0x3]
        %v1416 = vld [vmem:[%s1373 + $0x18c] sm:$0xc]
        %v1417 = vld [vmem:[%s1373 + $0x190] sm:$0xf]
        %v1418 = vld [vmem:[%s1373 + $0x194] sm:$0x3]
        %v1419 = vld [vmem:[%s1373 + $0x1a8] sm:$0xc]
        %v1420 = vld [vmem:[%s1373 + $0x1ac] sm:$0xf]
        %v1421 = vld [vmem:[%s1373 + $0x1b0] sm:$0x3]
        %vm1470 = vcmask 1041408
        %vm1471 = vcmask 1045508
        %vm1472 = vmor %vm1470, %vm1471
        %v1473 = vrot.slane %v1374, 6
        %v1474 = vrot.slane %v1473, 4
        %v1475 = vrot.slane %v1375, 6
        %v1476 = vsel %vm1472, %v1474, %v1475
        %v1477 = vrot.slane %v1475, 4
        %v1478 = vrot.slane %v1376, 6
        %v1479 = vsel %vm1472, %v1477, %v1478
        %v1480 = vrot.slane %v1377, 6
        %v1481 = vrot.slane %v1480, 4
        %v1482 = vrot.slane %v1378, 6
        %v1483 = vsel %vm1472, %v1481, %v1482
        %v1484 = vrot.slane %v1482, 4
        %v1485 = vrot.slane %v1379, 6
        %v1486 = vsel %vm1472, %v1484, %v1485
        %v1487 = vrot.slane %v1380, 6
        %v1488 = vrot.slane %v1487, 4
        %v1489 = vrot.slane %v1381, 6
        %v1490 = vsel %vm1472, %v1488, %v1489
        %v1491 = vrot.slane %v1489, 4
        %v1492 = vrot.slane %v1382, 6
        %v1493 = vsel %vm1472, %v1491, %v1492
        %v1494 = vrot.slane %v1383, 6
        %v1495 = vrot.slane %v1494, 4
        %v1496 = vrot.slane %v1384, 6
        %v1497 = vsel %vm1472, %v1495, %v1496
        %v1498 = vrot.slane %v1496, 4
        %v1499 = vrot.slane %v1385, 6
        %v1500 = vsel %vm1472, %v1498, %v1499
        %v1501 = vrot.slane %v1386, 6
        %v1502 = vrot.slane %v1501, 4
        %v1503 = vrot.slane %v1387, 6
        %v1504 = vsel %vm1472, %v1502, %v1503
        %v1505 = vrot.slane %v1503, 4
        %v1506 = vrot.slane %v1388, 6
        %v1507 = vsel %vm1472, %v1505, %v1506
        %v1508 = vrot.slane %v1389, 6
        %v1509 = vrot.slane %v1508, 4
        %v1510 = vrot.slane %v1390, 6
        %v1511 = vsel %vm1472, %v1509, %v1510
        %v1512 = vrot.slane %v1510, 4
        %v1513 = vrot.slane %v1391, 6
        %v1514 = vsel %vm1472, %v1512, %v1513
        %v1515 = vrot.slane %v1392, 6
        %v1516 = vrot.slane %v1515, 4
        %v1517 = vrot.slane %v1393, 6
        %v1518 = vsel %vm1472, %v1516, %v1517
        %v1519 = vrot.slane %v1517, 4
        %v1520 = vrot.slane %v1394, 6
        %v1521 = vsel %vm1472, %v1519, %v1520
        %v1522 = vrot.slane %v1395, 6
        %v1523 = vrot.slane %v1522, 4
        %v1524 = vrot.slane %v1396, 6
        %v1525 = vsel %vm1472, %v1523, %v1524
        %v1526 = vrot.slane %v1524, 4
        %v1527 = vrot.slane %v1397, 6
        %v1528 = vsel %vm1472, %v1526, %v1527
        %v1529 = vrot.slane %v1398, 6
        %v1530 = vrot.slane %v1529, 4
        %v1531 = vrot.slane %v1399, 6
        %v1532 = vsel %vm1472, %v1530, %v1531
        %v1533 = vrot.slane %v1531, 4
        %v1534 = vrot.slane %v1400, 6
        %v1535 = vsel %vm1472, %v1533, %v1534
        %v1536 = vrot.slane %v1401, 6
        %v1537 = vrot.slane %v1536, 4
        %v1538 = vrot.slane %v1402, 6
        %v1539 = vsel %vm1472, %v1537, %v1538
        %v1540 = vrot.slane %v1538, 4
        %v1541 = vrot.slane %v1403, 6
        %v1542 = vsel %vm1472, %v1540, %v1541
        %v1543 = vrot.slane %v1404, 6
        %v1544 = vrot.slane %v1543, 4
        %v1545 = vrot.slane %v1405, 6
        %v1546 = vsel %vm1472, %v1544, %v1545
        %v1547 = vrot.slane %v1545, 4
        %v1548 = vrot.slane %v1406, 6
        %v1549 = vsel %vm1472, %v1547, %v1548
        %v1550 = vrot.slane %v1407, 6
        %v1551 = vrot.slane %v1550, 4
        %v1552 = vrot.slane %v1408, 6
        %v1553 = vsel %vm1472, %v1551, %v1552
        %v1554 = vrot.slane %v1552, 4
        %v1555 = vrot.slane %v1409, 6
        %v1556 = vsel %vm1472, %v1554, %v1555
        %v1557 = vrot.slane %v1410, 6
        %v1558 = vrot.slane %v1557, 4
        %v1559 = vrot.slane %v1411, 6
        %v1560 = vsel %vm1472, %v1558, %v1559
        %v1561 = vrot.slane %v1559, 4
        %v1562 = vrot.slane %v1412, 6
        %v1563 = vsel %vm1472, %v1561, %v1562
        %v1564 = vrot.slane %v1413, 6
        %v1565 = vrot.slane %v1564, 4
        %v1566 = vrot.slane %v1414, 6
        %v1567 = vsel %vm1472, %v1565, %v1566
        %v1568 = vrot.slane %v1566, 4
        %v1569 = vrot.slane %v1415, 6
        %v1570 = vsel %vm1472, %v1568, %v1569
        %v1571 = vrot.slane %v1416, 6
        %v1572 = vrot.slane %v1571, 4
        %v1573 = vrot.slane %v1417, 6
        %v1574 = vsel %vm1472, %v1572, %v1573
        %v1575 = vrot.slane %v1573, 4
        %v1576 = vrot.slane %v1418, 6
        %v1577 = vsel %vm1472, %v1575, %v1576
        %v1578 = vrot.slane %v1419, 6
        %v1579 = vrot.slane %v1578, 4
        %v1580 = vrot.slane %v1420, 6
        %v1581 = vsel %vm1472, %v1579, %v1580
        %v1582 = vrot.slane %v1580, 4
        %v1583 = vrot.slane %v1421, 6
        %v1584 = vsel %vm1472, %v1582, %v1583
        %v1585 = vunpack.c.l.b16 %v1476
        %v1586 = vunpack.c.l.b16 %v1479
        %v1587 = vunpack.c.l.b16 %v1483
        %v1588 = vunpack.c.l.b16 %v1486
        %v1589 = vunpack.c.l.b16 %v1490
        %v1590 = vunpack.c.l.b16 %v1493
        %v1591 = vunpack.c.l.b16 %v1497
        %v1592 = vunpack.c.l.b16 %v1500
        %v1593 = vunpack.c.l.b16 %v1504
        %v1594 = vunpack.c.l.b16 %v1507
        %v1595 = vunpack.c.l.b16 %v1511
        %v1596 = vunpack.c.l.b16 %v1514
        %v1597 = vunpack.c.l.b16 %v1518
        %v1598 = vunpack.c.l.b16 %v1521
        %v1599 = vunpack.c.l.b16 %v1525
        %v1600 = vunpack.c.l.b16 %v1528
        %v1601 = vunpack.c.l.b16 %v1532
        %v1602 = vunpack.c.l.b16 %v1535
        %v1603 = vunpack.c.l.b16 %v1539
        %v1604 = vunpack.c.l.b16 %v1542
        %v1605 = vunpack.c.l.b16 %v1546
        %v1606 = vunpack.c.l.b16 %v1549
        %v1607 = vunpack.c.l.b16 %v1553
        %v1608 = vunpack.c.l.b16 %v1556
        %v1609 = vunpack.c.l.b16 %v1560
        %v1610 = vunpack.c.l.b16 %v1563
        %v1611 = vunpack.c.l.b16 %v1567
        %v1612 = vunpack.c.l.b16 %v1570
        %v1613 = vunpack.c.l.b16 %v1574
        %v1614 = vunpack.c.l.b16 %v1577
        %v1615 = vunpack.c.l.b16 %v1581
        %v1616 = vunpack.c.l.b16 %v1584
        %v1617 = vpack.c.b16 %v1586, %v1585
        %v1618 = vpack.c.b16 %v1588, %v1587
        %v1619 = vpack.c.b16 %v1590, %v1589
        %v1620 = vpack.c.b16 %v1592, %v1591
        %v1621 = vpack.c.b16 %v1594, %v1593
        %v1622 = vpack.c.b16 %v1596, %v1595
        %v1623 = vpack.c.b16 %v1598, %v1597
        %v1624 = vpack.c.b16 %v1600, %v1599
        %v1625 = vpack.c.b16 %v1602, %v1601
        %v1626 = vpack.c.b16 %v1604, %v1603
        %v1627 = vpack.c.b16 %v1606, %v1605
        %v1628 = vpack.c.b16 %v1608, %v1607
        %v1629 = vpack.c.b16 %v1610, %v1609
        %v1630 = vpack.c.b16 %v1612, %v1611
        %v1631 = vpack.c.b16 %v1614, %v1613
        %v1632 = vpack.c.b16 %v1616, %v1615
        %1649 = vst.msk [vmem:[#allocation3] sm:$0xff] %vm1022, %v1617
        %1650 = vst.msk [vmem:[#allocation3 + $0x8] sm:$0xff] %vm1022, %v1618
        %1651 = vst.msk [vmem:[#allocation3 + $0x10] sm:$0xff] %vm1022, %v1619
        %1652 = vst.msk [vmem:[#allocation3 + $0x18] sm:$0xff] %vm1022, %v1620
        %1653 = vst.msk [vmem:[#allocation3 + $0x20] sm:$0xff] %vm1022, %v1621
        %1654 = vst.msk [vmem:[#allocation3 + $0x28] sm:$0xff] %vm1022, %v1622
        %1655 = vst.msk [vmem:[#allocation3 + $0x30] sm:$0xff] %vm1022, %v1623
        %1656 = vst.msk [vmem:[#allocation3 + $0x38] sm:$0xff] %vm1022, %v1624
        %1657 = vst.msk [vmem:[#allocation3 + $0x40] sm:$0xff] %vm1022, %v1625
        %1658 = vst.msk [vmem:[#allocation3 + $0x48] sm:$0xff] %vm1022, %v1626
        %1659 = vst.msk [vmem:[#allocation3 + $0x50] sm:$0xff] %vm1022, %v1627
        %1660 = vst.msk [vmem:[#allocation3 + $0x58] sm:$0xff] %vm1022, %v1628
        %1661 = vst.msk [vmem:[#allocation3 + $0x60] sm:$0xff] %vm1022, %v1629
        %1662 = vst.msk [vmem:[#allocation3 + $0x68] sm:$0xff] %vm1022, %v1630
        %1663 = vst.msk [vmem:[#allocation3 + $0x70] sm:$0xff] %vm1022, %v1631
        %1664 = vst.msk [vmem:[#allocation3 + $0x78] sm:$0xff] %vm1022, %v1632
        %v1665 = vld [vmem:[%s1373 + $0x8] sm:$0xe]
        %v1666 = vld [vmem:[%s1373 + $0xc] sm:$0xf]
        %v1667 = vld [vmem:[%s1373 + $0x10] sm:$0x1]
        %v1668 = vld [vmem:[%s1373 + $0x24] sm:$0xe]
        %v1669 = vld [vmem:[%s1373 + $0x28] sm:$0xf]
        %v1670 = vld [vmem:[%s1373 + $0x2c] sm:$0x1]
        %v1671 = vld [vmem:[%s1373 + $0x40] sm:$0xe]
        %v1672 = vld [vmem:[%s1373 + $0x44] sm:$0xf]
        %v1673 = vld [vmem:[%s1373 + $0x48] sm:$0x1]
        %v1674 = vld [vmem:[%s1373 + $0x5c] sm:$0xe]
        %v1675 = vld [vmem:[%s1373 + $0x60] sm:$0xf]
        %v1676 = vld [vmem:[%s1373 + $0x64] sm:$0x1]
        %v1677 = vld [vmem:[%s1373 + $0x78] sm:$0xe]
        %v1678 = vld [vmem:[%s1373 + $0x7c] sm:$0xf]
        %v1679 = vld [vmem:[%s1373 + $0x80] sm:$0x1]
        %v1680 = vld [vmem:[%s1373 + $0x94] sm:$0xe]
        %v1681 = vld [vmem:[%s1373 + $0x98] sm:$0xf]
        %v1682 = vld [vmem:[%s1373 + $0x9c] sm:$0x1]
        %v1683 = vld [vmem:[%s1373 + $0xb0] sm:$0xe]
        %v1684 = vld [vmem:[%s1373 + $0xb4] sm:$0xf]
        %v1685 = vld [vmem:[%s1373 + $0xb8] sm:$0x1]
        %v1686 = vld [vmem:[%s1373 + $0xcc] sm:$0xe]
        %v1687 = vld [vmem:[%s1373 + $0xd0] sm:$0xf]
        %v1688 = vld [vmem:[%s1373 + $0xd4] sm:$0x1]
        %v1689 = vld [vmem:[%s1373 + $0xe8] sm:$0xe]
        %v1690 = vld [vmem:[%s1373 + $0xec] sm:$0xf]
        %v1691 = vld [vmem:[%s1373 + $0xf0] sm:$0x1]
        %v1692 = vld [vmem:[%s1373 + $0x104] sm:$0xe]
        %v1693 = vld [vmem:[%s1373 + $0x108] sm:$0xf]
        %v1694 = vld [vmem:[%s1373 + $0x10c] sm:$0x1]
        %v1695 = vld [vmem:[%s1373 + $0x120] sm:$0xe]
        %v1696 = vld [vmem:[%s1373 + $0x124] sm:$0xf]
        %v1697 = vld [vmem:[%s1373 + $0x128] sm:$0x1]
        %v1698 = vld [vmem:[%s1373 + $0x13c] sm:$0xe]
        %v1699 = vld [vmem:[%s1373 + $0x140] sm:$0xf]
        %v1700 = vld [vmem:[%s1373 + $0x144] sm:$0x1]
        %v1701 = vld [vmem:[%s1373 + $0x158] sm:$0xe]
        %v1702 = vld [vmem:[%s1373 + $0x15c] sm:$0xf]
        %v1703 = vld [vmem:[%s1373 + $0x160] sm:$0x1]
        %v1704 = vld [vmem:[%s1373 + $0x174] sm:$0xe]
        %v1705 = vld [vmem:[%s1373 + $0x178] sm:$0xf]
        %v1706 = vld [vmem:[%s1373 + $0x17c] sm:$0x1]
        %v1707 = vld [vmem:[%s1373 + $0x190] sm:$0xe]
        %v1708 = vld [vmem:[%s1373 + $0x194] sm:$0xf]
        %v1709 = vld [vmem:[%s1373 + $0x198] sm:$0x1]
        %v1710 = vld [vmem:[%s1373 + $0x1ac] sm:$0xe]
        %v1711 = vld [vmem:[%s1373 + $0x1b0] sm:$0xf]
        %v1712 = vld [vmem:[%s1373 + $0x1b4] sm:$0x1]
        %vm1761 = vcmask 1042432
        %vm1762 = vcmask 1046532
        %vm1763 = vmor %vm1761, %vm1762
        %v1764 = vrot.slane %v1665, 5
        %v1765 = vrot.slane %v1764, 4
        %v1766 = vrot.slane %v1666, 5
        %v1767 = vsel %vm1763, %v1765, %v1766
        %v1768 = vrot.slane %v1766, 4
        %v1769 = vrot.slane %v1667, 5
        %v1770 = vsel %vm1763, %v1768, %v1769
        %v1771 = vrot.slane %v1668, 5
        %v1772 = vrot.slane %v1771, 4
        %v1773 = vrot.slane %v1669, 5
        %v1774 = vsel %vm1763, %v1772, %v1773
        %v1775 = vrot.slane %v1773, 4
        %v1776 = vrot.slane %v1670, 5
        %v1777 = vsel %vm1763, %v1775, %v1776
        %v1778 = vrot.slane %v1671, 5
        %v1779 = vrot.slane %v1778, 4
        %v1780 = vrot.slane %v1672, 5
        %v1781 = vsel %vm1763, %v1779, %v1780
        %v1782 = vrot.slane %v1780, 4
        %v1783 = vrot.slane %v1673, 5
        %v1784 = vsel %vm1763, %v1782, %v1783
        %v1785 = vrot.slane %v1674, 5
        %v1786 = vrot.slane %v1785, 4
        %v1787 = vrot.slane %v1675, 5
        %v1788 = vsel %vm1763, %v1786, %v1787
        %v1789 = vrot.slane %v1787, 4
        %v1790 = vrot.slane %v1676, 5
        %v1791 = vsel %vm1763, %v1789, %v1790
        %v1792 = vrot.slane %v1677, 5
        %v1793 = vrot.slane %v1792, 4
        %v1794 = vrot.slane %v1678, 5
        %v1795 = vsel %vm1763, %v1793, %v1794
        %v1796 = vrot.slane %v1794, 4
        %v1797 = vrot.slane %v1679, 5
        %v1798 = vsel %vm1763, %v1796, %v1797
        %v1799 = vrot.slane %v1680, 5
        %v1800 = vrot.slane %v1799, 4
        %v1801 = vrot.slane %v1681, 5
        %v1802 = vsel %vm1763, %v1800, %v1801
        %v1803 = vrot.slane %v1801, 4
        %v1804 = vrot.slane %v1682, 5
        %v1805 = vsel %vm1763, %v1803, %v1804
        %v1806 = vrot.slane %v1683, 5
        %v1807 = vrot.slane %v1806, 4
        %v1808 = vrot.slane %v1684, 5
        %v1809 = vsel %vm1763, %v1807, %v1808
        %v1810 = vrot.slane %v1808, 4
        %v1811 = vrot.slane %v1685, 5
        %v1812 = vsel %vm1763, %v1810, %v1811
        %v1813 = vrot.slane %v1686, 5
        %v1814 = vrot.slane %v1813, 4
        %v1815 = vrot.slane %v1687, 5
        %v1816 = vsel %vm1763, %v1814, %v1815
        %v1817 = vrot.slane %v1815, 4
        %v1818 = vrot.slane %v1688, 5
        %v1819 = vsel %vm1763, %v1817, %v1818
        %v1820 = vrot.slane %v1689, 5
        %v1821 = vrot.slane %v1820, 4
        %v1822 = vrot.slane %v1690, 5
        %v1823 = vsel %vm1763, %v1821, %v1822
        %v1824 = vrot.slane %v1822, 4
        %v1825 = vrot.slane %v1691, 5
        %v1826 = vsel %vm1763, %v1824, %v1825
        %v1827 = vrot.slane %v1692, 5
        %v1828 = vrot.slane %v1827, 4
        %v1829 = vrot.slane %v1693, 5
        %v1830 = vsel %vm1763, %v1828, %v1829
        %v1831 = vrot.slane %v1829, 4
        %v1832 = vrot.slane %v1694, 5
        %v1833 = vsel %vm1763, %v1831, %v1832
        %v1834 = vrot.slane %v1695, 5
        %v1835 = vrot.slane %v1834, 4
        %v1836 = vrot.slane %v1696, 5
        %v1837 = vsel %vm1763, %v1835, %v1836
        %v1838 = vrot.slane %v1836, 4
        %v1839 = vrot.slane %v1697, 5
        %v1840 = vsel %vm1763, %v1838, %v1839
        %v1841 = vrot.slane %v1698, 5
        %v1842 = vrot.slane %v1841, 4
        %v1843 = vrot.slane %v1699, 5
        %v1844 = vsel %vm1763, %v1842, %v1843
        %v1845 = vrot.slane %v1843, 4
        %v1846 = vrot.slane %v1700, 5
        %v1847 = vsel %vm1763, %v1845, %v1846
        %v1848 = vrot.slane %v1701, 5
        %v1849 = vrot.slane %v1848, 4
        %v1850 = vrot.slane %v1702, 5
        %v1851 = vsel %vm1763, %v1849, %v1850
        %v1852 = vrot.slane %v1850, 4
        %v1853 = vrot.slane %v1703, 5
        %v1854 = vsel %vm1763, %v1852, %v1853
        %v1855 = vrot.slane %v1704, 5
        %v1856 = vrot.slane %v1855, 4
        %v1857 = vrot.slane %v1705, 5
        %v1858 = vsel %vm1763, %v1856, %v1857
        %v1859 = vrot.slane %v1857, 4
        %v1860 = vrot.slane %v1706, 5
        %v1861 = vsel %vm1763, %v1859, %v1860
        %v1862 = vrot.slane %v1707, 5
        %v1863 = vrot.slane %v1862, 4
        %v1864 = vrot.slane %v1708, 5
        %v1865 = vsel %vm1763, %v1863, %v1864
        %v1866 = vrot.slane %v1864, 4
        %v1867 = vrot.slane %v1709, 5
        %v1868 = vsel %vm1763, %v1866, %v1867
        %v1869 = vrot.slane %v1710, 5
        %v1870 = vrot.slane %v1869, 4
        %v1871 = vrot.slane %v1711, 5
        %v1872 = vsel %vm1763, %v1870, %v1871
        %v1873 = vrot.slane %v1871, 4
        %v1874 = vrot.slane %v1712, 5
        %v1875 = vsel %vm1763, %v1873, %v1874
        %v1876 = vunpack.c.l.b16 %v1767
        %v1877 = vunpack.c.l.b16 %v1770
        %v1878 = vunpack.c.l.b16 %v1774
        %v1879 = vunpack.c.l.b16 %v1777
        %v1880 = vunpack.c.l.b16 %v1781
        %v1881 = vunpack.c.l.b16 %v1784
        %v1882 = vunpack.c.l.b16 %v1788
        %v1883 = vunpack.c.l.b16 %v1791
        %v1884 = vunpack.c.l.b16 %v1795
        %v1885 = vunpack.c.l.b16 %v1798
        %v1886 = vunpack.c.l.b16 %v1802
        %v1887 = vunpack.c.l.b16 %v1805
        %v1888 = vunpack.c.l.b16 %v1809
        %v1889 = vunpack.c.l.b16 %v1812
        %v1890 = vunpack.c.l.b16 %v1816
        %v1891 = vunpack.c.l.b16 %v1819
        %v1892 = vunpack.c.l.b16 %v1823
        %v1893 = vunpack.c.l.b16 %v1826
        %v1894 = vunpack.c.l.b16 %v1830
        %v1895 = vunpack.c.l.b16 %v1833
        %v1896 = vunpack.c.l.b16 %v1837
        %v1897 = vunpack.c.l.b16 %v1840
        %v1898 = vunpack.c.l.b16 %v1844
        %v1899 = vunpack.c.l.b16 %v1847
        %v1900 = vunpack.c.l.b16 %v1851
        %v1901 = vunpack.c.l.b16 %v1854
        %v1902 = vunpack.c.l.b16 %v1858
        %v1903 = vunpack.c.l.b16 %v1861
        %v1904 = vunpack.c.l.b16 %v1865
        %v1905 = vunpack.c.l.b16 %v1868
        %v1906 = vunpack.c.l.b16 %v1872
        %v1907 = vunpack.c.l.b16 %v1875
        %v1908 = vpack.c.b16 %v1877, %v1876
        %v1909 = vpack.c.b16 %v1879, %v1878
        %v1910 = vpack.c.b16 %v1881, %v1880
        %v1911 = vpack.c.b16 %v1883, %v1882
        %v1912 = vpack.c.b16 %v1885, %v1884
        %v1913 = vpack.c.b16 %v1887, %v1886
        %v1914 = vpack.c.b16 %v1889, %v1888
        %v1915 = vpack.c.b16 %v1891, %v1890
        %v1916 = vpack.c.b16 %v1893, %v1892
        %v1917 = vpack.c.b16 %v1895, %v1894
        %v1918 = vpack.c.b16 %v1897, %v1896
        %v1919 = vpack.c.b16 %v1899, %v1898
        %v1920 = vpack.c.b16 %v1901, %v1900
        %v1921 = vpack.c.b16 %v1903, %v1902
        %v1922 = vpack.c.b16 %v1905, %v1904
        %v1923 = vpack.c.b16 %v1907, %v1906
        %1924 = vrot.lane.b32.xlu0 %v1908, 4
        %v1925 = vpop.permute.xlu0 %1924
        %1926 = vrot.lane.b32.xlu0 %v1909, 4
        %v1927 = vpop.permute.xlu0 %1926
        %1928 = vrot.lane.b32.xlu0 %v1910, 4
        %v1929 = vpop.permute.xlu0 %1928
        %1930 = vrot.lane.b32.xlu0 %v1911, 4
        %v1931 = vpop.permute.xlu0 %1930
        %1932 = vrot.lane.b32.xlu0 %v1912, 4
        %v1933 = vpop.permute.xlu0 %1932
        %1934 = vrot.lane.b32.xlu0 %v1913, 4
        %v1935 = vpop.permute.xlu0 %1934
        %1936 = vrot.lane.b32.xlu0 %v1914, 4
        %v1937 = vpop.permute.xlu0 %1936
        %1938 = vrot.lane.b32.xlu0 %v1915, 4
        %v1939 = vpop.permute.xlu0 %1938
        %1940 = vrot.lane.b32.xlu0 %v1916, 4
        %v1941 = vpop.permute.xlu0 %1940
        %1942 = vrot.lane.b32.xlu0 %v1917, 4
        %v1943 = vpop.permute.xlu0 %1942
        %1944 = vrot.lane.b32.xlu0 %v1918, 4
        %v1945 = vpop.permute.xlu0 %1944
        %1946 = vrot.lane.b32.xlu0 %v1919, 4
        %v1947 = vpop.permute.xlu0 %1946
        %1948 = vrot.lane.b32.xlu0 %v1920, 4
        %v1949 = vpop.permute.xlu0 %1948
        %1950 = vrot.lane.b32.xlu0 %v1921, 4
        %v1951 = vpop.permute.xlu0 %1950
        %1952 = vrot.lane.b32.xlu0 %v1922, 4
        %v1953 = vpop.permute.xlu0 %1952
        %1954 = vrot.lane.b32.xlu0 %v1923, 4
        %v1955 = vpop.permute.xlu0 %1954
        %vm1972 = vcmask 64544
        %1973 = vst.msk [vmem:[#allocation3] sm:$0xff] %vm1972, %v1925
        %1974 = vst.msk [vmem:[#allocation3 + $0x8] sm:$0xff] %vm1972, %v1927
        %1975 = vst.msk [vmem:[#allocation3 + $0x10] sm:$0xff] %vm1972, %v1929
        %1976 = vst.msk [vmem:[#allocation3 + $0x18] sm:$0xff] %vm1972, %v1931
        %1977 = vst.msk [vmem:[#allocation3 + $0x20] sm:$0xff] %vm1972, %v1933
        %1978 = vst.msk [vmem:[#allocation3 + $0x28] sm:$0xff] %vm1972, %v1935
        %1979 = vst.msk [vmem:[#allocation3 + $0x30] sm:$0xff] %vm1972, %v1937
        %1980 = vst.msk [vmem:[#allocation3 + $0x38] sm:$0xff] %vm1972, %v1939
        %1981 = vst.msk [vmem:[#allocation3 + $0x40] sm:$0xff] %vm1972, %v1941
        %1982 = vst.msk [vmem:[#allocation3 + $0x48] sm:$0xff] %vm1972, %v1943
        %1983 = vst.msk [vmem:[#allocation3 + $0x50] sm:$0xff] %vm1972, %v1945
        %1984 = vst.msk [vmem:[#allocation3 + $0x58] sm:$0xff] %vm1972, %v1947
        %1985 = vst.msk [vmem:[#allocation3 + $0x60] sm:$0xff] %vm1972, %v1949
        %1986 = vst.msk [vmem:[#allocation3 + $0x68] sm:$0xff] %vm1972, %v1951
        %1987 = vst.msk [vmem:[#allocation3 + $0x70] sm:$0xff] %vm1972, %v1953
        %1988 = vst.msk [vmem:[#allocation3 + $0x78] sm:$0xff] %vm1972, %v1955
        %v1989 = vld [vmem:[%s1373 + $0xc] sm:$0xf]
        %v1990 = vld [vmem:[%s1373 + $0x10] sm:$0xf]
        %v1991 = vld [vmem:[%s1373 + $0x28] sm:$0xf]
        %v1992 = vld [vmem:[%s1373 + $0x2c] sm:$0xf]
        %v1993 = vld [vmem:[%s1373 + $0x44] sm:$0xf]
        %v1994 = vld [vmem:[%s1373 + $0x48] sm:$0xf]
        %v1995 = vld [vmem:[%s1373 + $0x60] sm:$0xf]
        %v1996 = vld [vmem:[%s1373 + $0x64] sm:$0xf]
        %v1997 = vld [vmem:[%s1373 + $0x7c] sm:$0xf]
        %v1998 = vld [vmem:[%s1373 + $0x80] sm:$0xf]
        %v1999 = vld [vmem:[%s1373 + $0x98] sm:$0xf]
        %v2000 = vld [vmem:[%s1373 + $0x9c] sm:$0xf]
        %v2001 = vld [vmem:[%s1373 + $0xb4] sm:$0xf]
        %v2002 = vld [vmem:[%s1373 + $0xb8] sm:$0xf]
        %v2003 = vld [vmem:[%s1373 + $0xd0] sm:$0xf]
        %v2004 = vld [vmem:[%s1373 + $0xd4] sm:$0xf]
        %v2005 = vld [vmem:[%s1373 + $0xec] sm:$0xf]
        %v2006 = vld [vmem:[%s1373 + $0xf0] sm:$0xf]
        %v2007 = vld [vmem:[%s1373 + $0x108] sm:$0xf]
        %v2008 = vld [vmem:[%s1373 + $0x10c] sm:$0xf]
        %v2009 = vld [vmem:[%s1373 + $0x124] sm:$0xf]
        %v2010 = vld [vmem:[%s1373 + $0x128] sm:$0xf]
        %v2011 = vld [vmem:[%s1373 + $0x140] sm:$0xf]
        %v2012 = vld [vmem:[%s1373 + $0x144] sm:$0xf]
        %v2013 = vld [vmem:[%s1373 + $0x15c] sm:$0xf]
        %v2014 = vld [vmem:[%s1373 + $0x160] sm:$0xf]
        %v2015 = vld [vmem:[%s1373 + $0x178] sm:$0xf]
        %v2016 = vld [vmem:[%s1373 + $0x17c] sm:$0xf]
        %v2017 = vld [vmem:[%s1373 + $0x194] sm:$0xf]
        %v2018 = vld [vmem:[%s1373 + $0x198] sm:$0xf]
        %v2019 = vld [vmem:[%s1373 + $0x1b0] sm:$0xf]
        %v2020 = vld [vmem:[%s1373 + $0x1b4] sm:$0xf]
        %v2053 = vunpack.c.l.b16 %v1989
        %v2054 = vunpack.c.l.b16 %v1990
        %v2055 = vunpack.c.l.b16 %v1991
        %v2056 = vunpack.c.l.b16 %v1992
        %v2057 = vunpack.c.l.b16 %v1993
        %v2058 = vunpack.c.l.b16 %v1994
        %v2059 = vunpack.c.l.b16 %v1995
        %v2060 = vunpack.c.l.b16 %v1996
        %v2061 = vunpack.c.l.b16 %v1997
        %v2062 = vunpack.c.l.b16 %v1998
        %v2063 = vunpack.c.l.b16 %v1999
        %v2064 = vunpack.c.l.b16 %v2000
        %v2065 = vunpack.c.l.b16 %v2001
        %v2066 = vunpack.c.l.b16 %v2002
        %v2067 = vunpack.c.l.b16 %v2003
        %v2068 = vunpack.c.l.b16 %v2004
        %v2069 = vunpack.c.l.b16 %v2005
        %v2070 = vunpack.c.l.b16 %v2006
        %v2071 = vunpack.c.l.b16 %v2007
        %v2072 = vunpack.c.l.b16 %v2008
        %v2073 = vunpack.c.l.b16 %v2009
        %v2074 = vunpack.c.l.b16 %v2010
        %v2075 = vunpack.c.l.b16 %v2011
        %v2076 = vunpack.c.l.b16 %v2012
        %v2077 = vunpack.c.l.b16 %v2013
        %v2078 = vunpack.c.l.b16 %v2014
        %v2079 = vunpack.c.l.b16 %v2015
        %v2080 = vunpack.c.l.b16 %v2016
        %v2081 = vunpack.c.l.b16 %v2017
        %v2082 = vunpack.c.l.b16 %v2018
        %v2083 = vunpack.c.l.b16 %v2019
        %v2084 = vunpack.c.l.b16 %v2020
        %v2085 = vpack.c.b16 %v2054, %v2053
        %v2086 = vpack.c.b16 %v2056, %v2055
        %v2087 = vpack.c.b16 %v2058, %v2057
        %v2088 = vpack.c.b16 %v2060, %v2059
        %v2089 = vpack.c.b16 %v2062, %v2061
        %v2090 = vpack.c.b16 %v2064, %v2063
        %v2091 = vpack.c.b16 %v2066, %v2065
        %v2092 = vpack.c.b16 %v2068, %v2067
        %v2093 = vpack.c.b16 %v2070, %v2069
        %v2094 = vpack.c.b16 %v2072, %v2071
        %v2095 = vpack.c.b16 %v2074, %v2073
        %v2096 = vpack.c.b16 %v2076, %v2075
        %v2097 = vpack.c.b16 %v2078, %v2077
        %v2098 = vpack.c.b16 %v2080, %v2079
        %v2099 = vpack.c.b16 %v2082, %v2081
        %v2100 = vpack.c.b16 %v2084, %v2083
        %2101 = vrot.lane.b32.xlu0 %v2085, 8
        %v2102 = vpop.permute.xlu0 %2101
        %2103 = vrot.lane.b32.xlu0 %v2086, 8
        %v2104 = vpop.permute.xlu0 %2103
        %2105 = vrot.lane.b32.xlu0 %v2087, 8
        %v2106 = vpop.permute.xlu0 %2105
        %2107 = vrot.lane.b32.xlu0 %v2088, 8
        %v2108 = vpop.permute.xlu0 %2107
        %2109 = vrot.lane.b32.xlu0 %v2089, 8
        %v2110 = vpop.permute.xlu0 %2109
        %2111 = vrot.lane.b32.xlu0 %v2090, 8
        %v2112 = vpop.permute.xlu0 %2111
        %2113 = vrot.lane.b32.xlu0 %v2091, 8
        %v2114 = vpop.permute.xlu0 %2113
        %2115 = vrot.lane.b32.xlu0 %v2092, 8
        %v2116 = vpop.permute.xlu0 %2115
        %2117 = vrot.lane.b32.xlu0 %v2093, 8
        %v2118 = vpop.permute.xlu0 %2117
        %2119 = vrot.lane.b32.xlu0 %v2094, 8
        %v2120 = vpop.permute.xlu0 %2119
        %2121 = vrot.lane.b32.xlu0 %v2095, 8
        %v2122 = vpop.permute.xlu0 %2121
        %2123 = vrot.lane.b32.xlu0 %v2096, 8
        %v2124 = vpop.permute.xlu0 %2123
        %2125 = vrot.lane.b32.xlu0 %v2097, 8
        %v2126 = vpop.permute.xlu0 %2125
        %2127 = vrot.lane.b32.xlu0 %v2098, 8
        %v2128 = vpop.permute.xlu0 %2127
        %2129 = vrot.lane.b32.xlu0 %v2099, 8
        %v2130 = vpop.permute.xlu0 %2129
        %2131 = vrot.lane.b32.xlu0 %v2100, 8
        %v2132 = vpop.permute.xlu0 %2131
        %vm2149 = vcmask 97344
        %2150 = vst.msk [vmem:[#allocation3] sm:$0xff] %vm2149, %v2102
        %2151 = vst.msk [vmem:[#allocation3 + $0x8] sm:$0xff] %vm2149, %v2104
        %2152 = vst.msk [vmem:[#allocation3 + $0x10] sm:$0xff] %vm2149, %v2106
        %2153 = vst.msk [vmem:[#allocation3 + $0x18] sm:$0xff] %vm2149, %v2108
        %2154 = vst.msk [vmem:[#allocation3 + $0x20] sm:$0xff] %vm2149, %v2110
        %2155 = vst.msk [vmem:[#allocation3 + $0x28] sm:$0xff] %vm2149, %v2112
        %2156 = vst.msk [vmem:[#allocation3 + $0x30] sm:$0xff] %vm2149, %v2114
        %2157 = vst.msk [vmem:[#allocation3 + $0x38] sm:$0xff] %vm2149, %v2116
        %2158 = vst.msk [vmem:[#allocation3 + $0x40] sm:$0xff] %vm2149, %v2118
        %2159 = vst.msk [vmem:[#allocation3 + $0x48] sm:$0xff] %vm2149, %v2120
        %2160 = vst.msk [vmem:[#allocation3 + $0x50] sm:$0xff] %vm2149, %v2122
        %2161 = vst.msk [vmem:[#allocation3 + $0x58] sm:$0xff] %vm2149, %v2124
        %2162 = vst.msk [vmem:[#allocation3 + $0x60] sm:$0xff] %vm2149, %v2126
        %2163 = vst.msk [vmem:[#allocation3 + $0x68] sm:$0xff] %vm2149, %v2128
        %2164 = vst.msk [vmem:[#allocation3 + $0x70] sm:$0xff] %vm2149, %v2130
        %2165 = vst.msk [vmem:[#allocation3 + $0x78] sm:$0xff] %vm2149, %v2132
        %v2166 = vld [vmem:[%s920 + $0x4] sm:$0xc]
        %v2167 = vld [vmem:[%s920 + $0x8] sm:$0xf]
        %v2168 = vld [vmem:[%s920 + $0xc] sm:$0x3]
        %v2169 = vld [vmem:[%s920 + $0x20] sm:$0xc]
        %v2170 = vld [vmem:[%s920 + $0x24] sm:$0xf]
        %v2171 = vld [vmem:[%s920 + $0x28] sm:$0x3]
        %v2172 = vld [vmem:[%s920 + $0x3c] sm:$0xc]
        %v2173 = vld [vmem:[%s920 + $0x40] sm:$0xf]
        %v2174 = vld [vmem:[%s920 + $0x44] sm:$0x3]
        %v2175 = vld [vmem:[%s920 + $0x58] sm:$0xc]
        %v2176 = vld [vmem:[%s920 + $0x5c] sm:$0xf]
        %v2177 = vld [vmem:[%s920 + $0x60] sm:$0x3]
        %v2178 = vld [vmem:[%s920 + $0x74] sm:$0xc]
        %v2179 = vld [vmem:[%s920 + $0x78] sm:$0xf]
        %v2180 = vld [vmem:[%s920 + $0x7c] sm:$0x3]
        %v2181 = vld [vmem:[%s920 + $0x90] sm:$0xc]
        %v2182 = vld [vmem:[%s920 + $0x94] sm:$0xf]
        %v2183 = vld [vmem:[%s920 + $0x98] sm:$0x3]
        %v2184 = vld [vmem:[%s920 + $0xac] sm:$0xc]
        %v2185 = vld [vmem:[%s920 + $0xb0] sm:$0xf]
        %v2186 = vld [vmem:[%s920 + $0xb4] sm:$0x3]
        %v2187 = vld [vmem:[%s920 + $0xc8] sm:$0xc]
        %v2188 = vld [vmem:[%s920 + $0xcc] sm:$0xf]
        %v2189 = vld [vmem:[%s920 + $0xd0] sm:$0x3]
        %v2190 = vld [vmem:[%s920 + $0xe4] sm:$0xc]
        %v2191 = vld [vmem:[%s920 + $0xe8] sm:$0xf]
        %v2192 = vld [vmem:[%s920 + $0xec] sm:$0x3]
        %v2193 = vld [vmem:[%s920 + $0x100] sm:$0xc]
        %v2194 = vld [vmem:[%s920 + $0x104] sm:$0xf]
        %v2195 = vld [vmem:[%s920 + $0x108] sm:$0x3]
        %v2196 = vld [vmem:[%s920 + $0x11c] sm:$0xc]
        %v2197 = vld [vmem:[%s920 + $0x120] sm:$0xf]
        %v2198 = vld [vmem:[%s920 + $0x124] sm:$0x3]
        %v2199 = vld [vmem:[%s920 + $0x138] sm:$0xc]
        %v2200 = vld [vmem:[%s920 + $0x13c] sm:$0xf]
        %v2201 = vld [vmem:[%s920 + $0x140] sm:$0x3]
        %v2202 = vld [vmem:[%s920 + $0x154] sm:$0xc]
        %v2203 = vld [vmem:[%s920 + $0x158] sm:$0xf]
        %v2204 = vld [vmem:[%s920 + $0x15c] sm:$0x3]
        %v2205 = vld [vmem:[%s920 + $0x170] sm:$0xc]
        %v2206 = vld [vmem:[%s920 + $0x174] sm:$0xf]
        %v2207 = vld [vmem:[%s920 + $0x178] sm:$0x3]
        %v2208 = vld [vmem:[%s920 + $0x18c] sm:$0xc]
        %v2209 = vld [vmem:[%s920 + $0x190] sm:$0xf]
        %v2210 = vld [vmem:[%s920 + $0x194] sm:$0x3]
        %v2211 = vld [vmem:[%s920 + $0x1a8] sm:$0xc]
        %v2212 = vld [vmem:[%s920 + $0x1ac] sm:$0xf]
        %v2213 = vld [vmem:[%s920 + $0x1b0] sm:$0x3]
        %v2262 = vrot.slane %v2166, 6
        %v2263 = vrot.slane %v2262, 4
        %v2264 = vrot.slane %v2167, 6
        %v2265 = vsel %vm1472, %v2263, %v2264
        %v2266 = vrot.slane %v2264, 4
        %v2267 = vrot.slane %v2168, 6
        %v2268 = vsel %vm1472, %v2266, %v2267
        %v2269 = vrot.slane %v2169, 6
        %v2270 = vrot.slane %v2269, 4
        %v2271 = vrot.slane %v2170, 6
        %v2272 = vsel %vm1472, %v2270, %v2271
        %v2273 = vrot.slane %v2271, 4
        %v2274 = vrot.slane %v2171, 6
        %v2275 = vsel %vm1472, %v2273, %v2274
        %v2276 = vrot.slane %v2172, 6
        %v2277 = vrot.slane %v2276, 4
        %v2278 = vrot.slane %v2173, 6
        %v2279 = vsel %vm1472, %v2277, %v2278
        %v2280 = vrot.slane %v2278, 4
        %v2281 = vrot.slane %v2174, 6
        %v2282 = vsel %vm1472, %v2280, %v2281
        %v2283 = vrot.slane %v2175, 6
        %v2284 = vrot.slane %v2283, 4
        %v2285 = vrot.slane %v2176, 6
        %v2286 = vsel %vm1472, %v2284, %v2285
        %v2287 = vrot.slane %v2285, 4
        %v2288 = vrot.slane %v2177, 6
        %v2289 = vsel %vm1472, %v2287, %v2288
        %v2290 = vrot.slane %v2178, 6
        %v2291 = vrot.slane %v2290, 4
        %v2292 = vrot.slane %v2179, 6
        %v2293 = vsel %vm1472, %v2291, %v2292
        %v2294 = vrot.slane %v2292, 4
        %v2295 = vrot.slane %v2180, 6
        %v2296 = vsel %vm1472, %v2294, %v2295
        %v2297 = vrot.slane %v2181, 6
        %v2298 = vrot.slane %v2297, 4
        %v2299 = vrot.slane %v2182, 6
        %v2300 = vsel %vm1472, %v2298, %v2299
        %v2301 = vrot.slane %v2299, 4
        %v2302 = vrot.slane %v2183, 6
        %v2303 = vsel %vm1472, %v2301, %v2302
        %v2304 = vrot.slane %v2184, 6
        %v2305 = vrot.slane %v2304, 4
        %v2306 = vrot.slane %v2185, 6
        %v2307 = vsel %vm1472, %v2305, %v2306
        %v2308 = vrot.slane %v2306, 4
        %v2309 = vrot.slane %v2186, 6
        %v2310 = vsel %vm1472, %v2308, %v2309
        %v2311 = vrot.slane %v2187, 6
        %v2312 = vrot.slane %v2311, 4
        %v2313 = vrot.slane %v2188, 6
        %v2314 = vsel %vm1472, %v2312, %v2313
        %v2315 = vrot.slane %v2313, 4
        %v2316 = vrot.slane %v2189, 6
        %v2317 = vsel %vm1472, %v2315, %v2316
        %v2318 = vrot.slane %v2190, 6
        %v2319 = vrot.slane %v2318, 4
        %v2320 = vrot.slane %v2191, 6
        %v2321 = vsel %vm1472, %v2319, %v2320
        %v2322 = vrot.slane %v2320, 4
        %v2323 = vrot.slane %v2192, 6
        %v2324 = vsel %vm1472, %v2322, %v2323
        %v2325 = vrot.slane %v2193, 6
        %v2326 = vrot.slane %v2325, 4
        %v2327 = vrot.slane %v2194, 6
        %v2328 = vsel %vm1472, %v2326, %v2327
        %v2329 = vrot.slane %v2327, 4
        %v2330 = vrot.slane %v2195, 6
        %v2331 = vsel %vm1472, %v2329, %v2330
        %v2332 = vrot.slane %v2196, 6
        %v2333 = vrot.slane %v2332, 4
        %v2334 = vrot.slane %v2197, 6
        %v2335 = vsel %vm1472, %v2333, %v2334
        %v2336 = vrot.slane %v2334, 4
        %v2337 = vrot.slane %v2198, 6
        %v2338 = vsel %vm1472, %v2336, %v2337
        %v2339 = vrot.slane %v2199, 6
        %v2340 = vrot.slane %v2339, 4
        %v2341 = vrot.slane %v2200, 6
        %v2342 = vsel %vm1472, %v2340, %v2341
        %v2343 = vrot.slane %v2341, 4
        %v2344 = vrot.slane %v2201, 6
        %v2345 = vsel %vm1472, %v2343, %v2344
        %v2346 = vrot.slane %v2202, 6
        %v2347 = vrot.slane %v2346, 4
        %v2348 = vrot.slane %v2203, 6
        %v2349 = vsel %vm1472, %v2347, %v2348
        %v2350 = vrot.slane %v2348, 4
        %v2351 = vrot.slane %v2204, 6
        %v2352 = vsel %vm1472, %v2350, %v2351
        %v2353 = vrot.slane %v2205, 6
        %v2354 = vrot.slane %v2353, 4
        %v2355 = vrot.slane %v2206, 6
        %v2356 = vsel %vm1472, %v2354, %v2355
        %v2357 = vrot.slane %v2355, 4
        %v2358 = vrot.slane %v2207, 6
        %v2359 = vsel %vm1472, %v2357, %v2358
        %v2360 = vrot.slane %v2208, 6
        %v2361 = vrot.slane %v2360, 4
        %v2362 = vrot.slane %v2209, 6
        %v2363 = vsel %vm1472, %v2361, %v2362
        %v2364 = vrot.slane %v2362, 4
        %v2365 = vrot.slane %v2210, 6
        %v2366 = vsel %vm1472, %v2364, %v2365
        %v2367 = vrot.slane %v2211, 6
        %v2368 = vrot.slane %v2367, 4
        %v2369 = vrot.slane %v2212, 6
        %v2370 = vsel %vm1472, %v2368, %v2369
        %v2371 = vrot.slane %v2369, 4
        %v2372 = vrot.slane %v2213, 6
        %v2373 = vsel %vm1472, %v2371, %v2372
        %v2374 = vunpack.c.l.b16 %v2265
        %v2375 = vunpack.c.l.b16 %v2268
        %v2376 = vunpack.c.l.b16 %v2272
        %v2377 = vunpack.c.l.b16 %v2275
        %v2378 = vunpack.c.l.b16 %v2279
        %v2379 = vunpack.c.l.b16 %v2282
        %v2380 = vunpack.c.l.b16 %v2286
        %v2381 = vunpack.c.l.b16 %v2289
        %v2382 = vunpack.c.l.b16 %v2293
        %v2383 = vunpack.c.l.b16 %v2296
        %v2384 = vunpack.c.l.b16 %v2300
        %v2385 = vunpack.c.l.b16 %v2303
        %v2386 = vunpack.c.l.b16 %v2307
        %v2387 = vunpack.c.l.b16 %v2310
        %v2388 = vunpack.c.l.b16 %v2314
        %v2389 = vunpack.c.l.b16 %v2317
        %v2390 = vunpack.c.l.b16 %v2321
        %v2391 = vunpack.c.l.b16 %v2324
        %v2392 = vunpack.c.l.b16 %v2328
        %v2393 = vunpack.c.l.b16 %v2331
        %v2394 = vunpack.c.l.b16 %v2335
        %v2395 = vunpack.c.l.b16 %v2338
        %v2396 = vunpack.c.l.b16 %v2342
        %v2397 = vunpack.c.l.b16 %v2345
        %v2398 = vunpack.c.l.b16 %v2349
        %v2399 = vunpack.c.l.b16 %v2352
        %v2400 = vunpack.c.l.b16 %v2356
        %v2401 = vunpack.c.l.b16 %v2359
        %v2402 = vunpack.c.l.b16 %v2363
        %v2403 = vunpack.c.l.b16 %v2366
        %v2404 = vunpack.c.l.b16 %v2370
        %v2405 = vunpack.c.l.b16 %v2373
        %v2406 = vpack.c.b16 %v2375, %v2374
        %v2407 = vpack.c.b16 %v2377, %v2376
        %v2408 = vpack.c.b16 %v2379, %v2378
        %v2409 = vpack.c.b16 %v2381, %v2380
        %v2410 = vpack.c.b16 %v2383, %v2382
        %v2411 = vpack.c.b16 %v2385, %v2384
        %v2412 = vpack.c.b16 %v2387, %v2386
        %v2413 = vpack.c.b16 %v2389, %v2388
        %v2414 = vpack.c.b16 %v2391, %v2390
        %v2415 = vpack.c.b16 %v2393, %v2392
        %v2416 = vpack.c.b16 %v2395, %v2394
        %v2417 = vpack.c.b16 %v2397, %v2396
        %v2418 = vpack.c.b16 %v2399, %v2398
        %v2419 = vpack.c.b16 %v2401, %v2400
        %v2420 = vpack.c.b16 %v2403, %v2402
        %v2421 = vpack.c.b16 %v2405, %v2404
        %2422 = vrot.lane.b32.xlu0 %v2406, 12
        %v2423 = vpop.permute.xlu0 %2422
        %2424 = vrot.lane.b32.xlu0 %v2407, 12
        %v2425 = vpop.permute.xlu0 %2424
        %2426 = vrot.lane.b32.xlu0 %v2408, 12
        %v2427 = vpop.permute.xlu0 %2426
        %2428 = vrot.lane.b32.xlu0 %v2409, 12
        %v2429 = vpop.permute.xlu0 %2428
        %2430 = vrot.lane.b32.xlu0 %v2410, 12
        %v2431 = vpop.permute.xlu0 %2430
        %2432 = vrot.lane.b32.xlu0 %v2411, 12
        %v2433 = vpop.permute.xlu0 %2432
        %2434 = vrot.lane.b32.xlu0 %v2412, 12
        %v2435 = vpop.permute.xlu0 %2434
        %2436 = vrot.lane.b32.xlu0 %v2413, 12
        %v2437 = vpop.permute.xlu0 %2436
        %2438 = vrot.lane.b32.xlu0 %v2414, 12
        %v2439 = vpop.permute.xlu0 %2438
        %2440 = vrot.lane.b32.xlu0 %v2415, 12
        %v2441 = vpop.permute.xlu0 %2440
        %2442 = vrot.lane.b32.xlu0 %v2416, 12
        %v2443 = vpop.permute.xlu0 %2442
        %2444 = vrot.lane.b32.xlu0 %v2417, 12
        %v2445 = vpop.permute.xlu0 %2444
        %2446 = vrot.lane.b32.xlu0 %v2418, 12
        %v2447 = vpop.permute.xlu0 %2446
        %2448 = vrot.lane.b32.xlu0 %v2419, 12
        %v2449 = vpop.permute.xlu0 %2448
        %2450 = vrot.lane.b32.xlu0 %v2420, 12
        %v2451 = vpop.permute.xlu0 %2450
        %2452 = vrot.lane.b32.xlu0 %v2421, 12
        %v2453 = vpop.permute.xlu0 %2452
        %vm2470 = vcmask 130144
        %2471 = vst.msk [vmem:[#allocation3] sm:$0xff] %vm2470, %v2423
        %2472 = vst.msk [vmem:[#allocation3 + $0x8] sm:$0xff] %vm2470, %v2425
        %2473 = vst.msk [vmem:[#allocation3 + $0x10] sm:$0xff] %vm2470, %v2427
        %2474 = vst.msk [vmem:[#allocation3 + $0x18] sm:$0xff] %vm2470, %v2429
        %2475 = vst.msk [vmem:[#allocation3 + $0x20] sm:$0xff] %vm2470, %v2431
        %2476 = vst.msk [vmem:[#allocation3 + $0x28] sm:$0xff] %vm2470, %v2433
        %2477 = vst.msk [vmem:[#allocation3 + $0x30] sm:$0xff] %vm2470, %v2435
        %2478 = vst.msk [vmem:[#allocation3 + $0x38] sm:$0xff] %vm2470, %v2437
        %2479 = vst.msk [vmem:[#allocation3 + $0x40] sm:$0xff] %vm2470, %v2439
        %2480 = vst.msk [vmem:[#allocation3 + $0x48] sm:$0xff] %vm2470, %v2441
        %2481 = vst.msk [vmem:[#allocation3 + $0x50] sm:$0xff] %vm2470, %v2443
        %2482 = vst.msk [vmem:[#allocation3 + $0x58] sm:$0xff] %vm2470, %v2445
        %2483 = vst.msk [vmem:[#allocation3 + $0x60] sm:$0xff] %vm2470, %v2447
        %2484 = vst.msk [vmem:[#allocation3 + $0x68] sm:$0xff] %vm2470, %v2449
        %2485 = vst.msk [vmem:[#allocation3 + $0x70] sm:$0xff] %vm2470, %v2451
        %2486 = vst.msk [vmem:[#allocation3 + $0x78] sm:$0xff] %vm2470, %v2453
        %v2487 = vld [vmem:[%s920 + $0x8] sm:$0xe]
        %v2488 = vld [vmem:[%s920 + $0xc] sm:$0xf]
        %v2489 = vld [vmem:[%s920 + $0x10] sm:$0x1]
        %v2490 = vld [vmem:[%s920 + $0x24] sm:$0xe]
        %v2491 = vld [vmem:[%s920 + $0x28] sm:$0xf]
        %v2492 = vld [vmem:[%s920 + $0x2c] sm:$0x1]
        %v2493 = vld [vmem:[%s920 + $0x40] sm:$0xe]
        %v2494 = vld [vmem:[%s920 + $0x44] sm:$0xf]
        %v2495 = vld [vmem:[%s920 + $0x48] sm:$0x1]
        %v2496 = vld [vmem:[%s920 + $0x5c] sm:$0xe]
        %v2497 = vld [vmem:[%s920 + $0x60] sm:$0xf]
        %v2498 = vld [vmem:[%s920 + $0x64] sm:$0x1]
        %v2499 = vld [vmem:[%s920 + $0x78] sm:$0xe]
        %v2500 = vld [vmem:[%s920 + $0x7c] sm:$0xf]
        %v2501 = vld [vmem:[%s920 + $0x80] sm:$0x1]
        %v2502 = vld [vmem:[%s920 + $0x94] sm:$0xe]
        %v2503 = vld [vmem:[%s920 + $0x98] sm:$0xf]
        %v2504 = vld [vmem:[%s920 + $0x9c] sm:$0x1]
        %v2505 = vld [vmem:[%s920 + $0xb0] sm:$0xe]
        %v2506 = vld [vmem:[%s920 + $0xb4] sm:$0xf]
        %v2507 = vld [vmem:[%s920 + $0xb8] sm:$0x1]
        %v2508 = vld [vmem:[%s920 + $0xcc] sm:$0xe]
        %v2509 = vld [vmem:[%s920 + $0xd0] sm:$0xf]
        %v2510 = vld [vmem:[%s920 + $0xd4] sm:$0x1]
        %v2511 = vld [vmem:[%s920 + $0xe8] sm:$0xe]
        %v2512 = vld [vmem:[%s920 + $0xec] sm:$0xf]
        %v2513 = vld [vmem:[%s920 + $0xf0] sm:$0x1]
        %v2514 = vld [vmem:[%s920 + $0x104] sm:$0xe]
        %v2515 = vld [vmem:[%s920 + $0x108] sm:$0xf]
        %v2516 = vld [vmem:[%s920 + $0x10c] sm:$0x1]
        %v2517 = vld [vmem:[%s920 + $0x120] sm:$0xe]
        %v2518 = vld [vmem:[%s920 + $0x124] sm:$0xf]
        %v2519 = vld [vmem:[%s920 + $0x128] sm:$0x1]
        %v2520 = vld [vmem:[%s920 + $0x13c] sm:$0xe]
        %v2521 = vld [vmem:[%s920 + $0x140] sm:$0xf]
        %v2522 = vld [vmem:[%s920 + $0x144] sm:$0x1]
        %v2523 = vld [vmem:[%s920 + $0x158] sm:$0xe]
        %v2524 = vld [vmem:[%s920 + $0x15c] sm:$0xf]
        %v2525 = vld [vmem:[%s920 + $0x160] sm:$0x1]
        %v2526 = vld [vmem:[%s920 + $0x174] sm:$0xe]
        %v2527 = vld [vmem:[%s920 + $0x178] sm:$0xf]
        %v2528 = vld [vmem:[%s920 + $0x17c] sm:$0x1]
        %v2529 = vld [vmem:[%s920 + $0x190] sm:$0xe]
        %v2530 = vld [vmem:[%s920 + $0x194] sm:$0xf]
        %v2531 = vld [vmem:[%s920 + $0x198] sm:$0x1]
        %v2532 = vld [vmem:[%s920 + $0x1ac] sm:$0xe]
        %v2533 = vld [vmem:[%s920 + $0x1b0] sm:$0xf]
        %v2534 = vld [vmem:[%s920 + $0x1b4] sm:$0x1]
        %v2583 = vrot.slane %v2487, 5
        %v2584 = vrot.slane %v2583, 4
        %v2585 = vrot.slane %v2488, 5
        %v2586 = vsel %vm1763, %v2584, %v2585
        %v2587 = vrot.slane %v2585, 4
        %v2588 = vrot.slane %v2489, 5
        %v2589 = vsel %vm1763, %v2587, %v2588
        %v2590 = vrot.slane %v2490, 5
        %v2591 = vrot.slane %v2590, 4
        %v2592 = vrot.slane %v2491, 5
        %v2593 = vsel %vm1763, %v2591, %v2592
        %v2594 = vrot.slane %v2592, 4
        %v2595 = vrot.slane %v2492, 5
        %v2596 = vsel %vm1763, %v2594, %v2595
        %v2597 = vrot.slane %v2493, 5
        %v2598 = vrot.slane %v2597, 4
        %v2599 = vrot.slane %v2494, 5
        %v2600 = vsel %vm1763, %v2598, %v2599
        %v2601 = vrot.slane %v2599, 4
        %v2602 = vrot.slane %v2495, 5
        %v2603 = vsel %vm1763, %v2601, %v2602
        %v2604 = vrot.slane %v2496, 5
        %v2605 = vrot.slane %v2604, 4
        %v2606 = vrot.slane %v2497, 5
        %v2607 = vsel %vm1763, %v2605, %v2606
        %v2608 = vrot.slane %v2606, 4
        %v2609 = vrot.slane %v2498, 5
        %v2610 = vsel %vm1763, %v2608, %v2609
        %v2611 = vrot.slane %v2499, 5
        %v2612 = vrot.slane %v2611, 4
        %v2613 = vrot.slane %v2500, 5
        %v2614 = vsel %vm1763, %v2612, %v2613
        %v2615 = vrot.slane %v2613, 4
        %v2616 = vrot.slane %v2501, 5
        %v2617 = vsel %vm1763, %v2615, %v2616
        %v2618 = vrot.slane %v2502, 5
        %v2619 = vrot.slane %v2618, 4
        %v2620 = vrot.slane %v2503, 5
        %v2621 = vsel %vm1763, %v2619, %v2620
        %v2622 = vrot.slane %v2620, 4
        %v2623 = vrot.slane %v2504, 5
        %v2624 = vsel %vm1763, %v2622, %v2623
        %v2625 = vrot.slane %v2505, 5
        %v2626 = vrot.slane %v2625, 4
        %v2627 = vrot.slane %v2506, 5
        %v2628 = vsel %vm1763, %v2626, %v2627
        %v2629 = vrot.slane %v2627, 4
        %v2630 = vrot.slane %v2507, 5
        %v2631 = vsel %vm1763, %v2629, %v2630
        %v2632 = vrot.slane %v2508, 5
        %v2633 = vrot.slane %v2632, 4
        %v2634 = vrot.slane %v2509, 5
        %v2635 = vsel %vm1763, %v2633, %v2634
        %v2636 = vrot.slane %v2634, 4
        %v2637 = vrot.slane %v2510, 5
        %v2638 = vsel %vm1763, %v2636, %v2637
        %v2639 = vrot.slane %v2511, 5
        %v2640 = vrot.slane %v2639, 4
        %v2641 = vrot.slane %v2512, 5
        %v2642 = vsel %vm1763, %v2640, %v2641
        %v2643 = vrot.slane %v2641, 4
        %v2644 = vrot.slane %v2513, 5
        %v2645 = vsel %vm1763, %v2643, %v2644
        %v2646 = vrot.slane %v2514, 5
        %v2647 = vrot.slane %v2646, 4
        %v2648 = vrot.slane %v2515, 5
        %v2649 = vsel %vm1763, %v2647, %v2648
        %v2650 = vrot.slane %v2648, 4
        %v2651 = vrot.slane %v2516, 5
        %v2652 = vsel %vm1763, %v2650, %v2651
        %v2653 = vrot.slane %v2517, 5
        %v2654 = vrot.slane %v2653, 4
        %v2655 = vrot.slane %v2518, 5
        %v2656 = vsel %vm1763, %v2654, %v2655
        %v2657 = vrot.slane %v2655, 4
        %v2658 = vrot.slane %v2519, 5
        %v2659 = vsel %vm1763, %v2657, %v2658
        %v2660 = vrot.slane %v2520, 5
        %v2661 = vrot.slane %v2660, 4
        %v2662 = vrot.slane %v2521, 5
        %v2663 = vsel %vm1763, %v2661, %v2662
        %v2664 = vrot.slane %v2662, 4
        %v2665 = vrot.slane %v2522, 5
        %v2666 = vsel %vm1763, %v2664, %v2665
        %v2667 = vrot.slane %v2523, 5
        %v2668 = vrot.slane %v2667, 4
        %v2669 = vrot.slane %v2524, 5
        %v2670 = vsel %vm1763, %v2668, %v2669
        %v2671 = vrot.slane %v2669, 4
        %v2672 = vrot.slane %v2525, 5
        %v2673 = vsel %vm1763, %v2671, %v2672
        %v2674 = vrot.slane %v2526, 5
        %v2675 = vrot.slane %v2674, 4
        %v2676 = vrot.slane %v2527, 5
        %v2677 = vsel %vm1763, %v2675, %v2676
        %v2678 = vrot.slane %v2676, 4
        %v2679 = vrot.slane %v2528, 5
        %v2680 = vsel %vm1763, %v2678, %v2679
        %v2681 = vrot.slane %v2529, 5
        %v2682 = vrot.slane %v2681, 4
        %v2683 = vrot.slane %v2530, 5
        %v2684 = vsel %vm1763, %v2682, %v2683
        %v2685 = vrot.slane %v2683, 4
        %v2686 = vrot.slane %v2531, 5
        %v2687 = vsel %vm1763, %v2685, %v2686
        %v2688 = vrot.slane %v2532, 5
        %v2689 = vrot.slane %v2688, 4
        %v2690 = vrot.slane %v2533, 5
        %v2691 = vsel %vm1763, %v2689, %v2690
        %v2692 = vrot.slane %v2690, 4
        %v2693 = vrot.slane %v2534, 5
        %v2694 = vsel %vm1763, %v2692, %v2693
        %v2695 = vunpack.c.l.b16 %v2586
        %v2696 = vunpack.c.l.b16 %v2589
        %v2697 = vunpack.c.l.b16 %v2593
        %v2698 = vunpack.c.l.b16 %v2596
        %v2699 = vunpack.c.l.b16 %v2600
        %v2700 = vunpack.c.l.b16 %v2603
        %v2701 = vunpack.c.l.b16 %v2607
        %v2702 = vunpack.c.l.b16 %v2610
        %v2703 = vunpack.c.l.b16 %v2614
        %v2704 = vunpack.c.l.b16 %v2617
        %v2705 = vunpack.c.l.b16 %v2621
        %v2706 = vunpack.c.l.b16 %v2624
        %v2707 = vunpack.c.l.b16 %v2628
        %v2708 = vunpack.c.l.b16 %v2631
        %v2709 = vunpack.c.l.b16 %v2635
        %v2710 = vunpack.c.l.b16 %v2638
        %v2711 = vunpack.c.l.b16 %v2642
        %v2712 = vunpack.c.l.b16 %v2645
        %v2713 = vunpack.c.l.b16 %v2649
        %v2714 = vunpack.c.l.b16 %v2652
        %v2715 = vunpack.c.l.b16 %v2656
        %v2716 = vunpack.c.l.b16 %v2659
        %v2717 = vunpack.c.l.b16 %v2663
        %v2718 = vunpack.c.l.b16 %v2666
        %v2719 = vunpack.c.l.b16 %v2670
        %v2720 = vunpack.c.l.b16 %v2673
        %v2721 = vunpack.c.l.b16 %v2677
        %v2722 = vunpack.c.l.b16 %v2680
        %v2723 = vunpack.c.l.b16 %v2684
        %v2724 = vunpack.c.l.b16 %v2687
        %v2725 = vunpack.c.l.b16 %v2691
        %v2726 = vunpack.c.l.b16 %v2694
        %v2727 = vpack.c.b16 %v2696, %v2695
        %v2728 = vpack.c.b16 %v2698, %v2697
        %v2729 = vpack.c.b16 %v2700, %v2699
        %v2730 = vpack.c.b16 %v2702, %v2701
        %v2731 = vpack.c.b16 %v2704, %v2703
        %v2732 = vpack.c.b16 %v2706, %v2705
        %v2733 = vpack.c.b16 %v2708, %v2707
        %v2734 = vpack.c.b16 %v2710, %v2709
        %v2735 = vpack.c.b16 %v2712, %v2711
        %v2736 = vpack.c.b16 %v2714, %v2713
        %v2737 = vpack.c.b16 %v2716, %v2715
        %v2738 = vpack.c.b16 %v2718, %v2717
        %v2739 = vpack.c.b16 %v2720, %v2719
        %v2740 = vpack.c.b16 %v2722, %v2721
        %v2741 = vpack.c.b16 %v2724, %v2723
        %v2742 = vpack.c.b16 %v2726, %v2725
        %2743 = vrot.lane.b32.xlu0 %v2727, 16
        %v2744 = vpop.permute.xlu0 %2743
        %2745 = vrot.lane.b32.xlu0 %v2728, 16
        %v2746 = vpop.permute.xlu0 %2745
        %2747 = vrot.lane.b32.xlu0 %v2729, 16
        %v2748 = vpop.permute.xlu0 %2747
        %2749 = vrot.lane.b32.xlu0 %v2730, 16
        %v2750 = vpop.permute.xlu0 %2749
        %2751 = vrot.lane.b32.xlu0 %v2731, 16
        %v2752 = vpop.permute.xlu0 %2751
        %2753 = vrot.lane.b32.xlu0 %v2732, 16
        %v2754 = vpop.permute.xlu0 %2753
        %2755 = vrot.lane.b32.xlu0 %v2733, 16
        %v2756 = vpop.permute.xlu0 %2755
        %2757 = vrot.lane.b32.xlu0 %v2734, 16
        %v2758 = vpop.permute.xlu0 %2757
        %2759 = vrot.lane.b32.xlu0 %v2735, 16
        %v2760 = vpop.permute.xlu0 %2759
        %2761 = vrot.lane.b32.xlu0 %v2736, 16
        %v2762 = vpop.permute.xlu0 %2761
        %2763 = vrot.lane.b32.xlu0 %v2737, 16
        %v2764 = vpop.permute.xlu0 %2763
        %2765 = vrot.lane.b32.xlu0 %v2738, 16
        %v2766 = vpop.permute.xlu0 %2765
        %2767 = vrot.lane.b32.xlu0 %v2739, 16
        %v2768 = vpop.permute.xlu0 %2767
        %2769 = vrot.lane.b32.xlu0 %v2740, 16
        %v2770 = vpop.permute.xlu0 %2769
        %2771 = vrot.lane.b32.xlu0 %v2741, 16
        %v2772 = vpop.permute.xlu0 %2771
        %2773 = vrot.lane.b32.xlu0 %v2742, 16
        %v2774 = vpop.permute.xlu0 %2773
        %vm2791 = vcmask 162944
        %2792 = vst.msk [vmem:[#allocation3] sm:$0xff] %vm2791, %v2744
        %2793 = vst.msk [vmem:[#allocation3 + $0x8] sm:$0xff] %vm2791, %v2746
        %2794 = vst.msk [vmem:[#allocation3 + $0x10] sm:$0xff] %vm2791, %v2748
        %2795 = vst.msk [vmem:[#allocation3 + $0x18] sm:$0xff] %vm2791, %v2750
        %2796 = vst.msk [vmem:[#allocation3 + $0x20] sm:$0xff] %vm2791, %v2752
        %2797 = vst.msk [vmem:[#allocation3 + $0x28] sm:$0xff] %vm2791, %v2754
        %2798 = vst.msk [vmem:[#allocation3 + $0x30] sm:$0xff] %vm2791, %v2756
        %2799 = vst.msk [vmem:[#allocation3 + $0x38] sm:$0xff] %vm2791, %v2758
        %2800 = vst.msk [vmem:[#allocation3 + $0x40] sm:$0xff] %vm2791, %v2760
        %2801 = vst.msk [vmem:[#allocation3 + $0x48] sm:$0xff] %vm2791, %v2762
        %2802 = vst.msk [vmem:[#allocation3 + $0x50] sm:$0xff] %vm2791, %v2764
        %2803 = vst.msk [vmem:[#allocation3 + $0x58] sm:$0xff] %vm2791, %v2766
        %2804 = vst.msk [vmem:[#allocation3 + $0x60] sm:$0xff] %vm2791, %v2768
        %2805 = vst.msk [vmem:[#allocation3 + $0x68] sm:$0xff] %vm2791, %v2770
        %2806 = vst.msk [vmem:[#allocation3 + $0x70] sm:$0xff] %vm2791, %v2772
        %2807 = vst.msk [vmem:[#allocation3 + $0x78] sm:$0xff] %vm2791, %v2774
        %v2808 = vld [vmem:[%s920 + $0xc] sm:$0xf]
        %v2809 = vld [vmem:[%s920 + $0x10] sm:$0xf]
        %v2810 = vld [vmem:[%s920 + $0x28] sm:$0xf]
        %v2811 = vld [vmem:[%s920 + $0x2c] sm:$0xf]
        %v2812 = vld [vmem:[%s920 + $0x44] sm:$0xf]
        %v2813 = vld [vmem:[%s920 + $0x48] sm:$0xf]
        %v2814 = vld [vmem:[%s920 + $0x60] sm:$0xf]
        %v2815 = vld [vmem:[%s920 + $0x64] sm:$0xf]
        %v2816 = vld [vmem:[%s920 + $0x7c] sm:$0xf]
        %v2817 = vld [vmem:[%s920 + $0x80] sm:$0xf]
        %v2818 = vld [vmem:[%s920 + $0x98] sm:$0xf]
        %v2819 = vld [vmem:[%s920 + $0x9c] sm:$0xf]
        %v2820 = vld [vmem:[%s920 + $0xb4] sm:$0xf]
        %v2821 = vld [vmem:[%s920 + $0xb8] sm:$0xf]
        %v2822 = vld [vmem:[%s920 + $0xd0] sm:$0xf]
        %v2823 = vld [vmem:[%s920 + $0xd4] sm:$0xf]
        %v2824 = vld [vmem:[%s920 + $0xec] sm:$0xf]
        %v2825 = vld [vmem:[%s920 + $0xf0] sm:$0xf]
        %v2826 = vld [vmem:[%s920 + $0x108] sm:$0xf]
        %v2827 = vld [vmem:[%s920 + $0x10c] sm:$0xf]
        %v2828 = vld [vmem:[%s920 + $0x124] sm:$0xf]
        %v2829 = vld [vmem:[%s920 + $0x128] sm:$0xf]
        %v2830 = vld [vmem:[%s920 + $0x140] sm:$0xf]
        %v2831 = vld [vmem:[%s920 + $0x144] sm:$0xf]
        %v2832 = vld [vmem:[%s920 + $0x15c] sm:$0xf]
        %v2833 = vld [vmem:[%s920 + $0x160] sm:$0xf]
        %v2834 = vld [vmem:[%s920 + $0x178] sm:$0xf]
        %v2835 = vld [vmem:[%s920 + $0x17c] sm:$0xf]
        %v2836 = vld [vmem:[%s920 + $0x194] sm:$0xf]
        %v2837 = vld [vmem:[%s920 + $0x198] sm:$0xf]
        %v2838 = vld [vmem:[%s920 + $0x1b0] sm:$0xf]
        %v2839 = vld [vmem:[%s920 + $0x1b4] sm:$0xf]
        %v2872 = vunpack.c.l.b16 %v2808
        %v2873 = vunpack.c.l.b16 %v2809
        %v2874 = vunpack.c.l.b16 %v2810
        %v2875 = vunpack.c.l.b16 %v2811
        %v2876 = vunpack.c.l.b16 %v2812
        %v2877 = vunpack.c.l.b16 %v2813
        %v2878 = vunpack.c.l.b16 %v2814
        %v2879 = vunpack.c.l.b16 %v2815
        %v2880 = vunpack.c.l.b16 %v2816
        %v2881 = vunpack.c.l.b16 %v2817
        %v2882 = vunpack.c.l.b16 %v2818
        %v2883 = vunpack.c.l.b16 %v2819
        %v2884 = vunpack.c.l.b16 %v2820
        %v2885 = vunpack.c.l.b16 %v2821
        %v2886 = vunpack.c.l.b16 %v2822
        %v2887 = vunpack.c.l.b16 %v2823
        %v2888 = vunpack.c.l.b16 %v2824
        %v2889 = vunpack.c.l.b16 %v2825
        %v2890 = vunpack.c.l.b16 %v2826
        %v2891 = vunpack.c.l.b16 %v2827
        %v2892 = vunpack.c.l.b16 %v2828
        %v2893 = vunpack.c.l.b16 %v2829
        %v2894 = vunpack.c.l.b16 %v2830
        %v2895 = vunpack.c.l.b16 %v2831
        %v2896 = vunpack.c.l.b16 %v2832
        %v2897 = vunpack.c.l.b16 %v2833
        %v2898 = vunpack.c.l.b16 %v2834
        %v2899 = vunpack.c.l.b16 %v2835
        %v2900 = vunpack.c.l.b16 %v2836
        %v2901 = vunpack.c.l.b16 %v2837
        %v2902 = vunpack.c.l.b16 %v2838
        %v2903 = vunpack.c.l.b16 %v2839
        %v2904 = vpack.c.b16 %v2873, %v2872
        %v2905 = vpack.c.b16 %v2875, %v2874
        %v2906 = vpack.c.b16 %v2877, %v2876
        %v2907 = vpack.c.b16 %v2879, %v2878
        %v2908 = vpack.c.b16 %v2881, %v2880
        %v2909 = vpack.c.b16 %v2883, %v2882
        %v2910 = vpack.c.b16 %v2885, %v2884
        %v2911 = vpack.c.b16 %v2887, %v2886
        %v2912 = vpack.c.b16 %v2889, %v2888
        %v2913 = vpack.c.b16 %v2891, %v2890
        %v2914 = vpack.c.b16 %v2893, %v2892
        %v2915 = vpack.c.b16 %v2895, %v2894
        %v2916 = vpack.c.b16 %v2897, %v2896
        %v2917 = vpack.c.b16 %v2899, %v2898
        %v2918 = vpack.c.b16 %v2901, %v2900
        %v2919 = vpack.c.b16 %v2903, %v2902
        %2920 = vrot.lane.b32.xlu0 %v2904, 20
        %v2921 = vpop.permute.xlu0 %2920
        %2922 = vrot.lane.b32.xlu0 %v2905, 20
        %v2923 = vpop.permute.xlu0 %2922
        %2924 = vrot.lane.b32.xlu0 %v2906, 20
        %v2925 = vpop.permute.xlu0 %2924
        %2926 = vrot.lane.b32.xlu0 %v2907, 20
        %v2927 = vpop.permute.xlu0 %2926
        %2928 = vrot.lane.b32.xlu0 %v2908, 20
        %v2929 = vpop.permute.xlu0 %2928
        %2930 = vrot.lane.b32.xlu0 %v2909, 20
        %v2931 = vpop.permute.xlu0 %2930
        %2932 = vrot.lane.b32.xlu0 %v2910, 20
        %v2933 = vpop.permute.xlu0 %2932
        %2934 = vrot.lane.b32.xlu0 %v2911, 20
        %v2935 = vpop.permute.xlu0 %2934
        %2936 = vrot.lane.b32.xlu0 %v2912, 20
        %v2937 = vpop.permute.xlu0 %2936
        %2938 = vrot.lane.b32.xlu0 %v2913, 20
        %v2939 = vpop.permute.xlu0 %2938
        %2940 = vrot.lane.b32.xlu0 %v2914, 20
        %v2941 = vpop.permute.xlu0 %2940
        %2942 = vrot.lane.b32.xlu0 %v2915, 20
        %v2943 = vpop.permute.xlu0 %2942
        %2944 = vrot.lane.b32.xlu0 %v2916, 20
        %v2945 = vpop.permute.xlu0 %2944
        %2946 = vrot.lane.b32.xlu0 %v2917, 20
        %v2947 = vpop.permute.xlu0 %2946
        %2948 = vrot.lane.b32.xlu0 %v2918, 20
        %v2949 = vpop.permute.xlu0 %2948
        %2950 = vrot.lane.b32.xlu0 %v2919, 20
        %v2951 = vpop.permute.xlu0 %2950
        %vm2968 = vcmask 195744
        %2969 = vst.msk [vmem:[#allocation3] sm:$0xff] %vm2968, %v2921
        %2970 = vst.msk [vmem:[#allocation3 + $0x8] sm:$0xff] %vm2968, %v2923
        %2971 = vst.msk [vmem:[#allocation3 + $0x10] sm:$0xff] %vm2968, %v2925
        %2972 = vst.msk [vmem:[#allocation3 + $0x18] sm:$0xff] %vm2968, %v2927
        %2973 = vst.msk [vmem:[#allocation3 + $0x20] sm:$0xff] %vm2968, %v2929
        %2974 = vst.msk [vmem:[#allocation3 + $0x28] sm:$0xff] %vm2968, %v2931
        %2975 = vst.msk [vmem:[#allocation3 + $0x30] sm:$0xff] %vm2968, %v2933
        %2976 = vst.msk [vmem:[#allocation3 + $0x38] sm:$0xff] %vm2968, %v2935
        %2977 = vst.msk [vmem:[#allocation3 + $0x40] sm:$0xff] %vm2968, %v2937
        %2978 = vst.msk [vmem:[#allocation3 + $0x48] sm:$0xff] %vm2968, %v2939
        %2979 = vst.msk [vmem:[#allocation3 + $0x50] sm:$0xff] %vm2968, %v2941
        %2980 = vst.msk [vmem:[#allocation3 + $0x58] sm:$0xff] %vm2968, %v2943
        %2981 = vst.msk [vmem:[#allocation3 + $0x60] sm:$0xff] %vm2968, %v2945
        %2982 = vst.msk [vmem:[#allocation3 + $0x68] sm:$0xff] %vm2968, %v2947
        %2983 = vst.msk [vmem:[#allocation3 + $0x70] sm:$0xff] %vm2968, %v2949
        %2984 = vst.msk [vmem:[#allocation3 + $0x78] sm:$0xff] %vm2968, %v2951
        %s2985 = scalar_lea.vmem [#allocation2], 672
        %v2986 = vld [vmem:[%s2985 + $0x4] sm:$0xc]
        %v2987 = vld [vmem:[%s2985 + $0x8] sm:$0xf]
        %v2988 = vld [vmem:[%s2985 + $0xc] sm:$0x3]
        %v2989 = vld [vmem:[%s2985 + $0x20] sm:$0xc]
        %v2990 = vld [vmem:[%s2985 + $0x24] sm:$0xf]
        %v2991 = vld [vmem:[%s2985 + $0x28] sm:$0x3]
        %v2992 = vld [vmem:[%s2985 + $0x3c] sm:$0xc]
        %v2993 = vld [vmem:[%s2985 + $0x40] sm:$0xf]
        %v2994 = vld [vmem:[%s2985 + $0x44] sm:$0x3]
        %v2995 = vld [vmem:[%s2985 + $0x58] sm:$0xc]
        %v2996 = vld [vmem:[%s2985 + $0x5c] sm:$0xf]
        %v2997 = vld [vmem:[%s2985 + $0x60] sm:$0x3]
        %v2998 = vld [vmem:[%s2985 + $0x74] sm:$0xc]
        %v2999 = vld [vmem:[%s2985 + $0x78] sm:$0xf]
        %v3000 = vld [vmem:[%s2985 + $0x7c] sm:$0x3]
        %v3001 = vld [vmem:[%s2985 + $0x90] sm:$0xc]
        %v3002 = vld [vmem:[%s2985 + $0x94] sm:$0xf]
        %v3003 = vld [vmem:[%s2985 + $0x98] sm:$0x3]
        %v3004 = vld [vmem:[%s2985 + $0xac] sm:$0xc]
        %v3005 = vld [vmem:[%s2985 + $0xb0] sm:$0xf]
        %v3006 = vld [vmem:[%s2985 + $0xb4] sm:$0x3]
        %v3007 = vld [vmem:[%s2985 + $0xc8] sm:$0xc]
        %v3008 = vld [vmem:[%s2985 + $0xcc] sm:$0xf]
        %v3009 = vld [vmem:[%s2985 + $0xd0] sm:$0x3]
        %v3010 = vld [vmem:[%s2985 + $0xe4] sm:$0xc]
        %v3011 = vld [vmem:[%s2985 + $0xe8] sm:$0xf]
        %v3012 = vld [vmem:[%s2985 + $0xec] sm:$0x3]
        %v3013 = vld [vmem:[%s2985 + $0x100] sm:$0xc]
        %v3014 = vld [vmem:[%s2985 + $0x104] sm:$0xf]
        %v3015 = vld [vmem:[%s2985 + $0x108] sm:$0x3]
        %v3016 = vld [vmem:[%s2985 + $0x11c] sm:$0xc]
        %v3017 = vld [vmem:[%s2985 + $0x120] sm:$0xf]
        %v3018 = vld [vmem:[%s2985 + $0x124] sm:$0x3]
        %v3019 = vld [vmem:[%s2985 + $0x138] sm:$0xc]
        %v3020 = vld [vmem:[%s2985 + $0x13c] sm:$0xf]
        %v3021 = vld [vmem:[%s2985 + $0x140] sm:$0x3]
        %v3022 = vld [vmem:[%s2985 + $0x154] sm:$0xc]
        %v3023 = vld [vmem:[%s2985 + $0x158] sm:$0xf]
        %v3024 = vld [vmem:[%s2985 + $0x15c] sm:$0x3]
        %v3025 = vld [vmem:[%s2985 + $0x170] sm:$0xc]
        %v3026 = vld [vmem:[%s2985 + $0x174] sm:$0xf]
        %v3027 = vld [vmem:[%s2985 + $0x178] sm:$0x3]
        %v3028 = vld [vmem:[%s2985 + $0x18c] sm:$0xc]
        %v3029 = vld [vmem:[%s2985 + $0x190] sm:$0xf]
        %v3030 = vld [vmem:[%s2985 + $0x194] sm:$0x3]
        %v3031 = vld [vmem:[%s2985 + $0x1a8] sm:$0xc]
        %v3032 = vld [vmem:[%s2985 + $0x1ac] sm:$0xf]
        %v3033 = vld [vmem:[%s2985 + $0x1b0] sm:$0x3]
        %v3082 = vrot.slane %v2986, 6
        %v3083 = vrot.slane %v3082, 4
        %v3084 = vrot.slane %v2987, 6
        %v3085 = vsel %vm1472, %v3083, %v3084
        %v3086 = vrot.slane %v3084, 4
        %v3087 = vrot.slane %v2988, 6
        %v3088 = vsel %vm1472, %v3086, %v3087
        %v3089 = vrot.slane %v2989, 6
        %v3090 = vrot.slane %v3089, 4
        %v3091 = vrot.slane %v2990, 6
        %v3092 = vsel %vm1472, %v3090, %v3091
        %v3093 = vrot.slane %v3091, 4
        %v3094 = vrot.slane %v2991, 6
        %v3095 = vsel %vm1472, %v3093, %v3094
        %v3096 = vrot.slane %v2992, 6
        %v3097 = vrot.slane %v3096, 4
        %v3098 = vrot.slane %v2993, 6
        %v3099 = vsel %vm1472, %v3097, %v3098
        %v3100 = vrot.slane %v3098, 4
        %v3101 = vrot.slane %v2994, 6
        %v3102 = vsel %vm1472, %v3100, %v3101
        %v3103 = vrot.slane %v2995, 6
        %v3104 = vrot.slane %v3103, 4
        %v3105 = vrot.slane %v2996, 6
        %v3106 = vsel %vm1472, %v3104, %v3105
        %v3107 = vrot.slane %v3105, 4
        %v3108 = vrot.slane %v2997, 6
        %v3109 = vsel %vm1472, %v3107, %v3108
        %v3110 = vrot.slane %v2998, 6
        %v3111 = vrot.slane %v3110, 4
        %v3112 = vrot.slane %v2999, 6
        %v3113 = vsel %vm1472, %v3111, %v3112
        %v3114 = vrot.slane %v3112, 4
        %v3115 = vrot.slane %v3000, 6
        %v3116 = vsel %vm1472, %v3114, %v3115
        %v3117 = vrot.slane %v3001, 6
        %v3118 = vrot.slane %v3117, 4
        %v3119 = vrot.slane %v3002, 6
        %v3120 = vsel %vm1472, %v3118, %v3119
        %v3121 = vrot.slane %v3119, 4
        %v3122 = vrot.slane %v3003, 6
        %v3123 = vsel %vm1472, %v3121, %v3122
        %v3124 = vrot.slane %v3004, 6
        %v3125 = vrot.slane %v3124, 4
        %v3126 = vrot.slane %v3005, 6
        %v3127 = vsel %vm1472, %v3125, %v3126
        %v3128 = vrot.slane %v3126, 4
        %v3129 = vrot.slane %v3006, 6
        %v3130 = vsel %vm1472, %v3128, %v3129
        %v3131 = vrot.slane %v3007, 6
        %v3132 = vrot.slane %v3131, 4
        %v3133 = vrot.slane %v3008, 6
        %v3134 = vsel %vm1472, %v3132, %v3133
        %v3135 = vrot.slane %v3133, 4
        %v3136 = vrot.slane %v3009, 6
        %v3137 = vsel %vm1472, %v3135, %v3136
        %v3138 = vrot.slane %v3010, 6
        %v3139 = vrot.slane %v3138, 4
        %v3140 = vrot.slane %v3011, 6
        %v3141 = vsel %vm1472, %v3139, %v3140
        %v3142 = vrot.slane %v3140, 4
        %v3143 = vrot.slane %v3012, 6
        %v3144 = vsel %vm1472, %v3142, %v3143
        %v3145 = vrot.slane %v3013, 6
        %v3146 = vrot.slane %v3145, 4
        %v3147 = vrot.slane %v3014, 6
        %v3148 = vsel %vm1472, %v3146, %v3147
        %v3149 = vrot.slane %v3147, 4
        %v3150 = vrot.slane %v3015, 6
        %v3151 = vsel %vm1472, %v3149, %v3150
        %v3152 = vrot.slane %v3016, 6
        %v3153 = vrot.slane %v3152, 4
        %v3154 = vrot.slane %v3017, 6
        %v3155 = vsel %vm1472, %v3153, %v3154
        %v3156 = vrot.slane %v3154, 4
        %v3157 = vrot.slane %v3018, 6
        %v3158 = vsel %vm1472, %v3156, %v3157
        %v3159 = vrot.slane %v3019, 6
        %v3160 = vrot.slane %v3159, 4
        %v3161 = vrot.slane %v3020, 6
        %v3162 = vsel %vm1472, %v3160, %v3161
        %v3163 = vrot.slane %v3161, 4
        %v3164 = vrot.slane %v3021, 6
        %v3165 = vsel %vm1472, %v3163, %v3164
        %v3166 = vrot.slane %v3022, 6
        %v3167 = vrot.slane %v3166, 4
        %v3168 = vrot.slane %v3023, 6
        %v3169 = vsel %vm1472, %v3167, %v3168
        %v3170 = vrot.slane %v3168, 4
        %v3171 = vrot.slane %v3024, 6
        %v3172 = vsel %vm1472, %v3170, %v3171
        %v3173 = vrot.slane %v3025, 6
        %v3174 = vrot.slane %v3173, 4
        %v3175 = vrot.slane %v3026, 6
        %v3176 = vsel %vm1472, %v3174, %v3175
        %v3177 = vrot.slane %v3175, 4
        %v3178 = vrot.slane %v3027, 6
        %v3179 = vsel %vm1472, %v3177, %v3178
        %v3180 = vrot.slane %v3028, 6
        %v3181 = vrot.slane %v3180, 4
        %v3182 = vrot.slane %v3029, 6
        %v3183 = vsel %vm1472, %v3181, %v3182
        %v3184 = vrot.slane %v3182, 4
        %v3185 = vrot.slane %v3030, 6
        %v3186 = vsel %vm1472, %v3184, %v3185
        %v3187 = vrot.slane %v3031, 6
        %v3188 = vrot.slane %v3187, 4
        %v3189 = vrot.slane %v3032, 6
        %v3190 = vsel %vm1472, %v3188, %v3189
        %v3191 = vrot.slane %v3189, 4
        %v3192 = vrot.slane %v3033, 6
        %v3193 = vsel %vm1472, %v3191, %v3192
        %v3194 = vunpack.c.l.b16 %v3085
        %v3195 = vunpack.c.l.b16 %v3088
        %v3196 = vunpack.c.l.b16 %v3092
        %v3197 = vunpack.c.l.b16 %v3095
        %v3198 = vunpack.c.l.b16 %v3099
        %v3199 = vunpack.c.l.b16 %v3102
        %v3200 = vunpack.c.l.b16 %v3106
        %v3201 = vunpack.c.l.b16 %v3109
        %v3202 = vunpack.c.l.b16 %v3113
        %v3203 = vunpack.c.l.b16 %v3116
        %v3204 = vunpack.c.l.b16 %v3120
        %v3205 = vunpack.c.l.b16 %v3123
        %v3206 = vunpack.c.l.b16 %v3127
        %v3207 = vunpack.c.l.b16 %v3130
        %v3208 = vunpack.c.l.b16 %v3134
        %v3209 = vunpack.c.l.b16 %v3137
        %v3210 = vunpack.c.l.b16 %v3141
        %v3211 = vunpack.c.l.b16 %v3144
        %v3212 = vunpack.c.l.b16 %v3148
        %v3213 = vunpack.c.l.b16 %v3151
        %v3214 = vunpack.c.l.b16 %v3155
        %v3215 = vunpack.c.l.b16 %v3158
        %v3216 = vunpack.c.l.b16 %v3162
        %v3217 = vunpack.c.l.b16 %v3165
        %v3218 = vunpack.c.l.b16 %v3169
        %v3219 = vunpack.c.l.b16 %v3172
        %v3220 = vunpack.c.l.b16 %v3176
        %v3221 = vunpack.c.l.b16 %v3179
        %v3222 = vunpack.c.l.b16 %v3183
        %v3223 = vunpack.c.l.b16 %v3186
        %v3224 = vunpack.c.l.b16 %v3190
        %v3225 = vunpack.c.l.b16 %v3193
        %v3226 = vpack.c.b16 %v3195, %v3194
        %v3227 = vpack.c.b16 %v3197, %v3196
        %v3228 = vpack.c.b16 %v3199, %v3198
        %v3229 = vpack.c.b16 %v3201, %v3200
        %v3230 = vpack.c.b16 %v3203, %v3202
        %v3231 = vpack.c.b16 %v3205, %v3204
        %v3232 = vpack.c.b16 %v3207, %v3206
        %v3233 = vpack.c.b16 %v3209, %v3208
        %v3234 = vpack.c.b16 %v3211, %v3210
        %v3235 = vpack.c.b16 %v3213, %v3212
        %v3236 = vpack.c.b16 %v3215, %v3214
        %v3237 = vpack.c.b16 %v3217, %v3216
        %v3238 = vpack.c.b16 %v3219, %v3218
        %v3239 = vpack.c.b16 %v3221, %v3220
        %v3240 = vpack.c.b16 %v3223, %v3222
        %v3241 = vpack.c.b16 %v3225, %v3224
        %3242 = vrot.lane.b32.xlu0 %v3226, 24
        %v3243 = vpop.permute.xlu0 %3242
        %3244 = vrot.lane.b32.xlu0 %v3227, 24
        %v3245 = vpop.permute.xlu0 %3244
        %3246 = vrot.lane.b32.xlu0 %v3228, 24
        %v3247 = vpop.permute.xlu0 %3246
        %3248 = vrot.lane.b32.xlu0 %v3229, 24
        %v3249 = vpop.permute.xlu0 %3248
        %3250 = vrot.lane.b32.xlu0 %v3230, 24
        %v3251 = vpop.permute.xlu0 %3250
        %3252 = vrot.lane.b32.xlu0 %v3231, 24
        %v3253 = vpop.permute.xlu0 %3252
        %3254 = vrot.lane.b32.xlu0 %v3232, 24
        %v3255 = vpop.permute.xlu0 %3254
        %3256 = vrot.lane.b32.xlu0 %v3233, 24
        %v3257 = vpop.permute.xlu0 %3256
        %3258 = vrot.lane.b32.xlu0 %v3234, 24
        %v3259 = vpop.permute.xlu0 %3258
        %3260 = vrot.lane.b32.xlu0 %v3235, 24
        %v3261 = vpop.permute.xlu0 %3260
        %3262 = vrot.lane.b32.xlu0 %v3236, 24
        %v3263 = vpop.permute.xlu0 %3262
        %3264 = vrot.lane.b32.xlu0 %v3237, 24
        %v3265 = vpop.permute.xlu0 %3264
        %3266 = vrot.lane.b32.xlu0 %v3238, 24
        %v3267 = vpop.permute.xlu0 %3266
        %3268 = vrot.lane.b32.xlu0 %v3239, 24
        %v3269 = vpop.permute.xlu0 %3268
        %3270 = vrot.lane.b32.xlu0 %v3240, 24
        %v3271 = vpop.permute.xlu0 %3270
        %3272 = vrot.lane.b32.xlu0 %v3241, 24
        %v3273 = vpop.permute.xlu0 %3272
        %vm3290 = vcmask 228544
        %3291 = vst.msk [vmem:[#allocation3] sm:$0xff] %vm3290, %v3243
        %3292 = vst.msk [vmem:[#allocation3 + $0x8] sm:$0xff] %vm3290, %v3245
        %3293 = vst.msk [vmem:[#allocation3 + $0x10] sm:$0xff] %vm3290, %v3247
        %3294 = vst.msk [vmem:[#allocation3 + $0x18] sm:$0xff] %vm3290, %v3249
        %3295 = vst.msk [vmem:[#allocation3 + $0x20] sm:$0xff] %vm3290, %v3251
        %3296 = vst.msk [vmem:[#allocation3 + $0x28] sm:$0xff] %vm3290, %v3253
        %3297 = vst.msk [vmem:[#allocation3 + $0x30] sm:$0xff] %vm3290, %v3255
        %3298 = vst.msk [vmem:[#allocation3 + $0x38] sm:$0xff] %vm3290, %v3257
        %3299 = vst.msk [vmem:[#allocation3 + $0x40] sm:$0xff] %vm3290, %v3259
        %3300 = vst.msk [vmem:[#allocation3 + $0x48] sm:$0xff] %vm3290, %v3261
        %3301 = vst.msk [vmem:[#allocation3 + $0x50] sm:$0xff] %vm3290, %v3263
        %3302 = vst.msk [vmem:[#allocation3 + $0x58] sm:$0xff] %vm3290, %v3265
        %3303 = vst.msk [vmem:[#allocation3 + $0x60] sm:$0xff] %vm3290, %v3267
        %3304 = vst.msk [vmem:[#allocation3 + $0x68] sm:$0xff] %vm3290, %v3269
        %3305 = vst.msk [vmem:[#allocation3 + $0x70] sm:$0xff] %vm3290, %v3271
        %3306 = vst.msk [vmem:[#allocation3 + $0x78] sm:$0xff] %vm3290, %v3273
        %v3307 = vld [vmem:[%s2985 + $0x8] sm:$0xe]
        %v3308 = vld [vmem:[%s2985 + $0xc] sm:$0xf]
        %v3309 = vld [vmem:[%s2985 + $0x10] sm:$0x1]
        %v3310 = vld [vmem:[%s2985 + $0x24] sm:$0xe]
        %v3311 = vld [vmem:[%s2985 + $0x28] sm:$0xf]
        %v3312 = vld [vmem:[%s2985 + $0x2c] sm:$0x1]
        %v3313 = vld [vmem:[%s2985 + $0x40] sm:$0xe]
        %v3314 = vld [vmem:[%s2985 + $0x44] sm:$0xf]
        %v3315 = vld [vmem:[%s2985 + $0x48] sm:$0x1]
        %v3316 = vld [vmem:[%s2985 + $0x5c] sm:$0xe]
        %v3317 = vld [vmem:[%s2985 + $0x60] sm:$0xf]
        %v3318 = vld [vmem:[%s2985 + $0x64] sm:$0x1]
        %v3319 = vld [vmem:[%s2985 + $0x78] sm:$0xe]
        %v3320 = vld [vmem:[%s2985 + $0x7c] sm:$0xf]
        %v3321 = vld [vmem:[%s2985 + $0x80] sm:$0x1]
        %v3322 = vld [vmem:[%s2985 + $0x94] sm:$0xe]
        %v3323 = vld [vmem:[%s2985 + $0x98] sm:$0xf]
        %v3324 = vld [vmem:[%s2985 + $0x9c] sm:$0x1]
        %v3325 = vld [vmem:[%s2985 + $0xb0] sm:$0xe]
        %v3326 = vld [vmem:[%s2985 + $0xb4] sm:$0xf]
        %v3327 = vld [vmem:[%s2985 + $0xb8] sm:$0x1]
        %v3328 = vld [vmem:[%s2985 + $0xcc] sm:$0xe]
        %v3329 = vld [vmem:[%s2985 + $0xd0] sm:$0xf]
        %v3330 = vld [vmem:[%s2985 + $0xd4] sm:$0x1]
        %v3331 = vld [vmem:[%s2985 + $0xe8] sm:$0xe]
        %v3332 = vld [vmem:[%s2985 + $0xec] sm:$0xf]
        %v3333 = vld [vmem:[%s2985 + $0xf0] sm:$0x1]
        %v3334 = vld [vmem:[%s2985 + $0x104] sm:$0xe]
        %v3335 = vld [vmem:[%s2985 + $0x108] sm:$0xf]
        %v3336 = vld [vmem:[%s2985 + $0x10c] sm:$0x1]
        %v3337 = vld [vmem:[%s2985 + $0x120] sm:$0xe]
        %v3338 = vld [vmem:[%s2985 + $0x124] sm:$0xf]
        %v3339 = vld [vmem:[%s2985 + $0x128] sm:$0x1]
        %v3340 = vld [vmem:[%s2985 + $0x13c] sm:$0xe]
        %v3341 = vld [vmem:[%s2985 + $0x140] sm:$0xf]
        %v3342 = vld [vmem:[%s2985 + $0x144] sm:$0x1]
        %v3343 = vld [vmem:[%s2985 + $0x158] sm:$0xe]
        %v3344 = vld [vmem:[%s2985 + $0x15c] sm:$0xf]
        %v3345 = vld [vmem:[%s2985 + $0x160] sm:$0x1]
        %v3346 = vld [vmem:[%s2985 + $0x174] sm:$0xe]
        %v3347 = vld [vmem:[%s2985 + $0x178] sm:$0xf]
        %v3348 = vld [vmem:[%s2985 + $0x17c] sm:$0x1]
        %v3349 = vld [vmem:[%s2985 + $0x190] sm:$0xe]
        %v3350 = vld [vmem:[%s2985 + $0x194] sm:$0xf]
        %v3351 = vld [vmem:[%s2985 + $0x198] sm:$0x1]
        %v3352 = vld [vmem:[%s2985 + $0x1ac] sm:$0xe]
        %v3353 = vld [vmem:[%s2985 + $0x1b0] sm:$0xf]
        %v3354 = vld [vmem:[%s2985 + $0x1b4] sm:$0x1]
        %v3403 = vrot.slane %v3307, 5
        %v3404 = vrot.slane %v3403, 4
        %v3405 = vrot.slane %v3308, 5
        %v3406 = vsel %vm1763, %v3404, %v3405
        %v3407 = vrot.slane %v3405, 4
        %v3408 = vrot.slane %v3309, 5
        %v3409 = vsel %vm1763, %v3407, %v3408
        %v3410 = vrot.slane %v3310, 5
        %v3411 = vrot.slane %v3410, 4
        %v3412 = vrot.slane %v3311, 5
        %v3413 = vsel %vm1763, %v3411, %v3412
        %v3414 = vrot.slane %v3412, 4
        %v3415 = vrot.slane %v3312, 5
        %v3416 = vsel %vm1763, %v3414, %v3415
        %v3417 = vrot.slane %v3313, 5
        %v3418 = vrot.slane %v3417, 4
        %v3419 = vrot.slane %v3314, 5
        %v3420 = vsel %vm1763, %v3418, %v3419
        %v3421 = vrot.slane %v3419, 4
        %v3422 = vrot.slane %v3315, 5
        %v3423 = vsel %vm1763, %v3421, %v3422
        %v3424 = vrot.slane %v3316, 5
        %v3425 = vrot.slane %v3424, 4
        %v3426 = vrot.slane %v3317, 5
        %v3427 = vsel %vm1763, %v3425, %v3426
        %v3428 = vrot.slane %v3426, 4
        %v3429 = vrot.slane %v3318, 5
        %v3430 = vsel %vm1763, %v3428, %v3429
        %v3431 = vrot.slane %v3319, 5
        %v3432 = vrot.slane %v3431, 4
        %v3433 = vrot.slane %v3320, 5
        %v3434 = vsel %vm1763, %v3432, %v3433
        %v3435 = vrot.slane %v3433, 4
        %v3436 = vrot.slane %v3321, 5
        %v3437 = vsel %vm1763, %v3435, %v3436
        %v3438 = vrot.slane %v3322, 5
        %v3439 = vrot.slane %v3438, 4
        %v3440 = vrot.slane %v3323, 5
        %v3441 = vsel %vm1763, %v3439, %v3440
        %v3442 = vrot.slane %v3440, 4
        %v3443 = vrot.slane %v3324, 5
        %v3444 = vsel %vm1763, %v3442, %v3443
        %v3445 = vrot.slane %v3325, 5
        %v3446 = vrot.slane %v3445, 4
        %v3447 = vrot.slane %v3326, 5
        %v3448 = vsel %vm1763, %v3446, %v3447
        %v3449 = vrot.slane %v3447, 4
        %v3450 = vrot.slane %v3327, 5
        %v3451 = vsel %vm1763, %v3449, %v3450
        %v3452 = vrot.slane %v3328, 5
        %v3453 = vrot.slane %v3452, 4
        %v3454 = vrot.slane %v3329, 5
        %v3455 = vsel %vm1763, %v3453, %v3454
        %v3456 = vrot.slane %v3454, 4
        %v3457 = vrot.slane %v3330, 5
        %v3458 = vsel %vm1763, %v3456, %v3457
        %v3459 = vrot.slane %v3331, 5
        %v3460 = vrot.slane %v3459, 4
        %v3461 = vrot.slane %v3332, 5
        %v3462 = vsel %vm1763, %v3460, %v3461
        %v3463 = vrot.slane %v3461, 4
        %v3464 = vrot.slane %v3333, 5
        %v3465 = vsel %vm1763, %v3463, %v3464
        %v3466 = vrot.slane %v3334, 5
        %v3467 = vrot.slane %v3466, 4
        %v3468 = vrot.slane %v3335, 5
        %v3469 = vsel %vm1763, %v3467, %v3468
        %v3470 = vrot.slane %v3468, 4
        %v3471 = vrot.slane %v3336, 5
        %v3472 = vsel %vm1763, %v3470, %v3471
        %v3473 = vrot.slane %v3337, 5
        %v3474 = vrot.slane %v3473, 4
        %v3475 = vrot.slane %v3338, 5
        %v3476 = vsel %vm1763, %v3474, %v3475
        %v3477 = vrot.slane %v3475, 4
        %v3478 = vrot.slane %v3339, 5
        %v3479 = vsel %vm1763, %v3477, %v3478
        %v3480 = vrot.slane %v3340, 5
        %v3481 = vrot.slane %v3480, 4
        %v3482 = vrot.slane %v3341, 5
        %v3483 = vsel %vm1763, %v3481, %v3482
        %v3484 = vrot.slane %v3482, 4
        %v3485 = vrot.slane %v3342, 5
        %v3486 = vsel %vm1763, %v3484, %v3485
        %v3487 = vrot.slane %v3343, 5
        %v3488 = vrot.slane %v3487, 4
        %v3489 = vrot.slane %v3344, 5
        %v3490 = vsel %vm1763, %v3488, %v3489
        %v3491 = vrot.slane %v3489, 4
        %v3492 = vrot.slane %v3345, 5
        %v3493 = vsel %vm1763, %v3491, %v3492
        %v3494 = vrot.slane %v3346, 5
        %v3495 = vrot.slane %v3494, 4
        %v3496 = vrot.slane %v3347, 5
        %v3497 = vsel %vm1763, %v3495, %v3496
        %v3498 = vrot.slane %v3496, 4
        %v3499 = vrot.slane %v3348, 5
        %v3500 = vsel %vm1763, %v3498, %v3499
        %v3501 = vrot.slane %v3349, 5
        %v3502 = vrot.slane %v3501, 4
        %v3503 = vrot.slane %v3350, 5
        %v3504 = vsel %vm1763, %v3502, %v3503
        %v3505 = vrot.slane %v3503, 4
        %v3506 = vrot.slane %v3351, 5
        %v3507 = vsel %vm1763, %v3505, %v3506
        %v3508 = vrot.slane %v3352, 5
        %v3509 = vrot.slane %v3508, 4
        %v3510 = vrot.slane %v3353, 5
        %v3511 = vsel %vm1763, %v3509, %v3510
        %v3512 = vrot.slane %v3510, 4
        %v3513 = vrot.slane %v3354, 5
        %v3514 = vsel %vm1763, %v3512, %v3513
        %v3515 = vunpack.c.l.b16 %v3406
        %v3516 = vunpack.c.l.b16 %v3409
        %v3517 = vunpack.c.l.b16 %v3413
        %v3518 = vunpack.c.l.b16 %v3416
        %v3519 = vunpack.c.l.b16 %v3420
        %v3520 = vunpack.c.l.b16 %v3423
        %v3521 = vunpack.c.l.b16 %v3427
        %v3522 = vunpack.c.l.b16 %v3430
        %v3523 = vunpack.c.l.b16 %v3434
        %v3524 = vunpack.c.l.b16 %v3437
        %v3525 = vunpack.c.l.b16 %v3441
        %v3526 = vunpack.c.l.b16 %v3444
        %v3527 = vunpack.c.l.b16 %v3448
        %v3528 = vunpack.c.l.b16 %v3451
        %v3529 = vunpack.c.l.b16 %v3455
        %v3530 = vunpack.c.l.b16 %v3458
        %v3531 = vunpack.c.l.b16 %v3462
        %v3532 = vunpack.c.l.b16 %v3465
        %v3533 = vunpack.c.l.b16 %v3469
        %v3534 = vunpack.c.l.b16 %v3472
        %v3535 = vunpack.c.l.b16 %v3476
        %v3536 = vunpack.c.l.b16 %v3479
        %v3537 = vunpack.c.l.b16 %v3483
        %v3538 = vunpack.c.l.b16 %v3486
        %v3539 = vunpack.c.l.b16 %v3490
        %v3540 = vunpack.c.l.b16 %v3493
        %v3541 = vunpack.c.l.b16 %v3497
        %v3542 = vunpack.c.l.b16 %v3500
        %v3543 = vunpack.c.l.b16 %v3504
        %v3544 = vunpack.c.l.b16 %v3507
        %v3545 = vunpack.c.l.b16 %v3511
        %v3546 = vunpack.c.l.b16 %v3514
        %v3547 = vpack.c.b16 %v3516, %v3515
        %v3548 = vpack.c.b16 %v3518, %v3517
        %v3549 = vpack.c.b16 %v3520, %v3519
        %v3550 = vpack.c.b16 %v3522, %v3521
        %v3551 = vpack.c.b16 %v3524, %v3523
        %v3552 = vpack.c.b16 %v3526, %v3525
        %v3553 = vpack.c.b16 %v3528, %v3527
        %v3554 = vpack.c.b16 %v3530, %v3529
        %v3555 = vpack.c.b16 %v3532, %v3531
        %v3556 = vpack.c.b16 %v3534, %v3533
        %v3557 = vpack.c.b16 %v3536, %v3535
        %v3558 = vpack.c.b16 %v3538, %v3537
        %v3559 = vpack.c.b16 %v3540, %v3539
        %v3560 = vpack.c.b16 %v3542, %v3541
        %v3561 = vpack.c.b16 %v3544, %v3543
        %v3562 = vpack.c.b16 %v3546, %v3545
        %3563 = vrot.lane.b32.xlu0 %v3547, 28
        %v3564 = vpop.permute.xlu0 %3563
        %3565 = vrot.lane.b32.xlu0 %v3548, 28
        %v3566 = vpop.permute.xlu0 %3565
        %3567 = vrot.lane.b32.xlu0 %v3549, 28
        %v3568 = vpop.permute.xlu0 %3567
        %3569 = vrot.lane.b32.xlu0 %v3550, 28
        %v3570 = vpop.permute.xlu0 %3569
        %3571 = vrot.lane.b32.xlu0 %v3551, 28
        %v3572 = vpop.permute.xlu0 %3571
        %3573 = vrot.lane.b32.xlu0 %v3552, 28
        %v3574 = vpop.permute.xlu0 %3573
        %3575 = vrot.lane.b32.xlu0 %v3553, 28
        %v3576 = vpop.permute.xlu0 %3575
        %3577 = vrot.lane.b32.xlu0 %v3554, 28
        %v3578 = vpop.permute.xlu0 %3577
        %3579 = vrot.lane.b32.xlu0 %v3555, 28
        %v3580 = vpop.permute.xlu0 %3579
        %3581 = vrot.lane.b32.xlu0 %v3556, 28
        %v3582 = vpop.permute.xlu0 %3581
        %3583 = vrot.lane.b32.xlu0 %v3557, 28
        %v3584 = vpop.permute.xlu0 %3583
        %3585 = vrot.lane.b32.xlu0 %v3558, 28
        %v3586 = vpop.permute.xlu0 %3585
        %3587 = vrot.lane.b32.xlu0 %v3559, 28
        %v3588 = vpop.permute.xlu0 %3587
        %3589 = vrot.lane.b32.xlu0 %v3560, 28
        %v3590 = vpop.permute.xlu0 %3589
        %3591 = vrot.lane.b32.xlu0 %v3561, 28
        %v3592 = vpop.permute.xlu0 %3591
        %3593 = vrot.lane.b32.xlu0 %v3562, 28
        %v3594 = vpop.permute.xlu0 %3593
        %vm3611 = vcmask 261344
        %3612 = vst.msk [vmem:[#allocation3] sm:$0xff] %vm3611, %v3564
        %3613 = vst.msk [vmem:[#allocation3 + $0x8] sm:$0xff] %vm3611, %v3566
        %3614 = vst.msk [vmem:[#allocation3 + $0x10] sm:$0xff] %vm3611, %v3568
        %3615 = vst.msk [vmem:[#allocation3 + $0x18] sm:$0xff] %vm3611, %v3570
        %3616 = vst.msk [vmem:[#allocation3 + $0x20] sm:$0xff] %vm3611, %v3572
        %3617 = vst.msk [vmem:[#allocation3 + $0x28] sm:$0xff] %vm3611, %v3574
        %3618 = vst.msk [vmem:[#allocation3 + $0x30] sm:$0xff] %vm3611, %v3576
        %3619 = vst.msk [vmem:[#allocation3 + $0x38] sm:$0xff] %vm3611, %v3578
        %3620 = vst.msk [vmem:[#allocation3 + $0x40] sm:$0xff] %vm3611, %v3580
        %3621 = vst.msk [vmem:[#allocation3 + $0x48] sm:$0xff] %vm3611, %v3582
        %3622 = vst.msk [vmem:[#allocation3 + $0x50] sm:$0xff] %vm3611, %v3584
        %3623 = vst.msk [vmem:[#allocation3 + $0x58] sm:$0xff] %vm3611, %v3586
        %3624 = vst.msk [vmem:[#allocation3 + $0x60] sm:$0xff] %vm3611, %v3588
        %3625 = vst.msk [vmem:[#allocation3 + $0x68] sm:$0xff] %vm3611, %v3590
        %3626 = vst.msk [vmem:[#allocation3 + $0x70] sm:$0xff] %vm3611, %v3592
        %3627 = vst.msk [vmem:[#allocation3 + $0x78] sm:$0xff] %vm3611, %v3594
        %v3628 = vld [vmem:[%s2985 + $0xc] sm:$0xf]
        %v3629 = vld [vmem:[%s2985 + $0x10] sm:$0xf]
        %v3630 = vld [vmem:[%s2985 + $0x28] sm:$0xf]
        %v3631 = vld [vmem:[%s2985 + $0x2c] sm:$0xf]
        %v3632 = vld [vmem:[%s2985 + $0x44] sm:$0xf]
        %v3633 = vld [vmem:[%s2985 + $0x48] sm:$0xf]
        %v3634 = vld [vmem:[%s2985 + $0x60] sm:$0xf]
        %v3635 = vld [vmem:[%s2985 + $0x64] sm:$0xf]
        %v3636 = vld [vmem:[%s2985 + $0x7c] sm:$0xf]
        %v3637 = vld [vmem:[%s2985 + $0x80] sm:$0xf]
        %v3638 = vld [vmem:[%s2985 + $0x98] sm:$0xf]
        %v3639 = vld [vmem:[%s2985 + $0x9c] sm:$0xf]
        %v3640 = vld [vmem:[%s2985 + $0xb4] sm:$0xf]
        %v3641 = vld [vmem:[%s2985 + $0xb8] sm:$0xf]
        %v3642 = vld [vmem:[%s2985 + $0xd0] sm:$0xf]
        %v3643 = vld [vmem:[%s2985 + $0xd4] sm:$0xf]
        %v3644 = vld [vmem:[%s2985 + $0xec] sm:$0xf]
        %v3645 = vld [vmem:[%s2985 + $0xf0] sm:$0xf]
        %v3646 = vld [vmem:[%s2985 + $0x108] sm:$0xf]
        %v3647 = vld [vmem:[%s2985 + $0x10c] sm:$0xf]
        %v3648 = vld [vmem:[%s2985 + $0x124] sm:$0xf]
        %v3649 = vld [vmem:[%s2985 + $0x128] sm:$0xf]
        %v3650 = vld [vmem:[%s2985 + $0x140] sm:$0xf]
        %v3651 = vld [vmem:[%s2985 + $0x144] sm:$0xf]
        %v3652 = vld [vmem:[%s2985 + $0x15c] sm:$0xf]
        %v3653 = vld [vmem:[%s2985 + $0x160] sm:$0xf]
        %v3654 = vld [vmem:[%s2985 + $0x178] sm:$0xf]
        %v3655 = vld [vmem:[%s2985 + $0x17c] sm:$0xf]
        %v3656 = vld [vmem:[%s2985 + $0x194] sm:$0xf]
        %v3657 = vld [vmem:[%s2985 + $0x198] sm:$0xf]
        %v3658 = vld [vmem:[%s2985 + $0x1b0] sm:$0xf]
        %v3659 = vld [vmem:[%s2985 + $0x1b4] sm:$0xf]
        %v3692 = vunpack.c.l.b16 %v3628
        %v3693 = vunpack.c.l.b16 %v3629
        %v3694 = vunpack.c.l.b16 %v3630
        %v3695 = vunpack.c.l.b16 %v3631
        %v3696 = vunpack.c.l.b16 %v3632
        %v3697 = vunpack.c.l.b16 %v3633
        %v3698 = vunpack.c.l.b16 %v3634
        %v3699 = vunpack.c.l.b16 %v3635
        %v3700 = vunpack.c.l.b16 %v3636
        %v3701 = vunpack.c.l.b16 %v3637
        %v3702 = vunpack.c.l.b16 %v3638
        %v3703 = vunpack.c.l.b16 %v3639
        %v3704 = vunpack.c.l.b16 %v3640
        %v3705 = vunpack.c.l.b16 %v3641
        %v3706 = vunpack.c.l.b16 %v3642
        %v3707 = vunpack.c.l.b16 %v3643
        %v3708 = vunpack.c.l.b16 %v3644
        %v3709 = vunpack.c.l.b16 %v3645
        %v3710 = vunpack.c.l.b16 %v3646
        %v3711 = vunpack.c.l.b16 %v3647
        %v3712 = vunpack.c.l.b16 %v3648
        %v3713 = vunpack.c.l.b16 %v3649
        %v3714 = vunpack.c.l.b16 %v3650
        %v3715 = vunpack.c.l.b16 %v3651
        %v3716 = vunpack.c.l.b16 %v3652
        %v3717 = vunpack.c.l.b16 %v3653
        %v3718 = vunpack.c.l.b16 %v3654
        %v3719 = vunpack.c.l.b16 %v3655
        %v3720 = vunpack.c.l.b16 %v3656
        %v3721 = vunpack.c.l.b16 %v3657
        %v3722 = vunpack.c.l.b16 %v3658
        %v3723 = vunpack.c.l.b16 %v3659
        %v3724 = vpack.c.b16 %v3693, %v3692
        %v3725 = vpack.c.b16 %v3695, %v3694
        %v3726 = vpack.c.b16 %v3697, %v3696
        %v3727 = vpack.c.b16 %v3699, %v3698
        %v3728 = vpack.c.b16 %v3701, %v3700
        %v3729 = vpack.c.b16 %v3703, %v3702
        %v3730 = vpack.c.b16 %v3705, %v3704
        %v3731 = vpack.c.b16 %v3707, %v3706
        %v3732 = vpack.c.b16 %v3709, %v3708
        %v3733 = vpack.c.b16 %v3711, %v3710
        %v3734 = vpack.c.b16 %v3713, %v3712
        %v3735 = vpack.c.b16 %v3715, %v3714
        %v3736 = vpack.c.b16 %v3717, %v3716
        %v3737 = vpack.c.b16 %v3719, %v3718
        %v3738 = vpack.c.b16 %v3721, %v3720
        %v3739 = vpack.c.b16 %v3723, %v3722
        %3740 = vrot.lane.b32.xlu0 %v3724, 32
        %v3741 = vpop.permute.xlu0 %3740
        %3742 = vrot.lane.b32.xlu0 %v3725, 32
        %v3743 = vpop.permute.xlu0 %3742
        %3744 = vrot.lane.b32.xlu0 %v3726, 32
        %v3745 = vpop.permute.xlu0 %3744
        %3746 = vrot.lane.b32.xlu0 %v3727, 32
        %v3747 = vpop.permute.xlu0 %3746
        %3748 = vrot.lane.b32.xlu0 %v3728, 32
        %v3749 = vpop.permute.xlu0 %3748
        %3750 = vrot.lane.b32.xlu0 %v3729, 32
        %v3751 = vpop.permute.xlu0 %3750
        %3752 = vrot.lane.b32.xlu0 %v3730, 32
        %v3753 = vpop.permute.xlu0 %3752
        %3754 = vrot.lane.b32.xlu0 %v3731, 32
        %v3755 = vpop.permute.xlu0 %3754
        %3756 = vrot.lane.b32.xlu0 %v3732, 32
        %v3757 = vpop.permute.xlu0 %3756
        %3758 = vrot.lane.b32.xlu0 %v3733, 32
        %v3759 = vpop.permute.xlu0 %3758
        %3760 = vrot.lane.b32.xlu0 %v3734, 32
        %v3761 = vpop.permute.xlu0 %3760
        %3762 = vrot.lane.b32.xlu0 %v3735, 32
        %v3763 = vpop.permute.xlu0 %3762
        %3764 = vrot.lane.b32.xlu0 %v3736, 32
        %v3765 = vpop.permute.xlu0 %3764
        %3766 = vrot.lane.b32.xlu0 %v3737, 32
        %v3767 = vpop.permute.xlu0 %3766
        %3768 = vrot.lane.b32.xlu0 %v3738, 32
        %v3769 = vpop.permute.xlu0 %3768
        %3770 = vrot.lane.b32.xlu0 %v3739, 32
        %v3771 = vpop.permute.xlu0 %3770
        %vm3788 = vcmask 294144
        %3789 = vst.msk [vmem:[#allocation3] sm:$0xff] %vm3788, %v3741
        %3790 = vst.msk [vmem:[#allocation3 + $0x8] sm:$0xff] %vm3788, %v3743
        %3791 = vst.msk [vmem:[#allocation3 + $0x10] sm:$0xff] %vm3788, %v3745
        %3792 = vst.msk [vmem:[#allocation3 + $0x18] sm:$0xff] %vm3788, %v3747
        %3793 = vst.msk [vmem:[#allocation3 + $0x20] sm:$0xff] %vm3788, %v3749
        %3794 = vst.msk [vmem:[#allocation3 + $0x28] sm:$0xff] %vm3788, %v3751
        %3795 = vst.msk [vmem:[#allocation3 + $0x30] sm:$0xff] %vm3788, %v3753
        %3796 = vst.msk [vmem:[#allocation3 + $0x38] sm:$0xff] %vm3788, %v3755
        %3797 = vst.msk [vmem:[#allocation3 + $0x40] sm:$0xff] %vm3788, %v3757
        %3798 = vst.msk [vmem:[#allocation3 + $0x48] sm:$0xff] %vm3788, %v3759
        %3799 = vst.msk [vmem:[#allocation3 + $0x50] sm:$0xff] %vm3788, %v3761
        %3800 = vst.msk [vmem:[#allocation3 + $0x58] sm:$0xff] %vm3788, %v3763
        %3801 = vst.msk [vmem:[#allocation3 + $0x60] sm:$0xff] %vm3788, %v3765
        %3802 = vst.msk [vmem:[#allocation3 + $0x68] sm:$0xff] %vm3788, %v3767
        %3803 = vst.msk [vmem:[#allocation3 + $0x70] sm:$0xff] %vm3788, %v3769
        %3804 = vst.msk [vmem:[#allocation3 + $0x78] sm:$0xff] %vm3788, %v3771
        %v3805 = vld [vmem:[#allocation3] sm:$0xff]
        %v3806 = vld [vmem:[#allocation3 + $0x8] sm:$0xff]
        %v3807 = vld [vmem:[#allocation3 + $0x10] sm:$0xff]
        %v3808 = vld [vmem:[#allocation3 + $0x18] sm:$0xff]
        %v3809 = vld [vmem:[#allocation3 + $0x20] sm:$0xff]
        %v3810 = vld [vmem:[#allocation3 + $0x28] sm:$0xff]
        %v3811 = vld [vmem:[#allocation3 + $0x30] sm:$0xff]
        %v3812 = vld [vmem:[#allocation3 + $0x38] sm:$0xff]
        %v3813 = vld [vmem:[#allocation3 + $0x40] sm:$0xff]
        %v3814 = vld [vmem:[#allocation3 + $0x48] sm:$0xff]
        %v3815 = vld [vmem:[#allocation3 + $0x50] sm:$0xff]
        %v3816 = vld [vmem:[#allocation3 + $0x58] sm:$0xff]
        %v3817 = vld [vmem:[#allocation3 + $0x60] sm:$0xff]
        %v3818 = vld [vmem:[#allocation3 + $0x68] sm:$0xff]
        %v3819 = vld [vmem:[#allocation3 + $0x70] sm:$0xff]
        %v3820 = vld [vmem:[#allocation3 + $0x78] sm:$0xff]
        %v3821 = vld [vmem:[%s2] sm:$0xf]
        %v3822 = vld [vmem:[%s2 + $0x4] sm:$0xf]
        %v3823 = vld [vmem:[%s2 + $0x8] sm:$0xf]
        %v3824 = vld [vmem:[%s2 + $0xc] sm:$0xf]
        %v3825 = vld [vmem:[%s2 + $0x10] sm:$0x3]
        %v3831 = vunpack.c.l.b16 %v3821
        %v3832 = vunpack.c.l.b16 %v3822
        %v3833 = vunpack.c.l.b16 %v3823
        %v3834 = vunpack.c.l.b16 %v3824
        %v3835 = vunpack.c.l.b16 %v3825
        %v3836 = vpack.c.b16 %v3832, %v3831
        %v3837 = vpack.c.b16 %v3834, %v3833
        %v3838 = vpack.c.b16 %v3835, %v3835
        %vm3841 = vcmask 293888
        %v3843 = vsel %vm3841, %v3805, 0
        %v3846 = vsel %vm3841, %v3806, 0
        %v3849 = vsel %vm3841, %v3807, 0
        %v3852 = vsel %vm3841, %v3808, 0
        %v3855 = vsel %vm3841, %v3809, 0
        %v3858 = vsel %vm3841, %v3810, 0
        %v3861 = vsel %vm3841, %v3811, 0
        %v3864 = vsel %vm3841, %v3812, 0
        %v3867 = vsel %vm3841, %v3813, 0
        %v3870 = vsel %vm3841, %v3814, 0
        %v3873 = vsel %vm3841, %v3815, 0
        %v3876 = vsel %vm3841, %v3816, 0
        %v3879 = vsel %vm3841, %v3817, 0
        %v3882 = vsel %vm3841, %v3818, 0
        %v3885 = vsel %vm3841, %v3819, 0
        %v3888 = vsel %vm3841, %v3820, 0
        %v3891 = vsel %vm1071, %v3838, 0
        %3893 = vmatprep.subr.bf16.mxu0 0
        %3894 = vmatpush1.bf16.msra.mxu0 %v3836
        %3895 = vmatprep.subr.bf16.mxu0 0
        %3896 = vmatpush1.bf16.msra.mxu0 %v3837
        %3897 = vmatprep.subr.bf16.mxu0 0
        %3898 = vmatpush1.bf16.msra.mxu0 %v3891
        %3899 = vmatprep.subr.bf16.mxu0 0
        %3900 = vmatpush1.bf16.msra.mxu0 0
        %3901 = vmatprep.subr.bf16.mxu0 0
        %3902 = vmatpush1.bf16.msra.mxu0 0
        %3903 = vmatprep.subr.bf16.mxu0 0
        %3904 = vmatpush1.bf16.msra.mxu0 0
        %3905 = vmatprep.subr.bf16.mxu0 0
        %3906 = vmatpush1.bf16.msra.mxu0 0
        %3907 = vmatprep.subr.bf16.mxu0 0
        %3908 = vmatpush1.bf16.msra.mxu0 0
        %3909 = vmatprep.subr.bf16.mxu0 0
        %3910 = vmatpush1.bf16.msra.mxu0 0
        %3911 = vmatprep.subr.bf16.mxu0 0
        %3912 = vmatpush1.bf16.msra.mxu0 0
        %3913 = vmatprep.subr.bf16.mxu0 0
        %3914 = vmatpush1.bf16.msra.mxu0 0
        %3915 = vmatprep.subr.bf16.mxu0 0
        %3916 = vmatpush1.bf16.msra.mxu0 0
        %3917 = vmatprep.subr.bf16.mxu0 0
        %3918 = vmatpush1.bf16.msra.mxu0 0
        %3919 = vmatprep.subr.bf16.mxu0 0
        %3920 = vmatpush1.bf16.msra.mxu0 0
        %3921 = vmatprep.subr.bf16.mxu0 0
        %3922 = vmatpush1.bf16.msra.mxu0 0
        %3923 = vmatprep.subr.bf16.mxu0 0
        %3924 = vmatpush1.bf16.msra.mxu0 0
        %3925 = vmatprep.mubr.bf16.mxu0 0
        %3926 = vmatmul.mubr.bf16.gmra.mrb[0].mxu0 %v3843
        %v3927 = vpop.f32.mrb[0].mxu0
        %v3928 = vadd.f32 0.0, %v3927
        %v3929 = vpop.f32.mrb[0].mxu0
        %v3930 = vpop.f32.mrb[0].mxu0
        %v3931 = vadd.f32 0.0, %v3930
        %v3932 = vpop.f32.mrb[0].mxu0
        %3933 = vmatprep.mubr.bf16.mxu0 0
        %3934 = vmatmul.mubr.bf16.gmra.mrb[0].mxu0 %v3846
        %v3935 = vpop.f32.mrb[0].mxu0
        %v3936 = vadd.f32 0.0, %v3935
        %v3937 = vpop.f32.mrb[0].mxu0
        %v3938 = vpop.f32.mrb[0].mxu0
        %v3939 = vadd.f32 0.0, %v3938
        %v3940 = vpop.f32.mrb[0].mxu0
        %3941 = vmatprep.mubr.bf16.mxu0 0
        %3942 = vmatmul.mubr.bf16.gmra.mrb[0].mxu0 %v3849
        %v3943 = vpop.f32.mrb[0].mxu0
        %v3944 = vadd.f32 0.0, %v3943
        %v3945 = vpop.f32.mrb[0].mxu0
        %v3946 = vpop.f32.mrb[0].mxu0
        %v3947 = vadd.f32 0.0, %v3946
        %v3948 = vpop.f32.mrb[0].mxu0
        %3949 = vmatprep.mubr.bf16.mxu0 0
        %3950 = vmatmul.mubr.bf16.gmra.mrb[0].mxu0 %v3852
        %v3951 = vpop.f32.mrb[0].mxu0
        %v3952 = vadd.f32 0.0, %v3951
        %v3953 = vpop.f32.mrb[0].mxu0
        %v3954 = vpop.f32.mrb[0].mxu0
        %v3955 = vadd.f32 0.0, %v3954
        %v3956 = vpop.f32.mrb[0].mxu0
        %3957 = vmatprep.mubr.bf16.mxu0 0
        %3958 = vmatmul.mubr.bf16.gmra.mrb[0].mxu0 %v3855
        %v3959 = vpop.f32.mrb[0].mxu0
        %v3960 = vadd.f32 0.0, %v3959
        %v3961 = vpop.f32.mrb[0].mxu0
        %v3962 = vpop.f32.mrb[0].mxu0
        %v3963 = vadd.f32 0.0, %v3962
        %v3964 = vpop.f32.mrb[0].mxu0
        %3965 = vmatprep.mubr.bf16.mxu0 0
        %3966 = vmatmul.mubr.bf16.gmra.mrb[0].mxu0 %v3858
        %v3967 = vpop.f32.mrb[0].mxu0
        %v3968 = vadd.f32 0.0, %v3967
        %v3969 = vpop.f32.mrb[0].mxu0
        %v3970 = vpop.f32.mrb[0].mxu0
        %v3971 = vadd.f32 0.0, %v3970
        %v3972 = vpop.f32.mrb[0].mxu0
        %3973 = vmatprep.mubr.bf16.mxu0 0
        %3974 = vmatmul.mubr.bf16.gmra.mrb[0].mxu0 %v3861
        %v3975 = vpop.f32.mrb[0].mxu0
        %v3976 = vadd.f32 0.0, %v3975
        %v3977 = vpop.f32.mrb[0].mxu0
        %v3978 = vpop.f32.mrb[0].mxu0
        %v3979 = vadd.f32 0.0, %v3978
        %v3980 = vpop.f32.mrb[0].mxu0
        %3981 = vmatprep.mubr.bf16.mxu0 0
        %3982 = vmatmul.mubr.bf16.gmra.mrb[0].mxu0 %v3864
        %v3983 = vpop.f32.mrb[0].mxu0
        %v3984 = vadd.f32 0.0, %v3983
        %v3985 = vpop.f32.mrb[0].mxu0
        %v3986 = vpop.f32.mrb[0].mxu0
        %v3987 = vadd.f32 0.0, %v3986
        %v3988 = vpop.f32.mrb[0].mxu0
        %3989 = vmatprep.mubr.bf16.mxu0 0
        %3990 = vmatmul.mubr.bf16.gmra.mrb[0].mxu0 %v3867
        %v3991 = vpop.f32.mrb[0].mxu0
        %v3992 = vadd.f32 0.0, %v3991
        %v3993 = vpop.f32.mrb[0].mxu0
        %v3994 = vpop.f32.mrb[0].mxu0
        %v3995 = vadd.f32 0.0, %v3994
        %v3996 = vpop.f32.mrb[0].mxu0
        %3997 = vmatprep.mubr.bf16.mxu0 0
        %3998 = vmatmul.mubr.bf16.gmra.mrb[0].mxu0 %v3870
        %v3999 = vpop.f32.mrb[0].mxu0
        %v4000 = vadd.f32 0.0, %v3999
        %v4001 = vpop.f32.mrb[0].mxu0
        %v4002 = vpop.f32.mrb[0].mxu0
        %v4003 = vadd.f32 0.0, %v4002
        %v4004 = vpop.f32.mrb[0].mxu0
        %4005 = vmatprep.mubr.bf16.mxu0 0
        %4006 = vmatmul.mubr.bf16.gmra.mrb[0].mxu0 %v3873
        %v4007 = vpop.f32.mrb[0].mxu0
        %v4008 = vadd.f32 0.0, %v4007
        %v4009 = vpop.f32.mrb[0].mxu0
        %v4010 = vpop.f32.mrb[0].mxu0
        %v4011 = vadd.f32 0.0, %v4010
        %v4012 = vpop.f32.mrb[0].mxu0
        %4013 = vmatprep.mubr.bf16.mxu0 0
        %4014 = vmatmul.mubr.bf16.gmra.mrb[0].mxu0 %v3876
        %v4015 = vpop.f32.mrb[0].mxu0
        %v4016 = vadd.f32 0.0, %v4015
        %v4017 = vpop.f32.mrb[0].mxu0
        %v4018 = vpop.f32.mrb[0].mxu0
        %v4019 = vadd.f32 0.0, %v4018
        %v4020 = vpop.f32.mrb[0].mxu0
        %4021 = vmatprep.mubr.bf16.mxu0 0
        %4022 = vmatmul.mubr.bf16.gmra.mrb[0].mxu0 %v3879
        %v4023 = vpop.f32.mrb[0].mxu0
        %v4024 = vadd.f32 0.0, %v4023
        %v4025 = vpop.f32.mrb[0].mxu0
        %v4026 = vpop.f32.mrb[0].mxu0
        %v4027 = vadd.f32 0.0, %v4026
        %v4028 = vpop.f32.mrb[0].mxu0
        %4029 = vmatprep.mubr.bf16.mxu0 0
        %4030 = vmatmul.mubr.bf16.gmra.mrb[0].mxu0 %v3882
        %v4031 = vpop.f32.mrb[0].mxu0
        %v4032 = vadd.f32 0.0, %v4031
        %v4033 = vpop.f32.mrb[0].mxu0
        %v4034 = vpop.f32.mrb[0].mxu0
        %v4035 = vadd.f32 0.0, %v4034
        %v4036 = vpop.f32.mrb[0].mxu0
        %4037 = vmatprep.mubr.bf16.mxu0 0
        %4038 = vmatmul.mubr.bf16.gmra.mrb[0].mxu0 %v3885
        %v4039 = vpop.f32.mrb[0].mxu0
        %v4040 = vadd.f32 0.0, %v4039
        %v4041 = vpop.f32.mrb[0].mxu0
        %v4042 = vpop.f32.mrb[0].mxu0
        %v4043 = vadd.f32 0.0, %v4042
        %v4044 = vpop.f32.mrb[0].mxu0
        %4045 = vmatprep.mubr.bf16.mxu0 0
        %4046 = vmatmul.mubr.bf16.gmra.mrb[0].mxu0 %v3888
        %v4047 = vpop.f32.mrb[0].mxu0
        %v4048 = vadd.f32 0.0, %v4047
        %v4049 = vpop.f32.mrb[0].mxu0
        %v4050 = vpop.f32.mrb[0].mxu0
        %v4051 = vadd.f32 0.0, %v4050
        %v4052 = vpop.f32.mrb[0].mxu0
        %4053 = vdwg.mxu0
        %v4054 = vlaneseq
        %v4055 = vshrl.u32 %v4054, 7
        %v4056 = vsub.s32 1, %v4055
        %v4057 = vrot.slane %v971, %v4056
        %v4058 = vmul.f32 %v3928, %v4057
        %v4059 = vmul.f32 %v3931, %v4057
        %v4060 = vmul.f32 %v3936, %v4057
        %v4061 = vmul.f32 %v3939, %v4057
        %v4062 = vmul.f32 %v3944, %v4057
        %v4063 = vmul.f32 %v3947, %v4057
        %v4064 = vmul.f32 %v3952, %v4057
        %v4065 = vmul.f32 %v3955, %v4057
        %v4066 = vmul.f32 %v3960, %v4057
        %v4067 = vmul.f32 %v3963, %v4057
        %v4068 = vmul.f32 %v3968, %v4057
        %v4069 = vmul.f32 %v3971, %v4057
        %v4070 = vmul.f32 %v3976, %v4057
        %v4071 = vmul.f32 %v3979, %v4057
        %v4072 = vmul.f32 %v3984, %v4057
        %v4073 = vmul.f32 %v3987, %v4057
        %v4074 = vmul.f32 %v3992, %v4057
        %v4075 = vmul.f32 %v3995, %v4057
        %v4076 = vmul.f32 %v4000, %v4057
        %v4077 = vmul.f32 %v4003, %v4057
        %v4078 = vmul.f32 %v4008, %v4057
        %v4079 = vmul.f32 %v4011, %v4057
        %v4080 = vmul.f32 %v4016, %v4057
        %v4081 = vmul.f32 %v4019, %v4057
        %v4082 = vmul.f32 %v4024, %v4057
        %v4083 = vmul.f32 %v4027, %v4057
        %v4084 = vmul.f32 %v4032, %v4057
        %v4085 = vmul.f32 %v4035, %v4057
        %v4086 = vmul.f32 %v4040, %v4057
        %v4087 = vmul.f32 %v4043, %v4057
        %v4088 = vmul.f32 %v4048, %v4057
        %v4089 = vmul.f32 %v4051, %v4057
        %v4090 = vlaneseq
        %v4091 = vshrl.u32 %v4090, 7
        %v4092 = vsub.s32 1, %v4091
        %v4093 = vrot.slane %v972, %v4092
        %v4094 = vadd.f32 %v4058, %v4093
        %v4095 = vadd.f32 %v4059, %v4093
        %v4096 = vadd.f32 %v4060, %v4093
        %v4097 = vadd.f32 %v4061, %v4093
        %v4098 = vadd.f32 %v4062, %v4093
        %v4099 = vadd.f32 %v4063, %v4093
        %v4100 = vadd.f32 %v4064, %v4093
        %v4101 = vadd.f32 %v4065, %v4093
        %v4102 = vadd.f32 %v4066, %v4093
        %v4103 = vadd.f32 %v4067, %v4093
        %v4104 = vadd.f32 %v4068, %v4093
        %v4105 = vadd.f32 %v4069, %v4093
        %v4106 = vadd.f32 %v4070, %v4093
        %v4107 = vadd.f32 %v4071, %v4093
        %v4108 = vadd.f32 %v4072, %v4093
        %v4109 = vadd.f32 %v4073, %v4093
        %v4110 = vadd.f32 %v4074, %v4093
        %v4111 = vadd.f32 %v4075, %v4093
        %v4112 = vadd.f32 %v4076, %v4093
        %v4113 = vadd.f32 %v4077, %v4093
        %v4114 = vadd.f32 %v4078, %v4093
        %v4115 = vadd.f32 %v4079, %v4093
        %v4116 = vadd.f32 %v4080, %v4093
        %v4117 = vadd.f32 %v4081, %v4093
        %v4118 = vadd.f32 %v4082, %v4093
        %v4119 = vadd.f32 %v4083, %v4093
        %v4120 = vadd.f32 %v4084, %v4093
        %v4121 = vadd.f32 %v4085, %v4093
        %v4122 = vadd.f32 %v4086, %v4093
        %v4123 = vadd.f32 %v4087, %v4093
        %v4124 = vadd.f32 %v4088, %v4093
        %v4125 = vadd.f32 %v4089, %v4093
        %v4126 = vmax.f32 %v4094, 0.0
        %v4127 = vmax.f32 %v4095, 0.0
        %v4128 = vmax.f32 %v4096, 0.0
        %v4129 = vmax.f32 %v4097, 0.0
        %v4130 = vmax.f32 %v4098, 0.0
        %v4131 = vmax.f32 %v4099, 0.0
        %v4132 = vmax.f32 %v4100, 0.0
        %v4133 = vmax.f32 %v4101, 0.0
        %v4134 = vmax.f32 %v4102, 0.0
        %v4135 = vmax.f32 %v4103, 0.0
        %v4136 = vmax.f32 %v4104, 0.0
        %v4137 = vmax.f32 %v4105, 0.0
        %v4138 = vmax.f32 %v4106, 0.0
        %v4139 = vmax.f32 %v4107, 0.0
        %v4140 = vmax.f32 %v4108, 0.0
        %v4141 = vmax.f32 %v4109, 0.0
        %v4142 = vmax.f32 %v4110, 0.0
        %v4143 = vmax.f32 %v4111, 0.0
        %v4144 = vmax.f32 %v4112, 0.0
        %v4145 = vmax.f32 %v4113, 0.0
        %v4146 = vmax.f32 %v4114, 0.0
        %v4147 = vmax.f32 %v4115, 0.0
        %v4148 = vmax.f32 %v4116, 0.0
        %v4149 = vmax.f32 %v4117, 0.0
        %v4150 = vmax.f32 %v4118, 0.0
        %v4151 = vmax.f32 %v4119, 0.0
        %v4152 = vmax.f32 %v4120, 0.0
        %v4153 = vmax.f32 %v4121, 0.0
        %v4154 = vmax.f32 %v4122, 0.0
        %v4155 = vmax.f32 %v4123, 0.0
        %v4156 = vmax.f32 %v4124, 0.0
        %v4157 = vmax.f32 %v4125, 0.0
        %v4158 = vpack.c.bf16 %v4127, %v4126
        %v4159 = vpack.c.bf16 %v4129, %v4128
        %v4160 = vpack.c.bf16 %v4131, %v4130
        %v4161 = vpack.c.bf16 %v4133, %v4132
        %v4162 = vpack.c.bf16 %v4135, %v4134
        %v4163 = vpack.c.bf16 %v4137, %v4136
        %v4164 = vpack.c.bf16 %v4139, %v4138
        %v4165 = vpack.c.bf16 %v4141, %v4140
        %v4166 = vpack.c.bf16 %v4143, %v4142
        %v4167 = vpack.c.bf16 %v4145, %v4144
        %v4168 = vpack.c.bf16 %v4147, %v4146
        %v4169 = vpack.c.bf16 %v4149, %v4148
        %v4170 = vpack.c.bf16 %v4151, %v4150
        %v4171 = vpack.c.bf16 %v4153, %v4152
        %v4172 = vpack.c.bf16 %v4155, %v4154
        %v4173 = vpack.c.bf16 %v4157, %v4156
        %4190 = vrot.lane.b32.xlu0 %v4158, 32
        %v4191 = vpop.permute.xlu0 %4190
        %4192 = vrot.lane.b32.xlu0 %v4159, 32
        %v4193 = vpop.permute.xlu0 %4192
        %4194 = vrot.lane.b32.xlu0 %v4160, 32
        %v4195 = vpop.permute.xlu0 %4194
        %4196 = vrot.lane.b32.xlu0 %v4161, 32
        %v4197 = vpop.permute.xlu0 %4196
        %4198 = vrot.lane.b32.xlu0 %v4162, 32
        %v4199 = vpop.permute.xlu0 %4198
        %4200 = vrot.lane.b32.xlu0 %v4163, 32
        %v4201 = vpop.permute.xlu0 %4200
        %4202 = vrot.lane.b32.xlu0 %v4164, 32
        %v4203 = vpop.permute.xlu0 %4202
        %4204 = vrot.lane.b32.xlu0 %v4165, 32
        %v4205 = vpop.permute.xlu0 %4204
        %4206 = vrot.lane.b32.xlu0 %v4166, 32
        %v4207 = vpop.permute.xlu0 %4206
        %4208 = vrot.lane.b32.xlu0 %v4167, 32
        %v4209 = vpop.permute.xlu0 %4208
        %4210 = vrot.lane.b32.xlu0 %v4168, 32
        %v4211 = vpop.permute.xlu0 %4210
        %4212 = vrot.lane.b32.xlu0 %v4169, 32
        %v4213 = vpop.permute.xlu0 %4212
        %4214 = vrot.lane.b32.xlu0 %v4170, 32
        %v4215 = vpop.permute.xlu0 %4214
        %4216 = vrot.lane.b32.xlu0 %v4171, 32
        %v4217 = vpop.permute.xlu0 %4216
        %4218 = vrot.lane.b32.xlu0 %v4172, 32
        %v4219 = vpop.permute.xlu0 %4218
        %4220 = vrot.lane.b32.xlu0 %v4173, 32
        %v4221 = vpop.permute.xlu0 %4220
        %vm4238 = vcmask 523520
        %4239 = vst.msk [vmem:[#allocation4] sm:$0xff] %vm4238, %v4191
        %4240 = vst.msk [vmem:[#allocation4 + $0x8] sm:$0xff] %vm4238, %v4193
        %4241 = vst.msk [vmem:[#allocation4 + $0x10] sm:$0xff] %vm4238, %v4195
        %4242 = vst.msk [vmem:[#allocation4 + $0x18] sm:$0xff] %vm4238, %v4197
        %4243 = vst.msk [vmem:[#allocation4 + $0x20] sm:$0xff] %vm4238, %v4199
        %4244 = vst.msk [vmem:[#allocation4 + $0x28] sm:$0xff] %vm4238, %v4201
        %4245 = vst.msk [vmem:[#allocation4 + $0x30] sm:$0xff] %vm4238, %v4203
        %4246 = vst.msk [vmem:[#allocation4 + $0x38] sm:$0xff] %vm4238, %v4205
        %4247 = vst.msk [vmem:[#allocation4 + $0x40] sm:$0xff] %vm4238, %v4207
        %4248 = vst.msk [vmem:[#allocation4 + $0x48] sm:$0xff] %vm4238, %v4209
        %4249 = vst.msk [vmem:[#allocation4 + $0x50] sm:$0xff] %vm4238, %v4211
        %4250 = vst.msk [vmem:[#allocation4 + $0x58] sm:$0xff] %vm4238, %v4213
        %4251 = vst.msk [vmem:[#allocation4 + $0x60] sm:$0xff] %vm4238, %v4215
        %4252 = vst.msk [vmem:[#allocation4 + $0x68] sm:$0xff] %vm4238, %v4217
        %4253 = vst.msk [vmem:[#allocation4 + $0x70] sm:$0xff] %vm4238, %v4219
        %4254 = vst.msk [vmem:[#allocation4 + $0x78] sm:$0xff] %vm4238, %v4221
        %s4255 = scalar_lea.vmem [#allocation2], 168
        %v4256 = vld [vmem:[%s4255] sm:$0x8]
        %v4257 = vld [vmem:[%s4255 + $0x4] sm:$0xf]
        %v4258 = vld [vmem:[%s4255 + $0x8] sm:$0x7]
        %v4259 = vld [vmem:[%s4255 + $0x1c] sm:$0x8]
        %v4260 = vld [vmem:[%s4255 + $0x20] sm:$0xf]
        %v4261 = vld [vmem:[%s4255 + $0x24] sm:$0x7]
        %v4262 = vld [vmem:[%s4255 + $0x38] sm:$0x8]
        %v4263 = vld [vmem:[%s4255 + $0x3c] sm:$0xf]
        %v4264 = vld [vmem:[%s4255 + $0x40] sm:$0x7]
        %v4265 = vld [vmem:[%s4255 + $0x54] sm:$0x8]
        %v4266 = vld [vmem:[%s4255 + $0x58] sm:$0xf]
        %v4267 = vld [vmem:[%s4255 + $0x5c] sm:$0x7]
        %v4268 = vld [vmem:[%s4255 + $0x70] sm:$0x8]
        %v4269 = vld [vmem:[%s4255 + $0x74] sm:$0xf]
        %v4270 = vld [vmem:[%s4255 + $0x78] sm:$0x7]
        %v4271 = vld [vmem:[%s4255 + $0x8c] sm:$0x8]
        %v4272 = vld [vmem:[%s4255 + $0x90] sm:$0xf]
        %v4273 = vld [vmem:[%s4255 + $0x94] sm:$0x7]
        %v4274 = vld [vmem:[%s4255 + $0xa8] sm:$0x8]
        %v4275 = vld [vmem:[%s4255 + $0xac] sm:$0xf]
        %v4276 = vld [vmem:[%s4255 + $0xb0] sm:$0x7]
        %v4277 = vld [vmem:[%s4255 + $0xc4] sm:$0x8]
        %v4278 = vld [vmem:[%s4255 + $0xc8] sm:$0xf]
        %v4279 = vld [vmem:[%s4255 + $0xcc] sm:$0x7]
        %v4280 = vld [vmem:[%s4255 + $0xe0] sm:$0x8]
        %v4281 = vld [vmem:[%s4255 + $0xe4] sm:$0xf]
        %v4282 = vld [vmem:[%s4255 + $0xe8] sm:$0x7]
        %v4283 = vld [vmem:[%s4255 + $0xfc] sm:$0x8]
        %v4284 = vld [vmem:[%s4255 + $0x100] sm:$0xf]
        %v4285 = vld [vmem:[%s4255 + $0x104] sm:$0x7]
        %v4286 = vld [vmem:[%s4255 + $0x118] sm:$0x8]
        %v4287 = vld [vmem:[%s4255 + $0x11c] sm:$0xf]
        %v4288 = vld [vmem:[%s4255 + $0x120] sm:$0x7]
        %v4289 = vld [vmem:[%s4255 + $0x134] sm:$0x8]
        %v4290 = vld [vmem:[%s4255 + $0x138] sm:$0xf]
        %v4291 = vld [vmem:[%s4255 + $0x13c] sm:$0x7]
        %v4292 = vld [vmem:[%s4255 + $0x150] sm:$0x8]
        %v4293 = vld [vmem:[%s4255 + $0x154] sm:$0xf]
        %v4294 = vld [vmem:[%s4255 + $0x158] sm:$0x7]
        %v4295 = vld [vmem:[%s4255 + $0x16c] sm:$0x8]
        %v4296 = vld [vmem:[%s4255 + $0x170] sm:$0xf]
        %v4297 = vld [vmem:[%s4255 + $0x174] sm:$0x7]
        %v4298 = vld [vmem:[%s4255 + $0x188] sm:$0x8]
        %v4299 = vld [vmem:[%s4255 + $0x18c] sm:$0xf]
        %v4300 = vld [vmem:[%s4255 + $0x190] sm:$0x7]
        %v4301 = vld [vmem:[%s4255 + $0x1a4] sm:$0x8]
        %v4302 = vld [vmem:[%s4255 + $0x1a8] sm:$0xf]
        %v4303 = vld [vmem:[%s4255 + $0x1ac] sm:$0x7]
        %v4352 = vrot.slane %v4256, 7
        %v4353 = vrot.slane %v4352, 4
        %v4354 = vrot.slane %v4257, 7
        %v4355 = vsel %vm791, %v4353, %v4354
        %v4356 = vrot.slane %v4354, 4
        %v4357 = vrot.slane %v4258, 7
        %v4358 = vsel %vm791, %v4356, %v4357
        %v4359 = vrot.slane %v4259, 7
        %v4360 = vrot.slane %v4359, 4
        %v4361 = vrot.slane %v4260, 7
        %v4362 = vsel %vm791, %v4360, %v4361
        %v4363 = vrot.slane %v4361, 4
        %v4364 = vrot.slane %v4261, 7
        %v4365 = vsel %vm791, %v4363, %v4364
        %v4366 = vrot.slane %v4262, 7
        %v4367 = vrot.slane %v4366, 4
        %v4368 = vrot.slane %v4263, 7
        %v4369 = vsel %vm791, %v4367, %v4368
        %v4370 = vrot.slane %v4368, 4
        %v4371 = vrot.slane %v4264, 7
        %v4372 = vsel %vm791, %v4370, %v4371
        %v4373 = vrot.slane %v4265, 7
        %v4374 = vrot.slane %v4373, 4
        %v4375 = vrot.slane %v4266, 7
        %v4376 = vsel %vm791, %v4374, %v4375
        %v4377 = vrot.slane %v4375, 4
        %v4378 = vrot.slane %v4267, 7
        %v4379 = vsel %vm791, %v4377, %v4378
        %v4380 = vrot.slane %v4268, 7
        %v4381 = vrot.slane %v4380, 4
        %v4382 = vrot.slane %v4269, 7
        %v4383 = vsel %vm791, %v4381, %v4382
        %v4384 = vrot.slane %v4382, 4
        %v4385 = vrot.slane %v4270, 7
        %v4386 = vsel %vm791, %v4384, %v4385
        %v4387 = vrot.slane %v4271, 7
        %v4388 = vrot.slane %v4387, 4
        %v4389 = vrot.slane %v4272, 7
        %v4390 = vsel %vm791, %v4388, %v4389
        %v4391 = vrot.slane %v4389, 4
        %v4392 = vrot.slane %v4273, 7
        %v4393 = vsel %vm791, %v4391, %v4392
        %v4394 = vrot.slane %v4274, 7
        %v4395 = vrot.slane %v4394, 4
        %v4396 = vrot.slane %v4275, 7
        %v4397 = vsel %vm791, %v4395, %v4396
        %v4398 = vrot.slane %v4396, 4
        %v4399 = vrot.slane %v4276, 7
        %v4400 = vsel %vm791, %v4398, %v4399
        %v4401 = vrot.slane %v4277, 7
        %v4402 = vrot.slane %v4401, 4
        %v4403 = vrot.slane %v4278, 7
        %v4404 = vsel %vm791, %v4402, %v4403
        %v4405 = vrot.slane %v4403, 4
        %v4406 = vrot.slane %v4279, 7
        %v4407 = vsel %vm791, %v4405, %v4406
        %v4408 = vrot.slane %v4280, 7
        %v4409 = vrot.slane %v4408, 4
        %v4410 = vrot.slane %v4281, 7
        %v4411 = vsel %vm791, %v4409, %v4410
        %v4412 = vrot.slane %v4410, 4
        %v4413 = vrot.slane %v4282, 7
        %v4414 = vsel %vm791, %v4412, %v4413
        %v4415 = vrot.slane %v4283, 7
        %v4416 = vrot.slane %v4415, 4
        %v4417 = vrot.slane %v4284, 7
        %v4418 = vsel %vm791, %v4416, %v4417
        %v4419 = vrot.slane %v4417, 4
        %v4420 = vrot.slane %v4285, 7
        %v4421 = vsel %vm791, %v4419, %v4420
        %v4422 = vrot.slane %v4286, 7
        %v4423 = vrot.slane %v4422, 4
        %v4424 = vrot.slane %v4287, 7
        %v4425 = vsel %vm791, %v4423, %v4424
        %v4426 = vrot.slane %v4424, 4
        %v4427 = vrot.slane %v4288, 7
        %v4428 = vsel %vm791, %v4426, %v4427
        %v4429 = vrot.slane %v4289, 7
        %v4430 = vrot.slane %v4429, 4
        %v4431 = vrot.slane %v4290, 7
        %v4432 = vsel %vm791, %v4430, %v4431
        %v4433 = vrot.slane %v4431, 4
        %v4434 = vrot.slane %v4291, 7
        %v4435 = vsel %vm791, %v4433, %v4434
        %v4436 = vrot.slane %v4292, 7
        %v4437 = vrot.slane %v4436, 4
        %v4438 = vrot.slane %v4293, 7
        %v4439 = vsel %vm791, %v4437, %v4438
        %v4440 = vrot.slane %v4438, 4
        %v4441 = vrot.slane %v4294, 7
        %v4442 = vsel %vm791, %v4440, %v4441
        %v4443 = vrot.slane %v4295, 7
        %v4444 = vrot.slane %v4443, 4
        %v4445 = vrot.slane %v4296, 7
        %v4446 = vsel %vm791, %v4444, %v4445
        %v4447 = vrot.slane %v4445, 4
        %v4448 = vrot.slane %v4297, 7
        %v4449 = vsel %vm791, %v4447, %v4448
        %v4450 = vrot.slane %v4298, 7
        %v4451 = vrot.slane %v4450, 4
        %v4452 = vrot.slane %v4299, 7
        %v4453 = vsel %vm791, %v4451, %v4452
        %v4454 = vrot.slane %v4452, 4
        %v4455 = vrot.slane %v4300, 7
        %v4456 = vsel %vm791, %v4454, %v4455
        %v4457 = vrot.slane %v4301, 7
        %v4458 = vrot.slane %v4457, 4
        %v4459 = vrot.slane %v4302, 7
        %v4460 = vsel %vm791, %v4458, %v4459
        %v4461 = vrot.slane %v4459, 4
        %v4462 = vrot.slane %v4303, 7
        %v4463 = vsel %vm791, %v4461, %v4462
        %v4464 = vunpack.c.l.b16 %v4355
        %v4465 = vunpack.c.l.b16 %v4358
        %v4466 = vunpack.c.l.b16 %v4362
        %v4467 = vunpack.c.l.b16 %v4365
        %v4468 = vunpack.c.l.b16 %v4369
        %v4469 = vunpack.c.l.b16 %v4372
        %v4470 = vunpack.c.l.b16 %v4376
        %v4471 = vunpack.c.l.b16 %v4379
        %v4472 = vunpack.c.l.b16 %v4383
        %v4473 = vunpack.c.l.b16 %v4386
        %v4474 = vunpack.c.l.b16 %v4390
        %v4475 = vunpack.c.l.b16 %v4393
        %v4476 = vunpack.c.l.b16 %v4397
        %v4477 = vunpack.c.l.b16 %v4400
        %v4478 = vunpack.c.l.b16 %v4404
        %v4479 = vunpack.c.l.b16 %v4407
        %v4480 = vunpack.c.l.b16 %v4411
        %v4481 = vunpack.c.l.b16 %v4414
        %v4482 = vunpack.c.l.b16 %v4418
        %v4483 = vunpack.c.l.b16 %v4421
        %v4484 = vunpack.c.l.b16 %v4425
        %v4485 = vunpack.c.l.b16 %v4428
        %v4486 = vunpack.c.l.b16 %v4432
        %v4487 = vunpack.c.l.b16 %v4435
        %v4488 = vunpack.c.l.b16 %v4439
        %v4489 = vunpack.c.l.b16 %v4442
        %v4490 = vunpack.c.l.b16 %v4446
        %v4491 = vunpack.c.l.b16 %v4449
        %v4492 = vunpack.c.l.b16 %v4453
        %v4493 = vunpack.c.l.b16 %v4456
        %v4494 = vunpack.c.l.b16 %v4460
        %v4495 = vunpack.c.l.b16 %v4463
        %v4496 = vpack.c.b16 %v4465, %v4464
        %v4497 = vpack.c.b16 %v4467, %v4466
        %v4498 = vpack.c.b16 %v4469, %v4468
        %v4499 = vpack.c.b16 %v4471, %v4470
        %v4500 = vpack.c.b16 %v4473, %v4472
        %v4501 = vpack.c.b16 %v4475, %v4474
        %v4502 = vpack.c.b16 %v4477, %v4476
        %v4503 = vpack.c.b16 %v4479, %v4478
        %v4504 = vpack.c.b16 %v4481, %v4480
        %v4505 = vpack.c.b16 %v4483, %v4482
        %v4506 = vpack.c.b16 %v4485, %v4484
        %v4507 = vpack.c.b16 %v4487, %v4486
        %v4508 = vpack.c.b16 %v4489, %v4488
        %v4509 = vpack.c.b16 %v4491, %v4490
        %v4510 = vpack.c.b16 %v4493, %v4492
        %v4511 = vpack.c.b16 %v4495, %v4494
        %4528 = vst.msk [vmem:[#allocation3] sm:$0xff] %vm1022, %v4496
        %4529 = vst.msk [vmem:[#allocation3 + $0x8] sm:$0xff] %vm1022, %v4497
        %4530 = vst.msk [vmem:[#allocation3 + $0x10] sm:$0xff] %vm1022, %v4498
        %4531 = vst.msk [vmem:[#allocation3 + $0x18] sm:$0xff] %vm1022, %v4499
        %4532 = vst.msk [vmem:[#allocation3 + $0x20] sm:$0xff] %vm1022, %v4500
        %4533 = vst.msk [vmem:[#allocation3 + $0x28] sm:$0xff] %vm1022, %v4501
        %4534 = vst.msk [vmem:[#allocation3 + $0x30] sm:$0xff] %vm1022, %v4502
        %4535 = vst.msk [vmem:[#allocation3 + $0x38] sm:$0xff] %vm1022, %v4503
        %4536 = vst.msk [vmem:[#allocation3 + $0x40] sm:$0xff] %vm1022, %v4504
        %4537 = vst.msk [vmem:[#allocation3 + $0x48] sm:$0xff] %vm1022, %v4505
        %4538 = vst.msk [vmem:[#allocation3 + $0x50] sm:$0xff] %vm1022, %v4506
        %4539 = vst.msk [vmem:[#allocation3 + $0x58] sm:$0xff] %vm1022, %v4507
        %4540 = vst.msk [vmem:[#allocation3 + $0x60] sm:$0xff] %vm1022, %v4508
        %4541 = vst.msk [vmem:[#allocation3 + $0x68] sm:$0xff] %vm1022, %v4509
        %4542 = vst.msk [vmem:[#allocation3 + $0x70] sm:$0xff] %vm1022, %v4510
        %4543 = vst.msk [vmem:[#allocation3 + $0x78] sm:$0xff] %vm1022, %v4511
        %v4544 = vld [vmem:[%s4255 + $0x8] sm:$0xe]
        %v4545 = vld [vmem:[%s4255 + $0xc] sm:$0xf]
        %v4546 = vld [vmem:[%s4255 + $0x10] sm:$0x1]
        %v4547 = vld [vmem:[%s4255 + $0x24] sm:$0xe]
        %v4548 = vld [vmem:[%s4255 + $0x28] sm:$0xf]
        %v4549 = vld [vmem:[%s4255 + $0x2c] sm:$0x1]
        %v4550 = vld [vmem:[%s4255 + $0x40] sm:$0xe]
        %v4551 = vld [vmem:[%s4255 + $0x44] sm:$0xf]
        %v4552 = vld [vmem:[%s4255 + $0x48] sm:$0x1]
        %v4553 = vld [vmem:[%s4255 + $0x5c] sm:$0xe]
        %v4554 = vld [vmem:[%s4255 + $0x60] sm:$0xf]
        %v4555 = vld [vmem:[%s4255 + $0x64] sm:$0x1]
        %v4556 = vld [vmem:[%s4255 + $0x78] sm:$0xe]
        %v4557 = vld [vmem:[%s4255 + $0x7c] sm:$0xf]
        %v4558 = vld [vmem:[%s4255 + $0x80] sm:$0x1]
        %v4559 = vld [vmem:[%s4255 + $0x94] sm:$0xe]
        %v4560 = vld [vmem:[%s4255 + $0x98] sm:$0xf]
        %v4561 = vld [vmem:[%s4255 + $0x9c] sm:$0x1]
        %v4562 = vld [vmem:[%s4255 + $0xb0] sm:$0xe]
        %v4563 = vld [vmem:[%s4255 + $0xb4] sm:$0xf]
        %v4564 = vld [vmem:[%s4255 + $0xb8] sm:$0x1]
        %v4565 = vld [vmem:[%s4255 + $0xcc] sm:$0xe]
        %v4566 = vld [vmem:[%s4255 + $0xd0] sm:$0xf]
        %v4567 = vld [vmem:[%s4255 + $0xd4] sm:$0x1]
        %v4568 = vld [vmem:[%s4255 + $0xe8] sm:$0xe]
        %v4569 = vld [vmem:[%s4255 + $0xec] sm:$0xf]
        %v4570 = vld [vmem:[%s4255 + $0xf0] sm:$0x1]
        %v4571 = vld [vmem:[%s4255 + $0x104] sm:$0xe]
        %v4572 = vld [vmem:[%s4255 + $0x108] sm:$0xf]
        %v4573 = vld [vmem:[%s4255 + $0x10c] sm:$0x1]
        %v4574 = vld [vmem:[%s4255 + $0x120] sm:$0xe]
        %v4575 = vld [vmem:[%s4255 + $0x124] sm:$0xf]
        %v4576 = vld [vmem:[%s4255 + $0x128] sm:$0x1]
        %v4577 = vld [vmem:[%s4255 + $0x13c] sm:$0xe]
        %v4578 = vld [vmem:[%s4255 + $0x140] sm:$0xf]
        %v4579 = vld [vmem:[%s4255 + $0x144] sm:$0x1]
        %v4580 = vld [vmem:[%s4255 + $0x158] sm:$0xe]
        %v4581 = vld [vmem:[%s4255 + $0x15c] sm:$0xf]
        %v4582 = vld [vmem:[%s4255 + $0x160] sm:$0x1]
        %v4583 = vld [vmem:[%s4255 + $0x174] sm:$0xe]
        %v4584 = vld [vmem:[%s4255 + $0x178] sm:$0xf]
        %v4585 = vld [vmem:[%s4255 + $0x17c] sm:$0x1]
        %v4586 = vld [vmem:[%s4255 + $0x190] sm:$0xe]
        %v4587 = vld [vmem:[%s4255 + $0x194] sm:$0xf]
        %v4588 = vld [vmem:[%s4255 + $0x198] sm:$0x1]
        %v4589 = vld [vmem:[%s4255 + $0x1ac] sm:$0xe]
        %v4590 = vld [vmem:[%s4255 + $0x1b0] sm:$0xf]
        %v4591 = vld [vmem:[%s4255 + $0x1b4] sm:$0x1]
        %v4640 = vrot.slane %v4544, 5
        %v4641 = vrot.slane %v4640, 4
        %v4642 = vrot.slane %v4545, 5
        %v4643 = vsel %vm1763, %v4641, %v4642
        %v4644 = vrot.slane %v4642, 4
        %v4645 = vrot.slane %v4546, 5
        %v4646 = vsel %vm1763, %v4644, %v4645
        %v4647 = vrot.slane %v4547, 5
        %v4648 = vrot.slane %v4647, 4
        %v4649 = vrot.slane %v4548, 5
        %v4650 = vsel %vm1763, %v4648, %v4649
        %v4651 = vrot.slane %v4649, 4
        %v4652 = vrot.slane %v4549, 5
        %v4653 = vsel %vm1763, %v4651, %v4652
        %v4654 = vrot.slane %v4550, 5
        %v4655 = vrot.slane %v4654, 4
        %v4656 = vrot.slane %v4551, 5
        %v4657 = vsel %vm1763, %v4655, %v4656
        %v4658 = vrot.slane %v4656, 4
        %v4659 = vrot.slane %v4552, 5
        %v4660 = vsel %vm1763, %v4658, %v4659
        %v4661 = vrot.slane %v4553, 5
        %v4662 = vrot.slane %v4661, 4
        %v4663 = vrot.slane %v4554, 5
        %v4664 = vsel %vm1763, %v4662, %v4663
        %v4665 = vrot.slane %v4663, 4
        %v4666 = vrot.slane %v4555, 5
        %v4667 = vsel %vm1763, %v4665, %v4666
        %v4668 = vrot.slane %v4556, 5
        %v4669 = vrot.slane %v4668, 4
        %v4670 = vrot.slane %v4557, 5
        %v4671 = vsel %vm1763, %v4669, %v4670
        %v4672 = vrot.slane %v4670, 4
        %v4673 = vrot.slane %v4558, 5
        %v4674 = vsel %vm1763, %v4672, %v4673
        %v4675 = vrot.slane %v4559, 5
        %v4676 = vrot.slane %v4675, 4
        %v4677 = vrot.slane %v4560, 5
        %v4678 = vsel %vm1763, %v4676, %v4677
        %v4679 = vrot.slane %v4677, 4
        %v4680 = vrot.slane %v4561, 5
        %v4681 = vsel %vm1763, %v4679, %v4680
        %v4682 = vrot.slane %v4562, 5
        %v4683 = vrot.slane %v4682, 4
        %v4684 = vrot.slane %v4563, 5
        %v4685 = vsel %vm1763, %v4683, %v4684
        %v4686 = vrot.slane %v4684, 4
        %v4687 = vrot.slane %v4564, 5
        %v4688 = vsel %vm1763, %v4686, %v4687
        %v4689 = vrot.slane %v4565, 5
        %v4690 = vrot.slane %v4689, 4
        %v4691 = vrot.slane %v4566, 5
        %v4692 = vsel %vm1763, %v4690, %v4691
        %v4693 = vrot.slane %v4691, 4
        %v4694 = vrot.slane %v4567, 5
        %v4695 = vsel %vm1763, %v4693, %v4694
        %v4696 = vrot.slane %v4568, 5
        %v4697 = vrot.slane %v4696, 4
        %v4698 = vrot.slane %v4569, 5
        %v4699 = vsel %vm1763, %v4697, %v4698
        %v4700 = vrot.slane %v4698, 4
        %v4701 = vrot.slane %v4570, 5
        %v4702 = vsel %vm1763, %v4700, %v4701
        %v4703 = vrot.slane %v4571, 5
        %v4704 = vrot.slane %v4703, 4
        %v4705 = vrot.slane %v4572, 5
        %v4706 = vsel %vm1763, %v4704, %v4705
        %v4707 = vrot.slane %v4705, 4
        %v4708 = vrot.slane %v4573, 5
        %v4709 = vsel %vm1763, %v4707, %v4708
        %v4710 = vrot.slane %v4574, 5
        %v4711 = vrot.slane %v4710, 4
        %v4712 = vrot.slane %v4575, 5
        %v4713 = vsel %vm1763, %v4711, %v4712
        %v4714 = vrot.slane %v4712, 4
        %v4715 = vrot.slane %v4576, 5
        %v4716 = vsel %vm1763, %v4714, %v4715
        %v4717 = vrot.slane %v4577, 5
        %v4718 = vrot.slane %v4717, 4
        %v4719 = vrot.slane %v4578, 5
        %v4720 = vsel %vm1763, %v4718, %v4719
        %v4721 = vrot.slane %v4719, 4
        %v4722 = vrot.slane %v4579, 5
        %v4723 = vsel %vm1763, %v4721, %v4722
        %v4724 = vrot.slane %v4580, 5
        %v4725 = vrot.slane %v4724, 4
        %v4726 = vrot.slane %v4581, 5
        %v4727 = vsel %vm1763, %v4725, %v4726
        %v4728 = vrot.slane %v4726, 4
        %v4729 = vrot.slane %v4582, 5
        %v4730 = vsel %vm1763, %v4728, %v4729
        %v4731 = vrot.slane %v4583, 5
        %v4732 = vrot.slane %v4731, 4
        %v4733 = vrot.slane %v4584, 5
        %v4734 = vsel %vm1763, %v4732, %v4733
        %v4735 = vrot.slane %v4733, 4
        %v4736 = vrot.slane %v4585, 5
        %v4737 = vsel %vm1763, %v4735, %v4736
        %v4738 = vrot.slane %v4586, 5
        %v4739 = vrot.slane %v4738, 4
        %v4740 = vrot.slane %v4587, 5
        %v4741 = vsel %vm1763, %v4739, %v4740
        %v4742 = vrot.slane %v4740, 4
        %v4743 = vrot.slane %v4588, 5
        %v4744 = vsel %vm1763, %v4742, %v4743
        %v4745 = vrot.slane %v4589, 5
        %v4746 = vrot.slane %v4745, 4
        %v4747 = vrot.slane %v4590, 5
        %v4748 = vsel %vm1763, %v4746, %v4747
        %v4749 = vrot.slane %v4747, 4
        %v4750 = vrot.slane %v4591, 5
        %v4751 = vsel %vm1763, %v4749, %v4750
        %v4752 = vunpack.c.l.b16 %v4643
        %v4753 = vunpack.c.l.b16 %v4646
        %v4754 = vunpack.c.l.b16 %v4650
        %v4755 = vunpack.c.l.b16 %v4653
        %v4756 = vunpack.c.l.b16 %v4657
        %v4757 = vunpack.c.l.b16 %v4660
        %v4758 = vunpack.c.l.b16 %v4664
        %v4759 = vunpack.c.l.b16 %v4667
        %v4760 = vunpack.c.l.b16 %v4671
        %v4761 = vunpack.c.l.b16 %v4674
        %v4762 = vunpack.c.l.b16 %v4678
        %v4763 = vunpack.c.l.b16 %v4681
        %v4764 = vunpack.c.l.b16 %v4685
        %v4765 = vunpack.c.l.b16 %v4688
        %v4766 = vunpack.c.l.b16 %v4692
        %v4767 = vunpack.c.l.b16 %v4695
        %v4768 = vunpack.c.l.b16 %v4699
        %v4769 = vunpack.c.l.b16 %v4702
        %v4770 = vunpack.c.l.b16 %v4706
        %v4771 = vunpack.c.l.b16 %v4709
        %v4772 = vunpack.c.l.b16 %v4713
        %v4773 = vunpack.c.l.b16 %v4716
        %v4774 = vunpack.c.l.b16 %v4720
        %v4775 = vunpack.c.l.b16 %v4723
        %v4776 = vunpack.c.l.b16 %v4727
        %v4777 = vunpack.c.l.b16 %v4730
        %v4778 = vunpack.c.l.b16 %v4734
        %v4779 = vunpack.c.l.b16 %v4737
        %v4780 = vunpack.c.l.b16 %v4741
        %v4781 = vunpack.c.l.b16 %v4744
        %v4782 = vunpack.c.l.b16 %v4748
        %v4783 = vunpack.c.l.b16 %v4751
        %v4784 = vpack.c.b16 %v4753, %v4752
        %v4785 = vpack.c.b16 %v4755, %v4754
        %v4786 = vpack.c.b16 %v4757, %v4756
        %v4787 = vpack.c.b16 %v4759, %v4758
        %v4788 = vpack.c.b16 %v4761, %v4760
        %v4789 = vpack.c.b16 %v4763, %v4762
        %v4790 = vpack.c.b16 %v4765, %v4764
        %v4791 = vpack.c.b16 %v4767, %v4766
        %v4792 = vpack.c.b16 %v4769, %v4768
        %v4793 = vpack.c.b16 %v4771, %v4770
        %v4794 = vpack.c.b16 %v4773, %v4772
        %v4795 = vpack.c.b16 %v4775, %v4774
        %v4796 = vpack.c.b16 %v4777, %v4776
        %v4797 = vpack.c.b16 %v4779, %v4778
        %v4798 = vpack.c.b16 %v4781, %v4780
        %v4799 = vpack.c.b16 %v4783, %v4782
        %4800 = vrot.lane.b32.xlu0 %v4784, 4
        %v4801 = vpop.permute.xlu0 %4800
        %4802 = vrot.lane.b32.xlu0 %v4785, 4
        %v4803 = vpop.permute.xlu0 %4802
        %4804 = vrot.lane.b32.xlu0 %v4786, 4
        %v4805 = vpop.permute.xlu0 %4804
        %4806 = vrot.lane.b32.xlu0 %v4787, 4
        %v4807 = vpop.permute.xlu0 %4806
        %4808 = vrot.lane.b32.xlu0 %v4788, 4
        %v4809 = vpop.permute.xlu0 %4808
        %4810 = vrot.lane.b32.xlu0 %v4789, 4
        %v4811 = vpop.permute.xlu0 %4810
        %4812 = vrot.lane.b32.xlu0 %v4790, 4
        %v4813 = vpop.permute.xlu0 %4812
        %4814 = vrot.lane.b32.xlu0 %v4791, 4
        %v4815 = vpop.permute.xlu0 %4814
        %4816 = vrot.lane.b32.xlu0 %v4792, 4
        %v4817 = vpop.permute.xlu0 %4816
        %4818 = vrot.lane.b32.xlu0 %v4793, 4
        %v4819 = vpop.permute.xlu0 %4818
        %4820 = vrot.lane.b32.xlu0 %v4794, 4
        %v4821 = vpop.permute.xlu0 %4820
        %4822 = vrot.lane.b32.xlu0 %v4795, 4
        %v4823 = vpop.permute.xlu0 %4822
        %4824 = vrot.lane.b32.xlu0 %v4796, 4
        %v4825 = vpop.permute.xlu0 %4824
        %4826 = vrot.lane.b32.xlu0 %v4797, 4
        %v4827 = vpop.permute.xlu0 %4826
        %4828 = vrot.lane.b32.xlu0 %v4798, 4
        %v4829 = vpop.permute.xlu0 %4828
        %4830 = vrot.lane.b32.xlu0 %v4799, 4
        %v4831 = vpop.permute.xlu0 %4830
        %4848 = vst.msk [vmem:[#allocation3] sm:$0xff] %vm1972, %v4801
        %4849 = vst.msk [vmem:[#allocation3 + $0x8] sm:$0xff] %vm1972, %v4803
        %4850 = vst.msk [vmem:[#allocation3 + $0x10] sm:$0xff] %vm1972, %v4805
        %4851 = vst.msk [vmem:[#allocation3 + $0x18] sm:$0xff] %vm1972, %v4807
        %4852 = vst.msk [vmem:[#allocation3 + $0x20] sm:$0xff] %vm1972, %v4809
        %4853 = vst.msk [vmem:[#allocation3 + $0x28] sm:$0xff] %vm1972, %v4811
        %4854 = vst.msk [vmem:[#allocation3 + $0x30] sm:$0xff] %vm1972, %v4813
        %4855 = vst.msk [vmem:[#allocation3 + $0x38] sm:$0xff] %vm1972, %v4815
        %4856 = vst.msk [vmem:[#allocation3 + $0x40] sm:$0xff] %vm1972, %v4817
        %4857 = vst.msk [vmem:[#allocation3 + $0x48] sm:$0xff] %vm1972, %v4819
        %4858 = vst.msk [vmem:[#allocation3 + $0x50] sm:$0xff] %vm1972, %v4821
        %4859 = vst.msk [vmem:[#allocation3 + $0x58] sm:$0xff] %vm1972, %v4823
        %4860 = vst.msk [vmem:[#allocation3 + $0x60] sm:$0xff] %vm1972, %v4825
        %4861 = vst.msk [vmem:[#allocation3 + $0x68] sm:$0xff] %vm1972, %v4827
        %4862 = vst.msk [vmem:[#allocation3 + $0x70] sm:$0xff] %vm1972, %v4829
        %4863 = vst.msk [vmem:[#allocation3 + $0x78] sm:$0xff] %vm1972, %v4831
        %v4864 = vld [vmem:[%s4255 + $0xc] sm:$0x8]
        %v4865 = vld [vmem:[%s4255 + $0x10] sm:$0xf]
        %v4866 = vld [vmem:[%s4255 + $0x14] sm:$0x7]
        %v4867 = vld [vmem:[%s4255 + $0x28] sm:$0x8]
        %v4868 = vld [vmem:[%s4255 + $0x2c] sm:$0xf]
        %v4869 = vld [vmem:[%s4255 + $0x30] sm:$0x7]
        %v4870 = vld [vmem:[%s4255 + $0x44] sm:$0x8]
        %v4871 = vld [vmem:[%s4255 + $0x48] sm:$0xf]
        %v4872 = vld [vmem:[%s4255 + $0x4c] sm:$0x7]
        %v4873 = vld [vmem:[%s4255 + $0x60] sm:$0x8]
        %v4874 = vld [vmem:[%s4255 + $0x64] sm:$0xf]
        %v4875 = vld [vmem:[%s4255 + $0x68] sm:$0x7]
        %v4876 = vld [vmem:[%s4255 + $0x7c] sm:$0x8]
        %v4877 = vld [vmem:[%s4255 + $0x80] sm:$0xf]
        %v4878 = vld [vmem:[%s4255 + $0x84] sm:$0x7]
        %v4879 = vld [vmem:[%s4255 + $0x98] sm:$0x8]
        %v4880 = vld [vmem:[%s4255 + $0x9c] sm:$0xf]
        %v4881 = vld [vmem:[%s4255 + $0xa0] sm:$0x7]
        %v4882 = vld [vmem:[%s4255 + $0xb4] sm:$0x8]
        %v4883 = vld [vmem:[%s4255 + $0xb8] sm:$0xf]
        %v4884 = vld [vmem:[%s4255 + $0xbc] sm:$0x7]
        %v4885 = vld [vmem:[%s4255 + $0xd0] sm:$0x8]
        %v4886 = vld [vmem:[%s4255 + $0xd4] sm:$0xf]
        %v4887 = vld [vmem:[%s4255 + $0xd8] sm:$0x7]
        %v4888 = vld [vmem:[%s4255 + $0xec] sm:$0x8]
        %v4889 = vld [vmem:[%s4255 + $0xf0] sm:$0xf]
        %v4890 = vld [vmem:[%s4255 + $0xf4] sm:$0x7]
        %v4891 = vld [vmem:[%s4255 + $0x108] sm:$0x8]
        %v4892 = vld [vmem:[%s4255 + $0x10c] sm:$0xf]
        %v4893 = vld [vmem:[%s4255 + $0x110] sm:$0x7]
        %v4894 = vld [vmem:[%s4255 + $0x124] sm:$0x8]
        %v4895 = vld [vmem:[%s4255 + $0x128] sm:$0xf]
        %v4896 = vld [vmem:[%s4255 + $0x12c] sm:$0x7]
        %v4897 = vld [vmem:[%s4255 + $0x140] sm:$0x8]
        %v4898 = vld [vmem:[%s4255 + $0x144] sm:$0xf]
        %v4899 = vld [vmem:[%s4255 + $0x148] sm:$0x7]
        %v4900 = vld [vmem:[%s4255 + $0x15c] sm:$0x8]
        %v4901 = vld [vmem:[%s4255 + $0x160] sm:$0xf]
        %v4902 = vld [vmem:[%s4255 + $0x164] sm:$0x7]
        %v4903 = vld [vmem:[%s4255 + $0x178] sm:$0x8]
        %v4904 = vld [vmem:[%s4255 + $0x17c] sm:$0xf]
        %v4905 = vld [vmem:[%s4255 + $0x180] sm:$0x7]
        %v4906 = vld [vmem:[%s4255 + $0x194] sm:$0x8]
        %v4907 = vld [vmem:[%s4255 + $0x198] sm:$0xf]
        %v4908 = vld [vmem:[%s4255 + $0x19c] sm:$0x7]
        %v4909 = vld [vmem:[%s4255 + $0x1b0] sm:$0x8]
        %v4910 = vld [vmem:[%s4255 + $0x1b4] sm:$0xf]
        %v4911 = vld [vmem:[%s4255 + $0x1b8] sm:$0x7]
        %v4960 = vrot.slane %v4864, 7
        %v4961 = vrot.slane %v4960, 4
        %v4962 = vrot.slane %v4865, 7
        %v4963 = vsel %vm791, %v4961, %v4962
        %v4964 = vrot.slane %v4962, 4
        %v4965 = vrot.slane %v4866, 7
        %v4966 = vsel %vm791, %v4964, %v4965
        %v4967 = vrot.slane %v4867, 7
        %v4968 = vrot.slane %v4967, 4
        %v4969 = vrot.slane %v4868, 7
        %v4970 = vsel %vm791, %v4968, %v4969
        %v4971 = vrot.slane %v4969, 4
        %v4972 = vrot.slane %v4869, 7
        %v4973 = vsel %vm791, %v4971, %v4972
        %v4974 = vrot.slane %v4870, 7
        %v4975 = vrot.slane %v4974, 4
        %v4976 = vrot.slane %v4871, 7
        %v4977 = vsel %vm791, %v4975, %v4976
        %v4978 = vrot.slane %v4976, 4
        %v4979 = vrot.slane %v4872, 7
        %v4980 = vsel %vm791, %v4978, %v4979
        %v4981 = vrot.slane %v4873, 7
        %v4982 = vrot.slane %v4981, 4
        %v4983 = vrot.slane %v4874, 7
        %v4984 = vsel %vm791, %v4982, %v4983
        %v4985 = vrot.slane %v4983, 4
        %v4986 = vrot.slane %v4875, 7
        %v4987 = vsel %vm791, %v4985, %v4986
        %v4988 = vrot.slane %v4876, 7
        %v4989 = vrot.slane %v4988, 4
        %v4990 = vrot.slane %v4877, 7
        %v4991 = vsel %vm791, %v4989, %v4990
        %v4992 = vrot.slane %v4990, 4
        %v4993 = vrot.slane %v4878, 7
        %v4994 = vsel %vm791, %v4992, %v4993
        %v4995 = vrot.slane %v4879, 7
        %v4996 = vrot.slane %v4995, 4
        %v4997 = vrot.slane %v4880, 7
        %v4998 = vsel %vm791, %v4996, %v4997
        %v4999 = vrot.slane %v4997, 4
        %v5000 = vrot.slane %v4881, 7
        %v5001 = vsel %vm791, %v4999, %v5000
        %v5002 = vrot.slane %v4882, 7
        %v5003 = vrot.slane %v5002, 4
        %v5004 = vrot.slane %v4883, 7
        %v5005 = vsel %vm791, %v5003, %v5004
        %v5006 = vrot.slane %v5004, 4
        %v5007 = vrot.slane %v4884, 7
        %v5008 = vsel %vm791, %v5006, %v5007
        %v5009 = vrot.slane %v4885, 7
        %v5010 = vrot.slane %v5009, 4
        %v5011 = vrot.slane %v4886, 7
        %v5012 = vsel %vm791, %v5010, %v5011
        %v5013 = vrot.slane %v5011, 4
        %v5014 = vrot.slane %v4887, 7
        %v5015 = vsel %vm791, %v5013, %v5014
        %v5016 = vrot.slane %v4888, 7
        %v5017 = vrot.slane %v5016, 4
        %v5018 = vrot.slane %v4889, 7
        %v5019 = vsel %vm791, %v5017, %v5018
        %v5020 = vrot.slane %v5018, 4
        %v5021 = vrot.slane %v4890, 7
        %v5022 = vsel %vm791, %v5020, %v5021
        %v5023 = vrot.slane %v4891, 7
        %v5024 = vrot.slane %v5023, 4
        %v5025 = vrot.slane %v4892, 7
        %v5026 = vsel %vm791, %v5024, %v5025
        %v5027 = vrot.slane %v5025, 4
        %v5028 = vrot.slane %v4893, 7
        %v5029 = vsel %vm791, %v5027, %v5028
        %v5030 = vrot.slane %v4894, 7
        %v5031 = vrot.slane %v5030, 4
        %v5032 = vrot.slane %v4895, 7
        %v5033 = vsel %vm791, %v5031, %v5032
        %v5034 = vrot.slane %v5032, 4
        %v5035 = vrot.slane %v4896, 7
        %v5036 = vsel %vm791, %v5034, %v5035
        %v5037 = vrot.slane %v4897, 7
        %v5038 = vrot.slane %v5037, 4
        %v5039 = vrot.slane %v4898, 7
        %v5040 = vsel %vm791, %v5038, %v5039
        %v5041 = vrot.slane %v5039, 4
        %v5042 = vrot.slane %v4899, 7
        %v5043 = vsel %vm791, %v5041, %v5042
        %v5044 = vrot.slane %v4900, 7
        %v5045 = vrot.slane %v5044, 4
        %v5046 = vrot.slane %v4901, 7
        %v5047 = vsel %vm791, %v5045, %v5046
        %v5048 = vrot.slane %v5046, 4
        %v5049 = vrot.slane %v4902, 7
        %v5050 = vsel %vm791, %v5048, %v5049
        %v5051 = vrot.slane %v4903, 7
        %v5052 = vrot.slane %v5051, 4
        %v5053 = vrot.slane %v4904, 7
        %v5054 = vsel %vm791, %v5052, %v5053
        %v5055 = vrot.slane %v5053, 4
        %v5056 = vrot.slane %v4905, 7
        %v5057 = vsel %vm791, %v5055, %v5056
        %v5058 = vrot.slane %v4906, 7
        %v5059 = vrot.slane %v5058, 4
        %v5060 = vrot.slane %v4907, 7
        %v5061 = vsel %vm791, %v5059, %v5060
        %v5062 = vrot.slane %v5060, 4
        %v5063 = vrot.slane %v4908, 7
        %v5064 = vsel %vm791, %v5062, %v5063
        %v5065 = vrot.slane %v4909, 7
        %v5066 = vrot.slane %v5065, 4
        %v5067 = vrot.slane %v4910, 7
        %v5068 = vsel %vm791, %v5066, %v5067
        %v5069 = vrot.slane %v5067, 4
        %v5070 = vrot.slane %v4911, 7
        %v5071 = vsel %vm791, %v5069, %v5070
        %v5072 = vunpack.c.l.b16 %v4963
        %v5073 = vunpack.c.l.b16 %v4966
        %v5074 = vunpack.c.l.b16 %v4970
        %v5075 = vunpack.c.l.b16 %v4973
        %v5076 = vunpack.c.l.b16 %v4977
        %v5077 = vunpack.c.l.b16 %v4980
        %v5078 = vunpack.c.l.b16 %v4984
        %v5079 = vunpack.c.l.b16 %v4987
        %v5080 = vunpack.c.l.b16 %v4991
        %v5081 = vunpack.c.l.b16 %v4994
        %v5082 = vunpack.c.l.b16 %v4998
        %v5083 = vunpack.c.l.b16 %v5001
        %v5084 = vunpack.c.l.b16 %v5005
        %v5085 = vunpack.c.l.b16 %v5008
        %v5086 = vunpack.c.l.b16 %v5012
        %v5087 = vunpack.c.l.b16 %v5015
        %v5088 = vunpack.c.l.b16 %v5019
        %v5089 = vunpack.c.l.b16 %v5022
        %v5090 = vunpack.c.l.b16 %v5026
        %v5091 = vunpack.c.l.b16 %v5029
        %v5092 = vunpack.c.l.b16 %v5033
        %v5093 = vunpack.c.l.b16 %v5036
        %v5094 = vunpack.c.l.b16 %v5040
        %v5095 = vunpack.c.l.b16 %v5043
        %v5096 = vunpack.c.l.b16 %v5047
        %v5097 = vunpack.c.l.b16 %v5050
        %v5098 = vunpack.c.l.b16 %v5054
        %v5099 = vunpack.c.l.b16 %v5057
        %v5100 = vunpack.c.l.b16 %v5061
        %v5101 = vunpack.c.l.b16 %v5064
        %v5102 = vunpack.c.l.b16 %v5068
        %v5103 = vunpack.c.l.b16 %v5071
        %v5104 = vpack.c.b16 %v5073, %v5072
        %v5105 = vpack.c.b16 %v5075, %v5074
        %v5106 = vpack.c.b16 %v5077, %v5076
        %v5107 = vpack.c.b16 %v5079, %v5078
        %v5108 = vpack.c.b16 %v5081, %v5080
        %v5109 = vpack.c.b16 %v5083, %v5082
        %v5110 = vpack.c.b16 %v5085, %v5084
        %v5111 = vpack.c.b16 %v5087, %v5086
        %v5112 = vpack.c.b16 %v5089, %v5088
        %v5113 = vpack.c.b16 %v5091, %v5090
        %v5114 = vpack.c.b16 %v5093, %v5092
        %v5115 = vpack.c.b16 %v5095, %v5094
        %v5116 = vpack.c.b16 %v5097, %v5096
        %v5117 = vpack.c.b16 %v5099, %v5098
        %v5118 = vpack.c.b16 %v5101, %v5100
        %v5119 = vpack.c.b16 %v5103, %v5102
        %5120 = vrot.lane.b32.xlu0 %v5104, 8
        %v5121 = vpop.permute.xlu0 %5120
        %5122 = vrot.lane.b32.xlu0 %v5105, 8
        %v5123 = vpop.permute.xlu0 %5122
        %5124 = vrot.lane.b32.xlu0 %v5106, 8
        %v5125 = vpop.permute.xlu0 %5124
        %5126 = vrot.lane.b32.xlu0 %v5107, 8
        %v5127 = vpop.permute.xlu0 %5126
        %5128 = vrot.lane.b32.xlu0 %v5108, 8
        %v5129 = vpop.permute.xlu0 %5128
        %5130 = vrot.lane.b32.xlu0 %v5109, 8
        %v5131 = vpop.permute.xlu0 %5130
        %5132 = vrot.lane.b32.xlu0 %v5110, 8
        %v5133 = vpop.permute.xlu0 %5132
        %5134 = vrot.lane.b32.xlu0 %v5111, 8
        %v5135 = vpop.permute.xlu0 %5134
        %5136 = vrot.lane.b32.xlu0 %v5112, 8
        %v5137 = vpop.permute.xlu0 %5136
        %5138 = vrot.lane.b32.xlu0 %v5113, 8
        %v5139 = vpop.permute.xlu0 %5138
        %5140 = vrot.lane.b32.xlu0 %v5114, 8
        %v5141 = vpop.permute.xlu0 %5140
        %5142 = vrot.lane.b32.xlu0 %v5115, 8
        %v5143 = vpop.permute.xlu0 %5142
        %5144 = vrot.lane.b32.xlu0 %v5116, 8
        %v5145 = vpop.permute.xlu0 %5144
        %5146 = vrot.lane.b32.xlu0 %v5117, 8
        %v5147 = vpop.permute.xlu0 %5146
        %5148 = vrot.lane.b32.xlu0 %v5118, 8
        %v5149 = vpop.permute.xlu0 %5148
        %5150 = vrot.lane.b32.xlu0 %v5119, 8
        %v5151 = vpop.permute.xlu0 %5150
        %5168 = vst.msk [vmem:[#allocation3] sm:$0xff] %vm2149, %v5121
        %5169 = vst.msk [vmem:[#allocation3 + $0x8] sm:$0xff] %vm2149, %v5123
        %5170 = vst.msk [vmem:[#allocation3 + $0x10] sm:$0xff] %vm2149, %v5125
        %5171 = vst.msk [vmem:[#allocation3 + $0x18] sm:$0xff] %vm2149, %v5127
        %5172 = vst.msk [vmem:[#allocation3 + $0x20] sm:$0xff] %vm2149, %v5129
        %5173 = vst.msk [vmem:[#allocation3 + $0x28] sm:$0xff] %vm2149, %v5131
        %5174 = vst.msk [vmem:[#allocation3 + $0x30] sm:$0xff] %vm2149, %v5133
        %5175 = vst.msk [vmem:[#allocation3 + $0x38] sm:$0xff] %vm2149, %v5135
        %5176 = vst.msk [vmem:[#allocation3 + $0x40] sm:$0xff] %vm2149, %v5137
        %5177 = vst.msk [vmem:[#allocation3 + $0x48] sm:$0xff] %vm2149, %v5139
        %5178 = vst.msk [vmem:[#allocation3 + $0x50] sm:$0xff] %vm2149, %v5141
        %5179 = vst.msk [vmem:[#allocation3 + $0x58] sm:$0xff] %vm2149, %v5143
        %5180 = vst.msk [vmem:[#allocation3 + $0x60] sm:$0xff] %vm2149, %v5145
        %5181 = vst.msk [vmem:[#allocation3 + $0x68] sm:$0xff] %vm2149, %v5147
        %5182 = vst.msk [vmem:[#allocation3 + $0x70] sm:$0xff] %vm2149, %v5149
        %5183 = vst.msk [vmem:[#allocation3 + $0x78] sm:$0xff] %vm2149, %v5151
        %v5184 = vld [vmem:[%s920] sm:$0x8]
        %v5185 = vld [vmem:[%s920 + $0x4] sm:$0xf]
        %v5186 = vld [vmem:[%s920 + $0x8] sm:$0x7]
        %v5187 = vld [vmem:[%s920 + $0x1c] sm:$0x8]
        %v5188 = vld [vmem:[%s920 + $0x20] sm:$0xf]
        %v5189 = vld [vmem:[%s920 + $0x24] sm:$0x7]
        %v5190 = vld [vmem:[%s920 + $0x38] sm:$0x8]
        %v5191 = vld [vmem:[%s920 + $0x3c] sm:$0xf]
        %v5192 = vld [vmem:[%s920 + $0x40] sm:$0x7]
        %v5193 = vld [vmem:[%s920 + $0x54] sm:$0x8]
        %v5194 = vld [vmem:[%s920 + $0x58] sm:$0xf]
        %v5195 = vld [vmem:[%s920 + $0x5c] sm:$0x7]
        %v5196 = vld [vmem:[%s920 + $0x70] sm:$0x8]
        %v5197 = vld [vmem:[%s920 + $0x74] sm:$0xf]
        %v5198 = vld [vmem:[%s920 + $0x78] sm:$0x7]
        %v5199 = vld [vmem:[%s920 + $0x8c] sm:$0x8]
        %v5200 = vld [vmem:[%s920 + $0x90] sm:$0xf]
        %v5201 = vld [vmem:[%s920 + $0x94] sm:$0x7]
        %v5202 = vld [vmem:[%s920 + $0xa8] sm:$0x8]
        %v5203 = vld [vmem:[%s920 + $0xac] sm:$0xf]
        %v5204 = vld [vmem:[%s920 + $0xb0] sm:$0x7]
        %v5205 = vld [vmem:[%s920 + $0xc4] sm:$0x8]
        %v5206 = vld [vmem:[%s920 + $0xc8] sm:$0xf]
        %v5207 = vld [vmem:[%s920 + $0xcc] sm:$0x7]
        %v5208 = vld [vmem:[%s920 + $0xe0] sm:$0x8]
        %v5209 = vld [vmem:[%s920 + $0xe4] sm:$0xf]
        %v5210 = vld [vmem:[%s920 + $0xe8] sm:$0x7]
        %v5211 = vld [vmem:[%s920 + $0xfc] sm:$0x8]
        %v5212 = vld [vmem:[%s920 + $0x100] sm:$0xf]
        %v5213 = vld [vmem:[%s920 + $0x104] sm:$0x7]
        %v5214 = vld [vmem:[%s920 + $0x118] sm:$0x8]
        %v5215 = vld [vmem:[%s920 + $0x11c] sm:$0xf]
        %v5216 = vld [vmem:[%s920 + $0x120] sm:$0x7]
        %v5217 = vld [vmem:[%s920 + $0x134] sm:$0x8]
        %v5218 = vld [vmem:[%s920 + $0x138] sm:$0xf]
        %v5219 = vld [vmem:[%s920 + $0x13c] sm:$0x7]
        %v5220 = vld [vmem:[%s920 + $0x150] sm:$0x8]
        %v5221 = vld [vmem:[%s920 + $0x154] sm:$0xf]
        %v5222 = vld [vmem:[%s920 + $0x158] sm:$0x7]
        %v5223 = vld [vmem:[%s920 + $0x16c] sm:$0x8]
        %v5224 = vld [vmem:[%s920 + $0x170] sm:$0xf]
        %v5225 = vld [vmem:[%s920 + $0x174] sm:$0x7]
        %v5226 = vld [vmem:[%s920 + $0x188] sm:$0x8]
        %v5227 = vld [vmem:[%s920 + $0x18c] sm:$0xf]
        %v5228 = vld [vmem:[%s920 + $0x190] sm:$0x7]
        %v5229 = vld [vmem:[%s920 + $0x1a4] sm:$0x8]
        %v5230 = vld [vmem:[%s920 + $0x1a8] sm:$0xf]
        %v5231 = vld [vmem:[%s920 + $0x1ac] sm:$0x7]
        %v5280 = vrot.slane %v5184, 7
        %v5281 = vrot.slane %v5280, 4
        %v5282 = vrot.slane %v5185, 7
        %v5283 = vsel %vm791, %v5281, %v5282
        %v5284 = vrot.slane %v5282, 4
        %v5285 = vrot.slane %v5186, 7
        %v5286 = vsel %vm791, %v5284, %v5285
        %v5287 = vrot.slane %v5187, 7
        %v5288 = vrot.slane %v5287, 4
        %v5289 = vrot.slane %v5188, 7
        %v5290 = vsel %vm791, %v5288, %v5289
        %v5291 = vrot.slane %v5289, 4
        %v5292 = vrot.slane %v5189, 7
        %v5293 = vsel %vm791, %v5291, %v5292
        %v5294 = vrot.slane %v5190, 7
        %v5295 = vrot.slane %v5294, 4
        %v5296 = vrot.slane %v5191, 7
        %v5297 = vsel %vm791, %v5295, %v5296
        %v5298 = vrot.slane %v5296, 4
        %v5299 = vrot.slane %v5192, 7
        %v5300 = vsel %vm791, %v5298, %v5299
        %v5301 = vrot.slane %v5193, 7
        %v5302 = vrot.slane %v5301, 4
        %v5303 = vrot.slane %v5194, 7
        %v5304 = vsel %vm791, %v5302, %v5303
        %v5305 = vrot.slane %v5303, 4
        %v5306 = vrot.slane %v5195, 7
        %v5307 = vsel %vm791, %v5305, %v5306
        %v5308 = vrot.slane %v5196, 7
        %v5309 = vrot.slane %v5308, 4
        %v5310 = vrot.slane %v5197, 7
        %v5311 = vsel %vm791, %v5309, %v5310
        %v5312 = vrot.slane %v5310, 4
        %v5313 = vrot.slane %v5198, 7
        %v5314 = vsel %vm791, %v5312, %v5313
        %v5315 = vrot.slane %v5199, 7
        %v5316 = vrot.slane %v5315, 4
        %v5317 = vrot.slane %v5200, 7
        %v5318 = vsel %vm791, %v5316, %v5317
        %v5319 = vrot.slane %v5317, 4
        %v5320 = vrot.slane %v5201, 7
        %v5321 = vsel %vm791, %v5319, %v5320
        %v5322 = vrot.slane %v5202, 7
        %v5323 = vrot.slane %v5322, 4
        %v5324 = vrot.slane %v5203, 7
        %v5325 = vsel %vm791, %v5323, %v5324
        %v5326 = vrot.slane %v5324, 4
        %v5327 = vrot.slane %v5204, 7
        %v5328 = vsel %vm791, %v5326, %v5327
        %v5329 = vrot.slane %v5205, 7
        %v5330 = vrot.slane %v5329, 4
        %v5331 = vrot.slane %v5206, 7
        %v5332 = vsel %vm791, %v5330, %v5331
        %v5333 = vrot.slane %v5331, 4
        %v5334 = vrot.slane %v5207, 7
        %v5335 = vsel %vm791, %v5333, %v5334
        %v5336 = vrot.slane %v5208, 7
        %v5337 = vrot.slane %v5336, 4
        %v5338 = vrot.slane %v5209, 7
        %v5339 = vsel %vm791, %v5337, %v5338
        %v5340 = vrot.slane %v5338, 4
        %v5341 = vrot.slane %v5210, 7
        %v5342 = vsel %vm791, %v5340, %v5341
        %v5343 = vrot.slane %v5211, 7
        %v5344 = vrot.slane %v5343, 4
        %v5345 = vrot.slane %v5212, 7
        %v5346 = vsel %vm791, %v5344, %v5345
        %v5347 = vrot.slane %v5345, 4
        %v5348 = vrot.slane %v5213, 7
        %v5349 = vsel %vm791, %v5347, %v5348
        %v5350 = vrot.slane %v5214, 7
        %v5351 = vrot.slane %v5350, 4
        %v5352 = vrot.slane %v5215, 7
        %v5353 = vsel %vm791, %v5351, %v5352
        %v5354 = vrot.slane %v5352, 4
        %v5355 = vrot.slane %v5216, 7
        %v5356 = vsel %vm791, %v5354, %v5355
        %v5357 = vrot.slane %v5217, 7
        %v5358 = vrot.slane %v5357, 4
        %v5359 = vrot.slane %v5218, 7
        %v5360 = vsel %vm791, %v5358, %v5359
        %v5361 = vrot.slane %v5359, 4
        %v5362 = vrot.slane %v5219, 7
        %v5363 = vsel %vm791, %v5361, %v5362
        %v5364 = vrot.slane %v5220, 7
        %v5365 = vrot.slane %v5364, 4
        %v5366 = vrot.slane %v5221, 7
        %v5367 = vsel %vm791, %v5365, %v5366
        %v5368 = vrot.slane %v5366, 4
        %v5369 = vrot.slane %v5222, 7
        %v5370 = vsel %vm791, %v5368, %v5369
        %v5371 = vrot.slane %v5223, 7
        %v5372 = vrot.slane %v5371, 4
        %v5373 = vrot.slane %v5224, 7
        %v5374 = vsel %vm791, %v5372, %v5373
        %v5375 = vrot.slane %v5373, 4
        %v5376 = vrot.slane %v5225, 7
        %v5377 = vsel %vm791, %v5375, %v5376
        %v5378 = vrot.slane %v5226, 7
        %v5379 = vrot.slane %v5378, 4
        %v5380 = vrot.slane %v5227, 7
        %v5381 = vsel %vm791, %v5379, %v5380
        %v5382 = vrot.slane %v5380, 4
        %v5383 = vrot.slane %v5228, 7
        %v5384 = vsel %vm791, %v5382, %v5383
        %v5385 = vrot.slane %v5229, 7
        %v5386 = vrot.slane %v5385, 4
        %v5387 = vrot.slane %v5230, 7
        %v5388 = vsel %vm791, %v5386, %v5387
        %v5389 = vrot.slane %v5387, 4
        %v5390 = vrot.slane %v5231, 7
        %v5391 = vsel %vm791, %v5389, %v5390
        %v5392 = vunpack.c.l.b16 %v5283
        %v5393 = vunpack.c.l.b16 %v5286
        %v5394 = vunpack.c.l.b16 %v5290
        %v5395 = vunpack.c.l.b16 %v5293
        %v5396 = vunpack.c.l.b16 %v5297
        %v5397 = vunpack.c.l.b16 %v5300
        %v5398 = vunpack.c.l.b16 %v5304
        %v5399 = vunpack.c.l.b16 %v5307
        %v5400 = vunpack.c.l.b16 %v5311
        %v5401 = vunpack.c.l.b16 %v5314
        %v5402 = vunpack.c.l.b16 %v5318
        %v5403 = vunpack.c.l.b16 %v5321
        %v5404 = vunpack.c.l.b16 %v5325
        %v5405 = vunpack.c.l.b16 %v5328
        %v5406 = vunpack.c.l.b16 %v5332
        %v5407 = vunpack.c.l.b16 %v5335
        %v5408 = vunpack.c.l.b16 %v5339
        %v5409 = vunpack.c.l.b16 %v5342
        %v5410 = vunpack.c.l.b16 %v5346
        %v5411 = vunpack.c.l.b16 %v5349
        %v5412 = vunpack.c.l.b16 %v5353
        %v5413 = vunpack.c.l.b16 %v5356
        %v5414 = vunpack.c.l.b16 %v5360
        %v5415 = vunpack.c.l.b16 %v5363
        %v5416 = vunpack.c.l.b16 %v5367
        %v5417 = vunpack.c.l.b16 %v5370
        %v5418 = vunpack.c.l.b16 %v5374
        %v5419 = vunpack.c.l.b16 %v5377
        %v5420 = vunpack.c.l.b16 %v5381
        %v5421 = vunpack.c.l.b16 %v5384
        %v5422 = vunpack.c.l.b16 %v5388
        %v5423 = vunpack.c.l.b16 %v5391
        %v5424 = vpack.c.b16 %v5393, %v5392
        %v5425 = vpack.c.b16 %v5395, %v5394
        %v5426 = vpack.c.b16 %v5397, %v5396
        %v5427 = vpack.c.b16 %v5399, %v5398
        %v5428 = vpack.c.b16 %v5401, %v5400
        %v5429 = vpack.c.b16 %v5403, %v5402
        %v5430 = vpack.c.b16 %v5405, %v5404
        %v5431 = vpack.c.b16 %v5407, %v5406
        %v5432 = vpack.c.b16 %v5409, %v5408
        %v5433 = vpack.c.b16 %v5411, %v5410
        %v5434 = vpack.c.b16 %v5413, %v5412
        %v5435 = vpack.c.b16 %v5415, %v5414
        %v5436 = vpack.c.b16 %v5417, %v5416
        %v5437 = vpack.c.b16 %v5419, %v5418
        %v5438 = vpack.c.b16 %v5421, %v5420
        %v5439 = vpack.c.b16 %v5423, %v5422
        %5440 = vrot.lane.b32.xlu0 %v5424, 12
        %v5441 = vpop.permute.xlu0 %5440
        %5442 = vrot.lane.b32.xlu0 %v5425, 12
        %v5443 = vpop.permute.xlu0 %5442
        %5444 = vrot.lane.b32.xlu0 %v5426, 12
        %v5445 = vpop.permute.xlu0 %5444
        %5446 = vrot.lane.b32.xlu0 %v5427, 12
        %v5447 = vpop.permute.xlu0 %5446
        %5448 = vrot.lane.b32.xlu0 %v5428, 12
        %v5449 = vpop.permute.xlu0 %5448
        %5450 = vrot.lane.b32.xlu0 %v5429, 12
        %v5451 = vpop.permute.xlu0 %5450
        %5452 = vrot.lane.b32.xlu0 %v5430, 12
        %v5453 = vpop.permute.xlu0 %5452
        %5454 = vrot.lane.b32.xlu0 %v5431, 12
        %v5455 = vpop.permute.xlu0 %5454
        %5456 = vrot.lane.b32.xlu0 %v5432, 12
        %v5457 = vpop.permute.xlu0 %5456
        %5458 = vrot.lane.b32.xlu0 %v5433, 12
        %v5459 = vpop.permute.xlu0 %5458
        %5460 = vrot.lane.b32.xlu0 %v5434, 12
        %v5461 = vpop.permute.xlu0 %5460
        %5462 = vrot.lane.b32.xlu0 %v5435, 12
        %v5463 = vpop.permute.xlu0 %5462
        %5464 = vrot.lane.b32.xlu0 %v5436, 12
        %v5465 = vpop.permute.xlu0 %5464
        %5466 = vrot.lane.b32.xlu0 %v5437, 12
        %v5467 = vpop.permute.xlu0 %5466
        %5468 = vrot.lane.b32.xlu0 %v5438, 12
        %v5469 = vpop.permute.xlu0 %5468
        %5470 = vrot.lane.b32.xlu0 %v5439, 12
        %v5471 = vpop.permute.xlu0 %5470
        %5488 = vst.msk [vmem:[#allocation3] sm:$0xff] %vm2470, %v5441
        %5489 = vst.msk [vmem:[#allocation3 + $0x8] sm:$0xff] %vm2470, %v5443
        %5490 = vst.msk [vmem:[#allocation3 + $0x10] sm:$0xff] %vm2470, %v5445
        %5491 = vst.msk [vmem:[#allocation3 + $0x18] sm:$0xff] %vm2470, %v5447
        %5492 = vst.msk [vmem:[#allocation3 + $0x20] sm:$0xff] %vm2470, %v5449
        %5493 = vst.msk [vmem:[#allocation3 + $0x28] sm:$0xff] %vm2470, %v5451
        %5494 = vst.msk [vmem:[#allocation3 + $0x30] sm:$0xff] %vm2470, %v5453
        %5495 = vst.msk [vmem:[#allocation3 + $0x38] sm:$0xff] %vm2470, %v5455
        %5496 = vst.msk [vmem:[#allocation3 + $0x40] sm:$0xff] %vm2470, %v5457
        %5497 = vst.msk [vmem:[#allocation3 + $0x48] sm:$0xff] %vm2470, %v5459
        %5498 = vst.msk [vmem:[#allocation3 + $0x50] sm:$0xff] %vm2470, %v5461
        %5499 = vst.msk [vmem:[#allocation3 + $0x58] sm:$0xff] %vm2470, %v5463
        %5500 = vst.msk [vmem:[#allocation3 + $0x60] sm:$0xff] %vm2470, %v5465
        %5501 = vst.msk [vmem:[#allocation3 + $0x68] sm:$0xff] %vm2470, %v5467
        %5502 = vst.msk [vmem:[#allocation3 + $0x70] sm:$0xff] %vm2470, %v5469
        %5503 = vst.msk [vmem:[#allocation3 + $0x78] sm:$0xff] %vm2470, %v5471
        %v5504 = vld [vmem:[%s920 + $0x8] sm:$0xe]
        %v5505 = vld [vmem:[%s920 + $0xc] sm:$0xf]
        %v5506 = vld [vmem:[%s920 + $0x10] sm:$0x1]
        %v5507 = vld [vmem:[%s920 + $0x24] sm:$0xe]
        %v5508 = vld [vmem:[%s920 + $0x28] sm:$0xf]
        %v5509 = vld [vmem:[%s920 + $0x2c] sm:$0x1]
        %v5510 = vld [vmem:[%s920 + $0x40] sm:$0xe]
        %v5511 = vld [vmem:[%s920 + $0x44] sm:$0xf]
        %v5512 = vld [vmem:[%s920 + $0x48] sm:$0x1]
        %v5513 = vld [vmem:[%s920 + $0x5c] sm:$0xe]
        %v5514 = vld [vmem:[%s920 + $0x60] sm:$0xf]
        %v5515 = vld [vmem:[%s920 + $0x64] sm:$0x1]
        %v5516 = vld [vmem:[%s920 + $0x78] sm:$0xe]
        %v5517 = vld [vmem:[%s920 + $0x7c] sm:$0xf]
        %v5518 = vld [vmem:[%s920 + $0x80] sm:$0x1]
        %v5519 = vld [vmem:[%s920 + $0x94] sm:$0xe]
        %v5520 = vld [vmem:[%s920 + $0x98] sm:$0xf]
        %v5521 = vld [vmem:[%s920 + $0x9c] sm:$0x1]
        %v5522 = vld [vmem:[%s920 + $0xb0] sm:$0xe]
        %v5523 = vld [vmem:[%s920 + $0xb4] sm:$0xf]
        %v5524 = vld [vmem:[%s920 + $0xb8] sm:$0x1]
        %v5525 = vld [vmem:[%s920 + $0xcc] sm:$0xe]
        %v5526 = vld [vmem:[%s920 + $0xd0] sm:$0xf]
        %v5527 = vld [vmem:[%s920 + $0xd4] sm:$0x1]
        %v5528 = vld [vmem:[%s920 + $0xe8] sm:$0xe]
        %v5529 = vld [vmem:[%s920 + $0xec] sm:$0xf]
        %v5530 = vld [vmem:[%s920 + $0xf0] sm:$0x1]
        %v5531 = vld [vmem:[%s920 + $0x104] sm:$0xe]
        %v5532 = vld [vmem:[%s920 + $0x108] sm:$0xf]
        %v5533 = vld [vmem:[%s920 + $0x10c] sm:$0x1]
        %v5534 = vld [vmem:[%s920 + $0x120] sm:$0xe]
        %v5535 = vld [vmem:[%s920 + $0x124] sm:$0xf]
        %v5536 = vld [vmem:[%s920 + $0x128] sm:$0x1]
        %v5537 = vld [vmem:[%s920 + $0x13c] sm:$0xe]
        %v5538 = vld [vmem:[%s920 + $0x140] sm:$0xf]
        %v5539 = vld [vmem:[%s920 + $0x144] sm:$0x1]
        %v5540 = vld [vmem:[%s920 + $0x158] sm:$0xe]
        %v5541 = vld [vmem:[%s920 + $0x15c] sm:$0xf]
        %v5542 = vld [vmem:[%s920 + $0x160] sm:$0x1]
        %v5543 = vld [vmem:[%s920 + $0x174] sm:$0xe]
        %v5544 = vld [vmem:[%s920 + $0x178] sm:$0xf]
        %v5545 = vld [vmem:[%s920 + $0x17c] sm:$0x1]
        %v5546 = vld [vmem:[%s920 + $0x190] sm:$0xe]
        %v5547 = vld [vmem:[%s920 + $0x194] sm:$0xf]
        %v5548 = vld [vmem:[%s920 + $0x198] sm:$0x1]
        %v5549 = vld [vmem:[%s920 + $0x1ac] sm:$0xe]
        %v5550 = vld [vmem:[%s920 + $0x1b0] sm:$0xf]
        %v5551 = vld [vmem:[%s920 + $0x1b4] sm:$0x1]
        %v5600 = vrot.slane %v5504, 5
        %v5601 = vrot.slane %v5600, 4
        %v5602 = vrot.slane %v5505, 5
        %v5603 = vsel %vm1763, %v5601, %v5602
        %v5604 = vrot.slane %v5602, 4
        %v5605 = vrot.slane %v5506, 5
        %v5606 = vsel %vm1763, %v5604, %v5605
        %v5607 = vrot.slane %v5507, 5
        %v5608 = vrot.slane %v5607, 4
        %v5609 = vrot.slane %v5508, 5
        %v5610 = vsel %vm1763, %v5608, %v5609
        %v5611 = vrot.slane %v5609, 4
        %v5612 = vrot.slane %v5509, 5
        %v5613 = vsel %vm1763, %v5611, %v5612
        %v5614 = vrot.slane %v5510, 5
        %v5615 = vrot.slane %v5614, 4
        %v5616 = vrot.slane %v5511, 5
        %v5617 = vsel %vm1763, %v5615, %v5616
        %v5618 = vrot.slane %v5616, 4
        %v5619 = vrot.slane %v5512, 5
        %v5620 = vsel %vm1763, %v5618, %v5619
        %v5621 = vrot.slane %v5513, 5
        %v5622 = vrot.slane %v5621, 4
        %v5623 = vrot.slane %v5514, 5
        %v5624 = vsel %vm1763, %v5622, %v5623
        %v5625 = vrot.slane %v5623, 4
        %v5626 = vrot.slane %v5515, 5
        %v5627 = vsel %vm1763, %v5625, %v5626
        %v5628 = vrot.slane %v5516, 5
        %v5629 = vrot.slane %v5628, 4
        %v5630 = vrot.slane %v5517, 5
        %v5631 = vsel %vm1763, %v5629, %v5630
        %v5632 = vrot.slane %v5630, 4
        %v5633 = vrot.slane %v5518, 5
        %v5634 = vsel %vm1763, %v5632, %v5633
        %v5635 = vrot.slane %v5519, 5
        %v5636 = vrot.slane %v5635, 4
        %v5637 = vrot.slane %v5520, 5
        %v5638 = vsel %vm1763, %v5636, %v5637
        %v5639 = vrot.slane %v5637, 4
        %v5640 = vrot.slane %v5521, 5
        %v5641 = vsel %vm1763, %v5639, %v5640
        %v5642 = vrot.slane %v5522, 5
        %v5643 = vrot.slane %v5642, 4
        %v5644 = vrot.slane %v5523, 5
        %v5645 = vsel %vm1763, %v5643, %v5644
        %v5646 = vrot.slane %v5644, 4
        %v5647 = vrot.slane %v5524, 5
        %v5648 = vsel %vm1763, %v5646, %v5647
        %v5649 = vrot.slane %v5525, 5
        %v5650 = vrot.slane %v5649, 4
        %v5651 = vrot.slane %v5526, 5
        %v5652 = vsel %vm1763, %v5650, %v5651
        %v5653 = vrot.slane %v5651, 4
        %v5654 = vrot.slane %v5527, 5
        %v5655 = vsel %vm1763, %v5653, %v5654
        %v5656 = vrot.slane %v5528, 5
        %v5657 = vrot.slane %v5656, 4
        %v5658 = vrot.slane %v5529, 5
        %v5659 = vsel %vm1763, %v5657, %v5658
        %v5660 = vrot.slane %v5658, 4
        %v5661 = vrot.slane %v5530, 5
        %v5662 = vsel %vm1763, %v5660, %v5661
        %v5663 = vrot.slane %v5531, 5
        %v5664 = vrot.slane %v5663, 4
        %v5665 = vrot.slane %v5532, 5
        %v5666 = vsel %vm1763, %v5664, %v5665
        %v5667 = vrot.slane %v5665, 4
        %v5668 = vrot.slane %v5533, 5
        %v5669 = vsel %vm1763, %v5667, %v5668
        %v5670 = vrot.slane %v5534, 5
        %v5671 = vrot.slane %v5670, 4
        %v5672 = vrot.slane %v5535, 5
        %v5673 = vsel %vm1763, %v5671, %v5672
        %v5674 = vrot.slane %v5672, 4
        %v5675 = vrot.slane %v5536, 5
        %v5676 = vsel %vm1763, %v5674, %v5675
        %v5677 = vrot.slane %v5537, 5
        %v5678 = vrot.slane %v5677, 4
        %v5679 = vrot.slane %v5538, 5
        %v5680 = vsel %vm1763, %v5678, %v5679
        %v5681 = vrot.slane %v5679, 4
        %v5682 = vrot.slane %v5539, 5
        %v5683 = vsel %vm1763, %v5681, %v5682
        %v5684 = vrot.slane %v5540, 5
        %v5685 = vrot.slane %v5684, 4
        %v5686 = vrot.slane %v5541, 5
        %v5687 = vsel %vm1763, %v5685, %v5686
        %v5688 = vrot.slane %v5686, 4
        %v5689 = vrot.slane %v5542, 5
        %v5690 = vsel %vm1763, %v5688, %v5689
        %v5691 = vrot.slane %v5543, 5
        %v5692 = vrot.slane %v5691, 4
        %v5693 = vrot.slane %v5544, 5
        %v5694 = vsel %vm1763, %v5692, %v5693
        %v5695 = vrot.slane %v5693, 4
        %v5696 = vrot.slane %v5545, 5
        %v5697 = vsel %vm1763, %v5695, %v5696
        %v5698 = vrot.slane %v5546, 5
        %v5699 = vrot.slane %v5698, 4
        %v5700 = vrot.slane %v5547, 5
        %v5701 = vsel %vm1763, %v5699, %v5700
        %v5702 = vrot.slane %v5700, 4
        %v5703 = vrot.slane %v5548, 5
        %v5704 = vsel %vm1763, %v5702, %v5703
        %v5705 = vrot.slane %v5549, 5
        %v5706 = vrot.slane %v5705, 4
        %v5707 = vrot.slane %v5550, 5
        %v5708 = vsel %vm1763, %v5706, %v5707
        %v5709 = vrot.slane %v5707, 4
        %v5710 = vrot.slane %v5551, 5
        %v5711 = vsel %vm1763, %v5709, %v5710
        %v5712 = vunpack.c.l.b16 %v5603
        %v5713 = vunpack.c.l.b16 %v5606
        %v5714 = vunpack.c.l.b16 %v5610
        %v5715 = vunpack.c.l.b16 %v5613
        %v5716 = vunpack.c.l.b16 %v5617
        %v5717 = vunpack.c.l.b16 %v5620
        %v5718 = vunpack.c.l.b16 %v5624
        %v5719 = vunpack.c.l.b16 %v5627
        %v5720 = vunpack.c.l.b16 %v5631
        %v5721 = vunpack.c.l.b16 %v5634
        %v5722 = vunpack.c.l.b16 %v5638
        %v5723 = vunpack.c.l.b16 %v5641
        %v5724 = vunpack.c.l.b16 %v5645
        %v5725 = vunpack.c.l.b16 %v5648
        %v5726 = vunpack.c.l.b16 %v5652
        %v5727 = vunpack.c.l.b16 %v5655
        %v5728 = vunpack.c.l.b16 %v5659
        %v5729 = vunpack.c.l.b16 %v5662
        %v5730 = vunpack.c.l.b16 %v5666
        %v5731 = vunpack.c.l.b16 %v5669
        %v5732 = vunpack.c.l.b16 %v5673
        %v5733 = vunpack.c.l.b16 %v5676
        %v5734 = vunpack.c.l.b16 %v5680
        %v5735 = vunpack.c.l.b16 %v5683
        %v5736 = vunpack.c.l.b16 %v5687
        %v5737 = vunpack.c.l.b16 %v5690
        %v5738 = vunpack.c.l.b16 %v5694
        %v5739 = vunpack.c.l.b16 %v5697
        %v5740 = vunpack.c.l.b16 %v5701
        %v5741 = vunpack.c.l.b16 %v5704
        %v5742 = vunpack.c.l.b16 %v5708
        %v5743 = vunpack.c.l.b16 %v5711
        %v5744 = vpack.c.b16 %v5713, %v5712
        %v5745 = vpack.c.b16 %v5715, %v5714
        %v5746 = vpack.c.b16 %v5717, %v5716
        %v5747 = vpack.c.b16 %v5719, %v5718
        %v5748 = vpack.c.b16 %v5721, %v5720
        %v5749 = vpack.c.b16 %v5723, %v5722
        %v5750 = vpack.c.b16 %v5725, %v5724
        %v5751 = vpack.c.b16 %v5727, %v5726
        %v5752 = vpack.c.b16 %v5729, %v5728
        %v5753 = vpack.c.b16 %v5731, %v5730
        %v5754 = vpack.c.b16 %v5733, %v5732
        %v5755 = vpack.c.b16 %v5735, %v5734
        %v5756 = vpack.c.b16 %v5737, %v5736
        %v5757 = vpack.c.b16 %v5739, %v5738
        %v5758 = vpack.c.b16 %v5741, %v5740
        %v5759 = vpack.c.b16 %v5743, %v5742
        %5760 = vrot.lane.b32.xlu0 %v5744, 16
        %v5761 = vpop.permute.xlu0 %5760
        %5762 = vrot.lane.b32.xlu0 %v5745, 16
        %v5763 = vpop.permute.xlu0 %5762
        %5764 = vrot.lane.b32.xlu0 %v5746, 16
        %v5765 = vpop.permute.xlu0 %5764
        %5766 = vrot.lane.b32.xlu0 %v5747, 16
        %v5767 = vpop.permute.xlu0 %5766
        %5768 = vrot.lane.b32.xlu0 %v5748, 16
        %v5769 = vpop.permute.xlu0 %5768
        %5770 = vrot.lane.b32.xlu0 %v5749, 16
        %v5771 = vpop.permute.xlu0 %5770
        %5772 = vrot.lane.b32.xlu0 %v5750, 16
        %v5773 = vpop.permute.xlu0 %5772
        %5774 = vrot.lane.b32.xlu0 %v5751, 16
        %v5775 = vpop.permute.xlu0 %5774
        %5776 = vrot.lane.b32.xlu0 %v5752, 16
        %v5777 = vpop.permute.xlu0 %5776
        %5778 = vrot.lane.b32.xlu0 %v5753, 16
        %v5779 = vpop.permute.xlu0 %5778
        %5780 = vrot.lane.b32.xlu0 %v5754, 16
        %v5781 = vpop.permute.xlu0 %5780
        %5782 = vrot.lane.b32.xlu0 %v5755, 16
        %v5783 = vpop.permute.xlu0 %5782
        %5784 = vrot.lane.b32.xlu0 %v5756, 16
        %v5785 = vpop.permute.xlu0 %5784
        %5786 = vrot.lane.b32.xlu0 %v5757, 16
        %v5787 = vpop.permute.xlu0 %5786
        %5788 = vrot.lane.b32.xlu0 %v5758, 16
        %v5789 = vpop.permute.xlu0 %5788
        %5790 = vrot.lane.b32.xlu0 %v5759, 16
        %v5791 = vpop.permute.xlu0 %5790
        %5808 = vst.msk [vmem:[#allocation3] sm:$0xff] %vm2791, %v5761
        %5809 = vst.msk [vmem:[#allocation3 + $0x8] sm:$0xff] %vm2791, %v5763
        %5810 = vst.msk [vmem:[#allocation3 + $0x10] sm:$0xff] %vm2791, %v5765
        %5811 = vst.msk [vmem:[#allocation3 + $0x18] sm:$0xff] %vm2791, %v5767
        %5812 = vst.msk [vmem:[#allocation3 + $0x20] sm:$0xff] %vm2791, %v5769
        %5813 = vst.msk [vmem:[#allocation3 + $0x28] sm:$0xff] %vm2791, %v5771
        %5814 = vst.msk [vmem:[#allocation3 + $0x30] sm:$0xff] %vm2791, %v5773
        %5815 = vst.msk [vmem:[#allocation3 + $0x38] sm:$0xff] %vm2791, %v5775
        %5816 = vst.msk [vmem:[#allocation3 + $0x40] sm:$0xff] %vm2791, %v5777
        %5817 = vst.msk [vmem:[#allocation3 + $0x48] sm:$0xff] %vm2791, %v5779
        %5818 = vst.msk [vmem:[#allocation3 + $0x50] sm:$0xff] %vm2791, %v5781
        %5819 = vst.msk [vmem:[#allocation3 + $0x58] sm:$0xff] %vm2791, %v5783
        %5820 = vst.msk [vmem:[#allocation3 + $0x60] sm:$0xff] %vm2791, %v5785
        %5821 = vst.msk [vmem:[#allocation3 + $0x68] sm:$0xff] %vm2791, %v5787
        %5822 = vst.msk [vmem:[#allocation3 + $0x70] sm:$0xff] %vm2791, %v5789
        %5823 = vst.msk [vmem:[#allocation3 + $0x78] sm:$0xff] %vm2791, %v5791
        %v5824 = vld [vmem:[%s920 + $0xc] sm:$0x8]
        %v5825 = vld [vmem:[%s920 + $0x10] sm:$0xf]
        %v5826 = vld [vmem:[%s920 + $0x14] sm:$0x7]
        %v5827 = vld [vmem:[%s920 + $0x28] sm:$0x8]
        %v5828 = vld [vmem:[%s920 + $0x2c] sm:$0xf]
        %v5829 = vld [vmem:[%s920 + $0x30] sm:$0x7]
        %v5830 = vld [vmem:[%s920 + $0x44] sm:$0x8]
        %v5831 = vld [vmem:[%s920 + $0x48] sm:$0xf]
        %v5832 = vld [vmem:[%s920 + $0x4c] sm:$0x7]
        %v5833 = vld [vmem:[%s920 + $0x60] sm:$0x8]
        %v5834 = vld [vmem:[%s920 + $0x64] sm:$0xf]
        %v5835 = vld [vmem:[%s920 + $0x68] sm:$0x7]
        %v5836 = vld [vmem:[%s920 + $0x7c] sm:$0x8]
        %v5837 = vld [vmem:[%s920 + $0x80] sm:$0xf]
        %v5838 = vld [vmem:[%s920 + $0x84] sm:$0x7]
        %v5839 = vld [vmem:[%s920 + $0x98] sm:$0x8]
        %v5840 = vld [vmem:[%s920 + $0x9c] sm:$0xf]
        %v5841 = vld [vmem:[%s920 + $0xa0] sm:$0x7]
        %v5842 = vld [vmem:[%s920 + $0xb4] sm:$0x8]
        %v5843 = vld [vmem:[%s920 + $0xb8] sm:$0xf]
        %v5844 = vld [vmem:[%s920 + $0xbc] sm:$0x7]
        %v5845 = vld [vmem:[%s920 + $0xd0] sm:$0x8]
        %v5846 = vld [vmem:[%s920 + $0xd4] sm:$0xf]
        %v5847 = vld [vmem:[%s920 + $0xd8] sm:$0x7]
        %v5848 = vld [vmem:[%s920 + $0xec] sm:$0x8]
        %v5849 = vld [vmem:[%s920 + $0xf0] sm:$0xf]
        %v5850 = vld [vmem:[%s920 + $0xf4] sm:$0x7]
        %v5851 = vld [vmem:[%s920 + $0x108] sm:$0x8]
        %v5852 = vld [vmem:[%s920 + $0x10c] sm:$0xf]
        %v5853 = vld [vmem:[%s920 + $0x110] sm:$0x7]
        %v5854 = vld [vmem:[%s920 + $0x124] sm:$0x8]
        %v5855 = vld [vmem:[%s920 + $0x128] sm:$0xf]
        %v5856 = vld [vmem:[%s920 + $0x12c] sm:$0x7]
        %v5857 = vld [vmem:[%s920 + $0x140] sm:$0x8]
        %v5858 = vld [vmem:[%s920 + $0x144] sm:$0xf]
        %v5859 = vld [vmem:[%s920 + $0x148] sm:$0x7]
        %v5860 = vld [vmem:[%s920 + $0x15c] sm:$0x8]
        %v5861 = vld [vmem:[%s920 + $0x160] sm:$0xf]
        %v5862 = vld [vmem:[%s920 + $0x164] sm:$0x7]
        %v5863 = vld [vmem:[%s920 + $0x178] sm:$0x8]
        %v5864 = vld [vmem:[%s920 + $0x17c] sm:$0xf]
        %v5865 = vld [vmem:[%s920 + $0x180] sm:$0x7]
        %v5866 = vld [vmem:[%s920 + $0x194] sm:$0x8]
        %v5867 = vld [vmem:[%s920 + $0x198] sm:$0xf]
        %v5868 = vld [vmem:[%s920 + $0x19c] sm:$0x7]
        %v5869 = vld [vmem:[%s920 + $0x1b0] sm:$0x8]
        %v5870 = vld [vmem:[%s920 + $0x1b4] sm:$0xf]
        %v5871 = vld [vmem:[%s920 + $0x1b8] sm:$0x7]
        %v5920 = vrot.slane %v5824, 7
        %v5921 = vrot.slane %v5920, 4
        %v5922 = vrot.slane %v5825, 7
        %v5923 = vsel %vm791, %v5921, %v5922
        %v5924 = vrot.slane %v5922, 4
        %v5925 = vrot.slane %v5826, 7
        %v5926 = vsel %vm791, %v5924, %v5925
        %v5927 = vrot.slane %v5827, 7
        %v5928 = vrot.slane %v5927, 4
        %v5929 = vrot.slane %v5828, 7
        %v5930 = vsel %vm791, %v5928, %v5929
        %v5931 = vrot.slane %v5929, 4
        %v5932 = vrot.slane %v5829, 7
        %v5933 = vsel %vm791, %v5931, %v5932
        %v5934 = vrot.slane %v5830, 7
        %v5935 = vrot.slane %v5934, 4
        %v5936 = vrot.slane %v5831, 7
        %v5937 = vsel %vm791, %v5935, %v5936
        %v5938 = vrot.slane %v5936, 4
        %v5939 = vrot.slane %v5832, 7
        %v5940 = vsel %vm791, %v5938, %v5939
        %v5941 = vrot.slane %v5833, 7
        %v5942 = vrot.slane %v5941, 4
        %v5943 = vrot.slane %v5834, 7
        %v5944 = vsel %vm791, %v5942, %v5943
        %v5945 = vrot.slane %v5943, 4
        %v5946 = vrot.slane %v5835, 7
        %v5947 = vsel %vm791, %v5945, %v5946
        %v5948 = vrot.slane %v5836, 7
        %v5949 = vrot.slane %v5948, 4
        %v5950 = vrot.slane %v5837, 7
        %v5951 = vsel %vm791, %v5949, %v5950
        %v5952 = vrot.slane %v5950, 4
        %v5953 = vrot.slane %v5838, 7
        %v5954 = vsel %vm791, %v5952, %v5953
        %v5955 = vrot.slane %v5839, 7
        %v5956 = vrot.slane %v5955, 4
        %v5957 = vrot.slane %v5840, 7
        %v5958 = vsel %vm791, %v5956, %v5957
        %v5959 = vrot.slane %v5957, 4
        %v5960 = vrot.slane %v5841, 7
        %v5961 = vsel %vm791, %v5959, %v5960
        %v5962 = vrot.slane %v5842, 7
        %v5963 = vrot.slane %v5962, 4
        %v5964 = vrot.slane %v5843, 7
        %v5965 = vsel %vm791, %v5963, %v5964
        %v5966 = vrot.slane %v5964, 4
        %v5967 = vrot.slane %v5844, 7
        %v5968 = vsel %vm791, %v5966, %v5967
        %v5969 = vrot.slane %v5845, 7
        %v5970 = vrot.slane %v5969, 4
        %v5971 = vrot.slane %v5846, 7
        %v5972 = vsel %vm791, %v5970, %v5971
        %v5973 = vrot.slane %v5971, 4
        %v5974 = vrot.slane %v5847, 7
        %v5975 = vsel %vm791, %v5973, %v5974
        %v5976 = vrot.slane %v5848, 7
        %v5977 = vrot.slane %v5976, 4
        %v5978 = vrot.slane %v5849, 7
        %v5979 = vsel %vm791, %v5977, %v5978
        %v5980 = vrot.slane %v5978, 4
        %v5981 = vrot.slane %v5850, 7
        %v5982 = vsel %vm791, %v5980, %v5981
        %v5983 = vrot.slane %v5851, 7
        %v5984 = vrot.slane %v5983, 4
        %v5985 = vrot.slane %v5852, 7
        %v5986 = vsel %vm791, %v5984, %v5985
        %v5987 = vrot.slane %v5985, 4
        %v5988 = vrot.slane %v5853, 7
        %v5989 = vsel %vm791, %v5987, %v5988
        %v5990 = vrot.slane %v5854, 7
        %v5991 = vrot.slane %v5990, 4
        %v5992 = vrot.slane %v5855, 7
        %v5993 = vsel %vm791, %v5991, %v5992
        %v5994 = vrot.slane %v5992, 4
        %v5995 = vrot.slane %v5856, 7
        %v5996 = vsel %vm791, %v5994, %v5995
        %v5997 = vrot.slane %v5857, 7
        %v5998 = vrot.slane %v5997, 4
        %v5999 = vrot.slane %v5858, 7
        %v6000 = vsel %vm791, %v5998, %v5999
        %v6001 = vrot.slane %v5999, 4
        %v6002 = vrot.slane %v5859, 7
        %v6003 = vsel %vm791, %v6001, %v6002
        %v6004 = vrot.slane %v5860, 7
        %v6005 = vrot.slane %v6004, 4
        %v6006 = vrot.slane %v5861, 7
        %v6007 = vsel %vm791, %v6005, %v6006
        %v6008 = vrot.slane %v6006, 4
        %v6009 = vrot.slane %v5862, 7
        %v6010 = vsel %vm791, %v6008, %v6009
        %v6011 = vrot.slane %v5863, 7
        %v6012 = vrot.slane %v6011, 4
        %v6013 = vrot.slane %v5864, 7
        %v6014 = vsel %vm791, %v6012, %v6013
        %v6015 = vrot.slane %v6013, 4
        %v6016 = vrot.slane %v5865, 7
        %v6017 = vsel %vm791, %v6015, %v6016
        %v6018 = vrot.slane %v5866, 7
        %v6019 = vrot.slane %v6018, 4
        %v6020 = vrot.slane %v5867, 7
        %v6021 = vsel %vm791, %v6019, %v6020
        %v6022 = vrot.slane %v6020, 4
        %v6023 = vrot.slane %v5868, 7
        %v6024 = vsel %vm791, %v6022, %v6023
        %v6025 = vrot.slane %v5869, 7
        %v6026 = vrot.slane %v6025, 4
        %v6027 = vrot.slane %v5870, 7
        %v6028 = vsel %vm791, %v6026, %v6027
        %v6029 = vrot.slane %v6027, 4
        %v6030 = vrot.slane %v5871, 7
        %v6031 = vsel %vm791, %v6029, %v6030
        %v6032 = vunpack.c.l.b16 %v5923
        %v6033 = vunpack.c.l.b16 %v5926
        %v6034 = vunpack.c.l.b16 %v5930
        %v6035 = vunpack.c.l.b16 %v5933
        %v6036 = vunpack.c.l.b16 %v5937
        %v6037 = vunpack.c.l.b16 %v5940
        %v6038 = vunpack.c.l.b16 %v5944
        %v6039 = vunpack.c.l.b16 %v5947
        %v6040 = vunpack.c.l.b16 %v5951
        %v6041 = vunpack.c.l.b16 %v5954
        %v6042 = vunpack.c.l.b16 %v5958
        %v6043 = vunpack.c.l.b16 %v5961
        %v6044 = vunpack.c.l.b16 %v5965
        %v6045 = vunpack.c.l.b16 %v5968
        %v6046 = vunpack.c.l.b16 %v5972
        %v6047 = vunpack.c.l.b16 %v5975
        %v6048 = vunpack.c.l.b16 %v5979
        %v6049 = vunpack.c.l.b16 %v5982
        %v6050 = vunpack.c.l.b16 %v5986
        %v6051 = vunpack.c.l.b16 %v5989
        %v6052 = vunpack.c.l.b16 %v5993
        %v6053 = vunpack.c.l.b16 %v5996
        %v6054 = vunpack.c.l.b16 %v6000
        %v6055 = vunpack.c.l.b16 %v6003
        %v6056 = vunpack.c.l.b16 %v6007
        %v6057 = vunpack.c.l.b16 %v6010
        %v6058 = vunpack.c.l.b16 %v6014
        %v6059 = vunpack.c.l.b16 %v6017
        %v6060 = vunpack.c.l.b16 %v6021
        %v6061 = vunpack.c.l.b16 %v6024
        %v6062 = vunpack.c.l.b16 %v6028
        %v6063 = vunpack.c.l.b16 %v6031
        %v6064 = vpack.c.b16 %v6033, %v6032
        %v6065 = vpack.c.b16 %v6035, %v6034
        %v6066 = vpack.c.b16 %v6037, %v6036
        %v6067 = vpack.c.b16 %v6039, %v6038
        %v6068 = vpack.c.b16 %v6041, %v6040
        %v6069 = vpack.c.b16 %v6043, %v6042
        %v6070 = vpack.c.b16 %v6045, %v6044
        %v6071 = vpack.c.b16 %v6047, %v6046
        %v6072 = vpack.c.b16 %v6049, %v6048
        %v6073 = vpack.c.b16 %v6051, %v6050
        %v6074 = vpack.c.b16 %v6053, %v6052
        %v6075 = vpack.c.b16 %v6055, %v6054
        %v6076 = vpack.c.b16 %v6057, %v6056
        %v6077 = vpack.c.b16 %v6059, %v6058
        %v6078 = vpack.c.b16 %v6061, %v6060
        %v6079 = vpack.c.b16 %v6063, %v6062
        %6080 = vrot.lane.b32.xlu0 %v6064, 20
        %v6081 = vpop.permute.xlu0 %6080
        %6082 = vrot.lane.b32.xlu0 %v6065, 20
        %v6083 = vpop.permute.xlu0 %6082
        %6084 = vrot.lane.b32.xlu0 %v6066, 20
        %v6085 = vpop.permute.xlu0 %6084
        %6086 = vrot.lane.b32.xlu0 %v6067, 20
        %v6087 = vpop.permute.xlu0 %6086
        %6088 = vrot.lane.b32.xlu0 %v6068, 20
        %v6089 = vpop.permute.xlu0 %6088
        %6090 = vrot.lane.b32.xlu0 %v6069, 20
        %v6091 = vpop.permute.xlu0 %6090
        %6092 = vrot.lane.b32.xlu0 %v6070, 20
        %v6093 = vpop.permute.xlu0 %6092
        %6094 = vrot.lane.b32.xlu0 %v6071, 20
        %v6095 = vpop.permute.xlu0 %6094
        %6096 = vrot.lane.b32.xlu0 %v6072, 20
        %v6097 = vpop.permute.xlu0 %6096
        %6098 = vrot.lane.b32.xlu0 %v6073, 20
        %v6099 = vpop.permute.xlu0 %6098
        %6100 = vrot.lane.b32.xlu0 %v6074, 20
        %v6101 = vpop.permute.xlu0 %6100
        %6102 = vrot.lane.b32.xlu0 %v6075, 20
        %v6103 = vpop.permute.xlu0 %6102
        %6104 = vrot.lane.b32.xlu0 %v6076, 20
        %v6105 = vpop.permute.xlu0 %6104
        %6106 = vrot.lane.b32.xlu0 %v6077, 20
        %v6107 = vpop.permute.xlu0 %6106
        %6108 = vrot.lane.b32.xlu0 %v6078, 20
        %v6109 = vpop.permute.xlu0 %6108
        %6110 = vrot.lane.b32.xlu0 %v6079, 20
        %v6111 = vpop.permute.xlu0 %6110
        %6128 = vst.msk [vmem:[#allocation3] sm:$0xff] %vm2968, %v6081
        %6129 = vst.msk [vmem:[#allocation3 + $0x8] sm:$0xff] %vm2968, %v6083
        %6130 = vst.msk [vmem:[#allocation3 + $0x10] sm:$0xff] %vm2968, %v6085
        %6131 = vst.msk [vmem:[#allocation3 + $0x18] sm:$0xff] %vm2968, %v6087
        %6132 = vst.msk [vmem:[#allocation3 + $0x20] sm:$0xff] %vm2968, %v6089
        %6133 = vst.msk [vmem:[#allocation3 + $0x28] sm:$0xff] %vm2968, %v6091
        %6134 = vst.msk [vmem:[#allocation3 + $0x30] sm:$0xff] %vm2968, %v6093
        %6135 = vst.msk [vmem:[#allocation3 + $0x38] sm:$0xff] %vm2968, %v6095
        %6136 = vst.msk [vmem:[#allocation3 + $0x40] sm:$0xff] %vm2968, %v6097
        %6137 = vst.msk [vmem:[#allocation3 + $0x48] sm:$0xff] %vm2968, %v6099
        %6138 = vst.msk [vmem:[#allocation3 + $0x50] sm:$0xff] %vm2968, %v6101
        %6139 = vst.msk [vmem:[#allocation3 + $0x58] sm:$0xff] %vm2968, %v6103
        %6140 = vst.msk [vmem:[#allocation3 + $0x60] sm:$0xff] %vm2968, %v6105
        %6141 = vst.msk [vmem:[#allocation3 + $0x68] sm:$0xff] %vm2968, %v6107
        %6142 = vst.msk [vmem:[#allocation3 + $0x70] sm:$0xff] %vm2968, %v6109
        %6143 = vst.msk [vmem:[#allocation3 + $0x78] sm:$0xff] %vm2968, %v6111
        %s6144 = scalar_lea.vmem [#allocation2], 840
        %v6145 = vld [vmem:[%s6144] sm:$0x8]
        %v6146 = vld [vmem:[%s6144 + $0x4] sm:$0xf]
        %v6147 = vld [vmem:[%s6144 + $0x8] sm:$0x7]
        %v6148 = vld [vmem:[%s6144 + $0x1c] sm:$0x8]
        %v6149 = vld [vmem:[%s6144 + $0x20] sm:$0xf]
        %v6150 = vld [vmem:[%s6144 + $0x24] sm:$0x7]
        %v6151 = vld [vmem:[%s6144 + $0x38] sm:$0x8]
        %v6152 = vld [vmem:[%s6144 + $0x3c] sm:$0xf]
        %v6153 = vld [vmem:[%s6144 + $0x40] sm:$0x7]
        %v6154 = vld [vmem:[%s6144 + $0x54] sm:$0x8]
        %v6155 = vld [vmem:[%s6144 + $0x58] sm:$0xf]
        %v6156 = vld [vmem:[%s6144 + $0x5c] sm:$0x7]
        %v6157 = vld [vmem:[%s6144 + $0x70] sm:$0x8]
        %v6158 = vld [vmem:[%s6144 + $0x74] sm:$0xf]
        %v6159 = vld [vmem:[%s6144 + $0x78] sm:$0x7]
        %v6160 = vld [vmem:[%s6144 + $0x8c] sm:$0x8]
        %v6161 = vld [vmem:[%s6144 + $0x90] sm:$0xf]
        %v6162 = vld [vmem:[%s6144 + $0x94] sm:$0x7]
        %v6163 = vld [vmem:[%s6144 + $0xa8] sm:$0x8]
        %v6164 = vld [vmem:[%s6144 + $0xac] sm:$0xf]
        %v6165 = vld [vmem:[%s6144 + $0xb0] sm:$0x7]
        %v6166 = vld [vmem:[%s6144 + $0xc4] sm:$0x8]
        %v6167 = vld [vmem:[%s6144 + $0xc8] sm:$0xf]
        %v6168 = vld [vmem:[%s6144 + $0xcc] sm:$0x7]
        %v6169 = vld [vmem:[%s6144 + $0xe0] sm:$0x8]
        %v6170 = vld [vmem:[%s6144 + $0xe4] sm:$0xf]
        %v6171 = vld [vmem:[%s6144 + $0xe8] sm:$0x7]
        %v6172 = vld [vmem:[%s6144 + $0xfc] sm:$0x8]
        %v6173 = vld [vmem:[%s6144 + $0x100] sm:$0xf]
        %v6174 = vld [vmem:[%s6144 + $0x104] sm:$0x7]
        %v6175 = vld [vmem:[%s6144 + $0x118] sm:$0x8]
        %v6176 = vld [vmem:[%s6144 + $0x11c] sm:$0xf]
        %v6177 = vld [vmem:[%s6144 + $0x120] sm:$0x7]
        %v6178 = vld [vmem:[%s6144 + $0x134] sm:$0x8]
        %v6179 = vld [vmem:[%s6144 + $0x138] sm:$0xf]
        %v6180 = vld [vmem:[%s6144 + $0x13c] sm:$0x7]
        %v6181 = vld [vmem:[%s6144 + $0x150] sm:$0x8]
        %v6182 = vld [vmem:[%s6144 + $0x154] sm:$0xf]
        %v6183 = vld [vmem:[%s6144 + $0x158] sm:$0x7]
        %v6184 = vld [vmem:[%s6144 + $0x16c] sm:$0x8]
        %v6185 = vld [vmem:[%s6144 + $0x170] sm:$0xf]
        %v6186 = vld [vmem:[%s6144 + $0x174] sm:$0x7]
        %v6187 = vld [vmem:[%s6144 + $0x188] sm:$0x8]
        %v6188 = vld [vmem:[%s6144 + $0x18c] sm:$0xf]
        %v6189 = vld [vmem:[%s6144 + $0x190] sm:$0x7]
        %v6190 = vld [vmem:[%s6144 + $0x1a4] sm:$0x8]
        %v6191 = vld [vmem:[%s6144 + $0x1a8] sm:$0xf]
        %v6192 = vld [vmem:[%s6144 + $0x1ac] sm:$0x7]
        %v6241 = vrot.slane %v6145, 7
        %v6242 = vrot.slane %v6241, 4
        %v6243 = vrot.slane %v6146, 7
        %v6244 = vsel %vm791, %v6242, %v6243
        %v6245 = vrot.slane %v6243, 4
        %v6246 = vrot.slane %v6147, 7
        %v6247 = vsel %vm791, %v6245, %v6246
        %v6248 = vrot.slane %v6148, 7
        %v6249 = vrot.slane %v6248, 4
        %v6250 = vrot.slane %v6149, 7
        %v6251 = vsel %vm791, %v6249, %v6250
        %v6252 = vrot.slane %v6250, 4
        %v6253 = vrot.slane %v6150, 7
        %v6254 = vsel %vm791, %v6252, %v6253
        %v6255 = vrot.slane %v6151, 7
        %v6256 = vrot.slane %v6255, 4
        %v6257 = vrot.slane %v6152, 7
        %v6258 = vsel %vm791, %v6256, %v6257
        %v6259 = vrot.slane %v6257, 4
        %v6260 = vrot.slane %v6153, 7
        %v6261 = vsel %vm791, %v6259, %v6260
        %v6262 = vrot.slane %v6154, 7
        %v6263 = vrot.slane %v6262, 4
        %v6264 = vrot.slane %v6155, 7
        %v6265 = vsel %vm791, %v6263, %v6264
        %v6266 = vrot.slane %v6264, 4
        %v6267 = vrot.slane %v6156, 7
        %v6268 = vsel %vm791, %v6266, %v6267
        %v6269 = vrot.slane %v6157, 7
        %v6270 = vrot.slane %v6269, 4
        %v6271 = vrot.slane %v6158, 7
        %v6272 = vsel %vm791, %v6270, %v6271
        %v6273 = vrot.slane %v6271, 4
        %v6274 = vrot.slane %v6159, 7
        %v6275 = vsel %vm791, %v6273, %v6274
        %v6276 = vrot.slane %v6160, 7
        %v6277 = vrot.slane %v6276, 4
        %v6278 = vrot.slane %v6161, 7
        %v6279 = vsel %vm791, %v6277, %v6278
        %v6280 = vrot.slane %v6278, 4
        %v6281 = vrot.slane %v6162, 7
        %v6282 = vsel %vm791, %v6280, %v6281
        %v6283 = vrot.slane %v6163, 7
        %v6284 = vrot.slane %v6283, 4
        %v6285 = vrot.slane %v6164, 7
        %v6286 = vsel %vm791, %v6284, %v6285
        %v6287 = vrot.slane %v6285, 4
        %v6288 = vrot.slane %v6165, 7
        %v6289 = vsel %vm791, %v6287, %v6288
        %v6290 = vrot.slane %v6166, 7
        %v6291 = vrot.slane %v6290, 4
        %v6292 = vrot.slane %v6167, 7
        %v6293 = vsel %vm791, %v6291, %v6292
        %v6294 = vrot.slane %v6292, 4
        %v6295 = vrot.slane %v6168, 7
        %v6296 = vsel %vm791, %v6294, %v6295
        %v6297 = vrot.slane %v6169, 7
        %v6298 = vrot.slane %v6297, 4
        %v6299 = vrot.slane %v6170, 7
        %v6300 = vsel %vm791, %v6298, %v6299
        %v6301 = vrot.slane %v6299, 4
        %v6302 = vrot.slane %v6171, 7
        %v6303 = vsel %vm791, %v6301, %v6302
        %v6304 = vrot.slane %v6172, 7
        %v6305 = vrot.slane %v6304, 4
        %v6306 = vrot.slane %v6173, 7
        %v6307 = vsel %vm791, %v6305, %v6306
        %v6308 = vrot.slane %v6306, 4
        %v6309 = vrot.slane %v6174, 7
        %v6310 = vsel %vm791, %v6308, %v6309
        %v6311 = vrot.slane %v6175, 7
        %v6312 = vrot.slane %v6311, 4
        %v6313 = vrot.slane %v6176, 7
        %v6314 = vsel %vm791, %v6312, %v6313
        %v6315 = vrot.slane %v6313, 4
        %v6316 = vrot.slane %v6177, 7
        %v6317 = vsel %vm791, %v6315, %v6316
        %v6318 = vrot.slane %v6178, 7
        %v6319 = vrot.slane %v6318, 4
        %v6320 = vrot.slane %v6179, 7
        %v6321 = vsel %vm791, %v6319, %v6320
        %v6322 = vrot.slane %v6320, 4
        %v6323 = vrot.slane %v6180, 7
        %v6324 = vsel %vm791, %v6322, %v6323
        %v6325 = vrot.slane %v6181, 7
        %v6326 = vrot.slane %v6325, 4
        %v6327 = vrot.slane %v6182, 7
        %v6328 = vsel %vm791, %v6326, %v6327
        %v6329 = vrot.slane %v6327, 4
        %v6330 = vrot.slane %v6183, 7
        %v6331 = vsel %vm791, %v6329, %v6330
        %v6332 = vrot.slane %v6184, 7
        %v6333 = vrot.slane %v6332, 4
        %v6334 = vrot.slane %v6185, 7
        %v6335 = vsel %vm791, %v6333, %v6334
        %v6336 = vrot.slane %v6334, 4
        %v6337 = vrot.slane %v6186, 7
        %v6338 = vsel %vm791, %v6336, %v6337
        %v6339 = vrot.slane %v6187, 7
        %v6340 = vrot.slane %v6339, 4
        %v6341 = vrot.slane %v6188, 7
        %v6342 = vsel %vm791, %v6340, %v6341
        %v6343 = vrot.slane %v6341, 4
        %v6344 = vrot.slane %v6189, 7
        %v6345 = vsel %vm791, %v6343, %v6344
        %v6346 = vrot.slane %v6190, 7
        %v6347 = vrot.slane %v6346, 4
        %v6348 = vrot.slane %v6191, 7
        %v6349 = vsel %vm791, %v6347, %v6348
        %v6350 = vrot.slane %v6348, 4
        %v6351 = vrot.slane %v6192, 7
        %v6352 = vsel %vm791, %v6350, %v6351
        %v6353 = vunpack.c.l.b16 %v6244
        %v6354 = vunpack.c.l.b16 %v6247
        %v6355 = vunpack.c.l.b16 %v6251
        %v6356 = vunpack.c.l.b16 %v6254
        %v6357 = vunpack.c.l.b16 %v6258
        %v6358 = vunpack.c.l.b16 %v6261
        %v6359 = vunpack.c.l.b16 %v6265
        %v6360 = vunpack.c.l.b16 %v6268
        %v6361 = vunpack.c.l.b16 %v6272
        %v6362 = vunpack.c.l.b16 %v6275
        %v6363 = vunpack.c.l.b16 %v6279
        %v6364 = vunpack.c.l.b16 %v6282
        %v6365 = vunpack.c.l.b16 %v6286
        %v6366 = vunpack.c.l.b16 %v6289
        %v6367 = vunpack.c.l.b16 %v6293
        %v6368 = vunpack.c.l.b16 %v6296
        %v6369 = vunpack.c.l.b16 %v6300
        %v6370 = vunpack.c.l.b16 %v6303
        %v6371 = vunpack.c.l.b16 %v6307
        %v6372 = vunpack.c.l.b16 %v6310
        %v6373 = vunpack.c.l.b16 %v6314
        %v6374 = vunpack.c.l.b16 %v6317
        %v6375 = vunpack.c.l.b16 %v6321
        %v6376 = vunpack.c.l.b16 %v6324
        %v6377 = vunpack.c.l.b16 %v6328
        %v6378 = vunpack.c.l.b16 %v6331
        %v6379 = vunpack.c.l.b16 %v6335
        %v6380 = vunpack.c.l.b16 %v6338
        %v6381 = vunpack.c.l.b16 %v6342
        %v6382 = vunpack.c.l.b16 %v6345
        %v6383 = vunpack.c.l.b16 %v6349
        %v6384 = vunpack.c.l.b16 %v6352
        %v6385 = vpack.c.b16 %v6354, %v6353
        %v6386 = vpack.c.b16 %v6356, %v6355
        %v6387 = vpack.c.b16 %v6358, %v6357
        %v6388 = vpack.c.b16 %v6360, %v6359
        %v6389 = vpack.c.b16 %v6362, %v6361
        %v6390 = vpack.c.b16 %v6364, %v6363
        %v6391 = vpack.c.b16 %v6366, %v6365
        %v6392 = vpack.c.b16 %v6368, %v6367
        %v6393 = vpack.c.b16 %v6370, %v6369
        %v6394 = vpack.c.b16 %v6372, %v6371
        %v6395 = vpack.c.b16 %v6374, %v6373
        %v6396 = vpack.c.b16 %v6376, %v6375
        %v6397 = vpack.c.b16 %v6378, %v6377
        %v6398 = vpack.c.b16 %v6380, %v6379
        %v6399 = vpack.c.b16 %v6382, %v6381
        %v6400 = vpack.c.b16 %v6384, %v6383
        %6401 = vrot.lane.b32.xlu0 %v6385, 24
        %v6402 = vpop.permute.xlu0 %6401
        %6403 = vrot.lane.b32.xlu0 %v6386, 24
        %v6404 = vpop.permute.xlu0 %6403
        %6405 = vrot.lane.b32.xlu0 %v6387, 24
        %v6406 = vpop.permute.xlu0 %6405
        %6407 = vrot.lane.b32.xlu0 %v6388, 24
        %v6408 = vpop.permute.xlu0 %6407
        %6409 = vrot.lane.b32.xlu0 %v6389, 24
        %v6410 = vpop.permute.xlu0 %6409
        %6411 = vrot.lane.b32.xlu0 %v6390, 24
        %v6412 = vpop.permute.xlu0 %6411
        %6413 = vrot.lane.b32.xlu0 %v6391, 24
        %v6414 = vpop.permute.xlu0 %6413
        %6415 = vrot.lane.b32.xlu0 %v6392, 24
        %v6416 = vpop.permute.xlu0 %6415
        %6417 = vrot.lane.b32.xlu0 %v6393, 24
        %v6418 = vpop.permute.xlu0 %6417
        %6419 = vrot.lane.b32.xlu0 %v6394, 24
        %v6420 = vpop.permute.xlu0 %6419
        %6421 = vrot.lane.b32.xlu0 %v6395, 24
        %v6422 = vpop.permute.xlu0 %6421
        %6423 = vrot.lane.b32.xlu0 %v6396, 24
        %v6424 = vpop.permute.xlu0 %6423
        %6425 = vrot.lane.b32.xlu0 %v6397, 24
        %v6426 = vpop.permute.xlu0 %6425
        %6427 = vrot.lane.b32.xlu0 %v6398, 24
        %v6428 = vpop.permute.xlu0 %6427
        %6429 = vrot.lane.b32.xlu0 %v6399, 24
        %v6430 = vpop.permute.xlu0 %6429
        %6431 = vrot.lane.b32.xlu0 %v6400, 24
        %v6432 = vpop.permute.xlu0 %6431
        %6449 = vst.msk [vmem:[#allocation3] sm:$0xff] %vm3290, %v6402
        %6450 = vst.msk [vmem:[#allocation3 + $0x8] sm:$0xff] %vm3290, %v6404
        %6451 = vst.msk [vmem:[#allocation3 + $0x10] sm:$0xff] %vm3290, %v6406
        %6452 = vst.msk [vmem:[#allocation3 + $0x18] sm:$0xff] %vm3290, %v6408
        %6453 = vst.msk [vmem:[#allocation3 + $0x20] sm:$0xff] %vm3290, %v6410
        %6454 = vst.msk [vmem:[#allocation3 + $0x28] sm:$0xff] %vm3290, %v6412
        %6455 = vst.msk [vmem:[#allocation3 + $0x30] sm:$0xff] %vm3290, %v6414
        %6456 = vst.msk [vmem:[#allocation3 + $0x38] sm:$0xff] %vm3290, %v6416
        %6457 = vst.msk [vmem:[#allocation3 + $0x40] sm:$0xff] %vm3290, %v6418
        %6458 = vst.msk [vmem:[#allocation3 + $0x48] sm:$0xff] %vm3290, %v6420
        %6459 = vst.msk [vmem:[#allocation3 + $0x50] sm:$0xff] %vm3290, %v6422
        %6460 = vst.msk [vmem:[#allocation3 + $0x58] sm:$0xff] %vm3290, %v6424
        %6461 = vst.msk [vmem:[#allocation3 + $0x60] sm:$0xff] %vm3290, %v6426
        %6462 = vst.msk [vmem:[#allocation3 + $0x68] sm:$0xff] %vm3290, %v6428
        %6463 = vst.msk [vmem:[#allocation3 + $0x70] sm:$0xff] %vm3290, %v6430
        %6464 = vst.msk [vmem:[#allocation3 + $0x78] sm:$0xff] %vm3290, %v6432
        %v6465 = vld [vmem:[%s6144 + $0x8] sm:$0xe]
        %v6466 = vld [vmem:[%s6144 + $0xc] sm:$0xf]
        %v6467 = vld [vmem:[%s6144 + $0x10] sm:$0x1]
        %v6468 = vld [vmem:[%s6144 + $0x24] sm:$0xe]
        %v6469 = vld [vmem:[%s6144 + $0x28] sm:$0xf]
        %v6470 = vld [vmem:[%s6144 + $0x2c] sm:$0x1]
        %v6471 = vld [vmem:[%s6144 + $0x40] sm:$0xe]
        %v6472 = vld [vmem:[%s6144 + $0x44] sm:$0xf]
        %v6473 = vld [vmem:[%s6144 + $0x48] sm:$0x1]
        %v6474 = vld [vmem:[%s6144 + $0x5c] sm:$0xe]
        %v6475 = vld [vmem:[%s6144 + $0x60] sm:$0xf]
        %v6476 = vld [vmem:[%s6144 + $0x64] sm:$0x1]
        %v6477 = vld [vmem:[%s6144 + $0x78] sm:$0xe]
        %v6478 = vld [vmem:[%s6144 + $0x7c] sm:$0xf]
        %v6479 = vld [vmem:[%s6144 + $0x80] sm:$0x1]
        %v6480 = vld [vmem:[%s6144 + $0x94] sm:$0xe]
        %v6481 = vld [vmem:[%s6144 + $0x98] sm:$0xf]
        %v6482 = vld [vmem:[%s6144 + $0x9c] sm:$0x1]
        %v6483 = vld [vmem:[%s6144 + $0xb0] sm:$0xe]
        %v6484 = vld [vmem:[%s6144 + $0xb4] sm:$0xf]
        %v6485 = vld [vmem:[%s6144 + $0xb8] sm:$0x1]
        %v6486 = vld [vmem:[%s6144 + $0xcc] sm:$0xe]
        %v6487 = vld [vmem:[%s6144 + $0xd0] sm:$0xf]
        %v6488 = vld [vmem:[%s6144 + $0xd4] sm:$0x1]
        %v6489 = vld [vmem:[%s6144 + $0xe8] sm:$0xe]
        %v6490 = vld [vmem:[%s6144 + $0xec] sm:$0xf]
        %v6491 = vld [vmem:[%s6144 + $0xf0] sm:$0x1]
        %v6492 = vld [vmem:[%s6144 + $0x104] sm:$0xe]
        %v6493 = vld [vmem:[%s6144 + $0x108] sm:$0xf]
        %v6494 = vld [vmem:[%s6144 + $0x10c] sm:$0x1]
        %v6495 = vld [vmem:[%s6144 + $0x120] sm:$0xe]
        %v6496 = vld [vmem:[%s6144 + $0x124] sm:$0xf]
        %v6497 = vld [vmem:[%s6144 + $0x128] sm:$0x1]
        %v6498 = vld [vmem:[%s6144 + $0x13c] sm:$0xe]
        %v6499 = vld [vmem:[%s6144 + $0x140] sm:$0xf]
        %v6500 = vld [vmem:[%s6144 + $0x144] sm:$0x1]
        %v6501 = vld [vmem:[%s6144 + $0x158] sm:$0xe]
        %v6502 = vld [vmem:[%s6144 + $0x15c] sm:$0xf]
        %v6503 = vld [vmem:[%s6144 + $0x160] sm:$0x1]
        %v6504 = vld [vmem:[%s6144 + $0x174] sm:$0xe]
        %v6505 = vld [vmem:[%s6144 + $0x178] sm:$0xf]
        %v6506 = vld [vmem:[%s6144 + $0x17c] sm:$0x1]
        %v6507 = vld [vmem:[%s6144 + $0x190] sm:$0xe]
        %v6508 = vld [vmem:[%s6144 + $0x194] sm:$0xf]
        %v6509 = vld [vmem:[%s6144 + $0x198] sm:$0x1]
        %v6510 = vld [vmem:[%s6144 + $0x1ac] sm:$0xe]
        %v6511 = vld [vmem:[%s6144 + $0x1b0] sm:$0xf]
        %v6512 = vld [vmem:[%s6144 + $0x1b4] sm:$0x1]
        %v6561 = vrot.slane %v6465, 5
        %v6562 = vrot.slane %v6561, 4
        %v6563 = vrot.slane %v6466, 5
        %v6564 = vsel %vm1763, %v6562, %v6563
        %v6565 = vrot.slane %v6563, 4
        %v6566 = vrot.slane %v6467, 5
        %v6567 = vsel %vm1763, %v6565, %v6566
        %v6568 = vrot.slane %v6468, 5
        %v6569 = vrot.slane %v6568, 4
        %v6570 = vrot.slane %v6469, 5
        %v6571 = vsel %vm1763, %v6569, %v6570
        %v6572 = vrot.slane %v6570, 4
        %v6573 = vrot.slane %v6470, 5
        %v6574 = vsel %vm1763, %v6572, %v6573
        %v6575 = vrot.slane %v6471, 5
        %v6576 = vrot.slane %v6575, 4
        %v6577 = vrot.slane %v6472, 5
        %v6578 = vsel %vm1763, %v6576, %v6577
        %v6579 = vrot.slane %v6577, 4
        %v6580 = vrot.slane %v6473, 5
        %v6581 = vsel %vm1763, %v6579, %v6580
        %v6582 = vrot.slane %v6474, 5
        %v6583 = vrot.slane %v6582, 4
        %v6584 = vrot.slane %v6475, 5
        %v6585 = vsel %vm1763, %v6583, %v6584
        %v6586 = vrot.slane %v6584, 4
        %v6587 = vrot.slane %v6476, 5
        %v6588 = vsel %vm1763, %v6586, %v6587
        %v6589 = vrot.slane %v6477, 5
        %v6590 = vrot.slane %v6589, 4
        %v6591 = vrot.slane %v6478, 5
        %v6592 = vsel %vm1763, %v6590, %v6591
        %v6593 = vrot.slane %v6591, 4
        %v6594 = vrot.slane %v6479, 5
        %v6595 = vsel %vm1763, %v6593, %v6594
        %v6596 = vrot.slane %v6480, 5
        %v6597 = vrot.slane %v6596, 4
        %v6598 = vrot.slane %v6481, 5
        %v6599 = vsel %vm1763, %v6597, %v6598
        %v6600 = vrot.slane %v6598, 4
        %v6601 = vrot.slane %v6482, 5
        %v6602 = vsel %vm1763, %v6600, %v6601
        %v6603 = vrot.slane %v6483, 5
        %v6604 = vrot.slane %v6603, 4
        %v6605 = vrot.slane %v6484, 5
        %v6606 = vsel %vm1763, %v6604, %v6605
        %v6607 = vrot.slane %v6605, 4
        %v6608 = vrot.slane %v6485, 5
        %v6609 = vsel %vm1763, %v6607, %v6608
        %v6610 = vrot.slane %v6486, 5
        %v6611 = vrot.slane %v6610, 4
        %v6612 = vrot.slane %v6487, 5
        %v6613 = vsel %vm1763, %v6611, %v6612
        %v6614 = vrot.slane %v6612, 4
        %v6615 = vrot.slane %v6488, 5
        %v6616 = vsel %vm1763, %v6614, %v6615
        %v6617 = vrot.slane %v6489, 5
        %v6618 = vrot.slane %v6617, 4
        %v6619 = vrot.slane %v6490, 5
        %v6620 = vsel %vm1763, %v6618, %v6619
        %v6621 = vrot.slane %v6619, 4
        %v6622 = vrot.slane %v6491, 5
        %v6623 = vsel %vm1763, %v6621, %v6622
        %v6624 = vrot.slane %v6492, 5
        %v6625 = vrot.slane %v6624, 4
        %v6626 = vrot.slane %v6493, 5
        %v6627 = vsel %vm1763, %v6625, %v6626
        %v6628 = vrot.slane %v6626, 4
        %v6629 = vrot.slane %v6494, 5
        %v6630 = vsel %vm1763, %v6628, %v6629
        %v6631 = vrot.slane %v6495, 5
        %v6632 = vrot.slane %v6631, 4
        %v6633 = vrot.slane %v6496, 5
        %v6634 = vsel %vm1763, %v6632, %v6633
        %v6635 = vrot.slane %v6633, 4
        %v6636 = vrot.slane %v6497, 5
        %v6637 = vsel %vm1763, %v6635, %v6636
        %v6638 = vrot.slane %v6498, 5
        %v6639 = vrot.slane %v6638, 4
        %v6640 = vrot.slane %v6499, 5
        %v6641 = vsel %vm1763, %v6639, %v6640
        %v6642 = vrot.slane %v6640, 4
        %v6643 = vrot.slane %v6500, 5
        %v6644 = vsel %vm1763, %v6642, %v6643
        %v6645 = vrot.slane %v6501, 5
        %v6646 = vrot.slane %v6645, 4
        %v6647 = vrot.slane %v6502, 5
        %v6648 = vsel %vm1763, %v6646, %v6647
        %v6649 = vrot.slane %v6647, 4
        %v6650 = vrot.slane %v6503, 5
        %v6651 = vsel %vm1763, %v6649, %v6650
        %v6652 = vrot.slane %v6504, 5
        %v6653 = vrot.slane %v6652, 4
        %v6654 = vrot.slane %v6505, 5
        %v6655 = vsel %vm1763, %v6653, %v6654
        %v6656 = vrot.slane %v6654, 4
        %v6657 = vrot.slane %v6506, 5
        %v6658 = vsel %vm1763, %v6656, %v6657
        %v6659 = vrot.slane %v6507, 5
        %v6660 = vrot.slane %v6659, 4
        %v6661 = vrot.slane %v6508, 5
        %v6662 = vsel %vm1763, %v6660, %v6661
        %v6663 = vrot.slane %v6661, 4
        %v6664 = vrot.slane %v6509, 5
        %v6665 = vsel %vm1763, %v6663, %v6664
        %v6666 = vrot.slane %v6510, 5
        %v6667 = vrot.slane %v6666, 4
        %v6668 = vrot.slane %v6511, 5
        %v6669 = vsel %vm1763, %v6667, %v6668
        %v6670 = vrot.slane %v6668, 4
        %v6671 = vrot.slane %v6512, 5
        %v6672 = vsel %vm1763, %v6670, %v6671
        %v6673 = vunpack.c.l.b16 %v6564
        %v6674 = vunpack.c.l.b16 %v6567
        %v6675 = vunpack.c.l.b16 %v6571
        %v6676 = vunpack.c.l.b16 %v6574
        %v6677 = vunpack.c.l.b16 %v6578
        %v6678 = vunpack.c.l.b16 %v6581
        %v6679 = vunpack.c.l.b16 %v6585
        %v6680 = vunpack.c.l.b16 %v6588
        %v6681 = vunpack.c.l.b16 %v6592
        %v6682 = vunpack.c.l.b16 %v6595
        %v6683 = vunpack.c.l.b16 %v6599
        %v6684 = vunpack.c.l.b16 %v6602
        %v6685 = vunpack.c.l.b16 %v6606
        %v6686 = vunpack.c.l.b16 %v6609
        %v6687 = vunpack.c.l.b16 %v6613
        %v6688 = vunpack.c.l.b16 %v6616
        %v6689 = vunpack.c.l.b16 %v6620
        %v6690 = vunpack.c.l.b16 %v6623
        %v6691 = vunpack.c.l.b16 %v6627
        %v6692 = vunpack.c.l.b16 %v6630
        %v6693 = vunpack.c.l.b16 %v6634
        %v6694 = vunpack.c.l.b16 %v6637
        %v6695 = vunpack.c.l.b16 %v6641
        %v6696 = vunpack.c.l.b16 %v6644
        %v6697 = vunpack.c.l.b16 %v6648
        %v6698 = vunpack.c.l.b16 %v6651
        %v6699 = vunpack.c.l.b16 %v6655
        %v6700 = vunpack.c.l.b16 %v6658
        %v6701 = vunpack.c.l.b16 %v6662
        %v6702 = vunpack.c.l.b16 %v6665
        %v6703 = vunpack.c.l.b16 %v6669
        %v6704 = vunpack.c.l.b16 %v6672
        %v6705 = vpack.c.b16 %v6674, %v6673
        %v6706 = vpack.c.b16 %v6676, %v6675
        %v6707 = vpack.c.b16 %v6678, %v6677
        %v6708 = vpack.c.b16 %v6680, %v6679
        %v6709 = vpack.c.b16 %v6682, %v6681
        %v6710 = vpack.c.b16 %v6684, %v6683
        %v6711 = vpack.c.b16 %v6686, %v6685
        %v6712 = vpack.c.b16 %v6688, %v6687
        %v6713 = vpack.c.b16 %v6690, %v6689
        %v6714 = vpack.c.b16 %v6692, %v6691
        %v6715 = vpack.c.b16 %v6694, %v6693
        %v6716 = vpack.c.b16 %v6696, %v6695
        %v6717 = vpack.c.b16 %v6698, %v6697
        %v6718 = vpack.c.b16 %v6700, %v6699
        %v6719 = vpack.c.b16 %v6702, %v6701
        %v6720 = vpack.c.b16 %v6704, %v6703
        %6721 = vrot.lane.b32.xlu0 %v6705, 28
        %v6722 = vpop.permute.xlu0 %6721
        %6723 = vrot.lane.b32.xlu0 %v6706, 28
        %v6724 = vpop.permute.xlu0 %6723
        %6725 = vrot.lane.b32.xlu0 %v6707, 28
        %v6726 = vpop.permute.xlu0 %6725
        %6727 = vrot.lane.b32.xlu0 %v6708, 28
        %v6728 = vpop.permute.xlu0 %6727
        %6729 = vrot.lane.b32.xlu0 %v6709, 28
        %v6730 = vpop.permute.xlu0 %6729
        %6731 = vrot.lane.b32.xlu0 %v6710, 28
        %v6732 = vpop.permute.xlu0 %6731
        %6733 = vrot.lane.b32.xlu0 %v6711, 28
        %v6734 = vpop.permute.xlu0 %6733
        %6735 = vrot.lane.b32.xlu0 %v6712, 28
        %v6736 = vpop.permute.xlu0 %6735
        %6737 = vrot.lane.b32.xlu0 %v6713, 28
        %v6738 = vpop.permute.xlu0 %6737
        %6739 = vrot.lane.b32.xlu0 %v6714, 28
        %v6740 = vpop.permute.xlu0 %6739
        %6741 = vrot.lane.b32.xlu0 %v6715, 28
        %v6742 = vpop.permute.xlu0 %6741
        %6743 = vrot.lane.b32.xlu0 %v6716, 28
        %v6744 = vpop.permute.xlu0 %6743
        %6745 = vrot.lane.b32.xlu0 %v6717, 28
        %v6746 = vpop.permute.xlu0 %6745
        %6747 = vrot.lane.b32.xlu0 %v6718, 28
        %v6748 = vpop.permute.xlu0 %6747
        %6749 = vrot.lane.b32.xlu0 %v6719, 28
        %v6750 = vpop.permute.xlu0 %6749
        %6751 = vrot.lane.b32.xlu0 %v6720, 28
        %v6752 = vpop.permute.xlu0 %6751
        %6769 = vst.msk [vmem:[#allocation3] sm:$0xff] %vm3611, %v6722
        %6770 = vst.msk [vmem:[#allocation3 + $0x8] sm:$0xff] %vm3611, %v6724
        %6771 = vst.msk [vmem:[#allocation3 + $0x10] sm:$0xff] %vm3611, %v6726
        %6772 = vst.msk [vmem:[#allocation3 + $0x18] sm:$0xff] %vm3611, %v6728
        %6773 = vst.msk [vmem:[#allocation3 + $0x20] sm:$0xff] %vm3611, %v6730
        %6774 = vst.msk [vmem:[#allocation3 + $0x28] sm:$0xff] %vm3611, %v6732
        %6775 = vst.msk [vmem:[#allocation3 + $0x30] sm:$0xff] %vm3611, %v6734
        %6776 = vst.msk [vmem:[#allocation3 + $0x38] sm:$0xff] %vm3611, %v6736
        %6777 = vst.msk [vmem:[#allocation3 + $0x40] sm:$0xff] %vm3611, %v6738
        %6778 = vst.msk [vmem:[#allocation3 + $0x48] sm:$0xff] %vm3611, %v6740
        %6779 = vst.msk [vmem:[#allocation3 + $0x50] sm:$0xff] %vm3611, %v6742
        %6780 = vst.msk [vmem:[#allocation3 + $0x58] sm:$0xff] %vm3611, %v6744
        %6781 = vst.msk [vmem:[#allocation3 + $0x60] sm:$0xff] %vm3611, %v6746
        %6782 = vst.msk [vmem:[#allocation3 + $0x68] sm:$0xff] %vm3611, %v6748
        %6783 = vst.msk [vmem:[#allocation3 + $0x70] sm:$0xff] %vm3611, %v6750
        %6784 = vst.msk [vmem:[#allocation3 + $0x78] sm:$0xff] %vm3611, %v6752
        %v6785 = vld [vmem:[%s6144 + $0xc] sm:$0x8]
        %v6786 = vld [vmem:[%s6144 + $0x10] sm:$0xf]
        %v6787 = vld [vmem:[%s6144 + $0x14] sm:$0x7]
        %v6788 = vld [vmem:[%s6144 + $0x28] sm:$0x8]
        %v6789 = vld [vmem:[%s6144 + $0x2c] sm:$0xf]
        %v6790 = vld [vmem:[%s6144 + $0x30] sm:$0x7]
        %v6791 = vld [vmem:[%s6144 + $0x44] sm:$0x8]
        %v6792 = vld [vmem:[%s6144 + $0x48] sm:$0xf]
        %v6793 = vld [vmem:[%s6144 + $0x4c] sm:$0x7]
        %v6794 = vld [vmem:[%s6144 + $0x60] sm:$0x8]
        %v6795 = vld [vmem:[%s6144 + $0x64] sm:$0xf]
        %v6796 = vld [vmem:[%s6144 + $0x68] sm:$0x7]
        %v6797 = vld [vmem:[%s6144 + $0x7c] sm:$0x8]
        %v6798 = vld [vmem:[%s6144 + $0x80] sm:$0xf]
        %v6799 = vld [vmem:[%s6144 + $0x84] sm:$0x7]
        %v6800 = vld [vmem:[%s6144 + $0x98] sm:$0x8]
        %v6801 = vld [vmem:[%s6144 + $0x9c] sm:$0xf]
        %v6802 = vld [vmem:[%s6144 + $0xa0] sm:$0x7]
        %v6803 = vld [vmem:[%s6144 + $0xb4] sm:$0x8]
        %v6804 = vld [vmem:[%s6144 + $0xb8] sm:$0xf]
        %v6805 = vld [vmem:[%s6144 + $0xbc] sm:$0x7]
        %v6806 = vld [vmem:[%s6144 + $0xd0] sm:$0x8]
        %v6807 = vld [vmem:[%s6144 + $0xd4] sm:$0xf]
        %v6808 = vld [vmem:[%s6144 + $0xd8] sm:$0x7]
        %v6809 = vld [vmem:[%s6144 + $0xec] sm:$0x8]
        %v6810 = vld [vmem:[%s6144 + $0xf0] sm:$0xf]
        %v6811 = vld [vmem:[%s6144 + $0xf4] sm:$0x7]
        %v6812 = vld [vmem:[%s6144 + $0x108] sm:$0x8]
        %v6813 = vld [vmem:[%s6144 + $0x10c] sm:$0xf]
        %v6814 = vld [vmem:[%s6144 + $0x110] sm:$0x7]
        %v6815 = vld [vmem:[%s6144 + $0x124] sm:$0x8]
        %v6816 = vld [vmem:[%s6144 + $0x128] sm:$0xf]
        %v6817 = vld [vmem:[%s6144 + $0x12c] sm:$0x7]
        %v6818 = vld [vmem:[%s6144 + $0x140] sm:$0x8]
        %v6819 = vld [vmem:[%s6144 + $0x144] sm:$0xf]
        %v6820 = vld [vmem:[%s6144 + $0x148] sm:$0x7]
        %v6821 = vld [vmem:[%s6144 + $0x15c] sm:$0x8]
        %v6822 = vld [vmem:[%s6144 + $0x160] sm:$0xf]
        %v6823 = vld [vmem:[%s6144 + $0x164] sm:$0x7]
        %v6824 = vld [vmem:[%s6144 + $0x178] sm:$0x8]
        %v6825 = vld [vmem:[%s6144 + $0x17c] sm:$0xf]
        %v6826 = vld [vmem:[%s6144 + $0x180] sm:$0x7]
        %v6827 = vld [vmem:[%s6144 + $0x194] sm:$0x8]
        %v6828 = vld [vmem:[%s6144 + $0x198] sm:$0xf]
        %v6829 = vld [vmem:[%s6144 + $0x19c] sm:$0x7]
        %v6830 = vld [vmem:[%s6144 + $0x1b0] sm:$0x8]
        %v6831 = vld [vmem:[%s6144 + $0x1b4] sm:$0xf]
        %v6832 = vld [vmem:[%s6144 + $0x1b8] sm:$0x7]
        %v6881 = vrot.slane %v6785, 7
        %v6882 = vrot.slane %v6881, 4
        %v6883 = vrot.slane %v6786, 7
        %v6884 = vsel %vm791, %v6882, %v6883
        %v6885 = vrot.slane %v6883, 4
        %v6886 = vrot.slane %v6787, 7
        %v6887 = vsel %vm791, %v6885, %v6886
        %v6888 = vrot.slane %v6788, 7
        %v6889 = vrot.slane %v6888, 4
        %v6890 = vrot.slane %v6789, 7
        %v6891 = vsel %vm791, %v6889, %v6890
        %v6892 = vrot.slane %v6890, 4
        %v6893 = vrot.slane %v6790, 7
        %v6894 = vsel %vm791, %v6892, %v6893
        %v6895 = vrot.slane %v6791, 7
        %v6896 = vrot.slane %v6895, 4
        %v6897 = vrot.slane %v6792, 7
        %v6898 = vsel %vm791, %v6896, %v6897
        %v6899 = vrot.slane %v6897, 4
        %v6900 = vrot.slane %v6793, 7
        %v6901 = vsel %vm791, %v6899, %v6900
        %v6902 = vrot.slane %v6794, 7
        %v6903 = vrot.slane %v6902, 4
        %v6904 = vrot.slane %v6795, 7
        %v6905 = vsel %vm791, %v6903, %v6904
        %v6906 = vrot.slane %v6904, 4
        %v6907 = vrot.slane %v6796, 7
        %v6908 = vsel %vm791, %v6906, %v6907
        %v6909 = vrot.slane %v6797, 7
        %v6910 = vrot.slane %v6909, 4
        %v6911 = vrot.slane %v6798, 7
        %v6912 = vsel %vm791, %v6910, %v6911
        %v6913 = vrot.slane %v6911, 4
        %v6914 = vrot.slane %v6799, 7
        %v6915 = vsel %vm791, %v6913, %v6914
        %v6916 = vrot.slane %v6800, 7
        %v6917 = vrot.slane %v6916, 4
        %v6918 = vrot.slane %v6801, 7
        %v6919 = vsel %vm791, %v6917, %v6918
        %v6920 = vrot.slane %v6918, 4
        %v6921 = vrot.slane %v6802, 7
        %v6922 = vsel %vm791, %v6920, %v6921
        %v6923 = vrot.slane %v6803, 7
        %v6924 = vrot.slane %v6923, 4
        %v6925 = vrot.slane %v6804, 7
        %v6926 = vsel %vm791, %v6924, %v6925
        %v6927 = vrot.slane %v6925, 4
        %v6928 = vrot.slane %v6805, 7
        %v6929 = vsel %vm791, %v6927, %v6928
        %v6930 = vrot.slane %v6806, 7
        %v6931 = vrot.slane %v6930, 4
        %v6932 = vrot.slane %v6807, 7
        %v6933 = vsel %vm791, %v6931, %v6932
        %v6934 = vrot.slane %v6932, 4
        %v6935 = vrot.slane %v6808, 7
        %v6936 = vsel %vm791, %v6934, %v6935
        %v6937 = vrot.slane %v6809, 7
        %v6938 = vrot.slane %v6937, 4
        %v6939 = vrot.slane %v6810, 7
        %v6940 = vsel %vm791, %v6938, %v6939
        %v6941 = vrot.slane %v6939, 4
        %v6942 = vrot.slane %v6811, 7
        %v6943 = vsel %vm791, %v6941, %v6942
        %v6944 = vrot.slane %v6812, 7
        %v6945 = vrot.slane %v6944, 4
        %v6946 = vrot.slane %v6813, 7
        %v6947 = vsel %vm791, %v6945, %v6946
        %v6948 = vrot.slane %v6946, 4
        %v6949 = vrot.slane %v6814, 7
        %v6950 = vsel %vm791, %v6948, %v6949
        %v6951 = vrot.slane %v6815, 7
        %v6952 = vrot.slane %v6951, 4
        %v6953 = vrot.slane %v6816, 7
        %v6954 = vsel %vm791, %v6952, %v6953
        %v6955 = vrot.slane %v6953, 4
        %v6956 = vrot.slane %v6817, 7
        %v6957 = vsel %vm791, %v6955, %v6956
        %v6958 = vrot.slane %v6818, 7
        %v6959 = vrot.slane %v6958, 4
        %v6960 = vrot.slane %v6819, 7
        %v6961 = vsel %vm791, %v6959, %v6960
        %v6962 = vrot.slane %v6960, 4
        %v6963 = vrot.slane %v6820, 7
        %v6964 = vsel %vm791, %v6962, %v6963
        %v6965 = vrot.slane %v6821, 7
        %v6966 = vrot.slane %v6965, 4
        %v6967 = vrot.slane %v6822, 7
        %v6968 = vsel %vm791, %v6966, %v6967
        %v6969 = vrot.slane %v6967, 4
        %v6970 = vrot.slane %v6823, 7
        %v6971 = vsel %vm791, %v6969, %v6970
        %v6972 = vrot.slane %v6824, 7
        %v6973 = vrot.slane %v6972, 4
        %v6974 = vrot.slane %v6825, 7
        %v6975 = vsel %vm791, %v6973, %v6974
        %v6976 = vrot.slane %v6974, 4
        %v6977 = vrot.slane %v6826, 7
        %v6978 = vsel %vm791, %v6976, %v6977
        %v6979 = vrot.slane %v6827, 7
        %v6980 = vrot.slane %v6979, 4
        %v6981 = vrot.slane %v6828, 7
        %v6982 = vsel %vm791, %v6980, %v6981
        %v6983 = vrot.slane %v6981, 4
        %v6984 = vrot.slane %v6829, 7
        %v6985 = vsel %vm791, %v6983, %v6984
        %v6986 = vrot.slane %v6830, 7
        %v6987 = vrot.slane %v6986, 4
        %v6988 = vrot.slane %v6831, 7
        %v6989 = vsel %vm791, %v6987, %v6988
        %v6990 = vrot.slane %v6988, 4
        %v6991 = vrot.slane %v6832, 7
        %v6992 = vsel %vm791, %v6990, %v6991
        %v6993 = vunpack.c.l.b16 %v6884
        %v6994 = vunpack.c.l.b16 %v6887
        %v6995 = vunpack.c.l.b16 %v6891
        %v6996 = vunpack.c.l.b16 %v6894
        %v6997 = vunpack.c.l.b16 %v6898
        %v6998 = vunpack.c.l.b16 %v6901
        %v6999 = vunpack.c.l.b16 %v6905
        %v7000 = vunpack.c.l.b16 %v6908
        %v7001 = vunpack.c.l.b16 %v6912
        %v7002 = vunpack.c.l.b16 %v6915
        %v7003 = vunpack.c.l.b16 %v6919
        %v7004 = vunpack.c.l.b16 %v6922
        %v7005 = vunpack.c.l.b16 %v6926
        %v7006 = vunpack.c.l.b16 %v6929
        %v7007 = vunpack.c.l.b16 %v6933
        %v7008 = vunpack.c.l.b16 %v6936
        %v7009 = vunpack.c.l.b16 %v6940
        %v7010 = vunpack.c.l.b16 %v6943
        %v7011 = vunpack.c.l.b16 %v6947
        %v7012 = vunpack.c.l.b16 %v6950
        %v7013 = vunpack.c.l.b16 %v6954
        %v7014 = vunpack.c.l.b16 %v6957
        %v7015 = vunpack.c.l.b16 %v6961
        %v7016 = vunpack.c.l.b16 %v6964
        %v7017 = vunpack.c.l.b16 %v6968
        %v7018 = vunpack.c.l.b16 %v6971
        %v7019 = vunpack.c.l.b16 %v6975
        %v7020 = vunpack.c.l.b16 %v6978
        %v7021 = vunpack.c.l.b16 %v6982
        %v7022 = vunpack.c.l.b16 %v6985
        %v7023 = vunpack.c.l.b16 %v6989
        %v7024 = vunpack.c.l.b16 %v6992
        %v7025 = vpack.c.b16 %v6994, %v6993
        %v7026 = vpack.c.b16 %v6996, %v6995
        %v7027 = vpack.c.b16 %v6998, %v6997
        %v7028 = vpack.c.b16 %v7000, %v6999
        %v7029 = vpack.c.b16 %v7002, %v7001
        %v7030 = vpack.c.b16 %v7004, %v7003
        %v7031 = vpack.c.b16 %v7006, %v7005
        %v7032 = vpack.c.b16 %v7008, %v7007
        %v7033 = vpack.c.b16 %v7010, %v7009
        %v7034 = vpack.c.b16 %v7012, %v7011
        %v7035 = vpack.c.b16 %v7014, %v7013
        %v7036 = vpack.c.b16 %v7016, %v7015
        %v7037 = vpack.c.b16 %v7018, %v7017
        %v7038 = vpack.c.b16 %v7020, %v7019
        %v7039 = vpack.c.b16 %v7022, %v7021
        %v7040 = vpack.c.b16 %v7024, %v7023
        %7041 = vrot.lane.b32.xlu0 %v7025, 32
        %v7042 = vpop.permute.xlu0 %7041
        %7043 = vrot.lane.b32.xlu0 %v7026, 32
        %v7044 = vpop.permute.xlu0 %7043
        %7045 = vrot.lane.b32.xlu0 %v7027, 32
        %v7046 = vpop.permute.xlu0 %7045
        %7047 = vrot.lane.b32.xlu0 %v7028, 32
        %v7048 = vpop.permute.xlu0 %7047
        %7049 = vrot.lane.b32.xlu0 %v7029, 32
        %v7050 = vpop.permute.xlu0 %7049
        %7051 = vrot.lane.b32.xlu0 %v7030, 32
        %v7052 = vpop.permute.xlu0 %7051
        %7053 = vrot.lane.b32.xlu0 %v7031, 32
        %v7054 = vpop.permute.xlu0 %7053
        %7055 = vrot.lane.b32.xlu0 %v7032, 32
        %v7056 = vpop.permute.xlu0 %7055
        %7057 = vrot.lane.b32.xlu0 %v7033, 32
        %v7058 = vpop.permute.xlu0 %7057
        %7059 = vrot.lane.b32.xlu0 %v7034, 32
        %v7060 = vpop.permute.xlu0 %7059
        %7061 = vrot.lane.b32.xlu0 %v7035, 32
        %v7062 = vpop.permute.xlu0 %7061
        %7063 = vrot.lane.b32.xlu0 %v7036, 32
        %v7064 = vpop.permute.xlu0 %7063
        %7065 = vrot.lane.b32.xlu0 %v7037, 32
        %v7066 = vpop.permute.xlu0 %7065
        %7067 = vrot.lane.b32.xlu0 %v7038, 32
        %v7068 = vpop.permute.xlu0 %7067
        %7069 = vrot.lane.b32.xlu0 %v7039, 32
        %v7070 = vpop.permute.xlu0 %7069
        %7071 = vrot.lane.b32.xlu0 %v7040, 32
        %v7072 = vpop.permute.xlu0 %7071
        %7089 = vst.msk [vmem:[#allocation3] sm:$0xff] %vm3788, %v7042
        %7090 = vst.msk [vmem:[#allocation3 + $0x8] sm:$0xff] %vm3788, %v7044
        %7091 = vst.msk [vmem:[#allocation3 + $0x10] sm:$0xff] %vm3788, %v7046
        %7092 = vst.msk [vmem:[#allocation3 + $0x18] sm:$0xff] %vm3788, %v7048
        %7093 = vst.msk [vmem:[#allocation3 + $0x20] sm:$0xff] %vm3788, %v7050
        %7094 = vst.msk [vmem:[#allocation3 + $0x28] sm:$0xff] %vm3788, %v7052
        %7095 = vst.msk [vmem:[#allocation3 + $0x30] sm:$0xff] %vm3788, %v7054
        %7096 = vst.msk [vmem:[#allocation3 + $0x38] sm:$0xff] %vm3788, %v7056
        %7097 = vst.msk [vmem:[#allocation3 + $0x40] sm:$0xff] %vm3788, %v7058
        %7098 = vst.msk [vmem:[#allocation3 + $0x48] sm:$0xff] %vm3788, %v7060
        %7099 = vst.msk [vmem:[#allocation3 + $0x50] sm:$0xff] %vm3788, %v7062
        %7100 = vst.msk [vmem:[#allocation3 + $0x58] sm:$0xff] %vm3788, %v7064
        %7101 = vst.msk [vmem:[#allocation3 + $0x60] sm:$0xff] %vm3788, %v7066
        %7102 = vst.msk [vmem:[#allocation3 + $0x68] sm:$0xff] %vm3788, %v7068
        %7103 = vst.msk [vmem:[#allocation3 + $0x70] sm:$0xff] %vm3788, %v7070
        %7104 = vst.msk [vmem:[#allocation3 + $0x78] sm:$0xff] %vm3788, %v7072
        %v7105 = vld [vmem:[#allocation3] sm:$0xff]
        %v7106 = vld [vmem:[#allocation3 + $0x8] sm:$0xff]
        %v7107 = vld [vmem:[#allocation3 + $0x10] sm:$0xff]
        %v7108 = vld [vmem:[#allocation3 + $0x18] sm:$0xff]
        %v7109 = vld [vmem:[#allocation3 + $0x20] sm:$0xff]
        %v7110 = vld [vmem:[#allocation3 + $0x28] sm:$0xff]
        %v7111 = vld [vmem:[#allocation3 + $0x30] sm:$0xff]
        %v7112 = vld [vmem:[#allocation3 + $0x38] sm:$0xff]
        %v7113 = vld [vmem:[#allocation3 + $0x40] sm:$0xff]
        %v7114 = vld [vmem:[#allocation3 + $0x48] sm:$0xff]
        %v7115 = vld [vmem:[#allocation3 + $0x50] sm:$0xff]
        %v7116 = vld [vmem:[#allocation3 + $0x58] sm:$0xff]
        %v7117 = vld [vmem:[#allocation3 + $0x60] sm:$0xff]
        %v7118 = vld [vmem:[#allocation3 + $0x68] sm:$0xff]
        %v7119 = vld [vmem:[#allocation3 + $0x70] sm:$0xff]
        %v7120 = vld [vmem:[#allocation3 + $0x78] sm:$0xff]
        %v7121 = vld [vmem:[%s3] sm:$0xf]
        %v7122 = vld [vmem:[%s3 + $0x4] sm:$0xf]
        %v7123 = vld [vmem:[%s3 + $0x8] sm:$0xf]
        %v7124 = vld [vmem:[%s3 + $0xc] sm:$0xf]
        %v7125 = vld [vmem:[%s3 + $0x10] sm:$0x3]
        %v7131 = vunpack.c.l.b16 %v7121
        %v7132 = vunpack.c.l.b16 %v7122
        %v7133 = vunpack.c.l.b16 %v7123
        %v7134 = vunpack.c.l.b16 %v7124
        %v7135 = vunpack.c.l.b16 %v7125
        %v7136 = vpack.c.b16 %v7132, %v7131
        %v7137 = vpack.c.b16 %v7134, %v7133
        %v7138 = vpack.c.b16 %v7135, %v7135
        %v7142 = vsel %vm3841, %v7105, 0
        %v7145 = vsel %vm3841, %v7106, 0
        %v7148 = vsel %vm3841, %v7107, 0
        %v7151 = vsel %vm3841, %v7108, 0
        %v7154 = vsel %vm3841, %v7109, 0
        %v7157 = vsel %vm3841, %v7110, 0
        %v7160 = vsel %vm3841, %v7111, 0
        %v7163 = vsel %vm3841, %v7112, 0
        %v7166 = vsel %vm3841, %v7113, 0
        %v7169 = vsel %vm3841, %v7114, 0
        %v7172 = vsel %vm3841, %v7115, 0
        %v7175 = vsel %vm3841, %v7116, 0
        %v7178 = vsel %vm3841, %v7117, 0
        %v7181 = vsel %vm3841, %v7118, 0
        %v7184 = vsel %vm3841, %v7119, 0
        %v7187 = vsel %vm3841, %v7120, 0
        %v7190 = vsel %vm1071, %v7138, 0
        %7192 = vmatprep.subr.bf16.mxu0 0
        %7193 = vmatpush1.bf16.msra.mxu0 %v7136
        %7194 = vmatprep.subr.bf16.mxu0 0
        %7195 = vmatpush1.bf16.msra.mxu0 %v7137
        %7196 = vmatprep.subr.bf16.mxu0 0
        %7197 = vmatpush1.bf16.msra.mxu0 %v7190
        %7198 = vmatprep.subr.bf16.mxu0 0
        %7199 = vmatpush1.bf16.msra.mxu0 0
        %7200 = vmatprep.subr.bf16.mxu0 0
        %7201 = vmatpush1.bf16.msra.mxu0 0
        %7202 = vmatprep.subr.bf16.mxu0 0
        %7203 = vmatpush1.bf16.msra.mxu0 0
        %7204 = vmatprep.subr.bf16.mxu0 0
        %7205 = vmatpush1.bf16.msra.mxu0 0
        %7206 = vmatprep.subr.bf16.mxu0 0
        %7207 = vmatpush1.bf16.msra.mxu0 0
        %7208 = vmatprep.subr.bf16.mxu0 0
        %7209 = vmatpush1.bf16.msra.mxu0 0
        %7210 = vmatprep.subr.bf16.mxu0 0
        %7211 = vmatpush1.bf16.msra.mxu0 0
        %7212 = vmatprep.subr.bf16.mxu0 0
        %7213 = vmatpush1.bf16.msra.mxu0 0
        %7214 = vmatprep.subr.bf16.mxu0 0
        %7215 = vmatpush1.bf16.msra.mxu0 0
        %7216 = vmatprep.subr.bf16.mxu0 0
        %7217 = vmatpush1.bf16.msra.mxu0 0
        %7218 = vmatprep.subr.bf16.mxu0 0
        %7219 = vmatpush1.bf16.msra.mxu0 0
        %7220 = vmatprep.subr.bf16.mxu0 0
        %7221 = vmatpush1.bf16.msra.mxu0 0
        %7222 = vmatprep.subr.bf16.mxu0 0
        %7223 = vmatpush1.bf16.msra.mxu0 0
        %7224 = vmatprep.mubr.bf16.mxu0 0
        %7225 = vmatmul.mubr.bf16.gmra.mrb[0].mxu0 %v7142
        %v7226 = vpop.f32.mrb[0].mxu0
        %v7227 = vadd.f32 0.0, %v7226
        %v7228 = vpop.f32.mrb[0].mxu0
        %v7229 = vpop.f32.mrb[0].mxu0
        %v7230 = vadd.f32 0.0, %v7229
        %v7231 = vpop.f32.mrb[0].mxu0
        %7232 = vmatprep.mubr.bf16.mxu0 0
        %7233 = vmatmul.mubr.bf16.gmra.mrb[0].mxu0 %v7145
        %v7234 = vpop.f32.mrb[0].mxu0
        %v7235 = vadd.f32 0.0, %v7234
        %v7236 = vpop.f32.mrb[0].mxu0
        %v7237 = vpop.f32.mrb[0].mxu0
        %v7238 = vadd.f32 0.0, %v7237
        %v7239 = vpop.f32.mrb[0].mxu0
        %7240 = vmatprep.mubr.bf16.mxu0 0
        %7241 = vmatmul.mubr.bf16.gmra.mrb[0].mxu0 %v7148
        %v7242 = vpop.f32.mrb[0].mxu0
        %v7243 = vadd.f32 0.0, %v7242
        %v7244 = vpop.f32.mrb[0].mxu0
        %v7245 = vpop.f32.mrb[0].mxu0
        %v7246 = vadd.f32 0.0, %v7245
        %v7247 = vpop.f32.mrb[0].mxu0
        %7248 = vmatprep.mubr.bf16.mxu0 0
        %7249 = vmatmul.mubr.bf16.gmra.mrb[0].mxu0 %v7151
        %v7250 = vpop.f32.mrb[0].mxu0
        %v7251 = vadd.f32 0.0, %v7250
        %v7252 = vpop.f32.mrb[0].mxu0
        %v7253 = vpop.f32.mrb[0].mxu0
        %v7254 = vadd.f32 0.0, %v7253
        %v7255 = vpop.f32.mrb[0].mxu0
        %7256 = vmatprep.mubr.bf16.mxu0 0
        %7257 = vmatmul.mubr.bf16.gmra.mrb[0].mxu0 %v7154
        %v7258 = vpop.f32.mrb[0].mxu0
        %v7259 = vadd.f32 0.0, %v7258
        %v7260 = vpop.f32.mrb[0].mxu0
        %v7261 = vpop.f32.mrb[0].mxu0
        %v7262 = vadd.f32 0.0, %v7261
        %v7263 = vpop.f32.mrb[0].mxu0
        %7264 = vmatprep.mubr.bf16.mxu0 0
        %7265 = vmatmul.mubr.bf16.gmra.mrb[0].mxu0 %v7157
        %v7266 = vpop.f32.mrb[0].mxu0
        %v7267 = vadd.f32 0.0, %v7266
        %v7268 = vpop.f32.mrb[0].mxu0
        %v7269 = vpop.f32.mrb[0].mxu0
        %v7270 = vadd.f32 0.0, %v7269
        %v7271 = vpop.f32.mrb[0].mxu0
        %7272 = vmatprep.mubr.bf16.mxu0 0
        %7273 = vmatmul.mubr.bf16.gmra.mrb[0].mxu0 %v7160
        %v7274 = vpop.f32.mrb[0].mxu0
        %v7275 = vadd.f32 0.0, %v7274
        %v7276 = vpop.f32.mrb[0].mxu0
        %v7277 = vpop.f32.mrb[0].mxu0
        %v7278 = vadd.f32 0.0, %v7277
        %v7279 = vpop.f32.mrb[0].mxu0
        %7280 = vmatprep.mubr.bf16.mxu0 0
        %7281 = vmatmul.mubr.bf16.gmra.mrb[0].mxu0 %v7163
        %v7282 = vpop.f32.mrb[0].mxu0
        %v7283 = vadd.f32 0.0, %v7282
        %v7284 = vpop.f32.mrb[0].mxu0
        %v7285 = vpop.f32.mrb[0].mxu0
        %v7286 = vadd.f32 0.0, %v7285
        %v7287 = vpop.f32.mrb[0].mxu0
        %7288 = vmatprep.mubr.bf16.mxu0 0
        %7289 = vmatmul.mubr.bf16.gmra.mrb[0].mxu0 %v7166
        %v7290 = vpop.f32.mrb[0].mxu0
        %v7291 = vadd.f32 0.0, %v7290
        %v7292 = vpop.f32.mrb[0].mxu0
        %v7293 = vpop.f32.mrb[0].mxu0
        %v7294 = vadd.f32 0.0, %v7293
        %v7295 = vpop.f32.mrb[0].mxu0
        %7296 = vmatprep.mubr.bf16.mxu0 0
        %7297 = vmatmul.mubr.bf16.gmra.mrb[0].mxu0 %v7169
        %v7298 = vpop.f32.mrb[0].mxu0
        %v7299 = vadd.f32 0.0, %v7298
        %v7300 = vpop.f32.mrb[0].mxu0
        %v7301 = vpop.f32.mrb[0].mxu0
        %v7302 = vadd.f32 0.0, %v7301
        %v7303 = vpop.f32.mrb[0].mxu0
        %7304 = vmatprep.mubr.bf16.mxu0 0
        %7305 = vmatmul.mubr.bf16.gmra.mrb[0].mxu0 %v7172
        %v7306 = vpop.f32.mrb[0].mxu0
        %v7307 = vadd.f32 0.0, %v7306
        %v7308 = vpop.f32.mrb[0].mxu0
        %v7309 = vpop.f32.mrb[0].mxu0
        %v7310 = vadd.f32 0.0, %v7309
        %v7311 = vpop.f32.mrb[0].mxu0
        %7312 = vmatprep.mubr.bf16.mxu0 0
        %7313 = vmatmul.mubr.bf16.gmra.mrb[0].mxu0 %v7175
        %v7314 = vpop.f32.mrb[0].mxu0
        %v7315 = vadd.f32 0.0, %v7314
        %v7316 = vpop.f32.mrb[0].mxu0
        %v7317 = vpop.f32.mrb[0].mxu0
        %v7318 = vadd.f32 0.0, %v7317
        %v7319 = vpop.f32.mrb[0].mxu0
        %7320 = vmatprep.mubr.bf16.mxu0 0
        %7321 = vmatmul.mubr.bf16.gmra.mrb[0].mxu0 %v7178
        %v7322 = vpop.f32.mrb[0].mxu0
        %v7323 = vadd.f32 0.0, %v7322
        %v7324 = vpop.f32.mrb[0].mxu0
        %v7325 = vpop.f32.mrb[0].mxu0
        %v7326 = vadd.f32 0.0, %v7325
        %v7327 = vpop.f32.mrb[0].mxu0
        %7328 = vmatprep.mubr.bf16.mxu0 0
        %7329 = vmatmul.mubr.bf16.gmra.mrb[0].mxu0 %v7181
        %v7330 = vpop.f32.mrb[0].mxu0
        %v7331 = vadd.f32 0.0, %v7330
        %v7332 = vpop.f32.mrb[0].mxu0
        %v7333 = vpop.f32.mrb[0].mxu0
        %v7334 = vadd.f32 0.0, %v7333
        %v7335 = vpop.f32.mrb[0].mxu0
        %7336 = vmatprep.mubr.bf16.mxu0 0
        %7337 = vmatmul.mubr.bf16.gmra.mrb[0].mxu0 %v7184
        %v7338 = vpop.f32.mrb[0].mxu0
        %v7339 = vadd.f32 0.0, %v7338
        %v7340 = vpop.f32.mrb[0].mxu0
        %v7341 = vpop.f32.mrb[0].mxu0
        %v7342 = vadd.f32 0.0, %v7341
        %v7343 = vpop.f32.mrb[0].mxu0
        %7344 = vmatprep.mubr.bf16.mxu0 0
        %7345 = vmatmul.mubr.bf16.gmra.mrb[0].mxu0 %v7187
        %v7346 = vpop.f32.mrb[0].mxu0
        %v7347 = vadd.f32 0.0, %v7346
        %v7348 = vpop.f32.mrb[0].mxu0
        %v7349 = vpop.f32.mrb[0].mxu0
        %v7350 = vadd.f32 0.0, %v7349
        %v7351 = vpop.f32.mrb[0].mxu0
        %7352 = vdwg.mxu0
        %v7353 = vlaneseq
        %v7354 = vshrl.u32 %v7353, 7
        %v7355 = vsub.s32 2, %v7354
        %v7356 = vrot.slane %v971, %v7355
        %v7357 = vmul.f32 %v7227, %v7356
        %v7358 = vmul.f32 %v7230, %v7356
        %v7359 = vmul.f32 %v7235, %v7356
        %v7360 = vmul.f32 %v7238, %v7356
        %v7361 = vmul.f32 %v7243, %v7356
        %v7362 = vmul.f32 %v7246, %v7356
        %v7363 = vmul.f32 %v7251, %v7356
        %v7364 = vmul.f32 %v7254, %v7356
        %v7365 = vmul.f32 %v7259, %v7356
        %v7366 = vmul.f32 %v7262, %v7356
        %v7367 = vmul.f32 %v7267, %v7356
        %v7368 = vmul.f32 %v7270, %v7356
        %v7369 = vmul.f32 %v7275, %v7356
        %v7370 = vmul.f32 %v7278, %v7356
        %v7371 = vmul.f32 %v7283, %v7356
        %v7372 = vmul.f32 %v7286, %v7356
        %v7373 = vmul.f32 %v7291, %v7356
        %v7374 = vmul.f32 %v7294, %v7356
        %v7375 = vmul.f32 %v7299, %v7356
        %v7376 = vmul.f32 %v7302, %v7356
        %v7377 = vmul.f32 %v7307, %v7356
        %v7378 = vmul.f32 %v7310, %v7356
        %v7379 = vmul.f32 %v7315, %v7356
        %v7380 = vmul.f32 %v7318, %v7356
        %v7381 = vmul.f32 %v7323, %v7356
        %v7382 = vmul.f32 %v7326, %v7356
        %v7383 = vmul.f32 %v7331, %v7356
        %v7384 = vmul.f32 %v7334, %v7356
        %v7385 = vmul.f32 %v7339, %v7356
        %v7386 = vmul.f32 %v7342, %v7356
        %v7387 = vmul.f32 %v7347, %v7356
        %v7388 = vmul.f32 %v7350, %v7356
        %v7389 = vlaneseq
        %v7390 = vshrl.u32 %v7389, 7
        %v7391 = vsub.s32 2, %v7390
        %v7392 = vrot.slane %v972, %v7391
        %v7393 = vadd.f32 %v7357, %v7392
        %v7394 = vadd.f32 %v7358, %v7392
        %v7395 = vadd.f32 %v7359, %v7392
        %v7396 = vadd.f32 %v7360, %v7392
        %v7397 = vadd.f32 %v7361, %v7392
        %v7398 = vadd.f32 %v7362, %v7392
        %v7399 = vadd.f32 %v7363, %v7392
        %v7400 = vadd.f32 %v7364, %v7392
        %v7401 = vadd.f32 %v7365, %v7392
        %v7402 = vadd.f32 %v7366, %v7392
        %v7403 = vadd.f32 %v7367, %v7392
        %v7404 = vadd.f32 %v7368, %v7392
        %v7405 = vadd.f32 %v7369, %v7392
        %v7406 = vadd.f32 %v7370, %v7392
        %v7407 = vadd.f32 %v7371, %v7392
        %v7408 = vadd.f32 %v7372, %v7392
        %v7409 = vadd.f32 %v7373, %v7392
        %v7410 = vadd.f32 %v7374, %v7392
        %v7411 = vadd.f32 %v7375, %v7392
        %v7412 = vadd.f32 %v7376, %v7392
        %v7413 = vadd.f32 %v7377, %v7392
        %v7414 = vadd.f32 %v7378, %v7392
        %v7415 = vadd.f32 %v7379, %v7392
        %v7416 = vadd.f32 %v7380, %v7392
        %v7417 = vadd.f32 %v7381, %v7392
        %v7418 = vadd.f32 %v7382, %v7392
        %v7419 = vadd.f32 %v7383, %v7392
        %v7420 = vadd.f32 %v7384, %v7392
        %v7421 = vadd.f32 %v7385, %v7392
        %v7422 = vadd.f32 %v7386, %v7392
        %v7423 = vadd.f32 %v7387, %v7392
        %v7424 = vadd.f32 %v7388, %v7392
        %v7425 = vmax.f32 %v7393, 0.0
        %v7426 = vmax.f32 %v7394, 0.0
        %v7427 = vmax.f32 %v7395, 0.0
        %v7428 = vmax.f32 %v7396, 0.0
        %v7429 = vmax.f32 %v7397, 0.0
        %v7430 = vmax.f32 %v7398, 0.0
        %v7431 = vmax.f32 %v7399, 0.0
        %v7432 = vmax.f32 %v7400, 0.0
        %v7433 = vmax.f32 %v7401, 0.0
        %v7434 = vmax.f32 %v7402, 0.0
        %v7435 = vmax.f32 %v7403, 0.0
        %v7436 = vmax.f32 %v7404, 0.0
        %v7437 = vmax.f32 %v7405, 0.0
        %v7438 = vmax.f32 %v7406, 0.0
        %v7439 = vmax.f32 %v7407, 0.0
        %v7440 = vmax.f32 %v7408, 0.0
        %v7441 = vmax.f32 %v7409, 0.0
        %v7442 = vmax.f32 %v7410, 0.0
        %v7443 = vmax.f32 %v7411, 0.0
        %v7444 = vmax.f32 %v7412, 0.0
        %v7445 = vmax.f32 %v7413, 0.0
        %v7446 = vmax.f32 %v7414, 0.0
        %v7447 = vmax.f32 %v7415, 0.0
        %v7448 = vmax.f32 %v7416, 0.0
        %v7449 = vmax.f32 %v7417, 0.0
        %v7450 = vmax.f32 %v7418, 0.0
        %v7451 = vmax.f32 %v7419, 0.0
        %v7452 = vmax.f32 %v7420, 0.0
        %v7453 = vmax.f32 %v7421, 0.0
        %v7454 = vmax.f32 %v7422, 0.0
        %v7455 = vmax.f32 %v7423, 0.0
        %v7456 = vmax.f32 %v7424, 0.0
        %v7457 = vpack.c.bf16 %v7426, %v7425
        %v7458 = vpack.c.bf16 %v7428, %v7427
        %v7459 = vpack.c.bf16 %v7430, %v7429
        %v7460 = vpack.c.bf16 %v7432, %v7431
        %v7461 = vpack.c.bf16 %v7434, %v7433
        %v7462 = vpack.c.bf16 %v7436, %v7435
        %v7463 = vpack.c.bf16 %v7438, %v7437
        %v7464 = vpack.c.bf16 %v7440, %v7439
        %v7465 = vpack.c.bf16 %v7442, %v7441
        %v7466 = vpack.c.bf16 %v7444, %v7443
        %v7467 = vpack.c.bf16 %v7446, %v7445
        %v7468 = vpack.c.bf16 %v7448, %v7447
        %v7469 = vpack.c.bf16 %v7450, %v7449
        %v7470 = vpack.c.bf16 %v7452, %v7451
        %v7471 = vpack.c.bf16 %v7454, %v7453
        %v7472 = vpack.c.bf16 %v7456, %v7455
        %7489 = vrot.lane.b32.xlu0 %v7457, 64
        %v7490 = vpop.permute.xlu0 %7489
        %7491 = vrot.lane.b32.xlu0 %v7458, 64
        %v7492 = vpop.permute.xlu0 %7491
        %7493 = vrot.lane.b32.xlu0 %v7459, 64
        %v7494 = vpop.permute.xlu0 %7493
        %7495 = vrot.lane.b32.xlu0 %v7460, 64
        %v7496 = vpop.permute.xlu0 %7495
        %7497 = vrot.lane.b32.xlu0 %v7461, 64
        %v7498 = vpop.permute.xlu0 %7497
        %7499 = vrot.lane.b32.xlu0 %v7462, 64
        %v7500 = vpop.permute.xlu0 %7499
        %7501 = vrot.lane.b32.xlu0 %v7463, 64
        %v7502 = vpop.permute.xlu0 %7501
        %7503 = vrot.lane.b32.xlu0 %v7464, 64
        %v7504 = vpop.permute.xlu0 %7503
        %7505 = vrot.lane.b32.xlu0 %v7465, 64
        %v7506 = vpop.permute.xlu0 %7505
        %7507 = vrot.lane.b32.xlu0 %v7466, 64
        %v7508 = vpop.permute.xlu0 %7507
        %7509 = vrot.lane.b32.xlu0 %v7467, 64
        %v7510 = vpop.permute.xlu0 %7509
        %7511 = vrot.lane.b32.xlu0 %v7468, 64
        %v7512 = vpop.permute.xlu0 %7511
        %7513 = vrot.lane.b32.xlu0 %v7469, 64
        %v7514 = vpop.permute.xlu0 %7513
        %7515 = vrot.lane.b32.xlu0 %v7470, 64
        %v7516 = vpop.permute.xlu0 %7515
        %7517 = vrot.lane.b32.xlu0 %v7471, 64
        %v7518 = vpop.permute.xlu0 %7517
        %7519 = vrot.lane.b32.xlu0 %v7472, 64
        %v7520 = vpop.permute.xlu0 %7519
        %vm7537 = vcmask 785920
        %7538 = vst.msk [vmem:[#allocation4] sm:$0xff] %vm7537, %v7490
        %7539 = vst.msk [vmem:[#allocation4 + $0x8] sm:$0xff] %vm7537, %v7492
        %7540 = vst.msk [vmem:[#allocation4 + $0x10] sm:$0xff] %vm7537, %v7494
        %7541 = vst.msk [vmem:[#allocation4 + $0x18] sm:$0xff] %vm7537, %v7496
        %7542 = vst.msk [vmem:[#allocation4 + $0x20] sm:$0xff] %vm7537, %v7498
        %7543 = vst.msk [vmem:[#allocation4 + $0x28] sm:$0xff] %vm7537, %v7500
        %7544 = vst.msk [vmem:[#allocation4 + $0x30] sm:$0xff] %vm7537, %v7502
        %7545 = vst.msk [vmem:[#allocation4 + $0x38] sm:$0xff] %vm7537, %v7504
        %7546 = vst.msk [vmem:[#allocation4 + $0x40] sm:$0xff] %vm7537, %v7506
        %7547 = vst.msk [vmem:[#allocation4 + $0x48] sm:$0xff] %vm7537, %v7508
        %7548 = vst.msk [vmem:[#allocation4 + $0x50] sm:$0xff] %vm7537, %v7510
        %7549 = vst.msk [vmem:[#allocation4 + $0x58] sm:$0xff] %vm7537, %v7512
        %7550 = vst.msk [vmem:[#allocation4 + $0x60] sm:$0xff] %vm7537, %v7514
        %7551 = vst.msk [vmem:[#allocation4 + $0x68] sm:$0xff] %vm7537, %v7516
        %7552 = vst.msk [vmem:[#allocation4 + $0x70] sm:$0xff] %vm7537, %v7518
        %7553 = vst.msk [vmem:[#allocation4 + $0x78] sm:$0xff] %vm7537, %v7520
        %v7554 = vld [vmem:[#allocation2] sm:$0xf]
        %v7555 = vld [vmem:[#allocation2 + $0x4] sm:$0xf]
        %v7556 = vld [vmem:[#allocation2 + $0x1c] sm:$0xf]
        %v7557 = vld [vmem:[#allocation2 + $0x20] sm:$0xf]
        %v7558 = vld [vmem:[#allocation2 + $0x38] sm:$0xf]
        %v7559 = vld [vmem:[#allocation2 + $0x3c] sm:$0xf]
        %v7560 = vld [vmem:[#allocation2 + $0x54] sm:$0xf]
        %v7561 = vld [vmem:[#allocation2 + $0x58] sm:$0xf]
        %v7562 = vld [vmem:[#allocation2 + $0x70] sm:$0xf]
        %v7563 = vld [vmem:[#allocation2 + $0x74] sm:$0xf]
        %v7564 = vld [vmem:[#allocation2 + $0x8c] sm:$0xf]
        %v7565 = vld [vmem:[#allocation2 + $0x90] sm:$0xf]
        %v7566 = vld [vmem:[#allocation2 + $0xa8] sm:$0xf]
        %v7567 = vld [vmem:[#allocation2 + $0xac] sm:$0xf]
        %v7568 = vld [vmem:[#allocation2 + $0xc4] sm:$0xf]
        %v7569 = vld [vmem:[#allocation2 + $0xc8] sm:$0xf]
        %v7570 = vld [vmem:[#allocation2 + $0xe0] sm:$0xf]
        %v7571 = vld [vmem:[#allocation2 + $0xe4] sm:$0xf]
        %v7572 = vld [vmem:[#allocation2 + $0xfc] sm:$0xf]
        %v7573 = vld [vmem:[#allocation2 + $0x100] sm:$0xf]
        %v7574 = vld [vmem:[#allocation2 + $0x118] sm:$0xf]
        %v7575 = vld [vmem:[#allocation2 + $0x11c] sm:$0xf]
        %v7576 = vld [vmem:[#allocation2 + $0x134] sm:$0xf]
        %v7577 = vld [vmem:[#allocation2 + $0x138] sm:$0xf]
        %v7578 = vld [vmem:[#allocation2 + $0x150] sm:$0xf]
        %v7579 = vld [vmem:[#allocation2 + $0x154] sm:$0xf]
        %v7580 = vld [vmem:[#allocation2 + $0x16c] sm:$0xf]
        %v7581 = vld [vmem:[#allocation2 + $0x170] sm:$0xf]
        %v7582 = vld [vmem:[#allocation2 + $0x188] sm:$0xf]
        %v7583 = vld [vmem:[#allocation2 + $0x18c] sm:$0xf]
        %v7584 = vld [vmem:[#allocation2 + $0x1a4] sm:$0xf]
        %v7585 = vld [vmem:[#allocation2 + $0x1a8] sm:$0xf]
        %v7618 = vunpack.c.l.b16 %v7554
        %v7619 = vunpack.c.l.b16 %v7555
        %v7620 = vunpack.c.l.b16 %v7556
        %v7621 = vunpack.c.l.b16 %v7557
        %v7622 = vunpack.c.l.b16 %v7558
        %v7623 = vunpack.c.l.b16 %v7559
        %v7624 = vunpack.c.l.b16 %v7560
        %v7625 = vunpack.c.l.b16 %v7561
        %v7626 = vunpack.c.l.b16 %v7562
        %v7627 = vunpack.c.l.b16 %v7563
        %v7628 = vunpack.c.l.b16 %v7564
        %v7629 = vunpack.c.l.b16 %v7565
        %v7630 = vunpack.c.l.b16 %v7566
        %v7631 = vunpack.c.l.b16 %v7567
        %v7632 = vunpack.c.l.b16 %v7568
        %v7633 = vunpack.c.l.b16 %v7569
        %v7634 = vunpack.c.l.b16 %v7570
        %v7635 = vunpack.c.l.b16 %v7571
        %v7636 = vunpack.c.l.b16 %v7572
        %v7637 = vunpack.c.l.b16 %v7573
        %v7638 = vunpack.c.l.b16 %v7574
        %v7639 = vunpack.c.l.b16 %v7575
        %v7640 = vunpack.c.l.b16 %v7576
        %v7641 = vunpack.c.l.b16 %v7577
        %v7642 = vunpack.c.l.b16 %v7578
        %v7643 = vunpack.c.l.b16 %v7579
        %v7644 = vunpack.c.l.b16 %v7580
        %v7645 = vunpack.c.l.b16 %v7581
        %v7646 = vunpack.c.l.b16 %v7582
        %v7647 = vunpack.c.l.b16 %v7583
        %v7648 = vunpack.c.l.b16 %v7584
        %v7649 = vunpack.c.l.b16 %v7585
        %v7650 = vpack.c.b16 %v7619, %v7618
        %v7651 = vpack.c.b16 %v7621, %v7620
        %v7652 = vpack.c.b16 %v7623, %v7622
        %v7653 = vpack.c.b16 %v7625, %v7624
        %v7654 = vpack.c.b16 %v7627, %v7626
        %v7655 = vpack.c.b16 %v7629, %v7628
        %v7656 = vpack.c.b16 %v7631, %v7630
        %v7657 = vpack.c.b16 %v7633, %v7632
        %v7658 = vpack.c.b16 %v7635, %v7634
        %v7659 = vpack.c.b16 %v7637, %v7636
        %v7660 = vpack.c.b16 %v7639, %v7638
        %v7661 = vpack.c.b16 %v7641, %v7640
        %v7662 = vpack.c.b16 %v7643, %v7642
        %v7663 = vpack.c.b16 %v7645, %v7644
        %v7664 = vpack.c.b16 %v7647, %v7646
        %v7665 = vpack.c.b16 %v7649, %v7648
        %7682 = vst.msk [vmem:[#allocation3] sm:$0xff] %vm1022, %v7650
        %7683 = vst.msk [vmem:[#allocation3 + $0x8] sm:$0xff] %vm1022, %v7651
        %7684 = vst.msk [vmem:[#allocation3 + $0x10] sm:$0xff] %vm1022, %v7652
        %7685 = vst.msk [vmem:[#allocation3 + $0x18] sm:$0xff] %vm1022, %v7653
        %7686 = vst.msk [vmem:[#allocation3 + $0x20] sm:$0xff] %vm1022, %v7654
        %7687 = vst.msk [vmem:[#allocation3 + $0x28] sm:$0xff] %vm1022, %v7655
        %7688 = vst.msk [vmem:[#allocation3 + $0x30] sm:$0xff] %vm1022, %v7656
        %7689 = vst.msk [vmem:[#allocation3 + $0x38] sm:$0xff] %vm1022, %v7657
        %7690 = vst.msk [vmem:[#allocation3 + $0x40] sm:$0xff] %vm1022, %v7658
        %7691 = vst.msk [vmem:[#allocation3 + $0x48] sm:$0xff] %vm1022, %v7659
        %7692 = vst.msk [vmem:[#allocation3 + $0x50] sm:$0xff] %vm1022, %v7660
        %7693 = vst.msk [vmem:[#allocation3 + $0x58] sm:$0xff] %vm1022, %v7661
        %7694 = vst.msk [vmem:[#allocation3 + $0x60] sm:$0xff] %vm1022, %v7662
        %7695 = vst.msk [vmem:[#allocation3 + $0x68] sm:$0xff] %vm1022, %v7663
        %7696 = vst.msk [vmem:[#allocation3 + $0x70] sm:$0xff] %vm1022, %v7664
        %7697 = vst.msk [vmem:[#allocation3 + $0x78] sm:$0xff] %vm1022, %v7665
        %v7698 = vld [vmem:[#allocation2 + $0x8] sm:$0xe]
        %v7699 = vld [vmem:[#allocation2 + $0xc] sm:$0xf]
        %v7700 = vld [vmem:[#allocation2 + $0x10] sm:$0x1]
        %v7701 = vld [vmem:[#allocation2 + $0x24] sm:$0xe]
        %v7702 = vld [vmem:[#allocation2 + $0x28] sm:$0xf]
        %v7703 = vld [vmem:[#allocation2 + $0x2c] sm:$0x1]
        %v7704 = vld [vmem:[#allocation2 + $0x40] sm:$0xe]
        %v7705 = vld [vmem:[#allocation2 + $0x44] sm:$0xf]
        %v7706 = vld [vmem:[#allocation2 + $0x48] sm:$0x1]
        %v7707 = vld [vmem:[#allocation2 + $0x5c] sm:$0xe]
        %v7708 = vld [vmem:[#allocation2 + $0x60] sm:$0xf]
        %v7709 = vld [vmem:[#allocation2 + $0x64] sm:$0x1]
        %v7710 = vld [vmem:[#allocation2 + $0x78] sm:$0xe]
        %v7711 = vld [vmem:[#allocation2 + $0x7c] sm:$0xf]
        %v7712 = vld [vmem:[#allocation2 + $0x80] sm:$0x1]
        %v7713 = vld [vmem:[#allocation2 + $0x94] sm:$0xe]
        %v7714 = vld [vmem:[#allocation2 + $0x98] sm:$0xf]
        %v7715 = vld [vmem:[#allocation2 + $0x9c] sm:$0x1]
        %v7716 = vld [vmem:[#allocation2 + $0xb0] sm:$0xe]
        %v7717 = vld [vmem:[#allocation2 + $0xb4] sm:$0xf]
        %v7718 = vld [vmem:[#allocation2 + $0xb8] sm:$0x1]
        %v7719 = vld [vmem:[#allocation2 + $0xcc] sm:$0xe]
        %v7720 = vld [vmem:[#allocation2 + $0xd0] sm:$0xf]
        %v7721 = vld [vmem:[#allocation2 + $0xd4] sm:$0x1]
        %v7722 = vld [vmem:[#allocation2 + $0xe8] sm:$0xe]
        %v7723 = vld [vmem:[#allocation2 + $0xec] sm:$0xf]
        %v7724 = vld [vmem:[#allocation2 + $0xf0] sm:$0x1]
        %v7725 = vld [vmem:[#allocation2 + $0x104] sm:$0xe]
        %v7726 = vld [vmem:[#allocation2 + $0x108] sm:$0xf]
        %v7727 = vld [vmem:[#allocation2 + $0x10c] sm:$0x1]
        %v7728 = vld [vmem:[#allocation2 + $0x120] sm:$0xe]
        %v7729 = vld [vmem:[#allocation2 + $0x124] sm:$0xf]
        %v7730 = vld [vmem:[#allocation2 + $0x128] sm:$0x1]
        %v7731 = vld [vmem:[#allocation2 + $0x13c] sm:$0xe]
        %v7732 = vld [vmem:[#allocation2 + $0x140] sm:$0xf]
        %v7733 = vld [vmem:[#allocation2 + $0x144] sm:$0x1]
        %v7734 = vld [vmem:[#allocation2 + $0x158] sm:$0xe]
        %v7735 = vld [vmem:[#allocation2 + $0x15c] sm:$0xf]
        %v7736 = vld [vmem:[#allocation2 + $0x160] sm:$0x1]
        %v7737 = vld [vmem:[#allocation2 + $0x174] sm:$0xe]
        %v7738 = vld [vmem:[#allocation2 + $0x178] sm:$0xf]
        %v7739 = vld [vmem:[#allocation2 + $0x17c] sm:$0x1]
        %v7740 = vld [vmem:[#allocation2 + $0x190] sm:$0xe]
        %v7741 = vld [vmem:[#allocation2 + $0x194] sm:$0xf]
        %v7742 = vld [vmem:[#allocation2 + $0x198] sm:$0x1]
        %v7743 = vld [vmem:[#allocation2 + $0x1ac] sm:$0xe]
        %v7744 = vld [vmem:[#allocation2 + $0x1b0] sm:$0xf]
        %v7745 = vld [vmem:[#allocation2 + $0x1b4] sm:$0x1]
        %v7794 = vrot.slane %v7698, 5
        %v7795 = vrot.slane %v7794, 4
        %v7796 = vrot.slane %v7699, 5
        %v7797 = vsel %vm1763, %v7795, %v7796
        %v7798 = vrot.slane %v7796, 4
        %v7799 = vrot.slane %v7700, 5
        %v7800 = vsel %vm1763, %v7798, %v7799
        %v7801 = vrot.slane %v7701, 5
        %v7802 = vrot.slane %v7801, 4
        %v7803 = vrot.slane %v7702, 5
        %v7804 = vsel %vm1763, %v7802, %v7803
        %v7805 = vrot.slane %v7803, 4
        %v7806 = vrot.slane %v7703, 5
        %v7807 = vsel %vm1763, %v7805, %v7806
        %v7808 = vrot.slane %v7704, 5
        %v7809 = vrot.slane %v7808, 4
        %v7810 = vrot.slane %v7705, 5
        %v7811 = vsel %vm1763, %v7809, %v7810
        %v7812 = vrot.slane %v7810, 4
        %v7813 = vrot.slane %v7706, 5
        %v7814 = vsel %vm1763, %v7812, %v7813
        %v7815 = vrot.slane %v7707, 5
        %v7816 = vrot.slane %v7815, 4
        %v7817 = vrot.slane %v7708, 5
        %v7818 = vsel %vm1763, %v7816, %v7817
        %v7819 = vrot.slane %v7817, 4
        %v7820 = vrot.slane %v7709, 5
        %v7821 = vsel %vm1763, %v7819, %v7820
        %v7822 = vrot.slane %v7710, 5
        %v7823 = vrot.slane %v7822, 4
        %v7824 = vrot.slane %v7711, 5
        %v7825 = vsel %vm1763, %v7823, %v7824
        %v7826 = vrot.slane %v7824, 4
        %v7827 = vrot.slane %v7712, 5
        %v7828 = vsel %vm1763, %v7826, %v7827
        %v7829 = vrot.slane %v7713, 5
        %v7830 = vrot.slane %v7829, 4
        %v7831 = vrot.slane %v7714, 5
        %v7832 = vsel %vm1763, %v7830, %v7831
        %v7833 = vrot.slane %v7831, 4
        %v7834 = vrot.slane %v7715, 5
        %v7835 = vsel %vm1763, %v7833, %v7834
        %v7836 = vrot.slane %v7716, 5
        %v7837 = vrot.slane %v7836, 4
        %v7838 = vrot.slane %v7717, 5
        %v7839 = vsel %vm1763, %v7837, %v7838
        %v7840 = vrot.slane %v7838, 4
        %v7841 = vrot.slane %v7718, 5
        %v7842 = vsel %vm1763, %v7840, %v7841
        %v7843 = vrot.slane %v7719, 5
        %v7844 = vrot.slane %v7843, 4
        %v7845 = vrot.slane %v7720, 5
        %v7846 = vsel %vm1763, %v7844, %v7845
        %v7847 = vrot.slane %v7845, 4
        %v7848 = vrot.slane %v7721, 5
        %v7849 = vsel %vm1763, %v7847, %v7848
        %v7850 = vrot.slane %v7722, 5
        %v7851 = vrot.slane %v7850, 4
        %v7852 = vrot.slane %v7723, 5
        %v7853 = vsel %vm1763, %v7851, %v7852
        %v7854 = vrot.slane %v7852, 4
        %v7855 = vrot.slane %v7724, 5
        %v7856 = vsel %vm1763, %v7854, %v7855
        %v7857 = vrot.slane %v7725, 5
        %v7858 = vrot.slane %v7857, 4
        %v7859 = vrot.slane %v7726, 5
        %v7860 = vsel %vm1763, %v7858, %v7859
        %v7861 = vrot.slane %v7859, 4
        %v7862 = vrot.slane %v7727, 5
        %v7863 = vsel %vm1763, %v7861, %v7862
        %v7864 = vrot.slane %v7728, 5
        %v7865 = vrot.slane %v7864, 4
        %v7866 = vrot.slane %v7729, 5
        %v7867 = vsel %vm1763, %v7865, %v7866
        %v7868 = vrot.slane %v7866, 4
        %v7869 = vrot.slane %v7730, 5
        %v7870 = vsel %vm1763, %v7868, %v7869
        %v7871 = vrot.slane %v7731, 5
        %v7872 = vrot.slane %v7871, 4
        %v7873 = vrot.slane %v7732, 5
        %v7874 = vsel %vm1763, %v7872, %v7873
        %v7875 = vrot.slane %v7873, 4
        %v7876 = vrot.slane %v7733, 5
        %v7877 = vsel %vm1763, %v7875, %v7876
        %v7878 = vrot.slane %v7734, 5
        %v7879 = vrot.slane %v7878, 4
        %v7880 = vrot.slane %v7735, 5
        %v7881 = vsel %vm1763, %v7879, %v7880
        %v7882 = vrot.slane %v7880, 4
        %v7883 = vrot.slane %v7736, 5
        %v7884 = vsel %vm1763, %v7882, %v7883
        %v7885 = vrot.slane %v7737, 5
        %v7886 = vrot.slane %v7885, 4
        %v7887 = vrot.slane %v7738, 5
        %v7888 = vsel %vm1763, %v7886, %v7887
        %v7889 = vrot.slane %v7887, 4
        %v7890 = vrot.slane %v7739, 5
        %v7891 = vsel %vm1763, %v7889, %v7890
        %v7892 = vrot.slane %v7740, 5
        %v7893 = vrot.slane %v7892, 4
        %v7894 = vrot.slane %v7741, 5
        %v7895 = vsel %vm1763, %v7893, %v7894
        %v7896 = vrot.slane %v7894, 4
        %v7897 = vrot.slane %v7742, 5
        %v7898 = vsel %vm1763, %v7896, %v7897
        %v7899 = vrot.slane %v7743, 5
        %v7900 = vrot.slane %v7899, 4
        %v7901 = vrot.slane %v7744, 5
        %v7902 = vsel %vm1763, %v7900, %v7901
        %v7903 = vrot.slane %v7901, 4
        %v7904 = vrot.slane %v7745, 5
        %v7905 = vsel %vm1763, %v7903, %v7904
        %v7906 = vunpack.c.l.b16 %v7797
        %v7907 = vunpack.c.l.b16 %v7800
        %v7908 = vunpack.c.l.b16 %v7804
        %v7909 = vunpack.c.l.b16 %v7807
        %v7910 = vunpack.c.l.b16 %v7811
        %v7911 = vunpack.c.l.b16 %v7814
        %v7912 = vunpack.c.l.b16 %v7818
        %v7913 = vunpack.c.l.b16 %v7821
        %v7914 = vunpack.c.l.b16 %v7825
        %v7915 = vunpack.c.l.b16 %v7828
        %v7916 = vunpack.c.l.b16 %v7832
        %v7917 = vunpack.c.l.b16 %v7835
        %v7918 = vunpack.c.l.b16 %v7839
        %v7919 = vunpack.c.l.b16 %v7842
        %v7920 = vunpack.c.l.b16 %v7846
        %v7921 = vunpack.c.l.b16 %v7849
        %v7922 = vunpack.c.l.b16 %v7853
        %v7923 = vunpack.c.l.b16 %v7856
        %v7924 = vunpack.c.l.b16 %v7860
        %v7925 = vunpack.c.l.b16 %v7863
        %v7926 = vunpack.c.l.b16 %v7867
        %v7927 = vunpack.c.l.b16 %v7870
        %v7928 = vunpack.c.l.b16 %v7874
        %v7929 = vunpack.c.l.b16 %v7877
        %v7930 = vunpack.c.l.b16 %v7881
        %v7931 = vunpack.c.l.b16 %v7884
        %v7932 = vunpack.c.l.b16 %v7888
        %v7933 = vunpack.c.l.b16 %v7891
        %v7934 = vunpack.c.l.b16 %v7895
        %v7935 = vunpack.c.l.b16 %v7898
        %v7936 = vunpack.c.l.b16 %v7902
        %v7937 = vunpack.c.l.b16 %v7905
        %v7938 = vpack.c.b16 %v7907, %v7906
        %v7939 = vpack.c.b16 %v7909, %v7908
        %v7940 = vpack.c.b16 %v7911, %v7910
        %v7941 = vpack.c.b16 %v7913, %v7912
        %v7942 = vpack.c.b16 %v7915, %v7914
        %v7943 = vpack.c.b16 %v7917, %v7916
        %v7944 = vpack.c.b16 %v7919, %v7918
        %v7945 = vpack.c.b16 %v7921, %v7920
        %v7946 = vpack.c.b16 %v7923, %v7922
        %v7947 = vpack.c.b16 %v7925, %v7924
        %v7948 = vpack.c.b16 %v7927, %v7926
        %v7949 = vpack.c.b16 %v7929, %v7928
        %v7950 = vpack.c.b16 %v7931, %v7930
        %v7951 = vpack.c.b16 %v7933, %v7932
        %v7952 = vpack.c.b16 %v7935, %v7934
        %v7953 = vpack.c.b16 %v7937, %v7936
        %7954 = vrot.lane.b32.xlu0 %v7938, 4
        %v7955 = vpop.permute.xlu0 %7954
        %7956 = vrot.lane.b32.xlu0 %v7939, 4
        %v7957 = vpop.permute.xlu0 %7956
        %7958 = vrot.lane.b32.xlu0 %v7940, 4
        %v7959 = vpop.permute.xlu0 %7958
        %7960 = vrot.lane.b32.xlu0 %v7941, 4
        %v7961 = vpop.permute.xlu0 %7960
        %7962 = vrot.lane.b32.xlu0 %v7942, 4
        %v7963 = vpop.permute.xlu0 %7962
        %7964 = vrot.lane.b32.xlu0 %v7943, 4
        %v7965 = vpop.permute.xlu0 %7964
        %7966 = vrot.lane.b32.xlu0 %v7944, 4
        %v7967 = vpop.permute.xlu0 %7966
        %7968 = vrot.lane.b32.xlu0 %v7945, 4
        %v7969 = vpop.permute.xlu0 %7968
        %7970 = vrot.lane.b32.xlu0 %v7946, 4
        %v7971 = vpop.permute.xlu0 %7970
        %7972 = vrot.lane.b32.xlu0 %v7947, 4
        %v7973 = vpop.permute.xlu0 %7972
        %7974 = vrot.lane.b32.xlu0 %v7948, 4
        %v7975 = vpop.permute.xlu0 %7974
        %7976 = vrot.lane.b32.xlu0 %v7949, 4
        %v7977 = vpop.permute.xlu0 %7976
        %7978 = vrot.lane.b32.xlu0 %v7950, 4
        %v7979 = vpop.permute.xlu0 %7978
        %7980 = vrot.lane.b32.xlu0 %v7951, 4
        %v7981 = vpop.permute.xlu0 %7980
        %7982 = vrot.lane.b32.xlu0 %v7952, 4
        %v7983 = vpop.permute.xlu0 %7982
        %7984 = vrot.lane.b32.xlu0 %v7953, 4
        %v7985 = vpop.permute.xlu0 %7984
        %8002 = vst.msk [vmem:[#allocation3] sm:$0xff] %vm1972, %v7955
        %8003 = vst.msk [vmem:[#allocation3 + $0x8] sm:$0xff] %vm1972, %v7957
        %8004 = vst.msk [vmem:[#allocation3 + $0x10] sm:$0xff] %vm1972, %v7959
        %8005 = vst.msk [vmem:[#allocation3 + $0x18] sm:$0xff] %vm1972, %v7961
        %8006 = vst.msk [vmem:[#allocation3 + $0x20] sm:$0xff] %vm1972, %v7963
        %8007 = vst.msk [vmem:[#allocation3 + $0x28] sm:$0xff] %vm1972, %v7965
        %8008 = vst.msk [vmem:[#allocation3 + $0x30] sm:$0xff] %vm1972, %v7967
        %8009 = vst.msk [vmem:[#allocation3 + $0x38] sm:$0xff] %vm1972, %v7969
        %8010 = vst.msk [vmem:[#allocation3 + $0x40] sm:$0xff] %vm1972, %v7971
        %8011 = vst.msk [vmem:[#allocation3 + $0x48] sm:$0xff] %vm1972, %v7973
        %8012 = vst.msk [vmem:[#allocation3 + $0x50] sm:$0xff] %vm1972, %v7975
        %8013 = vst.msk [vmem:[#allocation3 + $0x58] sm:$0xff] %vm1972, %v7977
        %8014 = vst.msk [vmem:[#allocation3 + $0x60] sm:$0xff] %vm1972, %v7979
        %8015 = vst.msk [vmem:[#allocation3 + $0x68] sm:$0xff] %vm1972, %v7981
        %8016 = vst.msk [vmem:[#allocation3 + $0x70] sm:$0xff] %vm1972, %v7983
        %8017 = vst.msk [vmem:[#allocation3 + $0x78] sm:$0xff] %vm1972, %v7985
        %v8018 = vld [vmem:[#allocation2 + $0x10] sm:$0xc]
        %v8019 = vld [vmem:[#allocation2 + $0x14] sm:$0xf]
        %v8020 = vld [vmem:[#allocation2 + $0x18] sm:$0x3]
        %v8021 = vld [vmem:[#allocation2 + $0x2c] sm:$0xc]
        %v8022 = vld [vmem:[#allocation2 + $0x30] sm:$0xf]
        %v8023 = vld [vmem:[#allocation2 + $0x34] sm:$0x3]
        %v8024 = vld [vmem:[#allocation2 + $0x48] sm:$0xc]
        %v8025 = vld [vmem:[#allocation2 + $0x4c] sm:$0xf]
        %v8026 = vld [vmem:[#allocation2 + $0x50] sm:$0x3]
        %v8027 = vld [vmem:[#allocation2 + $0x64] sm:$0xc]
        %v8028 = vld [vmem:[#allocation2 + $0x68] sm:$0xf]
        %v8029 = vld [vmem:[#allocation2 + $0x6c] sm:$0x3]
        %v8030 = vld [vmem:[#allocation2 + $0x80] sm:$0xc]
        %v8031 = vld [vmem:[#allocation2 + $0x84] sm:$0xf]
        %v8032 = vld [vmem:[#allocation2 + $0x88] sm:$0x3]
        %v8033 = vld [vmem:[#allocation2 + $0x9c] sm:$0xc]
        %v8034 = vld [vmem:[#allocation2 + $0xa0] sm:$0xf]
        %v8035 = vld [vmem:[#allocation2 + $0xa4] sm:$0x3]
        %v8036 = vld [vmem:[#allocation2 + $0xb8] sm:$0xc]
        %v8037 = vld [vmem:[#allocation2 + $0xbc] sm:$0xf]
        %v8038 = vld [vmem:[#allocation2 + $0xc0] sm:$0x3]
        %v8039 = vld [vmem:[#allocation2 + $0xd4] sm:$0xc]
        %v8040 = vld [vmem:[#allocation2 + $0xd8] sm:$0xf]
        %v8041 = vld [vmem:[#allocation2 + $0xdc] sm:$0x3]
        %v8042 = vld [vmem:[#allocation2 + $0xf0] sm:$0xc]
        %v8043 = vld [vmem:[#allocation2 + $0xf4] sm:$0xf]
        %v8044 = vld [vmem:[#allocation2 + $0xf8] sm:$0x3]
        %v8045 = vld [vmem:[#allocation2 + $0x10c] sm:$0xc]
        %v8046 = vld [vmem:[#allocation2 + $0x110] sm:$0xf]
        %v8047 = vld [vmem:[#allocation2 + $0x114] sm:$0x3]
        %v8048 = vld [vmem:[#allocation2 + $0x128] sm:$0xc]
        %v8049 = vld [vmem:[#allocation2 + $0x12c] sm:$0xf]
        %v8050 = vld [vmem:[#allocation2 + $0x130] sm:$0x3]
        %v8051 = vld [vmem:[#allocation2 + $0x144] sm:$0xc]
        %v8052 = vld [vmem:[#allocation2 + $0x148] sm:$0xf]
        %v8053 = vld [vmem:[#allocation2 + $0x14c] sm:$0x3]
        %v8054 = vld [vmem:[#allocation2 + $0x160] sm:$0xc]
        %v8055 = vld [vmem:[#allocation2 + $0x164] sm:$0xf]
        %v8056 = vld [vmem:[#allocation2 + $0x168] sm:$0x3]
        %v8057 = vld [vmem:[#allocation2 + $0x17c] sm:$0xc]
        %v8058 = vld [vmem:[#allocation2 + $0x180] sm:$0xf]
        %v8059 = vld [vmem:[#allocation2 + $0x184] sm:$0x3]
        %v8060 = vld [vmem:[#allocation2 + $0x198] sm:$0xc]
        %v8061 = vld [vmem:[#allocation2 + $0x19c] sm:$0xf]
        %v8062 = vld [vmem:[#allocation2 + $0x1a0] sm:$0x3]
        %v8063 = vld [vmem:[#allocation2 + $0x1b4] sm:$0xc]
        %v8064 = vld [vmem:[#allocation2 + $0x1b8] sm:$0xf]
        %v8065 = vld [vmem:[#allocation2 + $0x1bc] sm:$0x3]
        %v8114 = vrot.slane %v8018, 6
        %v8115 = vrot.slane %v8114, 4
        %v8116 = vrot.slane %v8019, 6
        %v8117 = vsel %vm1472, %v8115, %v8116
        %v8118 = vrot.slane %v8116, 4
        %v8119 = vrot.slane %v8020, 6
        %v8120 = vsel %vm1472, %v8118, %v8119
        %v8121 = vrot.slane %v8021, 6
        %v8122 = vrot.slane %v8121, 4
        %v8123 = vrot.slane %v8022, 6
        %v8124 = vsel %vm1472, %v8122, %v8123
        %v8125 = vrot.slane %v8123, 4
        %v8126 = vrot.slane %v8023, 6
        %v8127 = vsel %vm1472, %v8125, %v8126
        %v8128 = vrot.slane %v8024, 6
        %v8129 = vrot.slane %v8128, 4
        %v8130 = vrot.slane %v8025, 6
        %v8131 = vsel %vm1472, %v8129, %v8130
        %v8132 = vrot.slane %v8130, 4
        %v8133 = vrot.slane %v8026, 6
        %v8134 = vsel %vm1472, %v8132, %v8133
        %v8135 = vrot.slane %v8027, 6
        %v8136 = vrot.slane %v8135, 4
        %v8137 = vrot.slane %v8028, 6
        %v8138 = vsel %vm1472, %v8136, %v8137
        %v8139 = vrot.slane %v8137, 4
        %v8140 = vrot.slane %v8029, 6
        %v8141 = vsel %vm1472, %v8139, %v8140
        %v8142 = vrot.slane %v8030, 6
        %v8143 = vrot.slane %v8142, 4
        %v8144 = vrot.slane %v8031, 6
        %v8145 = vsel %vm1472, %v8143, %v8144
        %v8146 = vrot.slane %v8144, 4
        %v8147 = vrot.slane %v8032, 6
        %v8148 = vsel %vm1472, %v8146, %v8147
        %v8149 = vrot.slane %v8033, 6
        %v8150 = vrot.slane %v8149, 4
        %v8151 = vrot.slane %v8034, 6
        %v8152 = vsel %vm1472, %v8150, %v8151
        %v8153 = vrot.slane %v8151, 4
        %v8154 = vrot.slane %v8035, 6
        %v8155 = vsel %vm1472, %v8153, %v8154
        %v8156 = vrot.slane %v8036, 6
        %v8157 = vrot.slane %v8156, 4
        %v8158 = vrot.slane %v8037, 6
        %v8159 = vsel %vm1472, %v8157, %v8158
        %v8160 = vrot.slane %v8158, 4
        %v8161 = vrot.slane %v8038, 6
        %v8162 = vsel %vm1472, %v8160, %v8161
        %v8163 = vrot.slane %v8039, 6
        %v8164 = vrot.slane %v8163, 4
        %v8165 = vrot.slane %v8040, 6
        %v8166 = vsel %vm1472, %v8164, %v8165
        %v8167 = vrot.slane %v8165, 4
        %v8168 = vrot.slane %v8041, 6
        %v8169 = vsel %vm1472, %v8167, %v8168
        %v8170 = vrot.slane %v8042, 6
        %v8171 = vrot.slane %v8170, 4
        %v8172 = vrot.slane %v8043, 6
        %v8173 = vsel %vm1472, %v8171, %v8172
        %v8174 = vrot.slane %v8172, 4
        %v8175 = vrot.slane %v8044, 6
        %v8176 = vsel %vm1472, %v8174, %v8175
        %v8177 = vrot.slane %v8045, 6
        %v8178 = vrot.slane %v8177, 4
        %v8179 = vrot.slane %v8046, 6
        %v8180 = vsel %vm1472, %v8178, %v8179
        %v8181 = vrot.slane %v8179, 4
        %v8182 = vrot.slane %v8047, 6
        %v8183 = vsel %vm1472, %v8181, %v8182
        %v8184 = vrot.slane %v8048, 6
        %v8185 = vrot.slane %v8184, 4
        %v8186 = vrot.slane %v8049, 6
        %v8187 = vsel %vm1472, %v8185, %v8186
        %v8188 = vrot.slane %v8186, 4
        %v8189 = vrot.slane %v8050, 6
        %v8190 = vsel %vm1472, %v8188, %v8189
        %v8191 = vrot.slane %v8051, 6
        %v8192 = vrot.slane %v8191, 4
        %v8193 = vrot.slane %v8052, 6
        %v8194 = vsel %vm1472, %v8192, %v8193
        %v8195 = vrot.slane %v8193, 4
        %v8196 = vrot.slane %v8053, 6
        %v8197 = vsel %vm1472, %v8195, %v8196
        %v8198 = vrot.slane %v8054, 6
        %v8199 = vrot.slane %v8198, 4
        %v8200 = vrot.slane %v8055, 6
        %v8201 = vsel %vm1472, %v8199, %v8200
        %v8202 = vrot.slane %v8200, 4
        %v8203 = vrot.slane %v8056, 6
        %v8204 = vsel %vm1472, %v8202, %v8203
        %v8205 = vrot.slane %v8057, 6
        %v8206 = vrot.slane %v8205, 4
        %v8207 = vrot.slane %v8058, 6
        %v8208 = vsel %vm1472, %v8206, %v8207
        %v8209 = vrot.slane %v8207, 4
        %v8210 = vrot.slane %v8059, 6
        %v8211 = vsel %vm1472, %v8209, %v8210
        %v8212 = vrot.slane %v8060, 6
        %v8213 = vrot.slane %v8212, 4
        %v8214 = vrot.slane %v8061, 6
        %v8215 = vsel %vm1472, %v8213, %v8214
        %v8216 = vrot.slane %v8214, 4
        %v8217 = vrot.slane %v8062, 6
        %v8218 = vsel %vm1472, %v8216, %v8217
        %v8219 = vrot.slane %v8063, 6
        %v8220 = vrot.slane %v8219, 4
        %v8221 = vrot.slane %v8064, 6
        %v8222 = vsel %vm1472, %v8220, %v8221
        %v8223 = vrot.slane %v8221, 4
        %v8224 = vrot.slane %v8065, 6
        %v8225 = vsel %vm1472, %v8223, %v8224
        %v8226 = vunpack.c.l.b16 %v8117
        %v8227 = vunpack.c.l.b16 %v8120
        %v8228 = vunpack.c.l.b16 %v8124
        %v8229 = vunpack.c.l.b16 %v8127
        %v8230 = vunpack.c.l.b16 %v8131
        %v8231 = vunpack.c.l.b16 %v8134
        %v8232 = vunpack.c.l.b16 %v8138
        %v8233 = vunpack.c.l.b16 %v8141
        %v8234 = vunpack.c.l.b16 %v8145
        %v8235 = vunpack.c.l.b16 %v8148
        %v8236 = vunpack.c.l.b16 %v8152
        %v8237 = vunpack.c.l.b16 %v8155
        %v8238 = vunpack.c.l.b16 %v8159
        %v8239 = vunpack.c.l.b16 %v8162
        %v8240 = vunpack.c.l.b16 %v8166
        %v8241 = vunpack.c.l.b16 %v8169
        %v8242 = vunpack.c.l.b16 %v8173
        %v8243 = vunpack.c.l.b16 %v8176
        %v8244 = vunpack.c.l.b16 %v8180
        %v8245 = vunpack.c.l.b16 %v8183
        %v8246 = vunpack.c.l.b16 %v8187
        %v8247 = vunpack.c.l.b16 %v8190
        %v8248 = vunpack.c.l.b16 %v8194
        %v8249 = vunpack.c.l.b16 %v8197
        %v8250 = vunpack.c.l.b16 %v8201
        %v8251 = vunpack.c.l.b16 %v8204
        %v8252 = vunpack.c.l.b16 %v8208
        %v8253 = vunpack.c.l.b16 %v8211
        %v8254 = vunpack.c.l.b16 %v8215
        %v8255 = vunpack.c.l.b16 %v8218
        %v8256 = vunpack.c.l.b16 %v8222
        %v8257 = vunpack.c.l.b16 %v8225
        %v8258 = vpack.c.b16 %v8227, %v8226
        %v8259 = vpack.c.b16 %v8229, %v8228
        %v8260 = vpack.c.b16 %v8231, %v8230
        %v8261 = vpack.c.b16 %v8233, %v8232
        %v8262 = vpack.c.b16 %v8235, %v8234
        %v8263 = vpack.c.b16 %v8237, %v8236
        %v8264 = vpack.c.b16 %v8239, %v8238
        %v8265 = vpack.c.b16 %v8241, %v8240
        %v8266 = vpack.c.b16 %v8243, %v8242
        %v8267 = vpack.c.b16 %v8245, %v8244
        %v8268 = vpack.c.b16 %v8247, %v8246
        %v8269 = vpack.c.b16 %v8249, %v8248
        %v8270 = vpack.c.b16 %v8251, %v8250
        %v8271 = vpack.c.b16 %v8253, %v8252
        %v8272 = vpack.c.b16 %v8255, %v8254
        %v8273 = vpack.c.b16 %v8257, %v8256
        %8274 = vrot.lane.b32.xlu0 %v8258, 8
        %v8275 = vpop.permute.xlu0 %8274
        %8276 = vrot.lane.b32.xlu0 %v8259, 8
        %v8277 = vpop.permute.xlu0 %8276
        %8278 = vrot.lane.b32.xlu0 %v8260, 8
        %v8279 = vpop.permute.xlu0 %8278
        %8280 = vrot.lane.b32.xlu0 %v8261, 8
        %v8281 = vpop.permute.xlu0 %8280
        %8282 = vrot.lane.b32.xlu0 %v8262, 8
        %v8283 = vpop.permute.xlu0 %8282
        %8284 = vrot.lane.b32.xlu0 %v8263, 8
        %v8285 = vpop.permute.xlu0 %8284
        %8286 = vrot.lane.b32.xlu0 %v8264, 8
        %v8287 = vpop.permute.xlu0 %8286
        %8288 = vrot.lane.b32.xlu0 %v8265, 8
        %v8289 = vpop.permute.xlu0 %8288
        %8290 = vrot.lane.b32.xlu0 %v8266, 8
        %v8291 = vpop.permute.xlu0 %8290
        %8292 = vrot.lane.b32.xlu0 %v8267, 8
        %v8293 = vpop.permute.xlu0 %8292
        %8294 = vrot.lane.b32.xlu0 %v8268, 8
        %v8295 = vpop.permute.xlu0 %8294
        %8296 = vrot.lane.b32.xlu0 %v8269, 8
        %v8297 = vpop.permute.xlu0 %8296
        %8298 = vrot.lane.b32.xlu0 %v8270, 8
        %v8299 = vpop.permute.xlu0 %8298
        %8300 = vrot.lane.b32.xlu0 %v8271, 8
        %v8301 = vpop.permute.xlu0 %8300
        %8302 = vrot.lane.b32.xlu0 %v8272, 8
        %v8303 = vpop.permute.xlu0 %8302
        %8304 = vrot.lane.b32.xlu0 %v8273, 8
        %v8305 = vpop.permute.xlu0 %8304
        %8322 = vst.msk [vmem:[#allocation3] sm:$0xff] %vm2149, %v8275
        %8323 = vst.msk [vmem:[#allocation3 + $0x8] sm:$0xff] %vm2149, %v8277
        %8324 = vst.msk [vmem:[#allocation3 + $0x10] sm:$0xff] %vm2149, %v8279
        %8325 = vst.msk [vmem:[#allocation3 + $0x18] sm:$0xff] %vm2149, %v8281
        %8326 = vst.msk [vmem:[#allocation3 + $0x20] sm:$0xff] %vm2149, %v8283
        %8327 = vst.msk [vmem:[#allocation3 + $0x28] sm:$0xff] %vm2149, %v8285
        %8328 = vst.msk [vmem:[#allocation3 + $0x30] sm:$0xff] %vm2149, %v8287
        %8329 = vst.msk [vmem:[#allocation3 + $0x38] sm:$0xff] %vm2149, %v8289
        %8330 = vst.msk [vmem:[#allocation3 + $0x40] sm:$0xff] %vm2149, %v8291
        %8331 = vst.msk [vmem:[#allocation3 + $0x48] sm:$0xff] %vm2149, %v8293
        %8332 = vst.msk [vmem:[#allocation3 + $0x50] sm:$0xff] %vm2149, %v8295
        %8333 = vst.msk [vmem:[#allocation3 + $0x58] sm:$0xff] %vm2149, %v8297
        %8334 = vst.msk [vmem:[#allocation3 + $0x60] sm:$0xff] %vm2149, %v8299
        %8335 = vst.msk [vmem:[#allocation3 + $0x68] sm:$0xff] %vm2149, %v8301
        %8336 = vst.msk [vmem:[#allocation3 + $0x70] sm:$0xff] %vm2149, %v8303
        %8337 = vst.msk [vmem:[#allocation3 + $0x78] sm:$0xff] %vm2149, %v8305
        %v8338 = vld [vmem:[%s920] sm:$0xf]
        %v8339 = vld [vmem:[%s920 + $0x4] sm:$0xf]
        %v8340 = vld [vmem:[%s920 + $0x1c] sm:$0xf]
        %v8341 = vld [vmem:[%s920 + $0x20] sm:$0xf]
        %v8342 = vld [vmem:[%s920 + $0x38] sm:$0xf]
        %v8343 = vld [vmem:[%s920 + $0x3c] sm:$0xf]
        %v8344 = vld [vmem:[%s920 + $0x54] sm:$0xf]
        %v8345 = vld [vmem:[%s920 + $0x58] sm:$0xf]
        %v8346 = vld [vmem:[%s920 + $0x70] sm:$0xf]
        %v8347 = vld [vmem:[%s920 + $0x74] sm:$0xf]
        %v8348 = vld [vmem:[%s920 + $0x8c] sm:$0xf]
        %v8349 = vld [vmem:[%s920 + $0x90] sm:$0xf]
        %v8350 = vld [vmem:[%s920 + $0xa8] sm:$0xf]
        %v8351 = vld [vmem:[%s920 + $0xac] sm:$0xf]
        %v8352 = vld [vmem:[%s920 + $0xc4] sm:$0xf]
        %v8353 = vld [vmem:[%s920 + $0xc8] sm:$0xf]
        %v8354 = vld [vmem:[%s920 + $0xe0] sm:$0xf]
        %v8355 = vld [vmem:[%s920 + $0xe4] sm:$0xf]
        %v8356 = vld [vmem:[%s920 + $0xfc] sm:$0xf]
        %v8357 = vld [vmem:[%s920 + $0x100] sm:$0xf]
        %v8358 = vld [vmem:[%s920 + $0x118] sm:$0xf]
        %v8359 = vld [vmem:[%s920 + $0x11c] sm:$0xf]
        %v8360 = vld [vmem:[%s920 + $0x134] sm:$0xf]
        %v8361 = vld [vmem:[%s920 + $0x138] sm:$0xf]
        %v8362 = vld [vmem:[%s920 + $0x150] sm:$0xf]
        %v8363 = vld [vmem:[%s920 + $0x154] sm:$0xf]
        %v8364 = vld [vmem:[%s920 + $0x16c] sm:$0xf]
        %v8365 = vld [vmem:[%s920 + $0x170] sm:$0xf]
        %v8366 = vld [vmem:[%s920 + $0x188] sm:$0xf]
        %v8367 = vld [vmem:[%s920 + $0x18c] sm:$0xf]
        %v8368 = vld [vmem:[%s920 + $0x1a4] sm:$0xf]
        %v8369 = vld [vmem:[%s920 + $0x1a8] sm:$0xf]
        %v8402 = vunpack.c.l.b16 %v8338
        %v8403 = vunpack.c.l.b16 %v8339
        %v8404 = vunpack.c.l.b16 %v8340
        %v8405 = vunpack.c.l.b16 %v8341
        %v8406 = vunpack.c.l.b16 %v8342
        %v8407 = vunpack.c.l.b16 %v8343
        %v8408 = vunpack.c.l.b16 %v8344
        %v8409 = vunpack.c.l.b16 %v8345
        %v8410 = vunpack.c.l.b16 %v8346
        %v8411 = vunpack.c.l.b16 %v8347
        %v8412 = vunpack.c.l.b16 %v8348
        %v8413 = vunpack.c.l.b16 %v8349
        %v8414 = vunpack.c.l.b16 %v8350
        %v8415 = vunpack.c.l.b16 %v8351
        %v8416 = vunpack.c.l.b16 %v8352
        %v8417 = vunpack.c.l.b16 %v8353
        %v8418 = vunpack.c.l.b16 %v8354
        %v8419 = vunpack.c.l.b16 %v8355
        %v8420 = vunpack.c.l.b16 %v8356
        %v8421 = vunpack.c.l.b16 %v8357
        %v8422 = vunpack.c.l.b16 %v8358
        %v8423 = vunpack.c.l.b16 %v8359
        %v8424 = vunpack.c.l.b16 %v8360
        %v8425 = vunpack.c.l.b16 %v8361
        %v8426 = vunpack.c.l.b16 %v8362
        %v8427 = vunpack.c.l.b16 %v8363
        %v8428 = vunpack.c.l.b16 %v8364
        %v8429 = vunpack.c.l.b16 %v8365
        %v8430 = vunpack.c.l.b16 %v8366
        %v8431 = vunpack.c.l.b16 %v8367
        %v8432 = vunpack.c.l.b16 %v8368
        %v8433 = vunpack.c.l.b16 %v8369
        %v8434 = vpack.c.b16 %v8403, %v8402
        %v8435 = vpack.c.b16 %v8405, %v8404
        %v8436 = vpack.c.b16 %v8407, %v8406
        %v8437 = vpack.c.b16 %v8409, %v8408
        %v8438 = vpack.c.b16 %v8411, %v8410
        %v8439 = vpack.c.b16 %v8413, %v8412
        %v8440 = vpack.c.b16 %v8415, %v8414
        %v8441 = vpack.c.b16 %v8417, %v8416
        %v8442 = vpack.c.b16 %v8419, %v8418
        %v8443 = vpack.c.b16 %v8421, %v8420
        %v8444 = vpack.c.b16 %v8423, %v8422
        %v8445 = vpack.c.b16 %v8425, %v8424
        %v8446 = vpack.c.b16 %v8427, %v8426
        %v8447 = vpack.c.b16 %v8429, %v8428
        %v8448 = vpack.c.b16 %v8431, %v8430
        %v8449 = vpack.c.b16 %v8433, %v8432
        %8450 = vrot.lane.b32.xlu0 %v8434, 12
        %v8451 = vpop.permute.xlu0 %8450
        %8452 = vrot.lane.b32.xlu0 %v8435, 12
        %v8453 = vpop.permute.xlu0 %8452
        %8454 = vrot.lane.b32.xlu0 %v8436, 12
        %v8455 = vpop.permute.xlu0 %8454
        %8456 = vrot.lane.b32.xlu0 %v8437, 12
        %v8457 = vpop.permute.xlu0 %8456
        %8458 = vrot.lane.b32.xlu0 %v8438, 12
        %v8459 = vpop.permute.xlu0 %8458
        %8460 = vrot.lane.b32.xlu0 %v8439, 12
        %v8461 = vpop.permute.xlu0 %8460
        %8462 = vrot.lane.b32.xlu0 %v8440, 12
        %v8463 = vpop.permute.xlu0 %8462
        %8464 = vrot.lane.b32.xlu0 %v8441, 12
        %v8465 = vpop.permute.xlu0 %8464
        %8466 = vrot.lane.b32.xlu0 %v8442, 12
        %v8467 = vpop.permute.xlu0 %8466
        %8468 = vrot.lane.b32.xlu0 %v8443, 12
        %v8469 = vpop.permute.xlu0 %8468
        %8470 = vrot.lane.b32.xlu0 %v8444, 12
        %v8471 = vpop.permute.xlu0 %8470
        %8472 = vrot.lane.b32.xlu0 %v8445, 12
        %v8473 = vpop.permute.xlu0 %8472
        %8474 = vrot.lane.b32.xlu0 %v8446, 12
        %v8475 = vpop.permute.xlu0 %8474
        %8476 = vrot.lane.b32.xlu0 %v8447, 12
        %v8477 = vpop.permute.xlu0 %8476
        %8478 = vrot.lane.b32.xlu0 %v8448, 12
        %v8479 = vpop.permute.xlu0 %8478
        %8480 = vrot.lane.b32.xlu0 %v8449, 12
        %v8481 = vpop.permute.xlu0 %8480
        %8498 = vst.msk [vmem:[#allocation3] sm:$0xff] %vm2470, %v8451
        %8499 = vst.msk [vmem:[#allocation3 + $0x8] sm:$0xff] %vm2470, %v8453
        %8500 = vst.msk [vmem:[#allocation3 + $0x10] sm:$0xff] %vm2470, %v8455
        %8501 = vst.msk [vmem:[#allocation3 + $0x18] sm:$0xff] %vm2470, %v8457
        %8502 = vst.msk [vmem:[#allocation3 + $0x20] sm:$0xff] %vm2470, %v8459
        %8503 = vst.msk [vmem:[#allocation3 + $0x28] sm:$0xff] %vm2470, %v8461
        %8504 = vst.msk [vmem:[#allocation3 + $0x30] sm:$0xff] %vm2470, %v8463
        %8505 = vst.msk [vmem:[#allocation3 + $0x38] sm:$0xff] %vm2470, %v8465
        %8506 = vst.msk [vmem:[#allocation3 + $0x40] sm:$0xff] %vm2470, %v8467
        %8507 = vst.msk [vmem:[#allocation3 + $0x48] sm:$0xff] %vm2470, %v8469
        %8508 = vst.msk [vmem:[#allocation3 + $0x50] sm:$0xff] %vm2470, %v8471
        %8509 = vst.msk [vmem:[#allocation3 + $0x58] sm:$0xff] %vm2470, %v8473
        %8510 = vst.msk [vmem:[#allocation3 + $0x60] sm:$0xff] %vm2470, %v8475
        %8511 = vst.msk [vmem:[#allocation3 + $0x68] sm:$0xff] %vm2470, %v8477
        %8512 = vst.msk [vmem:[#allocation3 + $0x70] sm:$0xff] %vm2470, %v8479
        %8513 = vst.msk [vmem:[#allocation3 + $0x78] sm:$0xff] %vm2470, %v8481
        %v8514 = vld [vmem:[%s920 + $0x8] sm:$0xe]
        %v8515 = vld [vmem:[%s920 + $0xc] sm:$0xf]
        %v8516 = vld [vmem:[%s920 + $0x10] sm:$0x1]
        %v8517 = vld [vmem:[%s920 + $0x24] sm:$0xe]
        %v8518 = vld [vmem:[%s920 + $0x28] sm:$0xf]
        %v8519 = vld [vmem:[%s920 + $0x2c] sm:$0x1]
        %v8520 = vld [vmem:[%s920 + $0x40] sm:$0xe]
        %v8521 = vld [vmem:[%s920 + $0x44] sm:$0xf]
        %v8522 = vld [vmem:[%s920 + $0x48] sm:$0x1]
        %v8523 = vld [vmem:[%s920 + $0x5c] sm:$0xe]
        %v8524 = vld [vmem:[%s920 + $0x60] sm:$0xf]
        %v8525 = vld [vmem:[%s920 + $0x64] sm:$0x1]
        %v8526 = vld [vmem:[%s920 + $0x78] sm:$0xe]
        %v8527 = vld [vmem:[%s920 + $0x7c] sm:$0xf]
        %v8528 = vld [vmem:[%s920 + $0x80] sm:$0x1]
        %v8529 = vld [vmem:[%s920 + $0x94] sm:$0xe]
        %v8530 = vld [vmem:[%s920 + $0x98] sm:$0xf]
        %v8531 = vld [vmem:[%s920 + $0x9c] sm:$0x1]
        %v8532 = vld [vmem:[%s920 + $0xb0] sm:$0xe]
        %v8533 = vld [vmem:[%s920 + $0xb4] sm:$0xf]
        %v8534 = vld [vmem:[%s920 + $0xb8] sm:$0x1]
        %v8535 = vld [vmem:[%s920 + $0xcc] sm:$0xe]
        %v8536 = vld [vmem:[%s920 + $0xd0] sm:$0xf]
        %v8537 = vld [vmem:[%s920 + $0xd4] sm:$0x1]
        %v8538 = vld [vmem:[%s920 + $0xe8] sm:$0xe]
        %v8539 = vld [vmem:[%s920 + $0xec] sm:$0xf]
        %v8540 = vld [vmem:[%s920 + $0xf0] sm:$0x1]
        %v8541 = vld [vmem:[%s920 + $0x104] sm:$0xe]
        %v8542 = vld [vmem:[%s920 + $0x108] sm:$0xf]
        %v8543 = vld [vmem:[%s920 + $0x10c] sm:$0x1]
        %v8544 = vld [vmem:[%s920 + $0x120] sm:$0xe]
        %v8545 = vld [vmem:[%s920 + $0x124] sm:$0xf]
        %v8546 = vld [vmem:[%s920 + $0x128] sm:$0x1]
        %v8547 = vld [vmem:[%s920 + $0x13c] sm:$0xe]
        %v8548 = vld [vmem:[%s920 + $0x140] sm:$0xf]
        %v8549 = vld [vmem:[%s920 + $0x144] sm:$0x1]
        %v8550 = vld [vmem:[%s920 + $0x158] sm:$0xe]
        %v8551 = vld [vmem:[%s920 + $0x15c] sm:$0xf]
        %v8552 = vld [vmem:[%s920 + $0x160] sm:$0x1]
        %v8553 = vld [vmem:[%s920 + $0x174] sm:$0xe]
        %v8554 = vld [vmem:[%s920 + $0x178] sm:$0xf]
        %v8555 = vld [vmem:[%s920 + $0x17c] sm:$0x1]
        %v8556 = vld [vmem:[%s920 + $0x190] sm:$0xe]
        %v8557 = vld [vmem:[%s920 + $0x194] sm:$0xf]
        %v8558 = vld [vmem:[%s920 + $0x198] sm:$0x1]
        %v8559 = vld [vmem:[%s920 + $0x1ac] sm:$0xe]
        %v8560 = vld [vmem:[%s920 + $0x1b0] sm:$0xf]
        %v8561 = vld [vmem:[%s920 + $0x1b4] sm:$0x1]
        %v8610 = vrot.slane %v8514, 5
        %v8611 = vrot.slane %v8610, 4
        %v8612 = vrot.slane %v8515, 5
        %v8613 = vsel %vm1763, %v8611, %v8612
        %v8614 = vrot.slane %v8612, 4
        %v8615 = vrot.slane %v8516, 5
        %v8616 = vsel %vm1763, %v8614, %v8615
        %v8617 = vrot.slane %v8517, 5
        %v8618 = vrot.slane %v8617, 4
        %v8619 = vrot.slane %v8518, 5
        %v8620 = vsel %vm1763, %v8618, %v8619
        %v8621 = vrot.slane %v8619, 4
        %v8622 = vrot.slane %v8519, 5
        %v8623 = vsel %vm1763, %v8621, %v8622
        %v8624 = vrot.slane %v8520, 5
        %v8625 = vrot.slane %v8624, 4
        %v8626 = vrot.slane %v8521, 5
        %v8627 = vsel %vm1763, %v8625, %v8626
        %v8628 = vrot.slane %v8626, 4
        %v8629 = vrot.slane %v8522, 5
        %v8630 = vsel %vm1763, %v8628, %v8629
        %v8631 = vrot.slane %v8523, 5
        %v8632 = vrot.slane %v8631, 4
        %v8633 = vrot.slane %v8524, 5
        %v8634 = vsel %vm1763, %v8632, %v8633
        %v8635 = vrot.slane %v8633, 4
        %v8636 = vrot.slane %v8525, 5
        %v8637 = vsel %vm1763, %v8635, %v8636
        %v8638 = vrot.slane %v8526, 5
        %v8639 = vrot.slane %v8638, 4
        %v8640 = vrot.slane %v8527, 5
        %v8641 = vsel %vm1763, %v8639, %v8640
        %v8642 = vrot.slane %v8640, 4
        %v8643 = vrot.slane %v8528, 5
        %v8644 = vsel %vm1763, %v8642, %v8643
        %v8645 = vrot.slane %v8529, 5
        %v8646 = vrot.slane %v8645, 4
        %v8647 = vrot.slane %v8530, 5
        %v8648 = vsel %vm1763, %v8646, %v8647
        %v8649 = vrot.slane %v8647, 4
        %v8650 = vrot.slane %v8531, 5
        %v8651 = vsel %vm1763, %v8649, %v8650
        %v8652 = vrot.slane %v8532, 5
        %v8653 = vrot.slane %v8652, 4
        %v8654 = vrot.slane %v8533, 5
        %v8655 = vsel %vm1763, %v8653, %v8654
        %v8656 = vrot.slane %v8654, 4
        %v8657 = vrot.slane %v8534, 5
        %v8658 = vsel %vm1763, %v8656, %v8657
        %v8659 = vrot.slane %v8535, 5
        %v8660 = vrot.slane %v8659, 4
        %v8661 = vrot.slane %v8536, 5
        %v8662 = vsel %vm1763, %v8660, %v8661
        %v8663 = vrot.slane %v8661, 4
        %v8664 = vrot.slane %v8537, 5
        %v8665 = vsel %vm1763, %v8663, %v8664
        %v8666 = vrot.slane %v8538, 5
        %v8667 = vrot.slane %v8666, 4
        %v8668 = vrot.slane %v8539, 5
        %v8669 = vsel %vm1763, %v8667, %v8668
        %v8670 = vrot.slane %v8668, 4
        %v8671 = vrot.slane %v8540, 5
        %v8672 = vsel %vm1763, %v8670, %v8671
        %v8673 = vrot.slane %v8541, 5
        %v8674 = vrot.slane %v8673, 4
        %v8675 = vrot.slane %v8542, 5
        %v8676 = vsel %vm1763, %v8674, %v8675
        %v8677 = vrot.slane %v8675, 4
        %v8678 = vrot.slane %v8543, 5
        %v8679 = vsel %vm1763, %v8677, %v8678
        %v8680 = vrot.slane %v8544, 5
        %v8681 = vrot.slane %v8680, 4
        %v8682 = vrot.slane %v8545, 5
        %v8683 = vsel %vm1763, %v8681, %v8682
        %v8684 = vrot.slane %v8682, 4
        %v8685 = vrot.slane %v8546, 5
        %v8686 = vsel %vm1763, %v8684, %v8685
        %v8687 = vrot.slane %v8547, 5
        %v8688 = vrot.slane %v8687, 4
        %v8689 = vrot.slane %v8548, 5
        %v8690 = vsel %vm1763, %v8688, %v8689
        %v8691 = vrot.slane %v8689, 4
        %v8692 = vrot.slane %v8549, 5
        %v8693 = vsel %vm1763, %v8691, %v8692
        %v8694 = vrot.slane %v8550, 5
        %v8695 = vrot.slane %v8694, 4
        %v8696 = vrot.slane %v8551, 5
        %v8697 = vsel %vm1763, %v8695, %v8696
        %v8698 = vrot.slane %v8696, 4
        %v8699 = vrot.slane %v8552, 5
        %v8700 = vsel %vm1763, %v8698, %v8699
        %v8701 = vrot.slane %v8553, 5
        %v8702 = vrot.slane %v8701, 4
        %v8703 = vrot.slane %v8554, 5
        %v8704 = vsel %vm1763, %v8702, %v8703
        %v8705 = vrot.slane %v8703, 4
        %v8706 = vrot.slane %v8555, 5
        %v8707 = vsel %vm1763, %v8705, %v8706
        %v8708 = vrot.slane %v8556, 5
        %v8709 = vrot.slane %v8708, 4
        %v8710 = vrot.slane %v8557, 5
        %v8711 = vsel %vm1763, %v8709, %v8710
        %v8712 = vrot.slane %v8710, 4
        %v8713 = vrot.slane %v8558, 5
        %v8714 = vsel %vm1763, %v8712, %v8713
        %v8715 = vrot.slane %v8559, 5
        %v8716 = vrot.slane %v8715, 4
        %v8717 = vrot.slane %v8560, 5
        %v8718 = vsel %vm1763, %v8716, %v8717
        %v8719 = vrot.slane %v8717, 4
        %v8720 = vrot.slane %v8561, 5
        %v8721 = vsel %vm1763, %v8719, %v8720
        %v8722 = vunpack.c.l.b16 %v8613
        %v8723 = vunpack.c.l.b16 %v8616
        %v8724 = vunpack.c.l.b16 %v8620
        %v8725 = vunpack.c.l.b16 %v8623
        %v8726 = vunpack.c.l.b16 %v8627
        %v8727 = vunpack.c.l.b16 %v8630
        %v8728 = vunpack.c.l.b16 %v8634
        %v8729 = vunpack.c.l.b16 %v8637
        %v8730 = vunpack.c.l.b16 %v8641
        %v8731 = vunpack.c.l.b16 %v8644
        %v8732 = vunpack.c.l.b16 %v8648
        %v8733 = vunpack.c.l.b16 %v8651
        %v8734 = vunpack.c.l.b16 %v8655
        %v8735 = vunpack.c.l.b16 %v8658
        %v8736 = vunpack.c.l.b16 %v8662
        %v8737 = vunpack.c.l.b16 %v8665
        %v8738 = vunpack.c.l.b16 %v8669
        %v8739 = vunpack.c.l.b16 %v8672
        %v8740 = vunpack.c.l.b16 %v8676
        %v8741 = vunpack.c.l.b16 %v8679
        %v8742 = vunpack.c.l.b16 %v8683
        %v8743 = vunpack.c.l.b16 %v8686
        %v8744 = vunpack.c.l.b16 %v8690
        %v8745 = vunpack.c.l.b16 %v8693
        %v8746 = vunpack.c.l.b16 %v8697
        %v8747 = vunpack.c.l.b16 %v8700
        %v8748 = vunpack.c.l.b16 %v8704
        %v8749 = vunpack.c.l.b16 %v8707
        %v8750 = vunpack.c.l.b16 %v8711
        %v8751 = vunpack.c.l.b16 %v8714
        %v8752 = vunpack.c.l.b16 %v8718
        %v8753 = vunpack.c.l.b16 %v8721
        %v8754 = vpack.c.b16 %v8723, %v8722
        %v8755 = vpack.c.b16 %v8725, %v8724
        %v8756 = vpack.c.b16 %v8727, %v8726
        %v8757 = vpack.c.b16 %v8729, %v8728
        %v8758 = vpack.c.b16 %v8731, %v8730
        %v8759 = vpack.c.b16 %v8733, %v8732
        %v8760 = vpack.c.b16 %v8735, %v8734
        %v8761 = vpack.c.b16 %v8737, %v8736
        %v8762 = vpack.c.b16 %v8739, %v8738
        %v8763 = vpack.c.b16 %v8741, %v8740
        %v8764 = vpack.c.b16 %v8743, %v8742
        %v8765 = vpack.c.b16 %v8745, %v8744
        %v8766 = vpack.c.b16 %v8747, %v8746
        %v8767 = vpack.c.b16 %v8749, %v8748
        %v8768 = vpack.c.b16 %v8751, %v8750
        %v8769 = vpack.c.b16 %v8753, %v8752
        %8770 = vrot.lane.b32.xlu0 %v8754, 16
        %v8771 = vpop.permute.xlu0 %8770
        %8772 = vrot.lane.b32.xlu0 %v8755, 16
        %v8773 = vpop.permute.xlu0 %8772
        %8774 = vrot.lane.b32.xlu0 %v8756, 16
        %v8775 = vpop.permute.xlu0 %8774
        %8776 = vrot.lane.b32.xlu0 %v8757, 16
        %v8777 = vpop.permute.xlu0 %8776
        %8778 = vrot.lane.b32.xlu0 %v8758, 16
        %v8779 = vpop.permute.xlu0 %8778
        %8780 = vrot.lane.b32.xlu0 %v8759, 16
        %v8781 = vpop.permute.xlu0 %8780
        %8782 = vrot.lane.b32.xlu0 %v8760, 16
        %v8783 = vpop.permute.xlu0 %8782
        %8784 = vrot.lane.b32.xlu0 %v8761, 16
        %v8785 = vpop.permute.xlu0 %8784
        %8786 = vrot.lane.b32.xlu0 %v8762, 16
        %v8787 = vpop.permute.xlu0 %8786
        %8788 = vrot.lane.b32.xlu0 %v8763, 16
        %v8789 = vpop.permute.xlu0 %8788
        %8790 = vrot.lane.b32.xlu0 %v8764, 16
        %v8791 = vpop.permute.xlu0 %8790
        %8792 = vrot.lane.b32.xlu0 %v8765, 16
        %v8793 = vpop.permute.xlu0 %8792
        %8794 = vrot.lane.b32.xlu0 %v8766, 16
        %v8795 = vpop.permute.xlu0 %8794
        %8796 = vrot.lane.b32.xlu0 %v8767, 16
        %v8797 = vpop.permute.xlu0 %8796
        %8798 = vrot.lane.b32.xlu0 %v8768, 16
        %v8799 = vpop.permute.xlu0 %8798
        %8800 = vrot.lane.b32.xlu0 %v8769, 16
        %v8801 = vpop.permute.xlu0 %8800
        %8818 = vst.msk [vmem:[#allocation3] sm:$0xff] %vm2791, %v8771
        %8819 = vst.msk [vmem:[#allocation3 + $0x8] sm:$0xff] %vm2791, %v8773
        %8820 = vst.msk [vmem:[#allocation3 + $0x10] sm:$0xff] %vm2791, %v8775
        %8821 = vst.msk [vmem:[#allocation3 + $0x18] sm:$0xff] %vm2791, %v8777
        %8822 = vst.msk [vmem:[#allocation3 + $0x20] sm:$0xff] %vm2791, %v8779
        %8823 = vst.msk [vmem:[#allocation3 + $0x28] sm:$0xff] %vm2791, %v8781
        %8824 = vst.msk [vmem:[#allocation3 + $0x30] sm:$0xff] %vm2791, %v8783
        %8825 = vst.msk [vmem:[#allocation3 + $0x38] sm:$0xff] %vm2791, %v8785
        %8826 = vst.msk [vmem:[#allocation3 + $0x40] sm:$0xff] %vm2791, %v8787
        %8827 = vst.msk [vmem:[#allocation3 + $0x48] sm:$0xff] %vm2791, %v8789
        %8828 = vst.msk [vmem:[#allocation3 + $0x50] sm:$0xff] %vm2791, %v8791
        %8829 = vst.msk [vmem:[#allocation3 + $0x58] sm:$0xff] %vm2791, %v8793
        %8830 = vst.msk [vmem:[#allocation3 + $0x60] sm:$0xff] %vm2791, %v8795
        %8831 = vst.msk [vmem:[#allocation3 + $0x68] sm:$0xff] %vm2791, %v8797
        %8832 = vst.msk [vmem:[#allocation3 + $0x70] sm:$0xff] %vm2791, %v8799
        %8833 = vst.msk [vmem:[#allocation3 + $0x78] sm:$0xff] %vm2791, %v8801
        %v8834 = vld [vmem:[%s920 + $0x10] sm:$0xc]
        %v8835 = vld [vmem:[%s920 + $0x14] sm:$0xf]
        %v8836 = vld [vmem:[%s920 + $0x18] sm:$0x3]
        %v8837 = vld [vmem:[%s920 + $0x2c] sm:$0xc]
        %v8838 = vld [vmem:[%s920 + $0x30] sm:$0xf]
        %v8839 = vld [vmem:[%s920 + $0x34] sm:$0x3]
        %v8840 = vld [vmem:[%s920 + $0x48] sm:$0xc]
        %v8841 = vld [vmem:[%s920 + $0x4c] sm:$0xf]
        %v8842 = vld [vmem:[%s920 + $0x50] sm:$0x3]
        %v8843 = vld [vmem:[%s920 + $0x64] sm:$0xc]
        %v8844 = vld [vmem:[%s920 + $0x68] sm:$0xf]
        %v8845 = vld [vmem:[%s920 + $0x6c] sm:$0x3]
        %v8846 = vld [vmem:[%s920 + $0x80] sm:$0xc]
        %v8847 = vld [vmem:[%s920 + $0x84] sm:$0xf]
        %v8848 = vld [vmem:[%s920 + $0x88] sm:$0x3]
        %v8849 = vld [vmem:[%s920 + $0x9c] sm:$0xc]
        %v8850 = vld [vmem:[%s920 + $0xa0] sm:$0xf]
        %v8851 = vld [vmem:[%s920 + $0xa4] sm:$0x3]
        %v8852 = vld [vmem:[%s920 + $0xb8] sm:$0xc]
        %v8853 = vld [vmem:[%s920 + $0xbc] sm:$0xf]
        %v8854 = vld [vmem:[%s920 + $0xc0] sm:$0x3]
        %v8855 = vld [vmem:[%s920 + $0xd4] sm:$0xc]
        %v8856 = vld [vmem:[%s920 + $0xd8] sm:$0xf]
        %v8857 = vld [vmem:[%s920 + $0xdc] sm:$0x3]
        %v8858 = vld [vmem:[%s920 + $0xf0] sm:$0xc]
        %v8859 = vld [vmem:[%s920 + $0xf4] sm:$0xf]
        %v8860 = vld [vmem:[%s920 + $0xf8] sm:$0x3]
        %v8861 = vld [vmem:[%s920 + $0x10c] sm:$0xc]
        %v8862 = vld [vmem:[%s920 + $0x110] sm:$0xf]
        %v8863 = vld [vmem:[%s920 + $0x114] sm:$0x3]
        %v8864 = vld [vmem:[%s920 + $0x128] sm:$0xc]
        %v8865 = vld [vmem:[%s920 + $0x12c] sm:$0xf]
        %v8866 = vld [vmem:[%s920 + $0x130] sm:$0x3]
        %v8867 = vld [vmem:[%s920 + $0x144] sm:$0xc]
        %v8868 = vld [vmem:[%s920 + $0x148] sm:$0xf]
        %v8869 = vld [vmem:[%s920 + $0x14c] sm:$0x3]
        %v8870 = vld [vmem:[%s920 + $0x160] sm:$0xc]
        %v8871 = vld [vmem:[%s920 + $0x164] sm:$0xf]
        %v8872 = vld [vmem:[%s920 + $0x168] sm:$0x3]
        %v8873 = vld [vmem:[%s920 + $0x17c] sm:$0xc]
        %v8874 = vld [vmem:[%s920 + $0x180] sm:$0xf]
        %v8875 = vld [vmem:[%s920 + $0x184] sm:$0x3]
        %v8876 = vld [vmem:[%s920 + $0x198] sm:$0xc]
        %v8877 = vld [vmem:[%s920 + $0x19c] sm:$0xf]
        %v8878 = vld [vmem:[%s920 + $0x1a0] sm:$0x3]
        %v8879 = vld [vmem:[%s920 + $0x1b4] sm:$0xc]
        %v8880 = vld [vmem:[%s920 + $0x1b8] sm:$0xf]
        %v8881 = vld [vmem:[%s920 + $0x1bc] sm:$0x3]
        %v8930 = vrot.slane %v8834, 6
        %v8931 = vrot.slane %v8930, 4
        %v8932 = vrot.slane %v8835, 6
        %v8933 = vsel %vm1472, %v8931, %v8932
        %v8934 = vrot.slane %v8932, 4
        %v8935 = vrot.slane %v8836, 6
        %v8936 = vsel %vm1472, %v8934, %v8935
        %v8937 = vrot.slane %v8837, 6
        %v8938 = vrot.slane %v8937, 4
        %v8939 = vrot.slane %v8838, 6
        %v8940 = vsel %vm1472, %v8938, %v8939
        %v8941 = vrot.slane %v8939, 4
        %v8942 = vrot.slane %v8839, 6
        %v8943 = vsel %vm1472, %v8941, %v8942
        %v8944 = vrot.slane %v8840, 6
        %v8945 = vrot.slane %v8944, 4
        %v8946 = vrot.slane %v8841, 6
        %v8947 = vsel %vm1472, %v8945, %v8946
        %v8948 = vrot.slane %v8946, 4
        %v8949 = vrot.slane %v8842, 6
        %v8950 = vsel %vm1472, %v8948, %v8949
        %v8951 = vrot.slane %v8843, 6
        %v8952 = vrot.slane %v8951, 4
        %v8953 = vrot.slane %v8844, 6
        %v8954 = vsel %vm1472, %v8952, %v8953
        %v8955 = vrot.slane %v8953, 4
        %v8956 = vrot.slane %v8845, 6
        %v8957 = vsel %vm1472, %v8955, %v8956
        %v8958 = vrot.slane %v8846, 6
        %v8959 = vrot.slane %v8958, 4
        %v8960 = vrot.slane %v8847, 6
        %v8961 = vsel %vm1472, %v8959, %v8960
        %v8962 = vrot.slane %v8960, 4
        %v8963 = vrot.slane %v8848, 6
        %v8964 = vsel %vm1472, %v8962, %v8963
        %v8965 = vrot.slane %v8849, 6
        %v8966 = vrot.slane %v8965, 4
        %v8967 = vrot.slane %v8850, 6
        %v8968 = vsel %vm1472, %v8966, %v8967
        %v8969 = vrot.slane %v8967, 4
        %v8970 = vrot.slane %v8851, 6
        %v8971 = vsel %vm1472, %v8969, %v8970
        %v8972 = vrot.slane %v8852, 6
        %v8973 = vrot.slane %v8972, 4
        %v8974 = vrot.slane %v8853, 6
        %v8975 = vsel %vm1472, %v8973, %v8974
        %v8976 = vrot.slane %v8974, 4
        %v8977 = vrot.slane %v8854, 6
        %v8978 = vsel %vm1472, %v8976, %v8977
        %v8979 = vrot.slane %v8855, 6
        %v8980 = vrot.slane %v8979, 4
        %v8981 = vrot.slane %v8856, 6
        %v8982 = vsel %vm1472, %v8980, %v8981
        %v8983 = vrot.slane %v8981, 4
        %v8984 = vrot.slane %v8857, 6
        %v8985 = vsel %vm1472, %v8983, %v8984
        %v8986 = vrot.slane %v8858, 6
        %v8987 = vrot.slane %v8986, 4
        %v8988 = vrot.slane %v8859, 6
        %v8989 = vsel %vm1472, %v8987, %v8988
        %v8990 = vrot.slane %v8988, 4
        %v8991 = vrot.slane %v8860, 6
        %v8992 = vsel %vm1472, %v8990, %v8991
        %v8993 = vrot.slane %v8861, 6
        %v8994 = vrot.slane %v8993, 4
        %v8995 = vrot.slane %v8862, 6
        %v8996 = vsel %vm1472, %v8994, %v8995
        %v8997 = vrot.slane %v8995, 4
        %v8998 = vrot.slane %v8863, 6
        %v8999 = vsel %vm1472, %v8997, %v8998
        %v9000 = vrot.slane %v8864, 6
        %v9001 = vrot.slane %v9000, 4
        %v9002 = vrot.slane %v8865, 6
        %v9003 = vsel %vm1472, %v9001, %v9002
        %v9004 = vrot.slane %v9002, 4
        %v9005 = vrot.slane %v8866, 6
        %v9006 = vsel %vm1472, %v9004, %v9005
        %v9007 = vrot.slane %v8867, 6
        %v9008 = vrot.slane %v9007, 4
        %v9009 = vrot.slane %v8868, 6
        %v9010 = vsel %vm1472, %v9008, %v9009
        %v9011 = vrot.slane %v9009, 4
        %v9012 = vrot.slane %v8869, 6
        %v9013 = vsel %vm1472, %v9011, %v9012
        %v9014 = vrot.slane %v8870, 6
        %v9015 = vrot.slane %v9014, 4
        %v9016 = vrot.slane %v8871, 6
        %v9017 = vsel %vm1472, %v9015, %v9016
        %v9018 = vrot.slane %v9016, 4
        %v9019 = vrot.slane %v8872, 6
        %v9020 = vsel %vm1472, %v9018, %v9019
        %v9021 = vrot.slane %v8873, 6
        %v9022 = vrot.slane %v9021, 4
        %v9023 = vrot.slane %v8874, 6
        %v9024 = vsel %vm1472, %v9022, %v9023
        %v9025 = vrot.slane %v9023, 4
        %v9026 = vrot.slane %v8875, 6
        %v9027 = vsel %vm1472, %v9025, %v9026
        %v9028 = vrot.slane %v8876, 6
        %v9029 = vrot.slane %v9028, 4
        %v9030 = vrot.slane %v8877, 6
        %v9031 = vsel %vm1472, %v9029, %v9030
        %v9032 = vrot.slane %v9030, 4
        %v9033 = vrot.slane %v8878, 6
        %v9034 = vsel %vm1472, %v9032, %v9033
        %v9035 = vrot.slane %v8879, 6
        %v9036 = vrot.slane %v9035, 4
        %v9037 = vrot.slane %v8880, 6
        %v9038 = vsel %vm1472, %v9036, %v9037
        %v9039 = vrot.slane %v9037, 4
        %v9040 = vrot.slane %v8881, 6
        %v9041 = vsel %vm1472, %v9039, %v9040
        %v9042 = vunpack.c.l.b16 %v8933
        %v9043 = vunpack.c.l.b16 %v8936
        %v9044 = vunpack.c.l.b16 %v8940
        %v9045 = vunpack.c.l.b16 %v8943
        %v9046 = vunpack.c.l.b16 %v8947
        %v9047 = vunpack.c.l.b16 %v8950
        %v9048 = vunpack.c.l.b16 %v8954
        %v9049 = vunpack.c.l.b16 %v8957
        %v9050 = vunpack.c.l.b16 %v8961
        %v9051 = vunpack.c.l.b16 %v8964
        %v9052 = vunpack.c.l.b16 %v8968
        %v9053 = vunpack.c.l.b16 %v8971
        %v9054 = vunpack.c.l.b16 %v8975
        %v9055 = vunpack.c.l.b16 %v8978
        %v9056 = vunpack.c.l.b16 %v8982
        %v9057 = vunpack.c.l.b16 %v8985
        %v9058 = vunpack.c.l.b16 %v8989
        %v9059 = vunpack.c.l.b16 %v8992
        %v9060 = vunpack.c.l.b16 %v8996
        %v9061 = vunpack.c.l.b16 %v8999
        %v9062 = vunpack.c.l.b16 %v9003
        %v9063 = vunpack.c.l.b16 %v9006
        %v9064 = vunpack.c.l.b16 %v9010
        %v9065 = vunpack.c.l.b16 %v9013
        %v9066 = vunpack.c.l.b16 %v9017
        %v9067 = vunpack.c.l.b16 %v9020
        %v9068 = vunpack.c.l.b16 %v9024
        %v9069 = vunpack.c.l.b16 %v9027
        %v9070 = vunpack.c.l.b16 %v9031
        %v9071 = vunpack.c.l.b16 %v9034
        %v9072 = vunpack.c.l.b16 %v9038
        %v9073 = vunpack.c.l.b16 %v9041
        %v9074 = vpack.c.b16 %v9043, %v9042
        %v9075 = vpack.c.b16 %v9045, %v9044
        %v9076 = vpack.c.b16 %v9047, %v9046
        %v9077 = vpack.c.b16 %v9049, %v9048
        %v9078 = vpack.c.b16 %v9051, %v9050
        %v9079 = vpack.c.b16 %v9053, %v9052
        %v9080 = vpack.c.b16 %v9055, %v9054
        %v9081 = vpack.c.b16 %v9057, %v9056
        %v9082 = vpack.c.b16 %v9059, %v9058
        %v9083 = vpack.c.b16 %v9061, %v9060
        %v9084 = vpack.c.b16 %v9063, %v9062
        %v9085 = vpack.c.b16 %v9065, %v9064
        %v9086 = vpack.c.b16 %v9067, %v9066
        %v9087 = vpack.c.b16 %v9069, %v9068
        %v9088 = vpack.c.b16 %v9071, %v9070
        %v9089 = vpack.c.b16 %v9073, %v9072
        %9090 = vrot.lane.b32.xlu0 %v9074, 20
        %v9091 = vpop.permute.xlu0 %9090
        %9092 = vrot.lane.b32.xlu0 %v9075, 20
        %v9093 = vpop.permute.xlu0 %9092
        %9094 = vrot.lane.b32.xlu0 %v9076, 20
        %v9095 = vpop.permute.xlu0 %9094
        %9096 = vrot.lane.b32.xlu0 %v9077, 20
        %v9097 = vpop.permute.xlu0 %9096
        %9098 = vrot.lane.b32.xlu0 %v9078, 20
        %v9099 = vpop.permute.xlu0 %9098
        %9100 = vrot.lane.b32.xlu0 %v9079, 20
        %v9101 = vpop.permute.xlu0 %9100
        %9102 = vrot.lane.b32.xlu0 %v9080, 20
        %v9103 = vpop.permute.xlu0 %9102
        %9104 = vrot.lane.b32.xlu0 %v9081, 20
        %v9105 = vpop.permute.xlu0 %9104
        %9106 = vrot.lane.b32.xlu0 %v9082, 20
        %v9107 = vpop.permute.xlu0 %9106
        %9108 = vrot.lane.b32.xlu0 %v9083, 20
        %v9109 = vpop.permute.xlu0 %9108
        %9110 = vrot.lane.b32.xlu0 %v9084, 20
        %v9111 = vpop.permute.xlu0 %9110
        %9112 = vrot.lane.b32.xlu0 %v9085, 20
        %v9113 = vpop.permute.xlu0 %9112
        %9114 = vrot.lane.b32.xlu0 %v9086, 20
        %v9115 = vpop.permute.xlu0 %9114
        %9116 = vrot.lane.b32.xlu0 %v9087, 20
        %v9117 = vpop.permute.xlu0 %9116
        %9118 = vrot.lane.b32.xlu0 %v9088, 20
        %v9119 = vpop.permute.xlu0 %9118
        %9120 = vrot.lane.b32.xlu0 %v9089, 20
        %v9121 = vpop.permute.xlu0 %9120
        %9138 = vst.msk [vmem:[#allocation3] sm:$0xff] %vm2968, %v9091
        %9139 = vst.msk [vmem:[#allocation3 + $0x8] sm:$0xff] %vm2968, %v9093
        %9140 = vst.msk [vmem:[#allocation3 + $0x10] sm:$0xff] %vm2968, %v9095
        %9141 = vst.msk [vmem:[#allocation3 + $0x18] sm:$0xff] %vm2968, %v9097
        %9142 = vst.msk [vmem:[#allocation3 + $0x20] sm:$0xff] %vm2968, %v9099
        %9143 = vst.msk [vmem:[#allocation3 + $0x28] sm:$0xff] %vm2968, %v9101
        %9144 = vst.msk [vmem:[#allocation3 + $0x30] sm:$0xff] %vm2968, %v9103
        %9145 = vst.msk [vmem:[#allocation3 + $0x38] sm:$0xff] %vm2968, %v9105
        %9146 = vst.msk [vmem:[#allocation3 + $0x40] sm:$0xff] %vm2968, %v9107
        %9147 = vst.msk [vmem:[#allocation3 + $0x48] sm:$0xff] %vm2968, %v9109
        %9148 = vst.msk [vmem:[#allocation3 + $0x50] sm:$0xff] %vm2968, %v9111
        %9149 = vst.msk [vmem:[#allocation3 + $0x58] sm:$0xff] %vm2968, %v9113
        %9150 = vst.msk [vmem:[#allocation3 + $0x60] sm:$0xff] %vm2968, %v9115
        %9151 = vst.msk [vmem:[#allocation3 + $0x68] sm:$0xff] %vm2968, %v9117
        %9152 = vst.msk [vmem:[#allocation3 + $0x70] sm:$0xff] %vm2968, %v9119
        %9153 = vst.msk [vmem:[#allocation3 + $0x78] sm:$0xff] %vm2968, %v9121
        %s9154 = scalar_lea.vmem [#allocation2], 1008
        %v9155 = vld [vmem:[%s9154] sm:$0xf]
        %v9156 = vld [vmem:[%s9154 + $0x4] sm:$0xf]
        %v9157 = vld [vmem:[%s9154 + $0x1c] sm:$0xf]
        %v9158 = vld [vmem:[%s9154 + $0x20] sm:$0xf]
        %v9159 = vld [vmem:[%s9154 + $0x38] sm:$0xf]
        %v9160 = vld [vmem:[%s9154 + $0x3c] sm:$0xf]
        %v9161 = vld [vmem:[%s9154 + $0x54] sm:$0xf]
        %v9162 = vld [vmem:[%s9154 + $0x58] sm:$0xf]
        %v9163 = vld [vmem:[%s9154 + $0x70] sm:$0xf]
        %v9164 = vld [vmem:[%s9154 + $0x74] sm:$0xf]
        %v9165 = vld [vmem:[%s9154 + $0x8c] sm:$0xf]
        %v9166 = vld [vmem:[%s9154 + $0x90] sm:$0xf]
        %v9167 = vld [vmem:[%s9154 + $0xa8] sm:$0xf]
        %v9168 = vld [vmem:[%s9154 + $0xac] sm:$0xf]
        %v9169 = vld [vmem:[%s9154 + $0xc4] sm:$0xf]
        %v9170 = vld [vmem:[%s9154 + $0xc8] sm:$0xf]
        %v9171 = vld [vmem:[%s9154 + $0xe0] sm:$0xf]
        %v9172 = vld [vmem:[%s9154 + $0xe4] sm:$0xf]
        %v9173 = vld [vmem:[%s9154 + $0xfc] sm:$0xf]
        %v9174 = vld [vmem:[%s9154 + $0x100] sm:$0xf]
        %v9175 = vld [vmem:[%s9154 + $0x118] sm:$0xf]
        %v9176 = vld [vmem:[%s9154 + $0x11c] sm:$0xf]
        %v9177 = vld [vmem:[%s9154 + $0x134] sm:$0xf]
        %v9178 = vld [vmem:[%s9154 + $0x138] sm:$0xf]
        %v9179 = vld [vmem:[%s9154 + $0x150] sm:$0xf]
        %v9180 = vld [vmem:[%s9154 + $0x154] sm:$0xf]
        %v9181 = vld [vmem:[%s9154 + $0x16c] sm:$0xf]
        %v9182 = vld [vmem:[%s9154 + $0x170] sm:$0xf]
        %v9183 = vld [vmem:[%s9154 + $0x188] sm:$0xf]
        %v9184 = vld [vmem:[%s9154 + $0x18c] sm:$0xf]
        %v9185 = vld [vmem:[%s9154 + $0x1a4] sm:$0xf]
        %v9186 = vld [vmem:[%s9154 + $0x1a8] sm:$0xf]
        %v9219 = vunpack.c.l.b16 %v9155
        %v9220 = vunpack.c.l.b16 %v9156
        %v9221 = vunpack.c.l.b16 %v9157
        %v9222 = vunpack.c.l.b16 %v9158
        %v9223 = vunpack.c.l.b16 %v9159
        %v9224 = vunpack.c.l.b16 %v9160
        %v9225 = vunpack.c.l.b16 %v9161
        %v9226 = vunpack.c.l.b16 %v9162
        %v9227 = vunpack.c.l.b16 %v9163
        %v9228 = vunpack.c.l.b16 %v9164
        %v9229 = vunpack.c.l.b16 %v9165
        %v9230 = vunpack.c.l.b16 %v9166
        %v9231 = vunpack.c.l.b16 %v9167
        %v9232 = vunpack.c.l.b16 %v9168
        %v9233 = vunpack.c.l.b16 %v9169
        %v9234 = vunpack.c.l.b16 %v9170
        %v9235 = vunpack.c.l.b16 %v9171
        %v9236 = vunpack.c.l.b16 %v9172
        %v9237 = vunpack.c.l.b16 %v9173
        %v9238 = vunpack.c.l.b16 %v9174
        %v9239 = vunpack.c.l.b16 %v9175
        %v9240 = vunpack.c.l.b16 %v9176
        %v9241 = vunpack.c.l.b16 %v9177
        %v9242 = vunpack.c.l.b16 %v9178
        %v9243 = vunpack.c.l.b16 %v9179
        %v9244 = vunpack.c.l.b16 %v9180
        %v9245 = vunpack.c.l.b16 %v9181
        %v9246 = vunpack.c.l.b16 %v9182
        %v9247 = vunpack.c.l.b16 %v9183
        %v9248 = vunpack.c.l.b16 %v9184
        %v9249 = vunpack.c.l.b16 %v9185
        %v9250 = vunpack.c.l.b16 %v9186
        %v9251 = vpack.c.b16 %v9220, %v9219
        %v9252 = vpack.c.b16 %v9222, %v9221
        %v9253 = vpack.c.b16 %v9224, %v9223
        %v9254 = vpack.c.b16 %v9226, %v9225
        %v9255 = vpack.c.b16 %v9228, %v9227
        %v9256 = vpack.c.b16 %v9230, %v9229
        %v9257 = vpack.c.b16 %v9232, %v9231
        %v9258 = vpack.c.b16 %v9234, %v9233
        %v9259 = vpack.c.b16 %v9236, %v9235
        %v9260 = vpack.c.b16 %v9238, %v9237
        %v9261 = vpack.c.b16 %v9240, %v9239
        %v9262 = vpack.c.b16 %v9242, %v9241
        %v9263 = vpack.c.b16 %v9244, %v9243
        %v9264 = vpack.c.b16 %v9246, %v9245
        %v9265 = vpack.c.b16 %v9248, %v9247
        %v9266 = vpack.c.b16 %v9250, %v9249
        %9267 = vrot.lane.b32.xlu0 %v9251, 24
        %v9268 = vpop.permute.xlu0 %9267
        %9269 = vrot.lane.b32.xlu0 %v9252, 24
        %v9270 = vpop.permute.xlu0 %9269
        %9271 = vrot.lane.b32.xlu0 %v9253, 24
        %v9272 = vpop.permute.xlu0 %9271
        %9273 = vrot.lane.b32.xlu0 %v9254, 24
        %v9274 = vpop.permute.xlu0 %9273
        %9275 = vrot.lane.b32.xlu0 %v9255, 24
        %v9276 = vpop.permute.xlu0 %9275
        %9277 = vrot.lane.b32.xlu0 %v9256, 24
        %v9278 = vpop.permute.xlu0 %9277
        %9279 = vrot.lane.b32.xlu0 %v9257, 24
        %v9280 = vpop.permute.xlu0 %9279
        %9281 = vrot.lane.b32.xlu0 %v9258, 24
        %v9282 = vpop.permute.xlu0 %9281
        %9283 = vrot.lane.b32.xlu0 %v9259, 24
        %v9284 = vpop.permute.xlu0 %9283
        %9285 = vrot.lane.b32.xlu0 %v9260, 24
        %v9286 = vpop.permute.xlu0 %9285
        %9287 = vrot.lane.b32.xlu0 %v9261, 24
        %v9288 = vpop.permute.xlu0 %9287
        %9289 = vrot.lane.b32.xlu0 %v9262, 24
        %v9290 = vpop.permute.xlu0 %9289
        %9291 = vrot.lane.b32.xlu0 %v9263, 24
        %v9292 = vpop.permute.xlu0 %9291
        %9293 = vrot.lane.b32.xlu0 %v9264, 24
        %v9294 = vpop.permute.xlu0 %9293
        %9295 = vrot.lane.b32.xlu0 %v9265, 24
        %v9296 = vpop.permute.xlu0 %9295
        %9297 = vrot.lane.b32.xlu0 %v9266, 24
        %v9298 = vpop.permute.xlu0 %9297
        %9315 = vst.msk [vmem:[#allocation3] sm:$0xff] %vm3290, %v9268
        %9316 = vst.msk [vmem:[#allocation3 + $0x8] sm:$0xff] %vm3290, %v9270
        %9317 = vst.msk [vmem:[#allocation3 + $0x10] sm:$0xff] %vm3290, %v9272
        %9318 = vst.msk [vmem:[#allocation3 + $0x18] sm:$0xff] %vm3290, %v9274
        %9319 = vst.msk [vmem:[#allocation3 + $0x20] sm:$0xff] %vm3290, %v9276
        %9320 = vst.msk [vmem:[#allocation3 + $0x28] sm:$0xff] %vm3290, %v9278
        %9321 = vst.msk [vmem:[#allocation3 + $0x30] sm:$0xff] %vm3290, %v9280
        %9322 = vst.msk [vmem:[#allocation3 + $0x38] sm:$0xff] %vm3290, %v9282
        %9323 = vst.msk [vmem:[#allocation3 + $0x40] sm:$0xff] %vm3290, %v9284
        %9324 = vst.msk [vmem:[#allocation3 + $0x48] sm:$0xff] %vm3290, %v9286
        %9325 = vst.msk [vmem:[#allocation3 + $0x50] sm:$0xff] %vm3290, %v9288
        %9326 = vst.msk [vmem:[#allocation3 + $0x58] sm:$0xff] %vm3290, %v9290
        %9327 = vst.msk [vmem:[#allocation3 + $0x60] sm:$0xff] %vm3290, %v9292
        %9328 = vst.msk [vmem:[#allocation3 + $0x68] sm:$0xff] %vm3290, %v9294
        %9329 = vst.msk [vmem:[#allocation3 + $0x70] sm:$0xff] %vm3290, %v9296
        %9330 = vst.msk [vmem:[#allocation3 + $0x78] sm:$0xff] %vm3290, %v9298
        %v9331 = vld [vmem:[%s9154 + $0x8] sm:$0xe]
        %v9332 = vld [vmem:[%s9154 + $0xc] sm:$0xf]
        %v9333 = vld [vmem:[%s9154 + $0x10] sm:$0x1]
        %v9334 = vld [vmem:[%s9154 + $0x24] sm:$0xe]
        %v9335 = vld [vmem:[%s9154 + $0x28] sm:$0xf]
        %v9336 = vld [vmem:[%s9154 + $0x2c] sm:$0x1]
        %v9337 = vld [vmem:[%s9154 + $0x40] sm:$0xe]
        %v9338 = vld [vmem:[%s9154 + $0x44] sm:$0xf]
        %v9339 = vld [vmem:[%s9154 + $0x48] sm:$0x1]
        %v9340 = vld [vmem:[%s9154 + $0x5c] sm:$0xe]
        %v9341 = vld [vmem:[%s9154 + $0x60] sm:$0xf]
        %v9342 = vld [vmem:[%s9154 + $0x64] sm:$0x1]
        %v9343 = vld [vmem:[%s9154 + $0x78] sm:$0xe]
        %v9344 = vld [vmem:[%s9154 + $0x7c] sm:$0xf]
        %v9345 = vld [vmem:[%s9154 + $0x80] sm:$0x1]
        %v9346 = vld [vmem:[%s9154 + $0x94] sm:$0xe]
        %v9347 = vld [vmem:[%s9154 + $0x98] sm:$0xf]
        %v9348 = vld [vmem:[%s9154 + $0x9c] sm:$0x1]
        %v9349 = vld [vmem:[%s9154 + $0xb0] sm:$0xe]
        %v9350 = vld [vmem:[%s9154 + $0xb4] sm:$0xf]
        %v9351 = vld [vmem:[%s9154 + $0xb8] sm:$0x1]
        %v9352 = vld [vmem:[%s9154 + $0xcc] sm:$0xe]
        %v9353 = vld [vmem:[%s9154 + $0xd0] sm:$0xf]
        %v9354 = vld [vmem:[%s9154 + $0xd4] sm:$0x1]
        %v9355 = vld [vmem:[%s9154 + $0xe8] sm:$0xe]
        %v9356 = vld [vmem:[%s9154 + $0xec] sm:$0xf]
        %v9357 = vld [vmem:[%s9154 + $0xf0] sm:$0x1]
        %v9358 = vld [vmem:[%s9154 + $0x104] sm:$0xe]
        %v9359 = vld [vmem:[%s9154 + $0x108] sm:$0xf]
        %v9360 = vld [vmem:[%s9154 + $0x10c] sm:$0x1]
        %v9361 = vld [vmem:[%s9154 + $0x120] sm:$0xe]
        %v9362 = vld [vmem:[%s9154 + $0x124] sm:$0xf]
        %v9363 = vld [vmem:[%s9154 + $0x128] sm:$0x1]
        %v9364 = vld [vmem:[%s9154 + $0x13c] sm:$0xe]
        %v9365 = vld [vmem:[%s9154 + $0x140] sm:$0xf]
        %v9366 = vld [vmem:[%s9154 + $0x144] sm:$0x1]
        %v9367 = vld [vmem:[%s9154 + $0x158] sm:$0xe]
        %v9368 = vld [vmem:[%s9154 + $0x15c] sm:$0xf]
        %v9369 = vld [vmem:[%s9154 + $0x160] sm:$0x1]
        %v9370 = vld [vmem:[%s9154 + $0x174] sm:$0xe]
        %v9371 = vld [vmem:[%s9154 + $0x178] sm:$0xf]
        %v9372 = vld [vmem:[%s9154 + $0x17c] sm:$0x1]
        %v9373 = vld [vmem:[%s9154 + $0x190] sm:$0xe]
        %v9374 = vld [vmem:[%s9154 + $0x194] sm:$0xf]
        %v9375 = vld [vmem:[%s9154 + $0x198] sm:$0x1]
        %v9376 = vld [vmem:[%s9154 + $0x1ac] sm:$0xe]
        %v9377 = vld [vmem:[%s9154 + $0x1b0] sm:$0xf]
        %v9378 = vld [vmem:[%s9154 + $0x1b4] sm:$0x1]
        %v9427 = vrot.slane %v9331, 5
        %v9428 = vrot.slane %v9427, 4
        %v9429 = vrot.slane %v9332, 5
        %v9430 = vsel %vm1763, %v9428, %v9429
        %v9431 = vrot.slane %v9429, 4
        %v9432 = vrot.slane %v9333, 5
        %v9433 = vsel %vm1763, %v9431, %v9432
        %v9434 = vrot.slane %v9334, 5
        %v9435 = vrot.slane %v9434, 4
        %v9436 = vrot.slane %v9335, 5
        %v9437 = vsel %vm1763, %v9435, %v9436
        %v9438 = vrot.slane %v9436, 4
        %v9439 = vrot.slane %v9336, 5
        %v9440 = vsel %vm1763, %v9438, %v9439
        %v9441 = vrot.slane %v9337, 5
        %v9442 = vrot.slane %v9441, 4
        %v9443 = vrot.slane %v9338, 5
        %v9444 = vsel %vm1763, %v9442, %v9443
        %v9445 = vrot.slane %v9443, 4
        %v9446 = vrot.slane %v9339, 5
        %v9447 = vsel %vm1763, %v9445, %v9446
        %v9448 = vrot.slane %v9340, 5
        %v9449 = vrot.slane %v9448, 4
        %v9450 = vrot.slane %v9341, 5
        %v9451 = vsel %vm1763, %v9449, %v9450
        %v9452 = vrot.slane %v9450, 4
        %v9453 = vrot.slane %v9342, 5
        %v9454 = vsel %vm1763, %v9452, %v9453
        %v9455 = vrot.slane %v9343, 5
        %v9456 = vrot.slane %v9455, 4
        %v9457 = vrot.slane %v9344, 5
        %v9458 = vsel %vm1763, %v9456, %v9457
        %v9459 = vrot.slane %v9457, 4
        %v9460 = vrot.slane %v9345, 5
        %v9461 = vsel %vm1763, %v9459, %v9460
        %v9462 = vrot.slane %v9346, 5
        %v9463 = vrot.slane %v9462, 4
        %v9464 = vrot.slane %v9347, 5
        %v9465 = vsel %vm1763, %v9463, %v9464
        %v9466 = vrot.slane %v9464, 4
        %v9467 = vrot.slane %v9348, 5
        %v9468 = vsel %vm1763, %v9466, %v9467
        %v9469 = vrot.slane %v9349, 5
        %v9470 = vrot.slane %v9469, 4
        %v9471 = vrot.slane %v9350, 5
        %v9472 = vsel %vm1763, %v9470, %v9471
        %v9473 = vrot.slane %v9471, 4
        %v9474 = vrot.slane %v9351, 5
        %v9475 = vsel %vm1763, %v9473, %v9474
        %v9476 = vrot.slane %v9352, 5
        %v9477 = vrot.slane %v9476, 4
        %v9478 = vrot.slane %v9353, 5
        %v9479 = vsel %vm1763, %v9477, %v9478
        %v9480 = vrot.slane %v9478, 4
        %v9481 = vrot.slane %v9354, 5
        %v9482 = vsel %vm1763, %v9480, %v9481
        %v9483 = vrot.slane %v9355, 5
        %v9484 = vrot.slane %v9483, 4
        %v9485 = vrot.slane %v9356, 5
        %v9486 = vsel %vm1763, %v9484, %v9485
        %v9487 = vrot.slane %v9485, 4
        %v9488 = vrot.slane %v9357, 5
        %v9489 = vsel %vm1763, %v9487, %v9488
        %v9490 = vrot.slane %v9358, 5
        %v9491 = vrot.slane %v9490, 4
        %v9492 = vrot.slane %v9359, 5
        %v9493 = vsel %vm1763, %v9491, %v9492
        %v9494 = vrot.slane %v9492, 4
        %v9495 = vrot.slane %v9360, 5
        %v9496 = vsel %vm1763, %v9494, %v9495
        %v9497 = vrot.slane %v9361, 5
        %v9498 = vrot.slane %v9497, 4
        %v9499 = vrot.slane %v9362, 5
        %v9500 = vsel %vm1763, %v9498, %v9499
        %v9501 = vrot.slane %v9499, 4
        %v9502 = vrot.slane %v9363, 5
        %v9503 = vsel %vm1763, %v9501, %v9502
        %v9504 = vrot.slane %v9364, 5
        %v9505 = vrot.slane %v9504, 4
        %v9506 = vrot.slane %v9365, 5
        %v9507 = vsel %vm1763, %v9505, %v9506
        %v9508 = vrot.slane %v9506, 4
        %v9509 = vrot.slane %v9366, 5
        %v9510 = vsel %vm1763, %v9508, %v9509
        %v9511 = vrot.slane %v9367, 5
        %v9512 = vrot.slane %v9511, 4
        %v9513 = vrot.slane %v9368, 5
        %v9514 = vsel %vm1763, %v9512, %v9513
        %v9515 = vrot.slane %v9513, 4
        %v9516 = vrot.slane %v9369, 5
        %v9517 = vsel %vm1763, %v9515, %v9516
        %v9518 = vrot.slane %v9370, 5
        %v9519 = vrot.slane %v9518, 4
        %v9520 = vrot.slane %v9371, 5
        %v9521 = vsel %vm1763, %v9519, %v9520
        %v9522 = vrot.slane %v9520, 4
        %v9523 = vrot.slane %v9372, 5
        %v9524 = vsel %vm1763, %v9522, %v9523
        %v9525 = vrot.slane %v9373, 5
        %v9526 = vrot.slane %v9525, 4
        %v9527 = vrot.slane %v9374, 5
        %v9528 = vsel %vm1763, %v9526, %v9527
        %v9529 = vrot.slane %v9527, 4
        %v9530 = vrot.slane %v9375, 5
        %v9531 = vsel %vm1763, %v9529, %v9530
        %v9532 = vrot.slane %v9376, 5
        %v9533 = vrot.slane %v9532, 4
        %v9534 = vrot.slane %v9377, 5
        %v9535 = vsel %vm1763, %v9533, %v9534
        %v9536 = vrot.slane %v9534, 4
        %v9537 = vrot.slane %v9378, 5
        %v9538 = vsel %vm1763, %v9536, %v9537
        %v9539 = vunpack.c.l.b16 %v9430
        %v9540 = vunpack.c.l.b16 %v9433
        %v9541 = vunpack.c.l.b16 %v9437
        %v9542 = vunpack.c.l.b16 %v9440
        %v9543 = vunpack.c.l.b16 %v9444
        %v9544 = vunpack.c.l.b16 %v9447
        %v9545 = vunpack.c.l.b16 %v9451
        %v9546 = vunpack.c.l.b16 %v9454
        %v9547 = vunpack.c.l.b16 %v9458
        %v9548 = vunpack.c.l.b16 %v9461
        %v9549 = vunpack.c.l.b16 %v9465
        %v9550 = vunpack.c.l.b16 %v9468
        %v9551 = vunpack.c.l.b16 %v9472
        %v9552 = vunpack.c.l.b16 %v9475
        %v9553 = vunpack.c.l.b16 %v9479
        %v9554 = vunpack.c.l.b16 %v9482
        %v9555 = vunpack.c.l.b16 %v9486
        %v9556 = vunpack.c.l.b16 %v9489
        %v9557 = vunpack.c.l.b16 %v9493
        %v9558 = vunpack.c.l.b16 %v9496
        %v9559 = vunpack.c.l.b16 %v9500
        %v9560 = vunpack.c.l.b16 %v9503
        %v9561 = vunpack.c.l.b16 %v9507
        %v9562 = vunpack.c.l.b16 %v9510
        %v9563 = vunpack.c.l.b16 %v9514
        %v9564 = vunpack.c.l.b16 %v9517
        %v9565 = vunpack.c.l.b16 %v9521
        %v9566 = vunpack.c.l.b16 %v9524
        %v9567 = vunpack.c.l.b16 %v9528
        %v9568 = vunpack.c.l.b16 %v9531
        %v9569 = vunpack.c.l.b16 %v9535
        %v9570 = vunpack.c.l.b16 %v9538
        %v9571 = vpack.c.b16 %v9540, %v9539
        %v9572 = vpack.c.b16 %v9542, %v9541
        %v9573 = vpack.c.b16 %v9544, %v9543
        %v9574 = vpack.c.b16 %v9546, %v9545
        %v9575 = vpack.c.b16 %v9548, %v9547
        %v9576 = vpack.c.b16 %v9550, %v9549
        %v9577 = vpack.c.b16 %v9552, %v9551
        %v9578 = vpack.c.b16 %v9554, %v9553
        %v9579 = vpack.c.b16 %v9556, %v9555
        %v9580 = vpack.c.b16 %v9558, %v9557
        %v9581 = vpack.c.b16 %v9560, %v9559
        %v9582 = vpack.c.b16 %v9562, %v9561
        %v9583 = vpack.c.b16 %v9564, %v9563
        %v9584 = vpack.c.b16 %v9566, %v9565
        %v9585 = vpack.c.b16 %v9568, %v9567
        %v9586 = vpack.c.b16 %v9570, %v9569
        %9587 = vrot.lane.b32.xlu0 %v9571, 28
        %v9588 = vpop.permute.xlu0 %9587
        %9589 = vrot.lane.b32.xlu0 %v9572, 28
        %v9590 = vpop.permute.xlu0 %9589
        %9591 = vrot.lane.b32.xlu0 %v9573, 28
        %v9592 = vpop.permute.xlu0 %9591
        %9593 = vrot.lane.b32.xlu0 %v9574, 28
        %v9594 = vpop.permute.xlu0 %9593
        %9595 = vrot.lane.b32.xlu0 %v9575, 28
        %v9596 = vpop.permute.xlu0 %9595
        %9597 = vrot.lane.b32.xlu0 %v9576, 28
        %v9598 = vpop.permute.xlu0 %9597
        %9599 = vrot.lane.b32.xlu0 %v9577, 28
        %v9600 = vpop.permute.xlu0 %9599
        %9601 = vrot.lane.b32.xlu0 %v9578, 28
        %v9602 = vpop.permute.xlu0 %9601
        %9603 = vrot.lane.b32.xlu0 %v9579, 28
        %v9604 = vpop.permute.xlu0 %9603
        %9605 = vrot.lane.b32.xlu0 %v9580, 28
        %v9606 = vpop.permute.xlu0 %9605
        %9607 = vrot.lane.b32.xlu0 %v9581, 28
        %v9608 = vpop.permute.xlu0 %9607
        %9609 = vrot.lane.b32.xlu0 %v9582, 28
        %v9610 = vpop.permute.xlu0 %9609
        %9611 = vrot.lane.b32.xlu0 %v9583, 28
        %v9612 = vpop.permute.xlu0 %9611
        %9613 = vrot.lane.b32.xlu0 %v9584, 28
        %v9614 = vpop.permute.xlu0 %9613
        %9615 = vrot.lane.b32.xlu0 %v9585, 28
        %v9616 = vpop.permute.xlu0 %9615
        %9617 = vrot.lane.b32.xlu0 %v9586, 28
        %v9618 = vpop.permute.xlu0 %9617
        %9635 = vst.msk [vmem:[#allocation3] sm:$0xff] %vm3611, %v9588
        %9636 = vst.msk [vmem:[#allocation3 + $0x8] sm:$0xff] %vm3611, %v9590
        %9637 = vst.msk [vmem:[#allocation3 + $0x10] sm:$0xff] %vm3611, %v9592
        %9638 = vst.msk [vmem:[#allocation3 + $0x18] sm:$0xff] %vm3611, %v9594
        %9639 = vst.msk [vmem:[#allocation3 + $0x20] sm:$0xff] %vm3611, %v9596
        %9640 = vst.msk [vmem:[#allocation3 + $0x28] sm:$0xff] %vm3611, %v9598
        %9641 = vst.msk [vmem:[#allocation3 + $0x30] sm:$0xff] %vm3611, %v9600
        %9642 = vst.msk [vmem:[#allocation3 + $0x38] sm:$0xff] %vm3611, %v9602
        %9643 = vst.msk [vmem:[#allocation3 + $0x40] sm:$0xff] %vm3611, %v9604
        %9644 = vst.msk [vmem:[#allocation3 + $0x48] sm:$0xff] %vm3611, %v9606
        %9645 = vst.msk [vmem:[#allocation3 + $0x50] sm:$0xff] %vm3611, %v9608
        %9646 = vst.msk [vmem:[#allocation3 + $0x58] sm:$0xff] %vm3611, %v9610
        %9647 = vst.msk [vmem:[#allocation3 + $0x60] sm:$0xff] %vm3611, %v9612
        %9648 = vst.msk [vmem:[#allocation3 + $0x68] sm:$0xff] %vm3611, %v9614
        %9649 = vst.msk [vmem:[#allocation3 + $0x70] sm:$0xff] %vm3611, %v9616
        %9650 = vst.msk [vmem:[#allocation3 + $0x78] sm:$0xff] %vm3611, %v9618
        %v9651 = vld [vmem:[%s9154 + $0x10] sm:$0xc]
        %v9652 = vld [vmem:[%s9154 + $0x14] sm:$0xf]
        %v9653 = vld [vmem:[%s9154 + $0x18] sm:$0x3]
        %v9654 = vld [vmem:[%s9154 + $0x2c] sm:$0xc]
        %v9655 = vld [vmem:[%s9154 + $0x30] sm:$0xf]
        %v9656 = vld [vmem:[%s9154 + $0x34] sm:$0x3]
        %v9657 = vld [vmem:[%s9154 + $0x48] sm:$0xc]
        %v9658 = vld [vmem:[%s9154 + $0x4c] sm:$0xf]
        %v9659 = vld [vmem:[%s9154 + $0x50] sm:$0x3]
        %v9660 = vld [vmem:[%s9154 + $0x64] sm:$0xc]
        %v9661 = vld [vmem:[%s9154 + $0x68] sm:$0xf]
        %v9662 = vld [vmem:[%s9154 + $0x6c] sm:$0x3]
        %v9663 = vld [vmem:[%s9154 + $0x80] sm:$0xc]
        %v9664 = vld [vmem:[%s9154 + $0x84] sm:$0xf]
        %v9665 = vld [vmem:[%s9154 + $0x88] sm:$0x3]
        %v9666 = vld [vmem:[%s9154 + $0x9c] sm:$0xc]
        %v9667 = vld [vmem:[%s9154 + $0xa0] sm:$0xf]
        %v9668 = vld [vmem:[%s9154 + $0xa4] sm:$0x3]
        %v9669 = vld [vmem:[%s9154 + $0xb8] sm:$0xc]
        %v9670 = vld [vmem:[%s9154 + $0xbc] sm:$0xf]
        %v9671 = vld [vmem:[%s9154 + $0xc0] sm:$0x3]
        %v9672 = vld [vmem:[%s9154 + $0xd4] sm:$0xc]
        %v9673 = vld [vmem:[%s9154 + $0xd8] sm:$0xf]
        %v9674 = vld [vmem:[%s9154 + $0xdc] sm:$0x3]
        %v9675 = vld [vmem:[%s9154 + $0xf0] sm:$0xc]
        %v9676 = vld [vmem:[%s9154 + $0xf4] sm:$0xf]
        %v9677 = vld [vmem:[%s9154 + $0xf8] sm:$0x3]
        %v9678 = vld [vmem:[%s9154 + $0x10c] sm:$0xc]
        %v9679 = vld [vmem:[%s9154 + $0x110] sm:$0xf]
        %v9680 = vld [vmem:[%s9154 + $0x114] sm:$0x3]
        %v9681 = vld [vmem:[%s9154 + $0x128] sm:$0xc]
        %v9682 = vld [vmem:[%s9154 + $0x12c] sm:$0xf]
        %v9683 = vld [vmem:[%s9154 + $0x130] sm:$0x3]
        %v9684 = vld [vmem:[%s9154 + $0x144] sm:$0xc]
        %v9685 = vld [vmem:[%s9154 + $0x148] sm:$0xf]
        %v9686 = vld [vmem:[%s9154 + $0x14c] sm:$0x3]
        %v9687 = vld [vmem:[%s9154 + $0x160] sm:$0xc]
        %v9688 = vld [vmem:[%s9154 + $0x164] sm:$0xf]
        %v9689 = vld [vmem:[%s9154 + $0x168] sm:$0x3]
        %v9690 = vld [vmem:[%s9154 + $0x17c] sm:$0xc]
        %v9691 = vld [vmem:[%s9154 + $0x180] sm:$0xf]
        %v9692 = vld [vmem:[%s9154 + $0x184] sm:$0x3]
        %v9693 = vld [vmem:[%s9154 + $0x198] sm:$0xc]
        %v9694 = vld [vmem:[%s9154 + $0x19c] sm:$0xf]
        %v9695 = vld [vmem:[%s9154 + $0x1a0] sm:$0x3]
        %v9696 = vld [vmem:[%s9154 + $0x1b4] sm:$0xc]
        %v9697 = vld [vmem:[%s9154 + $0x1b8] sm:$0xf]
        %v9698 = vld [vmem:[%s9154 + $0x1bc] sm:$0x3]
        %v9747 = vrot.slane %v9651, 6
        %v9748 = vrot.slane %v9747, 4
        %v9749 = vrot.slane %v9652, 6
        %v9750 = vsel %vm1472, %v9748, %v9749
        %v9751 = vrot.slane %v9749, 4
        %v9752 = vrot.slane %v9653, 6
        %v9753 = vsel %vm1472, %v9751, %v9752
        %v9754 = vrot.slane %v9654, 6
        %v9755 = vrot.slane %v9754, 4
        %v9756 = vrot.slane %v9655, 6
        %v9757 = vsel %vm1472, %v9755, %v9756
        %v9758 = vrot.slane %v9756, 4
        %v9759 = vrot.slane %v9656, 6
        %v9760 = vsel %vm1472, %v9758, %v9759
        %v9761 = vrot.slane %v9657, 6
        %v9762 = vrot.slane %v9761, 4
        %v9763 = vrot.slane %v9658, 6
        %v9764 = vsel %vm1472, %v9762, %v9763
        %v9765 = vrot.slane %v9763, 4
        %v9766 = vrot.slane %v9659, 6
        %v9767 = vsel %vm1472, %v9765, %v9766
        %v9768 = vrot.slane %v9660, 6
        %v9769 = vrot.slane %v9768, 4
        %v9770 = vrot.slane %v9661, 6
        %v9771 = vsel %vm1472, %v9769, %v9770
        %v9772 = vrot.slane %v9770, 4
        %v9773 = vrot.slane %v9662, 6
        %v9774 = vsel %vm1472, %v9772, %v9773
        %v9775 = vrot.slane %v9663, 6
        %v9776 = vrot.slane %v9775, 4
        %v9777 = vrot.slane %v9664, 6
        %v9778 = vsel %vm1472, %v9776, %v9777
        %v9779 = vrot.slane %v9777, 4
        %v9780 = vrot.slane %v9665, 6
        %v9781 = vsel %vm1472, %v9779, %v9780
        %v9782 = vrot.slane %v9666, 6
        %v9783 = vrot.slane %v9782, 4
        %v9784 = vrot.slane %v9667, 6
        %v9785 = vsel %vm1472, %v9783, %v9784
        %v9786 = vrot.slane %v9784, 4
        %v9787 = vrot.slane %v9668, 6
        %v9788 = vsel %vm1472, %v9786, %v9787
        %v9789 = vrot.slane %v9669, 6
        %v9790 = vrot.slane %v9789, 4
        %v9791 = vrot.slane %v9670, 6
        %v9792 = vsel %vm1472, %v9790, %v9791
        %v9793 = vrot.slane %v9791, 4
        %v9794 = vrot.slane %v9671, 6
        %v9795 = vsel %vm1472, %v9793, %v9794
        %v9796 = vrot.slane %v9672, 6
        %v9797 = vrot.slane %v9796, 4
        %v9798 = vrot.slane %v9673, 6
        %v9799 = vsel %vm1472, %v9797, %v9798
        %v9800 = vrot.slane %v9798, 4
        %v9801 = vrot.slane %v9674, 6
        %v9802 = vsel %vm1472, %v9800, %v9801
        %v9803 = vrot.slane %v9675, 6
        %v9804 = vrot.slane %v9803, 4
        %v9805 = vrot.slane %v9676, 6
        %v9806 = vsel %vm1472, %v9804, %v9805
        %v9807 = vrot.slane %v9805, 4
        %v9808 = vrot.slane %v9677, 6
        %v9809 = vsel %vm1472, %v9807, %v9808
        %v9810 = vrot.slane %v9678, 6
        %v9811 = vrot.slane %v9810, 4
        %v9812 = vrot.slane %v9679, 6
        %v9813 = vsel %vm1472, %v9811, %v9812
        %v9814 = vrot.slane %v9812, 4
        %v9815 = vrot.slane %v9680, 6
        %v9816 = vsel %vm1472, %v9814, %v9815
        %v9817 = vrot.slane %v9681, 6
        %v9818 = vrot.slane %v9817, 4
        %v9819 = vrot.slane %v9682, 6
        %v9820 = vsel %vm1472, %v9818, %v9819
        %v9821 = vrot.slane %v9819, 4
        %v9822 = vrot.slane %v9683, 6
        %v9823 = vsel %vm1472, %v9821, %v9822
        %v9824 = vrot.slane %v9684, 6
        %v9825 = vrot.slane %v9824, 4
        %v9826 = vrot.slane %v9685, 6
        %v9827 = vsel %vm1472, %v9825, %v9826
        %v9828 = vrot.slane %v9826, 4
        %v9829 = vrot.slane %v9686, 6
        %v9830 = vsel %vm1472, %v9828, %v9829
        %v9831 = vrot.slane %v9687, 6
        %v9832 = vrot.slane %v9831, 4
        %v9833 = vrot.slane %v9688, 6
        %v9834 = vsel %vm1472, %v9832, %v9833
        %v9835 = vrot.slane %v9833, 4
        %v9836 = vrot.slane %v9689, 6
        %v9837 = vsel %vm1472, %v9835, %v9836
        %v9838 = vrot.slane %v9690, 6
        %v9839 = vrot.slane %v9838, 4
        %v9840 = vrot.slane %v9691, 6
        %v9841 = vsel %vm1472, %v9839, %v9840
        %v9842 = vrot.slane %v9840, 4
        %v9843 = vrot.slane %v9692, 6
        %v9844 = vsel %vm1472, %v9842, %v9843
        %v9845 = vrot.slane %v9693, 6
        %v9846 = vrot.slane %v9845, 4
        %v9847 = vrot.slane %v9694, 6
        %v9848 = vsel %vm1472, %v9846, %v9847
        %v9849 = vrot.slane %v9847, 4
        %v9850 = vrot.slane %v9695, 6
        %v9851 = vsel %vm1472, %v9849, %v9850
        %v9852 = vrot.slane %v9696, 6
        %v9853 = vrot.slane %v9852, 4
        %v9854 = vrot.slane %v9697, 6
        %v9855 = vsel %vm1472, %v9853, %v9854
        %v9856 = vrot.slane %v9854, 4
        %v9857 = vrot.slane %v9698, 6
        %v9858 = vsel %vm1472, %v9856, %v9857
        %v9859 = vunpack.c.l.b16 %v9750
        %v9860 = vunpack.c.l.b16 %v9753
        %v9861 = vunpack.c.l.b16 %v9757
        %v9862 = vunpack.c.l.b16 %v9760
        %v9863 = vunpack.c.l.b16 %v9764
        %v9864 = vunpack.c.l.b16 %v9767
        %v9865 = vunpack.c.l.b16 %v9771
        %v9866 = vunpack.c.l.b16 %v9774
        %v9867 = vunpack.c.l.b16 %v9778
        %v9868 = vunpack.c.l.b16 %v9781
        %v9869 = vunpack.c.l.b16 %v9785
        %v9870 = vunpack.c.l.b16 %v9788
        %v9871 = vunpack.c.l.b16 %v9792
        %v9872 = vunpack.c.l.b16 %v9795
        %v9873 = vunpack.c.l.b16 %v9799
        %v9874 = vunpack.c.l.b16 %v9802
        %v9875 = vunpack.c.l.b16 %v9806
        %v9876 = vunpack.c.l.b16 %v9809
        %v9877 = vunpack.c.l.b16 %v9813
        %v9878 = vunpack.c.l.b16 %v9816
        %v9879 = vunpack.c.l.b16 %v9820
        %v9880 = vunpack.c.l.b16 %v9823
        %v9881 = vunpack.c.l.b16 %v9827
        %v9882 = vunpack.c.l.b16 %v9830
        %v9883 = vunpack.c.l.b16 %v9834
        %v9884 = vunpack.c.l.b16 %v9837
        %v9885 = vunpack.c.l.b16 %v9841
        %v9886 = vunpack.c.l.b16 %v9844
        %v9887 = vunpack.c.l.b16 %v9848
        %v9888 = vunpack.c.l.b16 %v9851
        %v9889 = vunpack.c.l.b16 %v9855
        %v9890 = vunpack.c.l.b16 %v9858
        %v9891 = vpack.c.b16 %v9860, %v9859
        %v9892 = vpack.c.b16 %v9862, %v9861
        %v9893 = vpack.c.b16 %v9864, %v9863
        %v9894 = vpack.c.b16 %v9866, %v9865
        %v9895 = vpack.c.b16 %v9868, %v9867
        %v9896 = vpack.c.b16 %v9870, %v9869
        %v9897 = vpack.c.b16 %v9872, %v9871
        %v9898 = vpack.c.b16 %v9874, %v9873
        %v9899 = vpack.c.b16 %v9876, %v9875
        %v9900 = vpack.c.b16 %v9878, %v9877
        %v9901 = vpack.c.b16 %v9880, %v9879
        %v9902 = vpack.c.b16 %v9882, %v9881
        %v9903 = vpack.c.b16 %v9884, %v9883
        %v9904 = vpack.c.b16 %v9886, %v9885
        %v9905 = vpack.c.b16 %v9888, %v9887
        %v9906 = vpack.c.b16 %v9890, %v9889
        %9907 = vrot.lane.b32.xlu0 %v9891, 32
        %v9908 = vpop.permute.xlu0 %9907
        %9909 = vrot.lane.b32.xlu0 %v9892, 32
        %v9910 = vpop.permute.xlu0 %9909
        %9911 = vrot.lane.b32.xlu0 %v9893, 32
        %v9912 = vpop.permute.xlu0 %9911
        %9913 = vrot.lane.b32.xlu0 %v9894, 32
        %v9914 = vpop.permute.xlu0 %9913
        %9915 = vrot.lane.b32.xlu0 %v9895, 32
        %v9916 = vpop.permute.xlu0 %9915
        %9917 = vrot.lane.b32.xlu0 %v9896, 32
        %v9918 = vpop.permute.xlu0 %9917
        %9919 = vrot.lane.b32.xlu0 %v9897, 32
        %v9920 = vpop.permute.xlu0 %9919
        %9921 = vrot.lane.b32.xlu0 %v9898, 32
        %v9922 = vpop.permute.xlu0 %9921
        %9923 = vrot.lane.b32.xlu0 %v9899, 32
        %v9924 = vpop.permute.xlu0 %9923
        %9925 = vrot.lane.b32.xlu0 %v9900, 32
        %v9926 = vpop.permute.xlu0 %9925
        %9927 = vrot.lane.b32.xlu0 %v9901, 32
        %v9928 = vpop.permute.xlu0 %9927
        %9929 = vrot.lane.b32.xlu0 %v9902, 32
        %v9930 = vpop.permute.xlu0 %9929
        %9931 = vrot.lane.b32.xlu0 %v9903, 32
        %v9932 = vpop.permute.xlu0 %9931
        %9933 = vrot.lane.b32.xlu0 %v9904, 32
        %v9934 = vpop.permute.xlu0 %9933
        %9935 = vrot.lane.b32.xlu0 %v9905, 32
        %v9936 = vpop.permute.xlu0 %9935
        %9937 = vrot.lane.b32.xlu0 %v9906, 32
        %v9938 = vpop.permute.xlu0 %9937
        %9955 = vst.msk [vmem:[#allocation3] sm:$0xff] %vm3788, %v9908
        %9956 = vst.msk [vmem:[#allocation3 + $0x8] sm:$0xff] %vm3788, %v9910
        %9957 = vst.msk [vmem:[#allocation3 + $0x10] sm:$0xff] %vm3788, %v9912
        %9958 = vst.msk [vmem:[#allocation3 + $0x18] sm:$0xff] %vm3788, %v9914
        %9959 = vst.msk [vmem:[#allocation3 + $0x20] sm:$0xff] %vm3788, %v9916
        %9960 = vst.msk [vmem:[#allocation3 + $0x28] sm:$0xff] %vm3788, %v9918
        %9961 = vst.msk [vmem:[#allocation3 + $0x30] sm:$0xff] %vm3788, %v9920
        %9962 = vst.msk [vmem:[#allocation3 + $0x38] sm:$0xff] %vm3788, %v9922
        %9963 = vst.msk [vmem:[#allocation3 + $0x40] sm:$0xff] %vm3788, %v9924
        %9964 = vst.msk [vmem:[#allocation3 + $0x48] sm:$0xff] %vm3788, %v9926
        %9965 = vst.msk [vmem:[#allocation3 + $0x50] sm:$0xff] %vm3788, %v9928
        %9966 = vst.msk [vmem:[#allocation3 + $0x58] sm:$0xff] %vm3788, %v9930
        %9967 = vst.msk [vmem:[#allocation3 + $0x60] sm:$0xff] %vm3788, %v9932
        %9968 = vst.msk [vmem:[#allocation3 + $0x68] sm:$0xff] %vm3788, %v9934
        %9969 = vst.msk [vmem:[#allocation3 + $0x70] sm:$0xff] %vm3788, %v9936
        %9970 = vst.msk [vmem:[#allocation3 + $0x78] sm:$0xff] %vm3788, %v9938
        %v9971 = vld [vmem:[#allocation3] sm:$0xff]
        %v9972 = vld [vmem:[#allocation3 + $0x8] sm:$0xff]
        %v9973 = vld [vmem:[#allocation3 + $0x10] sm:$0xff]
        %v9974 = vld [vmem:[#allocation3 + $0x18] sm:$0xff]
        %v9975 = vld [vmem:[#allocation3 + $0x20] sm:$0xff]
        %v9976 = vld [vmem:[#allocation3 + $0x28] sm:$0xff]
        %v9977 = vld [vmem:[#allocation3 + $0x30] sm:$0xff]
        %v9978 = vld [vmem:[#allocation3 + $0x38] sm:$0xff]
        %v9979 = vld [vmem:[#allocation3 + $0x40] sm:$0xff]
        %v9980 = vld [vmem:[#allocation3 + $0x48] sm:$0xff]
        %v9981 = vld [vmem:[#allocation3 + $0x50] sm:$0xff]
        %v9982 = vld [vmem:[#allocation3 + $0x58] sm:$0xff]
        %v9983 = vld [vmem:[#allocation3 + $0x60] sm:$0xff]
        %v9984 = vld [vmem:[#allocation3 + $0x68] sm:$0xff]
        %v9985 = vld [vmem:[#allocation3 + $0x70] sm:$0xff]
        %v9986 = vld [vmem:[#allocation3 + $0x78] sm:$0xff]
        %v9987 = vld [vmem:[%s4] sm:$0xf]
        %v9988 = vld [vmem:[%s4 + $0x4] sm:$0xf]
        %v9989 = vld [vmem:[%s4 + $0x8] sm:$0xf]
        %v9990 = vld [vmem:[%s4 + $0xc] sm:$0xf]
        %v9991 = vld [vmem:[%s4 + $0x10] sm:$0x3]
        %v9997 = vunpack.c.l.b16 %v9987
        %v9998 = vunpack.c.l.b16 %v9988
        %v9999 = vunpack.c.l.b16 %v9989
        %v10000 = vunpack.c.l.b16 %v9990
        %v10001 = vunpack.c.l.b16 %v9991
        %v10002 = vpack.c.b16 %v9998, %v9997
        %v10003 = vpack.c.b16 %v10000, %v9999
        %v10004 = vpack.c.b16 %v10001, %v10001
        %v10008 = vsel %vm3841, %v9971, 0
        %v10011 = vsel %vm3841, %v9972, 0
        %v10014 = vsel %vm3841, %v9973, 0
        %v10017 = vsel %vm3841, %v9974, 0
        %v10020 = vsel %vm3841, %v9975, 0
        %v10023 = vsel %vm3841, %v9976, 0
        %v10026 = vsel %vm3841, %v9977, 0
        %v10029 = vsel %vm3841, %v9978, 0
        %v10032 = vsel %vm3841, %v9979, 0
        %v10035 = vsel %vm3841, %v9980, 0
        %v10038 = vsel %vm3841, %v9981, 0
        %v10041 = vsel %vm3841, %v9982, 0
        %v10044 = vsel %vm3841, %v9983, 0
        %v10047 = vsel %vm3841, %v9984, 0
        %v10050 = vsel %vm3841, %v9985, 0
        %v10053 = vsel %vm3841, %v9986, 0
        %v10056 = vsel %vm1071, %v10004, 0
        %10058 = vmatprep.subr.bf16.mxu0 0
        %10059 = vmatpush1.bf16.msra.mxu0 %v10002
        %10060 = vmatprep.subr.bf16.mxu0 0
        %10061 = vmatpush1.bf16.msra.mxu0 %v10003
        %10062 = vmatprep.subr.bf16.mxu0 0
        %10063 = vmatpush1.bf16.msra.mxu0 %v10056
        %10064 = vmatprep.subr.bf16.mxu0 0
        %10065 = vmatpush1.bf16.msra.mxu0 0
        %10066 = vmatprep.subr.bf16.mxu0 0
        %10067 = vmatpush1.bf16.msra.mxu0 0
        %10068 = vmatprep.subr.bf16.mxu0 0
        %10069 = vmatpush1.bf16.msra.mxu0 0
        %10070 = vmatprep.subr.bf16.mxu0 0
        %10071 = vmatpush1.bf16.msra.mxu0 0
        %10072 = vmatprep.subr.bf16.mxu0 0
        %10073 = vmatpush1.bf16.msra.mxu0 0
        %10074 = vmatprep.subr.bf16.mxu0 0
        %10075 = vmatpush1.bf16.msra.mxu0 0
        %10076 = vmatprep.subr.bf16.mxu0 0
        %10077 = vmatpush1.bf16.msra.mxu0 0
        %10078 = vmatprep.subr.bf16.mxu0 0
        %10079 = vmatpush1.bf16.msra.mxu0 0
        %10080 = vmatprep.subr.bf16.mxu0 0
        %10081 = vmatpush1.bf16.msra.mxu0 0
        %10082 = vmatprep.subr.bf16.mxu0 0
        %10083 = vmatpush1.bf16.msra.mxu0 0
        %10084 = vmatprep.subr.bf16.mxu0 0
        %10085 = vmatpush1.bf16.msra.mxu0 0
        %10086 = vmatprep.subr.bf16.mxu0 0
        %10087 = vmatpush1.bf16.msra.mxu0 0
        %10088 = vmatprep.subr.bf16.mxu0 0
        %10089 = vmatpush1.bf16.msra.mxu0 0
        %10090 = vmatprep.mubr.bf16.mxu0 0
        %10091 = vmatmul.mubr.bf16.gmra.mrb[0].mxu0 %v10008
        %v10092 = vpop.f32.mrb[0].mxu0
        %v10093 = vadd.f32 0.0, %v10092
        %v10094 = vpop.f32.mrb[0].mxu0
        %v10095 = vpop.f32.mrb[0].mxu0
        %v10096 = vadd.f32 0.0, %v10095
        %v10097 = vpop.f32.mrb[0].mxu0
        %10098 = vmatprep.mubr.bf16.mxu0 0
        %10099 = vmatmul.mubr.bf16.gmra.mrb[0].mxu0 %v10011
        %v10100 = vpop.f32.mrb[0].mxu0
        %v10101 = vadd.f32 0.0, %v10100
        %v10102 = vpop.f32.mrb[0].mxu0
        %v10103 = vpop.f32.mrb[0].mxu0
        %v10104 = vadd.f32 0.0, %v10103
        %v10105 = vpop.f32.mrb[0].mxu0
        %10106 = vmatprep.mubr.bf16.mxu0 0
        %10107 = vmatmul.mubr.bf16.gmra.mrb[0].mxu0 %v10014
        %v10108 = vpop.f32.mrb[0].mxu0
        %v10109 = vadd.f32 0.0, %v10108
        %v10110 = vpop.f32.mrb[0].mxu0
        %v10111 = vpop.f32.mrb[0].mxu0
        %v10112 = vadd.f32 0.0, %v10111
        %v10113 = vpop.f32.mrb[0].mxu0
        %10114 = vmatprep.mubr.bf16.mxu0 0
        %10115 = vmatmul.mubr.bf16.gmra.mrb[0].mxu0 %v10017
        %v10116 = vpop.f32.mrb[0].mxu0
        %v10117 = vadd.f32 0.0, %v10116
        %v10118 = vpop.f32.mrb[0].mxu0
        %v10119 = vpop.f32.mrb[0].mxu0
        %v10120 = vadd.f32 0.0, %v10119
        %v10121 = vpop.f32.mrb[0].mxu0
        %10122 = vmatprep.mubr.bf16.mxu0 0
        %10123 = vmatmul.mubr.bf16.gmra.mrb[0].mxu0 %v10020
        %v10124 = vpop.f32.mrb[0].mxu0
        %v10125 = vadd.f32 0.0, %v10124
        %v10126 = vpop.f32.mrb[0].mxu0
        %v10127 = vpop.f32.mrb[0].mxu0
        %v10128 = vadd.f32 0.0, %v10127
        %v10129 = vpop.f32.mrb[0].mxu0
        %10130 = vmatprep.mubr.bf16.mxu0 0
        %10131 = vmatmul.mubr.bf16.gmra.mrb[0].mxu0 %v10023
        %v10132 = vpop.f32.mrb[0].mxu0
        %v10133 = vadd.f32 0.0, %v10132
        %v10134 = vpop.f32.mrb[0].mxu0
        %v10135 = vpop.f32.mrb[0].mxu0
        %v10136 = vadd.f32 0.0, %v10135
        %v10137 = vpop.f32.mrb[0].mxu0
        %10138 = vmatprep.mubr.bf16.mxu0 0
        %10139 = vmatmul.mubr.bf16.gmra.mrb[0].mxu0 %v10026
        %v10140 = vpop.f32.mrb[0].mxu0
        %v10141 = vadd.f32 0.0, %v10140
        %v10142 = vpop.f32.mrb[0].mxu0
        %v10143 = vpop.f32.mrb[0].mxu0
        %v10144 = vadd.f32 0.0, %v10143
        %v10145 = vpop.f32.mrb[0].mxu0
        %10146 = vmatprep.mubr.bf16.mxu0 0
        %10147 = vmatmul.mubr.bf16.gmra.mrb[0].mxu0 %v10029
        %v10148 = vpop.f32.mrb[0].mxu0
        %v10149 = vadd.f32 0.0, %v10148
        %v10150 = vpop.f32.mrb[0].mxu0
        %v10151 = vpop.f32.mrb[0].mxu0
        %v10152 = vadd.f32 0.0, %v10151
        %v10153 = vpop.f32.mrb[0].mxu0
        %10154 = vmatprep.mubr.bf16.mxu0 0
        %10155 = vmatmul.mubr.bf16.gmra.mrb[0].mxu0 %v10032
        %v10156 = vpop.f32.mrb[0].mxu0
        %v10157 = vadd.f32 0.0, %v10156
        %v10158 = vpop.f32.mrb[0].mxu0
        %v10159 = vpop.f32.mrb[0].mxu0
        %v10160 = vadd.f32 0.0, %v10159
        %v10161 = vpop.f32.mrb[0].mxu0
        %10162 = vmatprep.mubr.bf16.mxu0 0
        %10163 = vmatmul.mubr.bf16.gmra.mrb[0].mxu0 %v10035
        %v10164 = vpop.f32.mrb[0].mxu0
        %v10165 = vadd.f32 0.0, %v10164
        %v10166 = vpop.f32.mrb[0].mxu0
        %v10167 = vpop.f32.mrb[0].mxu0
        %v10168 = vadd.f32 0.0, %v10167
        %v10169 = vpop.f32.mrb[0].mxu0
        %10170 = vmatprep.mubr.bf16.mxu0 0
        %10171 = vmatmul.mubr.bf16.gmra.mrb[0].mxu0 %v10038
        %v10172 = vpop.f32.mrb[0].mxu0
        %v10173 = vadd.f32 0.0, %v10172
        %v10174 = vpop.f32.mrb[0].mxu0
        %v10175 = vpop.f32.mrb[0].mxu0
        %v10176 = vadd.f32 0.0, %v10175
        %v10177 = vpop.f32.mrb[0].mxu0
        %10178 = vmatprep.mubr.bf16.mxu0 0
        %10179 = vmatmul.mubr.bf16.gmra.mrb[0].mxu0 %v10041
        %v10180 = vpop.f32.mrb[0].mxu0
        %v10181 = vadd.f32 0.0, %v10180
        %v10182 = vpop.f32.mrb[0].mxu0
        %v10183 = vpop.f32.mrb[0].mxu0
        %v10184 = vadd.f32 0.0, %v10183
        %v10185 = vpop.f32.mrb[0].mxu0
        %10186 = vmatprep.mubr.bf16.mxu0 0
        %10187 = vmatmul.mubr.bf16.gmra.mrb[0].mxu0 %v10044
        %v10188 = vpop.f32.mrb[0].mxu0
        %v10189 = vadd.f32 0.0, %v10188
        %v10190 = vpop.f32.mrb[0].mxu0
        %v10191 = vpop.f32.mrb[0].mxu0
        %v10192 = vadd.f32 0.0, %v10191
        %v10193 = vpop.f32.mrb[0].mxu0
        %10194 = vmatprep.mubr.bf16.mxu0 0
        %10195 = vmatmul.mubr.bf16.gmra.mrb[0].mxu0 %v10047
        %v10196 = vpop.f32.mrb[0].mxu0
        %v10197 = vadd.f32 0.0, %v10196
        %v10198 = vpop.f32.mrb[0].mxu0
        %v10199 = vpop.f32.mrb[0].mxu0
        %v10200 = vadd.f32 0.0, %v10199
        %v10201 = vpop.f32.mrb[0].mxu0
        %10202 = vmatprep.mubr.bf16.mxu0 0
        %10203 = vmatmul.mubr.bf16.gmra.mrb[0].mxu0 %v10050
        %v10204 = vpop.f32.mrb[0].mxu0
        %v10205 = vadd.f32 0.0, %v10204
        %v10206 = vpop.f32.mrb[0].mxu0
        %v10207 = vpop.f32.mrb[0].mxu0
        %v10208 = vadd.f32 0.0, %v10207
        %v10209 = vpop.f32.mrb[0].mxu0
        %10210 = vmatprep.mubr.bf16.mxu0 0
        %10211 = vmatmul.mubr.bf16.gmra.mrb[0].mxu0 %v10053
        %v10212 = vpop.f32.mrb[0].mxu0
        %v10213 = vadd.f32 0.0, %v10212
        %v10214 = vpop.f32.mrb[0].mxu0
        %v10215 = vpop.f32.mrb[0].mxu0
        %v10216 = vadd.f32 0.0, %v10215
        %v10217 = vpop.f32.mrb[0].mxu0
        %10218 = vdwg.mxu0
        %v10219 = vlaneseq
        %v10220 = vshrl.u32 %v10219, 7
        %v10221 = vsub.s32 3, %v10220
        %v10222 = vrot.slane %v971, %v10221
        %v10223 = vmul.f32 %v10093, %v10222
        %v10224 = vmul.f32 %v10096, %v10222
        %v10225 = vmul.f32 %v10101, %v10222
        %v10226 = vmul.f32 %v10104, %v10222
        %v10227 = vmul.f32 %v10109, %v10222
        %v10228 = vmul.f32 %v10112, %v10222
        %v10229 = vmul.f32 %v10117, %v10222
        %v10230 = vmul.f32 %v10120, %v10222
        %v10231 = vmul.f32 %v10125, %v10222
        %v10232 = vmul.f32 %v10128, %v10222
        %v10233 = vmul.f32 %v10133, %v10222
        %v10234 = vmul.f32 %v10136, %v10222
        %v10235 = vmul.f32 %v10141, %v10222
        %v10236 = vmul.f32 %v10144, %v10222
        %v10237 = vmul.f32 %v10149, %v10222
        %v10238 = vmul.f32 %v10152, %v10222
        %v10239 = vmul.f32 %v10157, %v10222
        %v10240 = vmul.f32 %v10160, %v10222
        %v10241 = vmul.f32 %v10165, %v10222
        %v10242 = vmul.f32 %v10168, %v10222
        %v10243 = vmul.f32 %v10173, %v10222
        %v10244 = vmul.f32 %v10176, %v10222
        %v10245 = vmul.f32 %v10181, %v10222
        %v10246 = vmul.f32 %v10184, %v10222
        %v10247 = vmul.f32 %v10189, %v10222
        %v10248 = vmul.f32 %v10192, %v10222
        %v10249 = vmul.f32 %v10197, %v10222
        %v10250 = vmul.f32 %v10200, %v10222
        %v10251 = vmul.f32 %v10205, %v10222
        %v10252 = vmul.f32 %v10208, %v10222
        %v10253 = vmul.f32 %v10213, %v10222
        %v10254 = vmul.f32 %v10216, %v10222
        %v10255 = vlaneseq
        %v10256 = vshrl.u32 %v10255, 7
        %v10257 = vsub.s32 3, %v10256
        %v10258 = vrot.slane %v972, %v10257
        %v10259 = vadd.f32 %v10223, %v10258
        %v10260 = vadd.f32 %v10224, %v10258
        %v10261 = vadd.f32 %v10225, %v10258
        %v10262 = vadd.f32 %v10226, %v10258
        %v10263 = vadd.f32 %v10227, %v10258
        %v10264 = vadd.f32 %v10228, %v10258
        %v10265 = vadd.f32 %v10229, %v10258
        %v10266 = vadd.f32 %v10230, %v10258
        %v10267 = vadd.f32 %v10231, %v10258
        %v10268 = vadd.f32 %v10232, %v10258
        %v10269 = vadd.f32 %v10233, %v10258
        %v10270 = vadd.f32 %v10234, %v10258
        %v10271 = vadd.f32 %v10235, %v10258
        %v10272 = vadd.f32 %v10236, %v10258
        %v10273 = vadd.f32 %v10237, %v10258
        %v10274 = vadd.f32 %v10238, %v10258
        %v10275 = vadd.f32 %v10239, %v10258
        %v10276 = vadd.f32 %v10240, %v10258
        %v10277 = vadd.f32 %v10241, %v10258
        %v10278 = vadd.f32 %v10242, %v10258
        %v10279 = vadd.f32 %v10243, %v10258
        %v10280 = vadd.f32 %v10244, %v10258
        %v10281 = vadd.f32 %v10245, %v10258
        %v10282 = vadd.f32 %v10246, %v10258
        %v10283 = vadd.f32 %v10247, %v10258
        %v10284 = vadd.f32 %v10248, %v10258
        %v10285 = vadd.f32 %v10249, %v10258
        %v10286 = vadd.f32 %v10250, %v10258
        %v10287 = vadd.f32 %v10251, %v10258
        %v10288 = vadd.f32 %v10252, %v10258
        %v10289 = vadd.f32 %v10253, %v10258
        %v10290 = vadd.f32 %v10254, %v10258
        %v10291 = vmax.f32 %v10259, 0.0
        %v10292 = vmax.f32 %v10260, 0.0
        %v10293 = vmax.f32 %v10261, 0.0
        %v10294 = vmax.f32 %v10262, 0.0
        %v10295 = vmax.f32 %v10263, 0.0
        %v10296 = vmax.f32 %v10264, 0.0
        %v10297 = vmax.f32 %v10265, 0.0
        %v10298 = vmax.f32 %v10266, 0.0
        %v10299 = vmax.f32 %v10267, 0.0
        %v10300 = vmax.f32 %v10268, 0.0
        %v10301 = vmax.f32 %v10269, 0.0
        %v10302 = vmax.f32 %v10270, 0.0
        %v10303 = vmax.f32 %v10271, 0.0
        %v10304 = vmax.f32 %v10272, 0.0
        %v10305 = vmax.f32 %v10273, 0.0
        %v10306 = vmax.f32 %v10274, 0.0
        %v10307 = vmax.f32 %v10275, 0.0
        %v10308 = vmax.f32 %v10276, 0.0
        %v10309 = vmax.f32 %v10277, 0.0
        %v10310 = vmax.f32 %v10278, 0.0
        %v10311 = vmax.f32 %v10279, 0.0
        %v10312 = vmax.f32 %v10280, 0.0
        %v10313 = vmax.f32 %v10281, 0.0
        %v10314 = vmax.f32 %v10282, 0.0
        %v10315 = vmax.f32 %v10283, 0.0
        %v10316 = vmax.f32 %v10284, 0.0
        %v10317 = vmax.f32 %v10285, 0.0
        %v10318 = vmax.f32 %v10286, 0.0
        %v10319 = vmax.f32 %v10287, 0.0
        %v10320 = vmax.f32 %v10288, 0.0
        %v10321 = vmax.f32 %v10289, 0.0
        %v10322 = vmax.f32 %v10290, 0.0
        %v10323 = vpack.c.bf16 %v10292, %v10291
        %v10324 = vpack.c.bf16 %v10294, %v10293
        %v10325 = vpack.c.bf16 %v10296, %v10295
        %v10326 = vpack.c.bf16 %v10298, %v10297
        %v10327 = vpack.c.bf16 %v10300, %v10299
        %v10328 = vpack.c.bf16 %v10302, %v10301
        %v10329 = vpack.c.bf16 %v10304, %v10303
        %v10330 = vpack.c.bf16 %v10306, %v10305
        %v10331 = vpack.c.bf16 %v10308, %v10307
        %v10332 = vpack.c.bf16 %v10310, %v10309
        %v10333 = vpack.c.bf16 %v10312, %v10311
        %v10334 = vpack.c.bf16 %v10314, %v10313
        %v10335 = vpack.c.bf16 %v10316, %v10315
        %v10336 = vpack.c.bf16 %v10318, %v10317
        %v10337 = vpack.c.bf16 %v10320, %v10319
        %v10338 = vpack.c.bf16 %v10322, %v10321
        %10355 = vrot.lane.b32.xlu0 %v10323, 96
        %v10356 = vpop.permute.xlu0 %10355
        %10357 = vrot.lane.b32.xlu0 %v10324, 96
        %v10358 = vpop.permute.xlu0 %10357
        %10359 = vrot.lane.b32.xlu0 %v10325, 96
        %v10360 = vpop.permute.xlu0 %10359
        %10361 = vrot.lane.b32.xlu0 %v10326, 96
        %v10362 = vpop.permute.xlu0 %10361
        %10363 = vrot.lane.b32.xlu0 %v10327, 96
        %v10364 = vpop.permute.xlu0 %10363
        %10365 = vrot.lane.b32.xlu0 %v10328, 96
        %v10366 = vpop.permute.xlu0 %10365
        %10367 = vrot.lane.b32.xlu0 %v10329, 96
        %v10368 = vpop.permute.xlu0 %10367
        %10369 = vrot.lane.b32.xlu0 %v10330, 96
        %v10370 = vpop.permute.xlu0 %10369
        %10371 = vrot.lane.b32.xlu0 %v10331, 96
        %v10372 = vpop.permute.xlu0 %10371
        %10373 = vrot.lane.b32.xlu0 %v10332, 96
        %v10374 = vpop.permute.xlu0 %10373
        %10375 = vrot.lane.b32.xlu0 %v10333, 96
        %v10376 = vpop.permute.xlu0 %10375
        %10377 = vrot.lane.b32.xlu0 %v10334, 96
        %v10378 = vpop.permute.xlu0 %10377
        %10379 = vrot.lane.b32.xlu0 %v10335, 96
        %v10380 = vpop.permute.xlu0 %10379
        %10381 = vrot.lane.b32.xlu0 %v10336, 96
        %v10382 = vpop.permute.xlu0 %10381
        %10383 = vrot.lane.b32.xlu0 %v10337, 96
        %v10384 = vpop.permute.xlu0 %10383
        %10385 = vrot.lane.b32.xlu0 %v10338, 96
        %v10386 = vpop.permute.xlu0 %10385
        %vm10403 = vcmask 1048320
        %10404 = vst.msk [vmem:[#allocation4] sm:$0xff] %vm10403, %v10356
        %10405 = vst.msk [vmem:[#allocation4 + $0x8] sm:$0xff] %vm10403, %v10358
        %10406 = vst.msk [vmem:[#allocation4 + $0x10] sm:$0xff] %vm10403, %v10360
        %10407 = vst.msk [vmem:[#allocation4 + $0x18] sm:$0xff] %vm10403, %v10362
        %10408 = vst.msk [vmem:[#allocation4 + $0x20] sm:$0xff] %vm10403, %v10364
        %10409 = vst.msk [vmem:[#allocation4 + $0x28] sm:$0xff] %vm10403, %v10366
        %10410 = vst.msk [vmem:[#allocation4 + $0x30] sm:$0xff] %vm10403, %v10368
        %10411 = vst.msk [vmem:[#allocation4 + $0x38] sm:$0xff] %vm10403, %v10370
        %10412 = vst.msk [vmem:[#allocation4 + $0x40] sm:$0xff] %vm10403, %v10372
        %10413 = vst.msk [vmem:[#allocation4 + $0x48] sm:$0xff] %vm10403, %v10374
        %10414 = vst.msk [vmem:[#allocation4 + $0x50] sm:$0xff] %vm10403, %v10376
        %10415 = vst.msk [vmem:[#allocation4 + $0x58] sm:$0xff] %vm10403, %v10378
        %10416 = vst.msk [vmem:[#allocation4 + $0x60] sm:$0xff] %vm10403, %v10380
        %10417 = vst.msk [vmem:[#allocation4 + $0x68] sm:$0xff] %vm10403, %v10382
        %10418 = vst.msk [vmem:[#allocation4 + $0x70] sm:$0xff] %vm10403, %v10384
        %10419 = vst.msk [vmem:[#allocation4 + $0x78] sm:$0xff] %vm10403, %v10386
        %v10420 = vunpack.c.l.bf16 %v725
        %v10421 = vunpack.c.l.bf16 %v726
        %v10422 = vunpack.c.l.bf16 %v727
        %v10423 = vunpack.c.l.bf16 %v728
        %v10424 = vunpack.c.l.bf16 %v729
        %v10425 = vunpack.c.l.bf16 %v730
        %v10426 = vunpack.c.l.bf16 %v731
        %v10427 = vunpack.c.l.bf16 %v732
        %v10428 = vunpack.c.l.bf16 %v733
        %v10429 = vunpack.c.l.bf16 %v734
        %v10430 = vunpack.c.l.bf16 %v735
        %v10431 = vunpack.c.l.bf16 %v736
        %v10432 = vunpack.c.l.bf16 %v737
        %v10433 = vunpack.c.l.bf16 %v738
        %v10434 = vunpack.c.l.bf16 %v739
        %v10435 = vunpack.c.l.bf16 %v740
        %v10436 = vunpack.c.l.bf16 %v741
        %v10437 = vunpack.c.l.bf16 %v742
        %v10438 = vunpack.c.l.bf16 %v743
        %v10439 = vunpack.c.l.bf16 %v744
        %v10440 = vunpack.c.l.bf16 %v745
        %v10441 = vunpack.c.l.bf16 %v746
        %v10442 = vunpack.c.l.bf16 %v747
        %v10443 = vunpack.c.l.bf16 %v748
        %v10444 = vunpack.c.l.bf16 %v749
        %v10445 = vunpack.c.l.bf16 %v750
        %v10446 = vunpack.c.l.bf16 %v751
        %v10447 = vunpack.c.l.bf16 %v752
        %v10448 = vunpack.c.l.bf16 %v753
        %v10449 = vunpack.c.l.bf16 %v754
        %v10450 = vunpack.c.l.bf16 %v755
        %v10451 = vunpack.c.l.bf16 %v756
        %v10452 = vsel %vm1022, %v10420, 0.0
        %v10453 = vsel %vm1022, %v10421, 0.0
        %v10454 = vadd.f32 %v10452, %v10453
        %v10455 = vsel %vm1022, %v10422, 0.0
        %v10456 = vadd.f32 %v10454, %v10455
        %v10457 = vsel %vm1022, %v10423, 0.0
        %v10458 = vadd.f32 %v10456, %v10457
        %v10459 = vsel %vm1022, %v10424, 0.0
        %v10460 = vadd.f32 %v10458, %v10459
        %v10461 = vsel %vm1022, %v10425, 0.0
        %v10462 = vadd.f32 %v10460, %v10461
        %v10463 = vsel %vm1022, %v10426, 0.0
        %v10464 = vadd.f32 %v10462, %v10463
        %v10465 = vsel %vm1022, %v10427, 0.0
        %v10466 = vadd.f32 %v10464, %v10465
        %v10467 = vsel %vm1022, %v10428, 0.0
        %v10468 = vadd.f32 %v10466, %v10467
        %v10469 = vsel %vm1022, %v10429, 0.0
        %v10470 = vadd.f32 %v10468, %v10469
        %v10471 = vsel %vm1022, %v10430, 0.0
        %v10472 = vadd.f32 %v10470, %v10471
        %v10473 = vsel %vm1022, %v10431, 0.0
        %v10474 = vadd.f32 %v10472, %v10473
        %v10475 = vsel %vm1022, %v10432, 0.0
        %v10476 = vadd.f32 %v10474, %v10475
        %v10477 = vsel %vm1022, %v10433, 0.0
        %v10478 = vadd.f32 %v10476, %v10477
        %v10479 = vsel %vm1022, %v10434, 0.0
        %v10480 = vadd.f32 %v10478, %v10479
        %v10481 = vsel %vm1022, %v10435, 0.0
        %v10482 = vadd.f32 %v10480, %v10481
        %v10483 = vsel %vm1022, %v10436, 0.0
        %v10484 = vadd.f32 %v10482, %v10483
        %v10485 = vsel %vm1022, %v10437, 0.0
        %v10486 = vadd.f32 %v10484, %v10485
        %v10487 = vsel %vm1022, %v10438, 0.0
        %v10488 = vadd.f32 %v10486, %v10487
        %v10489 = vsel %vm1022, %v10439, 0.0
        %v10490 = vadd.f32 %v10488, %v10489
        %v10491 = vsel %vm1022, %v10440, 0.0
        %v10492 = vadd.f32 %v10490, %v10491
        %v10493 = vsel %vm1022, %v10441, 0.0
        %v10494 = vadd.f32 %v10492, %v10493
        %v10495 = vsel %vm1022, %v10442, 0.0
        %v10496 = vadd.f32 %v10494, %v10495
        %v10497 = vsel %vm1022, %v10443, 0.0
        %v10498 = vadd.f32 %v10496, %v10497
        %v10499 = vsel %vm1022, %v10444, 0.0
        %v10500 = vadd.f32 %v10498, %v10499
        %v10501 = vsel %vm1022, %v10445, 0.0
        %v10502 = vadd.f32 %v10500, %v10501
        %v10503 = vsel %vm1022, %v10446, 0.0
        %v10504 = vadd.f32 %v10502, %v10503
        %v10505 = vsel %vm1022, %v10447, 0.0
        %v10506 = vadd.f32 %v10504, %v10505
        %v10507 = vsel %vm1022, %v10448, 0.0
        %v10508 = vadd.f32 %v10506, %v10507
        %v10509 = vsel %vm1022, %v10449, 0.0
        %v10510 = vadd.f32 %v10508, %v10509
        %v10511 = vsel %vm1022, %v10450, 0.0
        %v10512 = vadd.f32 %v10510, %v10511
        %v10513 = vsel %vm1022, %v10451, 0.0
        %v10514 = vadd.f32 %v10512, %v10513
        %v10515 = vrot.slane %v10514, 4
        %v10516 = vadd.f32 %v10514, %v10515
        %v10517 = vrot.slane %v10516, 2
        %v10518 = vadd.f32 %v10516, %v10517
        %v10519 = vrot.slane %v10518, 1
        %v10520 = vadd.f32 %v10518, %v10519
        %v10521 = vrcp.pop 256.0
        %v10522 = vmul.f32 %v10520, %v10521
        %v10523 = vpack.c.bf16 %v10522, %v10522
        %v10524 = vld [vmem:[%s5] sm:$0x3]
        %v10526 = vsel %vm1022, %v10523, 0
        %v10529 = vsel %vm1071, %v10524, 0
        %10531 = vmatprep.subr.bf16.mxu0 0
        %10532 = vmatpush1.bf16.msra.mxu0 %v10529
        %10533 = vmatprep.subr.bf16.mxu0 0
        %10534 = vmatpush1.bf16.msra.mxu0 0
        %10535 = vmatprep.subr.bf16.mxu0 0
        %10536 = vmatpush1.bf16.msra.mxu0 0
        %10537 = vmatprep.subr.bf16.mxu0 0
        %10538 = vmatpush1.bf16.msra.mxu0 0
        %10539 = vmatprep.subr.bf16.mxu0 0
        %10540 = vmatpush1.bf16.msra.mxu0 0
        %10541 = vmatprep.subr.bf16.mxu0 0
        %10542 = vmatpush1.bf16.msra.mxu0 0
        %10543 = vmatprep.subr.bf16.mxu0 0
        %10544 = vmatpush1.bf16.msra.mxu0 0
        %10545 = vmatprep.subr.bf16.mxu0 0
        %10546 = vmatpush1.bf16.msra.mxu0 0
        %10547 = vmatprep.subr.bf16.mxu0 0
        %10548 = vmatpush1.bf16.msra.mxu0 0
        %10549 = vmatprep.subr.bf16.mxu0 0
        %10550 = vmatpush1.bf16.msra.mxu0 0
        %10551 = vmatprep.subr.bf16.mxu0 0
        %10552 = vmatpush1.bf16.msra.mxu0 0
        %10553 = vmatprep.subr.bf16.mxu0 0
        %10554 = vmatpush1.bf16.msra.mxu0 0
        %10555 = vmatprep.subr.bf16.mxu0 0
        %10556 = vmatpush1.bf16.msra.mxu0 0
        %10557 = vmatprep.subr.bf16.mxu0 0
        %10558 = vmatpush1.bf16.msra.mxu0 0
        %10559 = vmatprep.subr.bf16.mxu0 0
        %10560 = vmatpush1.bf16.msra.mxu0 0
        %10561 = vmatprep.subr.bf16.mxu0 0
        %10562 = vmatpush1.bf16.msra.mxu0 0
        %10563 = vmatprep.mubr.bf16.mxu0 0
        %10564 = vmatmul.mubr.bf16.gmra.mrb[0].mxu0 %v10526
        %v10565 = vpop.f32.mrb[0].mxu0
        %v10566 = vadd.f32 0.0, %v10565
        %v10567 = vpop.f32.mrb[0].mxu0
        %v10568 = vpop.f32.mrb[0].mxu0
        %v10569 = vpop.f32.mrb[0].mxu0
        %10570 = vdwg.mxu0
        %v10572 = vrot.slane %v971, 4
        %v10574 = vmul.f32 %v10566, %v10572
        %v10576 = vrot.slane %v972, 4
        %v10578 = vadd.f32 %v10574, %v10576
        %v10579 = vmax.f32 %v10578, 0.0
        %v10580 = vpack.c.bf16 %v10579, %v10579
        %v10581 = vld [vmem:[%s7] sm:$0xf]
        %v10582 = vld [vmem:[%s7 + $0x4] sm:$0xf]
        %v10583 = vld [vmem:[%s7 + $0x8] sm:$0xf]
        %v10584 = vld [vmem:[%s7 + $0xc] sm:$0xf]
        %v10589 = vunpack.c.l.b16 %v10581
        %v10590 = vunpack.c.l.b16 %v10582
        %v10591 = vunpack.c.l.b16 %v10583
        %v10592 = vunpack.c.l.b16 %v10584
        %v10593 = vpack.c.b16 %v10590, %v10589
        %v10594 = vpack.c.b16 %v10592, %v10591
        %v10598 = vsel %vm1356, %v10580, 0
        %10600 = vmatprep.subr.bf16.mxu0 0
        %10601 = vmatpush1.bf16.msra.mxu0 %v10593
        %10602 = vmatprep.subr.bf16.mxu0 0
        %10603 = vmatpush1.bf16.msra.mxu0 %v10594
        %10604 = vmatprep.subr.bf16.mxu0 0
        %10605 = vmatpush1.bf16.msra.mxu0 0
        %10606 = vmatprep.subr.bf16.mxu0 0
        %10607 = vmatpush1.bf16.msra.mxu0 0
        %10608 = vmatprep.subr.bf16.mxu0 0
        %10609 = vmatpush1.bf16.msra.mxu0 0
        %10610 = vmatprep.subr.bf16.mxu0 0
        %10611 = vmatpush1.bf16.msra.mxu0 0
        %10612 = vmatprep.subr.bf16.mxu0 0
        %10613 = vmatpush1.bf16.msra.mxu0 0
        %10614 = vmatprep.subr.bf16.mxu0 0
        %10615 = vmatpush1.bf16.msra.mxu0 0
        %10616 = vmatprep.subr.bf16.mxu0 0
        %10617 = vmatpush1.bf16.msra.mxu0 0
        %10618 = vmatprep.subr.bf16.mxu0 0
        %10619 = vmatpush1.bf16.msra.mxu0 0
        %10620 = vmatprep.subr.bf16.mxu0 0
        %10621 = vmatpush1.bf16.msra.mxu0 0
        %10622 = vmatprep.subr.bf16.mxu0 0
        %10623 = vmatpush1.bf16.msra.mxu0 0
        %10624 = vmatprep.subr.bf16.mxu0 0
        %10625 = vmatpush1.bf16.msra.mxu0 0
        %10626 = vmatprep.subr.bf16.mxu0 0
        %10627 = vmatpush1.bf16.msra.mxu0 0
        %10628 = vmatprep.subr.bf16.mxu0 0
        %10629 = vmatpush1.bf16.msra.mxu0 0
        %10630 = vmatprep.subr.bf16.mxu0 0
        %10631 = vmatpush1.bf16.msra.mxu0 0
        %10632 = vmatprep.mubr.bf16.mxu0 0
        %10633 = vmatmul.mubr.bf16.gmra.mrb[0].mxu0 %v10598
        %v10634 = vpop.f32.mrb[0].mxu0
        %v10635 = vadd.f32 0.0, %v10634
        %v10636 = vpop.f32.mrb[0].mxu0
        %v10637 = vpop.f32.mrb[0].mxu0
        %v10638 = vpop.f32.mrb[0].mxu0
        %10639 = vdwg.mxu0
        %v10640 = vld [vmem:[#allocation4] sm:$0xff]
        %v10641 = vld [vmem:[#allocation4 + $0x8] sm:$0xff]
        %v10642 = vld [vmem:[#allocation4 + $0x10] sm:$0xff]
        %v10643 = vld [vmem:[#allocation4 + $0x18] sm:$0xff]
        %v10644 = vld [vmem:[#allocation4 + $0x20] sm:$0xff]
        %v10645 = vld [vmem:[#allocation4 + $0x28] sm:$0xff]
        %v10646 = vld [vmem:[#allocation4 + $0x30] sm:$0xff]
        %v10647 = vld [vmem:[#allocation4 + $0x38] sm:$0xff]
        %v10648 = vld [vmem:[#allocation4 + $0x40] sm:$0xff]
        %v10649 = vld [vmem:[#allocation4 + $0x48] sm:$0xff]
        %v10650 = vld [vmem:[#allocation4 + $0x50] sm:$0xff]
        %v10651 = vld [vmem:[#allocation4 + $0x58] sm:$0xff]
        %v10652 = vld [vmem:[#allocation4 + $0x60] sm:$0xff]
        %v10653 = vld [vmem:[#allocation4 + $0x68] sm:$0xff]
        %v10654 = vld [vmem:[#allocation4 + $0x70] sm:$0xff]
        %v10655 = vld [vmem:[#allocation4 + $0x78] sm:$0xff]
        %v10656 = vld [vmem:[%s6] sm:$0xf]
        %v10657 = vld [vmem:[%s6 + $0x4] sm:$0xf]
        %v10658 = vld [vmem:[%s6 + $0x8] sm:$0xf]
        %v10659 = vld [vmem:[%s6 + $0xc] sm:$0xf]
        %v10660 = vld [vmem:[%s6 + $0x10] sm:$0xf]
        %v10661 = vld [vmem:[%s6 + $0x14] sm:$0xf]
        %v10662 = vld [vmem:[%s6 + $0x18] sm:$0xf]
        %v10663 = vld [vmem:[%s6 + $0x1c] sm:$0xf]
        %v10664 = vld [vmem:[%s6 + $0x20] sm:$0xf]
        %v10665 = vld [vmem:[%s6 + $0x24] sm:$0xf]
        %v10666 = vld [vmem:[%s6 + $0x28] sm:$0xf]
        %v10667 = vld [vmem:[%s6 + $0x2c] sm:$0xf]
        %v10668 = vld [vmem:[%s6 + $0x30] sm:$0xf]
        %v10669 = vld [vmem:[%s6 + $0x34] sm:$0xf]
        %v10670 = vld [vmem:[%s6 + $0x38] sm:$0xf]
        %v10671 = vld [vmem:[%s6 + $0x3c] sm:$0xf]
        %v10672 = vlaneseq
        %v10673 = vshrl.u32 %v10672, 7
        %v10674 = vsub.s32 0, %v10673
        %v10675 = vrot.slane %v10635, %v10674
        %v10692 = vunpack.c.l.b16 %v10656
        %v10693 = vunpack.c.l.b16 %v10657
        %v10694 = vunpack.c.l.b16 %v10658
        %v10695 = vunpack.c.l.b16 %v10659
        %v10696 = vunpack.c.l.b16 %v10660
        %v10697 = vunpack.c.l.b16 %v10661
        %v10698 = vunpack.c.l.b16 %v10662
        %v10699 = vunpack.c.l.b16 %v10663
        %v10700 = vunpack.c.l.b16 %v10664
        %v10701 = vunpack.c.l.b16 %v10665
        %v10702 = vunpack.c.l.b16 %v10666
        %v10703 = vunpack.c.l.b16 %v10667
        %v10704 = vunpack.c.l.b16 %v10668
        %v10705 = vunpack.c.l.b16 %v10669
        %v10706 = vunpack.c.l.b16 %v10670
        %v10707 = vunpack.c.l.b16 %v10671
        %v10708 = vpack.c.b16 %v10693, %v10692
        %v10709 = vpack.c.b16 %v10695, %v10694
        %v10710 = vpack.c.b16 %v10697, %v10696
        %v10711 = vpack.c.b16 %v10699, %v10698
        %v10712 = vpack.c.b16 %v10701, %v10700
        %v10713 = vpack.c.b16 %v10703, %v10702
        %v10714 = vpack.c.b16 %v10705, %v10704
        %v10715 = vpack.c.b16 %v10707, %v10706
        %10724 = vmatprep.subr.bf16.mxu0 0
        %10725 = vmatpush1.bf16.msra.mxu0 %v10708
        %10726 = vmatprep.subr.bf16.mxu0 0
        %10727 = vmatpush1.bf16.msra.mxu0 %v10709
        %10728 = vmatprep.subr.bf16.mxu0 0
        %10729 = vmatpush1.bf16.msra.mxu0 %v10710
        %10730 = vmatprep.subr.bf16.mxu0 0
        %10731 = vmatpush1.bf16.msra.mxu0 %v10711
        %10732 = vmatprep.subr.bf16.mxu0 0
        %10733 = vmatpush1.bf16.msra.mxu0 %v10712
        %10734 = vmatprep.subr.bf16.mxu0 0
        %10735 = vmatpush1.bf16.msra.mxu0 %v10713
        %10736 = vmatprep.subr.bf16.mxu0 0
        %10737 = vmatpush1.bf16.msra.mxu0 %v10714
        %10738 = vmatprep.subr.bf16.mxu0 0
        %10739 = vmatpush1.bf16.msra.mxu0 %v10715
        %10740 = vmatprep.subr.bf16.mxu0 0
        %10741 = vmatpush1.bf16.msra.mxu0 0
        %10742 = vmatprep.subr.bf16.mxu0 0
        %10743 = vmatpush1.bf16.msra.mxu0 0
        %10744 = vmatprep.subr.bf16.mxu0 0
        %10745 = vmatpush1.bf16.msra.mxu0 0
        %10746 = vmatprep.subr.bf16.mxu0 0
        %10747 = vmatpush1.bf16.msra.mxu0 0
        %10748 = vmatprep.subr.bf16.mxu0 0
        %10749 = vmatpush1.bf16.msra.mxu0 0
        %10750 = vmatprep.subr.bf16.mxu0 0
        %10751 = vmatpush1.bf16.msra.mxu0 0
        %10752 = vmatprep.subr.bf16.mxu0 0
        %10753 = vmatpush1.bf16.msra.mxu0 0
        %10754 = vmatprep.subr.bf16.mxu0 0
        %10755 = vmatpush1.bf16.msra.mxu0 0
        %10756 = vmatprep.mubr.bf16.mxu0 0
        %10757 = vmatmul.mubr.bf16.gmra.mrb[0].mxu0 %v10640
        %v10758 = vpop.f32.mrb[0].mxu0
        %v10759 = vadd.f32 %v10675, %v10758
        %v10760 = vpop.f32.mrb[0].mxu0
        %v10761 = vpop.f32.mrb[0].mxu0
        %v10762 = vadd.f32 %v10675, %v10761
        %v10763 = vpop.f32.mrb[0].mxu0
        %10764 = vmatprep.mubr.bf16.mxu0 0
        %10765 = vmatmul.mubr.bf16.gmra.mrb[0].mxu0 %v10641
        %v10766 = vpop.f32.mrb[0].mxu0
        %v10767 = vadd.f32 %v10675, %v10766
        %v10768 = vpop.f32.mrb[0].mxu0
        %v10769 = vpop.f32.mrb[0].mxu0
        %v10770 = vadd.f32 %v10675, %v10769
        %v10771 = vpop.f32.mrb[0].mxu0
        %10772 = vmatprep.mubr.bf16.mxu0 0
        %10773 = vmatmul.mubr.bf16.gmra.mrb[0].mxu0 %v10642
        %v10774 = vpop.f32.mrb[0].mxu0
        %v10775 = vadd.f32 %v10675, %v10774
        %v10776 = vpop.f32.mrb[0].mxu0
        %v10777 = vpop.f32.mrb[0].mxu0
        %v10778 = vadd.f32 %v10675, %v10777
        %v10779 = vpop.f32.mrb[0].mxu0
        %10780 = vmatprep.mubr.bf16.mxu0 0
        %10781 = vmatmul.mubr.bf16.gmra.mrb[0].mxu0 %v10643
        %v10782 = vpop.f32.mrb[0].mxu0
        %v10783 = vadd.f32 %v10675, %v10782
        %v10784 = vpop.f32.mrb[0].mxu0
        %v10785 = vpop.f32.mrb[0].mxu0
        %v10786 = vadd.f32 %v10675, %v10785
        %v10787 = vpop.f32.mrb[0].mxu0
        %10788 = vmatprep.mubr.bf16.mxu0 0
        %10789 = vmatmul.mubr.bf16.gmra.mrb[0].mxu0 %v10644
        %v10790 = vpop.f32.mrb[0].mxu0
        %v10791 = vadd.f32 %v10675, %v10790
        %v10792 = vpop.f32.mrb[0].mxu0
        %v10793 = vpop.f32.mrb[0].mxu0
        %v10794 = vadd.f32 %v10675, %v10793
        %v10795 = vpop.f32.mrb[0].mxu0
        %10796 = vmatprep.mubr.bf16.mxu0 0
        %10797 = vmatmul.mubr.bf16.gmra.mrb[0].mxu0 %v10645
        %v10798 = vpop.f32.mrb[0].mxu0
        %v10799 = vadd.f32 %v10675, %v10798
        %v10800 = vpop.f32.mrb[0].mxu0
        %v10801 = vpop.f32.mrb[0].mxu0
        %v10802 = vadd.f32 %v10675, %v10801
        %v10803 = vpop.f32.mrb[0].mxu0
        %10804 = vmatprep.mubr.bf16.mxu0 0
        %10805 = vmatmul.mubr.bf16.gmra.mrb[0].mxu0 %v10646
        %v10806 = vpop.f32.mrb[0].mxu0
        %v10807 = vadd.f32 %v10675, %v10806
        %v10808 = vpop.f32.mrb[0].mxu0
        %v10809 = vpop.f32.mrb[0].mxu0
        %v10810 = vadd.f32 %v10675, %v10809
        %v10811 = vpop.f32.mrb[0].mxu0
        %10812 = vmatprep.mubr.bf16.mxu0 0
        %10813 = vmatmul.mubr.bf16.gmra.mrb[0].mxu0 %v10647
        %v10814 = vpop.f32.mrb[0].mxu0
        %v10815 = vadd.f32 %v10675, %v10814
        %v10816 = vpop.f32.mrb[0].mxu0
        %v10817 = vpop.f32.mrb[0].mxu0
        %v10818 = vadd.f32 %v10675, %v10817
        %v10819 = vpop.f32.mrb[0].mxu0
        %10820 = vmatprep.mubr.bf16.mxu0 0
        %10821 = vmatmul.mubr.bf16.gmra.mrb[0].mxu0 %v10648
        %v10822 = vpop.f32.mrb[0].mxu0
        %v10823 = vadd.f32 %v10675, %v10822
        %v10824 = vpop.f32.mrb[0].mxu0
        %v10825 = vpop.f32.mrb[0].mxu0
        %v10826 = vadd.f32 %v10675, %v10825
        %v10827 = vpop.f32.mrb[0].mxu0
        %10828 = vmatprep.mubr.bf16.mxu0 0
        %10829 = vmatmul.mubr.bf16.gmra.mrb[0].mxu0 %v10649
        %v10830 = vpop.f32.mrb[0].mxu0
        %v10831 = vadd.f32 %v10675, %v10830
        %v10832 = vpop.f32.mrb[0].mxu0
        %v10833 = vpop.f32.mrb[0].mxu0
        %v10834 = vadd.f32 %v10675, %v10833
        %v10835 = vpop.f32.mrb[0].mxu0
        %10836 = vmatprep.mubr.bf16.mxu0 0
        %10837 = vmatmul.mubr.bf16.gmra.mrb[0].mxu0 %v10650
        %v10838 = vpop.f32.mrb[0].mxu0
        %v10839 = vadd.f32 %v10675, %v10838
        %v10840 = vpop.f32.mrb[0].mxu0
        %v10841 = vpop.f32.mrb[0].mxu0
        %v10842 = vadd.f32 %v10675, %v10841
        %v10843 = vpop.f32.mrb[0].mxu0
        %10844 = vmatprep.mubr.bf16.mxu0 0
        %10845 = vmatmul.mubr.bf16.gmra.mrb[0].mxu0 %v10651
        %v10846 = vpop.f32.mrb[0].mxu0
        %v10847 = vadd.f32 %v10675, %v10846
        %v10848 = vpop.f32.mrb[0].mxu0
        %v10849 = vpop.f32.mrb[0].mxu0
        %v10850 = vadd.f32 %v10675, %v10849
        %v10851 = vpop.f32.mrb[0].mxu0
        %10852 = vmatprep.mubr.bf16.mxu0 0
        %10853 = vmatmul.mubr.bf16.gmra.mrb[0].mxu0 %v10652
        %v10854 = vpop.f32.mrb[0].mxu0
        %v10855 = vadd.f32 %v10675, %v10854
        %v10856 = vpop.f32.mrb[0].mxu0
        %v10857 = vpop.f32.mrb[0].mxu0
        %v10858 = vadd.f32 %v10675, %v10857
        %v10859 = vpop.f32.mrb[0].mxu0
        %10860 = vmatprep.mubr.bf16.mxu0 0
        %10861 = vmatmul.mubr.bf16.gmra.mrb[0].mxu0 %v10653
        %v10862 = vpop.f32.mrb[0].mxu0
        %v10863 = vadd.f32 %v10675, %v10862
        %v10864 = vpop.f32.mrb[0].mxu0
        %v10865 = vpop.f32.mrb[0].mxu0
        %v10866 = vadd.f32 %v10675, %v10865
        %v10867 = vpop.f32.mrb[0].mxu0
        %10868 = vmatprep.mubr.bf16.mxu0 0
        %10869 = vmatmul.mubr.bf16.gmra.mrb[0].mxu0 %v10654
        %v10870 = vpop.f32.mrb[0].mxu0
        %v10871 = vadd.f32 %v10675, %v10870
        %v10872 = vpop.f32.mrb[0].mxu0
        %v10873 = vpop.f32.mrb[0].mxu0
        %v10874 = vadd.f32 %v10675, %v10873
        %v10875 = vpop.f32.mrb[0].mxu0
        %10876 = vmatprep.mubr.bf16.mxu0 0
        %10877 = vmatmul.mubr.bf16.gmra.mrb[0].mxu0 %v10655
        %v10878 = vpop.f32.mrb[0].mxu0
        %v10879 = vadd.f32 %v10675, %v10878
        %v10880 = vpop.f32.mrb[0].mxu0
        %v10881 = vpop.f32.mrb[0].mxu0
        %v10882 = vadd.f32 %v10675, %v10881
        %v10883 = vpop.f32.mrb[0].mxu0
        %10884 = vdwg.mxu0
        %v10885 = vlaneseq
        %v10886 = vshrl.u32 %v10885, 7
        %v10887 = vsub.s32 5, %v10886
        %v10888 = vrot.slane %v971, %v10887
        %v10889 = vmul.f32 %v10759, %v10888
        %v10890 = vmul.f32 %v10762, %v10888
        %v10891 = vmul.f32 %v10767, %v10888
        %v10892 = vmul.f32 %v10770, %v10888
        %v10893 = vmul.f32 %v10775, %v10888
        %v10894 = vmul.f32 %v10778, %v10888
        %v10895 = vmul.f32 %v10783, %v10888
        %v10896 = vmul.f32 %v10786, %v10888
        %v10897 = vmul.f32 %v10791, %v10888
        %v10898 = vmul.f32 %v10794, %v10888
        %v10899 = vmul.f32 %v10799, %v10888
        %v10900 = vmul.f32 %v10802, %v10888
        %v10901 = vmul.f32 %v10807, %v10888
        %v10902 = vmul.f32 %v10810, %v10888
        %v10903 = vmul.f32 %v10815, %v10888
        %v10904 = vmul.f32 %v10818, %v10888
        %v10905 = vmul.f32 %v10823, %v10888
        %v10906 = vmul.f32 %v10826, %v10888
        %v10907 = vmul.f32 %v10831, %v10888
        %v10908 = vmul.f32 %v10834, %v10888
        %v10909 = vmul.f32 %v10839, %v10888
        %v10910 = vmul.f32 %v10842, %v10888
        %v10911 = vmul.f32 %v10847, %v10888
        %v10912 = vmul.f32 %v10850, %v10888
        %v10913 = vmul.f32 %v10855, %v10888
        %v10914 = vmul.f32 %v10858, %v10888
        %v10915 = vmul.f32 %v10863, %v10888
        %v10916 = vmul.f32 %v10866, %v10888
        %v10917 = vmul.f32 %v10871, %v10888
        %v10918 = vmul.f32 %v10874, %v10888
        %v10919 = vmul.f32 %v10879, %v10888
        %v10920 = vmul.f32 %v10882, %v10888
        %v10921 = vlaneseq
        %v10922 = vshrl.u32 %v10921, 7
        %v10923 = vsub.s32 5, %v10922
        %v10924 = vrot.slane %v972, %v10923
        %v10925 = vadd.f32 %v10889, %v10924
        %v10926 = vadd.f32 %v10890, %v10924
        %v10927 = vadd.f32 %v10891, %v10924
        %v10928 = vadd.f32 %v10892, %v10924
        %v10929 = vadd.f32 %v10893, %v10924
        %v10930 = vadd.f32 %v10894, %v10924
        %v10931 = vadd.f32 %v10895, %v10924
        %v10932 = vadd.f32 %v10896, %v10924
        %v10933 = vadd.f32 %v10897, %v10924
        %v10934 = vadd.f32 %v10898, %v10924
        %v10935 = vadd.f32 %v10899, %v10924
        %v10936 = vadd.f32 %v10900, %v10924
        %v10937 = vadd.f32 %v10901, %v10924
        %v10938 = vadd.f32 %v10902, %v10924
        %v10939 = vadd.f32 %v10903, %v10924
        %v10940 = vadd.f32 %v10904, %v10924
        %v10941 = vadd.f32 %v10905, %v10924
        %v10942 = vadd.f32 %v10906, %v10924
        %v10943 = vadd.f32 %v10907, %v10924
        %v10944 = vadd.f32 %v10908, %v10924
        %v10945 = vadd.f32 %v10909, %v10924
        %v10946 = vadd.f32 %v10910, %v10924
        %v10947 = vadd.f32 %v10911, %v10924
        %v10948 = vadd.f32 %v10912, %v10924
        %v10949 = vadd.f32 %v10913, %v10924
        %v10950 = vadd.f32 %v10914, %v10924
        %v10951 = vadd.f32 %v10915, %v10924
        %v10952 = vadd.f32 %v10916, %v10924
        %v10953 = vadd.f32 %v10917, %v10924
        %v10954 = vadd.f32 %v10918, %v10924
        %v10955 = vadd.f32 %v10919, %v10924
        %v10956 = vadd.f32 %v10920, %v10924
        %v10957 = vmax.f32 %v10925, 0.0
        %v10958 = vmax.f32 %v10926, 0.0
        %v10959 = vmax.f32 %v10927, 0.0
        %v10960 = vmax.f32 %v10928, 0.0
        %v10961 = vmax.f32 %v10929, 0.0
        %v10962 = vmax.f32 %v10930, 0.0
        %v10963 = vmax.f32 %v10931, 0.0
        %v10964 = vmax.f32 %v10932, 0.0
        %v10965 = vmax.f32 %v10933, 0.0
        %v10966 = vmax.f32 %v10934, 0.0
        %v10967 = vmax.f32 %v10935, 0.0
        %v10968 = vmax.f32 %v10936, 0.0
        %v10969 = vmax.f32 %v10937, 0.0
        %v10970 = vmax.f32 %v10938, 0.0
        %v10971 = vmax.f32 %v10939, 0.0
        %v10972 = vmax.f32 %v10940, 0.0
        %v10973 = vmax.f32 %v10941, 0.0
        %v10974 = vmax.f32 %v10942, 0.0
        %v10975 = vmax.f32 %v10943, 0.0
        %v10976 = vmax.f32 %v10944, 0.0
        %v10977 = vmax.f32 %v10945, 0.0
        %v10978 = vmax.f32 %v10946, 0.0
        %v10979 = vmax.f32 %v10947, 0.0
        %v10980 = vmax.f32 %v10948, 0.0
        %v10981 = vmax.f32 %v10949, 0.0
        %v10982 = vmax.f32 %v10950, 0.0
        %v10983 = vmax.f32 %v10951, 0.0
        %v10984 = vmax.f32 %v10952, 0.0
        %v10985 = vmax.f32 %v10953, 0.0
        %v10986 = vmax.f32 %v10954, 0.0
        %v10987 = vmax.f32 %v10955, 0.0
        %v10988 = vmax.f32 %v10956, 0.0
        %10989 = vst.msk [vmem:[%s352] sm:$0xff] %vm1356, %v10957
        %10990 = vst.msk [vmem:[%s352 + $0x8] sm:$0xff] %vm1356, %v10958
        %10991 = vst.msk [vmem:[%s352 + $0x10] sm:$0xff] %vm1356, %v10959
        %10992 = vst.msk [vmem:[%s352 + $0x18] sm:$0xff] %vm1356, %v10960
        %10993 = vst.msk [vmem:[%s352 + $0x20] sm:$0xff] %vm1356, %v10961
        %10994 = vst.msk [vmem:[%s352 + $0x28] sm:$0xff] %vm1356, %v10962
        %10995 = vst.msk [vmem:[%s352 + $0x30] sm:$0xff] %vm1356, %v10963
        %10996 = vst.msk [vmem:[%s352 + $0x38] sm:$0xff] %vm1356, %v10964
        %10997 = vst.msk [vmem:[%s352 + $0x40] sm:$0xff] %vm1356, %v10965
        %10998 = vst.msk [vmem:[%s352 + $0x48] sm:$0xff] %vm1356, %v10966
        %10999 = vst.msk [vmem:[%s352 + $0x50] sm:$0xff] %vm1356, %v10967
        %11000 = vst.msk [vmem:[%s352 + $0x58] sm:$0xff] %vm1356, %v10968
        %11001 = vst.msk [vmem:[%s352 + $0x60] sm:$0xff] %vm1356, %v10969
        %11002 = vst.msk [vmem:[%s352 + $0x68] sm:$0xff] %vm1356, %v10970
        %11003 = vst.msk [vmem:[%s352 + $0x70] sm:$0xff] %vm1356, %v10971
        %11004 = vst.msk [vmem:[%s352 + $0x78] sm:$0xff] %vm1356, %v10972
        %11005 = vst.msk [vmem:[%s352 + $0x80] sm:$0xff] %vm1356, %v10973
        %11006 = vst.msk [vmem:[%s352 + $0x88] sm:$0xff] %vm1356, %v10974
        %11007 = vst.msk [vmem:[%s352 + $0x90] sm:$0xff] %vm1356, %v10975
        %11008 = vst.msk [vmem:[%s352 + $0x98] sm:$0xff] %vm1356, %v10976
        %11009 = vst.msk [vmem:[%s352 + $0xa0] sm:$0xff] %vm1356, %v10977
        %11010 = vst.msk [vmem:[%s352 + $0xa8] sm:$0xff] %vm1356, %v10978
        %11011 = vst.msk [vmem:[%s352 + $0xb0] sm:$0xff] %vm1356, %v10979
        %11012 = vst.msk [vmem:[%s352 + $0xb8] sm:$0xff] %vm1356, %v10980
        %11013 = vst.msk [vmem:[%s352 + $0xc0] sm:$0xff] %vm1356, %v10981
        %11014 = vst.msk [vmem:[%s352 + $0xc8] sm:$0xff] %vm1356, %v10982
        %11015 = vst.msk [vmem:[%s352 + $0xd0] sm:$0xff] %vm1356, %v10983
        %11016 = vst.msk [vmem:[%s352 + $0xd8] sm:$0xff] %vm1356, %v10984
        %11017 = vst.msk [vmem:[%s352 + $0xe0] sm:$0xff] %vm1356, %v10985
        %11018 = vst.msk [vmem:[%s352 + $0xe8] sm:$0xff] %vm1356, %v10986
        %11019 = vst.msk [vmem:[%s352 + $0xf0] sm:$0xff] %vm1356, %v10987
        %11020 = vst.msk [vmem:[%s352 + $0xf8] sm:$0xff] %vm1356, %v10988
        %s11021 = sand.u32 %s247, 1
        %s11022 = scalar_lea.sflag [#allocation6], %s11021
        %s11023 = sand.u32 %s247, 1
        %s11024 = smul.addr %s11023, 256
        %s11025 = scalar_lea.vmem [#allocation5], %s11024
        // Predicated region
        $region61: #{tpu_custom_call.1} parent=59 // pred_check
          %p11026 = pneg %p257
        $region62: #{tpu_custom_call.1} parent=59 // pred_check_branch
          %11028 = sbr.rel (%p11026) target = $region64
        $region63: #{tpu_custom_call.1} parent=59 // pred_region
          %s11030 = ssub.s32 4096, 4096
          %11031 = vsyncadd %s11022, %s11030
          %s11032 = smul.addr %s24, 32
          %s11033 = smul.addr %s11032, 128
          %s11034 = scalar_lea.hbm %s10, %s11033
          %s11035 = sshll.u32 %s11025, 4
          %s11036 = int_to_ptr.vmem [resolvable:$true] %s11035
          %11041 = dma.vmem_to_hbm [thread:$0]  %s11036, 4096, %s11034, %s11022, 128, 128, 8
        $region64: #{tpu_custom_call.1} parent=59 // pred_fallthru
          _
      $region60: #{tpu_custom_call.1} parent=5 // pred_fallthru
        _
      %p11042 = scmp.le.s32.totalorder 2, %s19
      // Predicated region
      $region65: #{tpu_custom_call.1} parent=5 // pred_check
        %p11043 = pneg %p11042
      $region66: #{tpu_custom_call.1} parent=5 // pred_check_branch
        %11045 = sbr.rel (%p11043) target = $region68
      $region67: #{tpu_custom_call.1} parent=5 // pred_region
        %s11046 = ssub.s32 %s19, 2
        // Predicated region
        $region69: #{tpu_custom_call.1} parent=67 // pred_check
          %p11047 = pneg %p263
        $region70: #{tpu_custom_call.1} parent=67 // pred_check_branch
          %11049 = sbr.rel (%p11047) target = $region72
        $region71: #{tpu_custom_call.1} parent=67 // pred_region
          %s11050 = sand.u32 %s248, 1
          %s11051 = scalar_lea.sflag [#allocation6], %s11050
          %s11052 = sand.u32 %s248, 1
          %s11053 = smul.addr %s11052, 256
          %s11054 = scalar_lea.vmem [#allocation5], %s11053
          %11055 = dma.done %s11051, 4096
        $region72: #{tpu_custom_call.1} parent=67 // pred_fallthru
          _
      $region68: #{tpu_custom_call.1} parent=5 // pred_fallthru
        _
    $region6: #{tpu_custom_call.1} parent=1 // loop_footer
      %s23 = sadd.s32 1, %s19
    $region7: #{tpu_custom_call.1} parent=1 // loop_footer_branch
      %18 = sbr.rel target = $region3
    $region8: #{tpu_custom_call.1} parent=1 // loop_exit
      _
    %11056 = vsyncpa [#allocation6], 1
    %s11057 = scalar_lea.sflag [#allocation6], 1
    %11058 = vsyncpa %s11057, 1

</llo_original>
